<compile_context>
chip_gen: v5e
topology: v5e:2x2
jax: 0.10.0
libtpu: 0.0.40
codegen_flags: <defaults>
</compile_context>

<pallas_src>
import math
import functools
from dataclasses import dataclass

import jax
import jax.numpy as jnp
from jax.experimental import pallas as pl
from jax.experimental.pallas import tpu as pltpu


# ----------------------------- config ---------------------------------------


@dataclass
class GPTConfig:
    block_size: int = 256
    vocab_size: int = 256
    n_layer: int = 2
    n_head: int = 2
    n_embd: int = 128


_VMEM_LIMIT = 64 * 1024 * 1024  # explicit scoped-VMEM cap (fits v7x's 64 MiB)


def _pick(dim, pref, step):
    """Largest tile <= pref (multiple of `step`) dividing dim, else full dim."""
    if dim <= pref:
        return dim
    for cand in range(pref, step - 1, -step):
        if dim % cand == 0:
            return cand
    # TODO(synk): for non-divisible dims (e.g. vocab=50257) pad to a multiple
    # of 128 instead of falling back to a full-extent block.
    return dim


# ----------------------------- Pallas kernels -------------------------------


def _ln_matmul_kernel(x_ref, g_ref, b_ref, w_ref, bias_ref, o_ref, *, gelu):
    """Fused LayerNorm -> (x_hat*g+b) @ W + bias [-> GELU(tanh)].  K untiled."""
    x = x_ref[...]                                   # (tm, K) f32
    mu = jnp.mean(x, axis=-1, keepdims=True)
    xc = x - mu
    var = jnp.mean(xc * xc, axis=-1, keepdims=True)
    xhat = xc * jax.lax.rsqrt(var + 1e-5)
    h = xhat * g_ref[...] + b_ref[...]               # (tm, K) f32
    y = jnp.dot(h.astype(jnp.bfloat16), w_ref[...],  # bf16 x bf16 -> f32 acc
                preferred_element_type=jnp.float32) + bias_ref[...]
    if gelu:
        c = math.sqrt(2.0 / math.pi)
        y = 0.5 * y * (1.0 + jnp.tanh(c * (y + 0.044715 * y * y * y)))
    o_ref[...] = y


def _matmul_resid_kernel(x_ref, w_ref, bias_ref, res_ref, o_ref, acc_ref):
    """K-tiled o = x @ W + bias + residual with f32 accumulator scratch."""
    @pl.when(pl.program_id(2) == 0)
    def _():
        acc_ref[...] = jnp.zeros_like(acc_ref)

    acc_ref[...] += jnp.dot(x_ref[...].astype(jnp.bfloat16), w_ref[...],
                            preferred_element_type=jnp.float32)

    @pl.when(pl.program_id(2) == pl.num_programs(2) - 1)
    def _():
        o_ref[...] = acc_ref[...] + bias_ref[...] + res_ref[...]


def _matmul_acc_kernel(x_ref, w_ref, o_ref, acc_ref):
    """K-tiled bias-free matmul (lm_head) with f32 accumulator scratch."""
    @pl.when(pl.program_id(2) == 0)
    def _():
        acc_ref[...] = jnp.zeros_like(acc_ref)

    acc_ref[...] += jnp.dot(x_ref[...].astype(jnp.bfloat16), w_ref[...],
                            preferred_element_type=jnp.float32)

    @pl.when(pl.program_id(2) == pl.num_programs(2) - 1)
    def _():
        o_ref[...] = acc_ref[...]


def _layernorm_kernel(x_ref, g_ref, b_ref, o_ref):
    x = x_ref[...]
    mu = jnp.mean(x, axis=-1, keepdims=True)
    xc = x - mu
    var = jnp.mean(xc * xc, axis=-1, keepdims=True)
    o_ref[...] = xc * jax.lax.rsqrt(var + 1e-5) * g_ref[...] + b_ref[...]


def _flash_attn_kernel(q_ref, k_ref, v_ref, o_ref, m_sc, l_sc, acc_sc,
                       *, n_head, scale):
    """Causal flash attention.  One batch element per (b, qi) pair, all heads
    fused on the lane axis; KV tiles stream along the last ('arbitrary') grid
    axis with an online softmax; fully masked tiles are skipped."""
    qi = pl.program_id(1)
    kv = pl.program_id(2)
    nkv = pl.num_programs(2)
    tq = q_ref.shape[0]
    tkv = k_ref.shape[0]
    C = o_ref.shape[-1]
    hd = C // n_head

    @pl.when(kv == 0)
    def _():
        m_sc[...] = jnp.full_like(m_sc, -1e30)
        l_sc[...] = jnp.zeros_like(l_sc)
        acc_sc[...] = jnp.zeros_like(acc_sc)

    # Skip KV tiles that lie entirely above the causal diagonal for this q tile.
    @pl.when(kv * tkv <= qi * tq + (tq - 1))
    def _():
        q = q_ref[...]                                  # (tq, C)  f32
        k = k_ref[...]                                  # (tkv, C) f32
        v = v_ref[...]                                  # (tkv, C) f32
        row = qi * tq + jax.lax.broadcasted_iota(jnp.int32, (tq, tkv), 0)
        col = kv * tkv + jax.lax.broadcasted_iota(jnp.int32, (tq, tkv), 1)
        mask = col <= row
        for h in range(n_head):                         # static unroll
            sl = slice(h * hd, (h + 1) * hd)
            qh = q[:, sl].astype(jnp.bfloat16)
            kh = k[:, sl].astype(jnp.bfloat16)
            vh = v[:, sl].astype(jnp.bfloat16)
            s = jax.lax.dot_general(                    # q @ k.T -> (tq, tkv)
                qh, kh, (((1,), (1,)), ((), ())),
                preferred_element_type=jnp.float32) * scale
            s = jnp.where(mask, s, -1e30)
            m_prev = m_sc[h]                            # (tq, 1)
            l_prev = l_sc[h]
            m_new = jnp.maximum(m_prev, jnp.max(s, axis=-1, keepdims=True))
            a = jnp.exp(m_prev - m_new)
            p = jnp.exp(s - m_new)
            l_sc[h] = a * l_prev + jnp.sum(p, axis=-1, keepdims=True)
            acc_sc[h] = a * acc_sc[h] + jnp.dot(
                p.astype(jnp.bfloat16), vh, preferred_element_type=jnp.float32)
            m_sc[h] = m_new

    @pl.when(kv == nkv - 1)
    def _():
        for h in range(n_head):
            inv = pl.reciprocal(l_sc[h], approx=True)   # EUP reciprocal
            o_ref[:, h * hd:(h + 1) * hd] = acc_sc[h] * inv


# ----------------------------- kernel wrappers -------------------------------


def ln_linear(x, g, b, w, bias, *, gelu=False, tm=128, tn=256):
    """Fused LayerNorm + Linear(+GELU).  x:(M,K) f32, w:(K,N) bf16 -> (M,N) f32."""
    M, K = x.shape
    N = w.shape[1]
    tm = _pick(M, tm, 8)
    tn = _pick(N, tn, 128)
    return pl.pallas_call(
        functools.partial(_ln_matmul_kernel, gelu=gelu),
        out_shape=jax.ShapeDtypeStruct((M, N), jnp.float32),
        grid_spec=pltpu.PrefetchScalarGridSpec(
            num_scalar_prefetch=0,
            grid=(M // tm, N // tn),
            in_specs=[
                pl.BlockSpec((tm, K), lambda i, j: (i, 0)),
                pl.BlockSpec((1, K), lambda i, j: (0, 0)),
                pl.BlockSpec((1, K), lambda i, j: (0, 0)),
                pl.BlockSpec((K, tn), lambda i, j: (0, j)),
                pl.BlockSpec((1, tn), lambda i, j: (0, j)),
            ],
            out_specs=pl.BlockSpec((tm, tn), lambda i, j: (i, j)),
        ),
        compiler_params=pltpu.CompilerParams(
            dimension_semantics=("parallel", "parallel"),
            vmem_limit_bytes=_VMEM_LIMIT,
        ),
    )(x, g.reshape(1, K), b.reshape(1, K), w, bias.reshape(1, N))


def linear_bias_residual(x, w, bias, res, *, tm=128, tn=256, tk=256):
    """o = x @ W + bias + res, tiled over (M, N, K) with accumulator scratch."""
    M, K = x.shape
    N = w.shape[1]
    tm = _pick(M, tm, 8)
    tn = _pick(N, tn, 128)
    tk = _pick(K, tk, 128)
    return pl.pallas_call(
        _matmul_resid_kernel,
        out_shape=jax.ShapeDtypeStruct((M, N), jnp.float32),
        grid_spec=pltpu.PrefetchScalarGridSpec(
            num_scalar_prefetch=0,
            grid=(M // tm, N // tn, K // tk),
            in_specs=[
                pl.BlockSpec((tm, tk), lambda i, j, k: (i, k)),
                pl.BlockSpec((tk, tn), lambda i, j, k: (k, j)),
                pl.BlockSpec((1, tn), lambda i, j, k: (0, j)),
                pl.BlockSpec((tm, tn), lambda i, j, k: (i, j)),
            ],
            out_specs=pl.BlockSpec((tm, tn), lambda i, j, k: (i, j)),
            scratch_shapes=[pltpu.VMEM((tm, tn), jnp.float32)],
        ),
        compiler_params=pltpu.CompilerParams(
            dimension_semantics=("parallel", "parallel", "arbitrary"),
            vmem_limit_bytes=_VMEM_LIMIT,
        ),
    )(x, w, bias.reshape(1, N), res)


def linear_nobias(x, w, *, tm=128, tn=512, tk=256):
    """o = x @ W (lm_head).  Tiled over rows / vocab / K; no dummy bias."""
    M, K = x.shape
    N = w.shape[1]
    tm = _pick(M, tm, 8)
    tn = _pick(N, tn, 128)
    tk = _pick(K, tk, 128)
    return pl.pallas_call(
        _matmul_acc_kernel,
        out_shape=jax.ShapeDtypeStruct((M, N), jnp.float32),
        grid_spec=pltpu.PrefetchScalarGridSpec(
            num_scalar_prefetch=0,
            grid=(M // tm, N // tn, K // tk),
            in_specs=[
                pl.BlockSpec((tm, tk), lambda i, j, k: (i, k)),
                pl.BlockSpec((tk, tn), lambda i, j, k: (k, j)),
            ],
            out_specs=pl.BlockSpec((tm, tn), lambda i, j, k: (i, j)),
            scratch_shapes=[pltpu.VMEM((tm, tn), jnp.float32)],
        ),
        compiler_params=pltpu.CompilerParams(
            dimension_semantics=("parallel", "parallel", "arbitrary"),
            vmem_limit_bytes=_VMEM_LIMIT,
        ),
    )(x, w)


def layernorm(x, g, b, *, tm=256):
    """Standalone LayerNorm (ln_f), row-tiled."""
    M, C = x.shape
    tm = _pick(M, tm, 8)
    return pl.pallas_call(
        _layernorm_kernel,
        out_shape=jax.ShapeDtypeStruct((M, C), jnp.float32),
        grid_spec=pltpu.PrefetchScalarGridSpec(
            num_scalar_prefetch=0,
            grid=(M // tm,),
            in_specs=[
                pl.BlockSpec((tm, C), lambda i: (i, 0)),
                pl.BlockSpec((1, C), lambda i: (0, 0)),
                pl.BlockSpec((1, C), lambda i: (0, 0)),
            ],
            out_specs=pl.BlockSpec((tm, C), lambda i: (i, 0)),
        ),
        compiler_params=pltpu.CompilerParams(
            dimension_semantics=("parallel",),
            vmem_limit_bytes=_VMEM_LIMIT,
        ),
    )(x, g.reshape(1, C), b.reshape(1, C))


def causal_attention(qkv, n_head, *, tq=128, tkv=128):
    """qkv: (B, T, 3C) fused projection output -> (B, T, C) attention output.

    The q/k/v split happens via index_map block offsets on the last dim of
    qkv (block index 0/1/2), so no jnp.split / transpose glue is needed.
    """
    B, T, C3 = qkv.shape
    C = C3 // 3
    hd = C // n_head
    tq = _pick(T, tq, 8)
    tkv = _pick(T, tkv, 8)
    scale = 1.0 / math.sqrt(hd)

    q_spec = pl.BlockSpec((pl.Squeezed(), tq, C), lambda b, qi, kv: (b, qi, 0))
    k_spec = pl.BlockSpec((pl.Squeezed(), tkv, C), lambda b, qi, kv: (b, kv, 1))
    v_spec = pl.BlockSpec((pl.Squeezed(), tkv, C), lambda b, qi, kv: (b, kv, 2))
    o_spec = pl.BlockSpec((pl.Squeezed(), tq, C), lambda b, qi, kv: (b, qi, 0))

    return pl.pallas_call(
        functools.partial(_flash_attn_kernel, n_head=n_head, scale=scale),
        out_shape=jax.ShapeDtypeStruct((B, T, C), jnp.float32),
        grid_spec=pltpu.PrefetchScalarGridSpec(
            num_scalar_prefetch=0,
            grid=(B, T // tq, T // tkv),
            in_specs=[q_spec, k_spec, v_spec],
            out_specs=o_spec,
            scratch_shapes=[
                pltpu.VMEM((n_head, tq, 1), jnp.float32),   # running max
                pltpu.VMEM((n_head, tq, 1), jnp.float32),   # running sum
                pltpu.VMEM((n_head, tq, hd), jnp.float32),  # output accumulator
            ],
        ),
        compiler_params=pltpu.CompilerParams(
            dimension_semantics=("parallel", "parallel", "arbitrary"),
            vmem_limit_bytes=_VMEM_LIMIT,
        ),
    )(qkv, qkv, qkv)


# ----------------------------- parameter init --------------------------------


def init_params(key, cfg: GPTConfig):
    std = 0.02
    scaled_std = std * (2 * cfg.n_layer) ** (-0.5)  # SCALE_INIT layers
    C = cfg.n_embd
    bf16 = jnp.bfloat16

    keys = iter(jax.random.split(key, 2 + 4 * cfg.n_layer))

    wte = jax.random.normal(next(keys), (cfg.vocab_size, C), jnp.float32) * std
    params = {
        "wte": wte,                                   # (vocab, C) f32, for gather
        "wte_t": wte.T.astype(bf16),                  # tied lm_head weight, pre-transposed
        "wpe": jax.random.normal(next(keys), (cfg.block_size, C), jnp.float32) * std,
        "ln_f_g": jnp.ones((C,), jnp.float32),
        "ln_f_b": jnp.zeros((C,), jnp.float32),
        "blocks": [],
    }
    for _ in range(cfg.n_layer):
        blk = {
            "ln1_g": jnp.ones((C,), jnp.float32),
            "ln1_b": jnp.zeros((C,), jnp.float32),
            "attn_w": (jax.random.normal(next(keys), (C, 3 * C)) * std).astype(bf16),
            "attn_b": jnp.zeros((3 * C,), jnp.float32),
            "attn_proj_w": (jax.random.normal(next(keys), (C, C)) * scaled_std).astype(bf16),
            "attn_proj_b": jnp.zeros((C,), jnp.float32),
            "ln2_g": jnp.ones((C,), jnp.float32),
            "ln2_b": jnp.zeros((C,), jnp.float32),
            "fc_w": (jax.random.normal(next(keys), (C, 4 * C)) * std).astype(bf16),
            "fc_b": jnp.zeros((4 * C,), jnp.float32),
            "proj_w": (jax.random.normal(next(keys), (4 * C, C)) * scaled_std).astype(bf16),
            "proj_b": jnp.zeros((C,), jnp.float32),
        }
        params["blocks"].append(blk)
    return params


# ----------------------------- model forward ---------------------------------


def block_forward(p, x2d, B, T, cfg: GPTConfig):
    C = cfg.n_embd

    # x = x + c_proj(attn(ln1(x)))        -- ln1 fused into c_attn, residual fused into c_proj
    qkv = ln_linear(x2d, p["ln1_g"], p["ln1_b"], p["attn_w"], p["attn_b"])   # (B*T, 3C)
    y = causal_attention(qkv.reshape(B, T, 3 * C), cfg.n_head)              # (B, T, C)
    x2d = linear_bias_residual(y.reshape(B * T, C),
                               p["attn_proj_w"], p["attn_proj_b"], x2d)

    # x = x + c_proj(gelu(c_fc(ln2(x))))  -- ln2+GELU fused into c_fc, residual fused into c_proj
    h = ln_linear(x2d, p["ln2_g"], p["ln2_b"], p["fc_w"], p["fc_b"], gelu=True)  # (B*T, 4C)
    x2d = linear_bias_residual(h, p["proj_w"], p["proj_b"], x2d)
    return x2d


def gpt_forward(params, idx, cfg: GPTConfig):
    B, T = idx.shape
    assert T <= cfg.block_size
    C = cfg.n_embd

    # embeddings (gather is glue in plain JAX)
    tok_emb = jnp.take(params["wte"], idx, axis=0)          # (B, T, C)
    pos_emb = params["wpe"][:T]                             # (T, C)
    x = (tok_emb + pos_emb[None, :, :]).reshape(B * T, C)

    for blk in params["blocks"]:
        x = block_forward(blk, x, B, T, cfg)

    x = layernorm(x, params["ln_f_g"], params["ln_f_b"])
    # lm_head: weight tied to wte (pre-transposed at init), no bias
    logits = linear_nobias(x, params["wte_t"])              # (B*T, vocab)
    logits = logits.reshape(B, T, cfg.vocab_size)
    # TODO(synk): targets / cross-entropy loss path not implemented (targets=None).
    return logits, None


# ----------------------------- main ------------------------------------------

if __name__ == "__main__":
    cfg = GPTConfig(block_size=256, vocab_size=256, n_layer=2, n_head=2, n_embd=128)

    key = jax.random.PRNGKey(0)
    pkey, ikey = jax.random.split(key)
    params = init_params(pkey, cfg)

    B, T = 2, 256
    idx = jax.random.randint(ikey, (B, T), 0, cfg.vocab_size, dtype=jnp.int32)

    fwd = jax.jit(functools.partial(gpt_forward, cfg=cfg))
    logits, loss = fwd(params, idx)
    jax.block_until_ready(logits)

    assert logits.shape == (B, T, cfg.vocab_size)
    assert logits.dtype == jnp.float32
    assert bool(jnp.all(jnp.isfinite(logits)))
    print("KERNEL_OK")
</pallas_src>

<mosaic_0001>
module attributes {stable_mosaic.version = 11 : i64} {
  func.func @_ln_matmul_kernel(%arg0: i32, %arg1: i32, %arg2: memref<128x128xf32, #tpu.memory_space<vmem>>, %arg3: memref<1x128xf32, #tpu.memory_space<vmem>>, %arg4: memref<1x128xf32, #tpu.memory_space<vmem>>, %arg5: memref<128x128xbf16, #tpu.memory_space<vmem>>, %arg6: memref<1x128xf32, #tpu.memory_space<vmem>>, %arg7: memref<128x128xf32, #tpu.memory_space<vmem>>) attributes {dimension_semantics = [#tpu.dimension_semantics<parallel>, #tpu.dimension_semantics<parallel>], iteration_bounds = array<i64: 4, 3>, scalar_prefetch = 0 : i64, scratch_operands = 0 : i64, tpu.core_type = #tpu.core_type<tc>, window_params = [{transform_indices = @transform_0, window_bounds = array<i64: 128, 128>}, {pipeline_mode = #tpu.pipeline_mode<synchronous>, transform_indices = @transform_1, window_bounds = array<i64: 1, 128>}, {pipeline_mode = #tpu.pipeline_mode<synchronous>, transform_indices = @transform_2, window_bounds = array<i64: 1, 128>}, {transform_indices = @transform_3, window_bounds = array<i64: 128, 128>}, {transform_indices = @transform_4, window_bounds = array<i64: 1, 128>}, {transform_indices = @transform_5, window_bounds = array<i64: 128, 128>}]} {
    %c0 = arith.constant 0 : index
    %c0_0 = arith.constant 0 : index
    %0 = vector.load %arg2[%c0, %c0_0] : memref<128x128xf32, #tpu.memory_space<vmem>>, vector<128x128xf32>
    %cst = arith.constant dense<0.000000e+00> : vector<128xf32>
    %1 = vector.multi_reduction <add>, %0, %cst [1] : vector<128x128xf32> to vector<128xf32>
    %2 = vector.shape_cast %1 : vector<128xf32> to vector<128x1xf32>
    %cst_1 = arith.constant 1.280000e+02 : f32
    %3 = vector.broadcast %cst_1 : f32 to vector<128x1xf32>
    %4 = arith.divf %2, %3 : vector<128x1xf32>
    %5 = vector.broadcast %4 : vector<128x1xf32> to vector<128x128xf32>
    %6 = arith.subf %0, %5 : vector<128x128xf32>
    %7 = arith.mulf %6, %6 : vector<128x128xf32>
    %cst_2 = arith.constant dense<0.000000e+00> : vector<128xf32>
    %8 = vector.multi_reduction <add>, %7, %cst_2 [1] : vector<128x128xf32> to vector<128xf32>
    %9 = vector.shape_cast %8 : vector<128xf32> to vector<128x1xf32>
    %cst_3 = arith.constant 1.280000e+02 : f32
    %10 = vector.broadcast %cst_3 : f32 to vector<128x1xf32>
    %11 = arith.divf %9, %10 : vector<128x1xf32>
    %cst_4 = arith.constant 9.99999974E-6 : f32
    %12 = vector.broadcast %cst_4 : f32 to vector<128x1xf32>
    %13 = arith.addf %11, %12 : vector<128x1xf32>
    %14 = math.rsqrt %13 : vector<128x1xf32>
    %15 = vector.broadcast %14 : vector<128x1xf32> to vector<128x128xf32>
    %16 = arith.mulf %6, %15 : vector<128x128xf32>
    %c0_5 = arith.constant 0 : index
    %c0_6 = arith.constant 0 : index
    %17 = vector.load %arg3[%c0_5, %c0_6] : memref<1x128xf32, #tpu.memory_space<vmem>>, vector<1x128xf32>
    %18 = vector.broadcast %17 : vector<1x128xf32> to vector<128x128xf32>
    %19 = arith.mulf %16, %18 : vector<128x128xf32>
    %c0_7 = arith.constant 0 : index
    %c0_8 = arith.constant 0 : index
    %20 = vector.load %arg4[%c0_7, %c0_8] : memref<1x128xf32, #tpu.memory_space<vmem>>, vector<1x128xf32>
    %21 = vector.broadcast %20 : vector<1x128xf32> to vector<128x128xf32>
    %22 = arith.addf %19, %21 : vector<128x128xf32>
    %23 = arith.truncf %22 : vector<128x128xf32> to vector<128x128xbf16>
    %c0_9 = arith.constant 0 : index
    %c0_10 = arith.constant 0 : index
    %24 = vector.load %arg5[%c0_9, %c0_10] : memref<128x128xbf16, #tpu.memory_space<vmem>>, vector<128x128xbf16>
    %cst_11 = arith.constant dense<0.000000e+00> : vector<128x128xf32>
    %25 = tpu.matmul %23, %24, %cst_11 {dimension_numbers = #tpu.dot_dimension_numbers<[1], [0], [0], [1], [0, 0, 1, 1], [], []>} : vector<128x128xbf16>, vector<128x128xbf16>, vector<128x128xf32> -> vector<128x128xf32>
    %c0_12 = arith.constant 0 : index
    %c0_13 = arith.constant 0 : index
    %26 = vector.load %arg6[%c0_12, %c0_13] : memref<1x128xf32, #tpu.memory_space<vmem>>, vector<1x128xf32>
    %27 = vector.broadcast %26 : vector<1x128xf32> to vector<128x128xf32>
    %28 = arith.addf %25, %27 : vector<128x128xf32>
    %c0_14 = arith.constant 0 : index
    %c0_15 = arith.constant 0 : index
    %29 = vector.load %arg7[%c0_14, %c0_15] : memref<128x128xf32, #tpu.memory_space<vmem>>, vector<128x128xf32>
    tpu.vector_store %arg7[%c0_14, %c0_15], %28 {strides = array<i32>} : memref<128x128xf32, #tpu.memory_space<vmem>>, vector<128x128xf32>,
    return
  }
  func.func @transform_0(%arg0: i32, %arg1: i32) -> (i32, i32) {
    %c0_i32 = arith.constant 0 : i32
    %c0_i32_0 = arith.constant 0 : i32
    return %arg0, %c0_i32 : i32, i32
  }
  func.func @transform_1(%arg0: i32, %arg1: i32) -> (i32, i32) {
    %c0_i32 = arith.constant 0 : i32
    %c0_i32_0 = arith.constant 0 : i32
    %c0_i32_1 = arith.constant 0 : i32
    return %c0_i32, %c0_i32_0 : i32, i32
  }
  func.func @transform_2(%arg0: i32, %arg1: i32) -> (i32, i32) {
    %c0_i32 = arith.constant 0 : i32
    %c0_i32_0 = arith.constant 0 : i32
    %c0_i32_1 = arith.constant 0 : i32
    return %c0_i32, %c0_i32_0 : i32, i32
  }
  func.func @transform_3(%arg0: i32, %arg1: i32) -> (i32, i32) {
    %c0_i32 = arith.constant 0 : i32
    %c0_i32_0 = arith.constant 0 : i32
    return %c0_i32, %arg1 : i32, i32
  }
  func.func @transform_4(%arg0: i32, %arg1: i32) -> (i32, i32) {
    %c0_i32 = arith.constant 0 : i32
    %c0_i32_0 = arith.constant 0 : i32
    return %c0_i32, %arg1 : i32, i32
  }
  func.func @transform_5(%arg0: i32, %arg1: i32) -> (i32, i32) {
    %c0_i32 = arith.constant 0 : i32
    return %arg0, %arg1 : i32, i32
  }
}

module attributes {stable_mosaic.version = 11 : i64} {
  func.func @_matmul_resid_kernel(%arg0: i32, %arg1: i32, %arg2: i32, %arg3: memref<128x128xf32, #tpu.memory_space<vmem>>, %arg4: memref<128x128xbf16, #tpu.memory_space<vmem>>, %arg5: memref<1x128xf32, #tpu.memory_space<vmem>>, %arg6: memref<128x128xf32, #tpu.memory_space<vmem>>, %arg7: memref<128x128xf32, #tpu.memory_space<vmem>>, %arg8: memref<128x128xf32, #tpu.memory_space<vmem>>) attributes {dimension_semantics = [#tpu.dimension_semantics<parallel>, #tpu.dimension_semantics<parallel>, #tpu.dimension_semantics<arbitrary>], iteration_bounds = array<i64: 4, 1, 1>, scalar_prefetch = 0 : i64, scratch_operands = 1 : i64, tpu.core_type = #tpu.core_type<tc>, window_params = [{transform_indices = @transform_0, window_bounds = array<i64: 128, 128>}, {transform_indices = @transform_1, window_bounds = array<i64: 128, 128>}, {transform_indices = @transform_2, window_bounds = array<i64: 1, 128>}, {transform_indices = @transform_3, window_bounds = array<i64: 128, 128>}, {transform_indices = @transform_4, window_bounds = array<i64: 128, 128>}]} {
    %c0_i32 = arith.constant 0 : i32
    %0 = arith.cmpi eq, %arg2, %c0_i32 : i32
    %1 = arith.extui %0 : i1 to i32
    %c0_i32_0 = arith.constant 0 : i32
    %2 = arith.cmpi ne, %1, %c0_i32_0 : i32
    scf.if %2 {
      %cst_10 = arith.constant 0.000000e+00 : f32
      %13 = vector.broadcast %cst_10 : f32 to vector<128x128xf32>
      %c0_11 = arith.constant 0 : index
      %c0_12 = arith.constant 0 : index
      %14 = vector.load %arg8[%c0_11, %c0_12] : memref<128x128xf32, #tpu.memory_space<vmem>>, vector<128x128xf32>
      tpu.vector_store %arg8[%c0_11, %c0_12], %13 {strides = array<i32>} : memref<128x128xf32, #tpu.memory_space<vmem>>, vector<128x128xf32>,
    } else {
    }
    %c0 = arith.constant 0 : index
    %c0_1 = arith.constant 0 : index
    %3 = vector.load %arg8[%c0, %c0_1] : memref<128x128xf32, #tpu.memory_space<vmem>>, vector<128x128xf32>
    %c0_2 = arith.constant 0 : index
    %c0_3 = arith.constant 0 : index
    %4 = vector.load %arg3[%c0_2, %c0_3] : memref<128x128xf32, #tpu.memory_space<vmem>>, vector<128x128xf32>
    %5 = arith.truncf %4 : vector<128x128xf32> to vector<128x128xbf16>
    %c0_4 = arith.constant 0 : index
    %c0_5 = arith.constant 0 : index
    %6 = vector.load %arg4[%c0_4, %c0_5] : memref<128x128xbf16, #tpu.memory_space<vmem>>, vector<128x128xbf16>
    %cst = arith.constant dense<0.000000e+00> : vector<128x128xf32>
    %7 = tpu.matmul %5, %6, %cst {dimension_numbers = #tpu.dot_dimension_numbers<[1], [0], [0], [1], [0, 0, 1, 1], [], []>} : vector<128x128xbf16>, vector<128x128xbf16>, vector<128x128xf32> -> vector<128x128xf32>
    %8 = arith.addf %3, %7 : vector<128x128xf32>
    %c0_6 = arith.constant 0 : index
    %c0_7 = arith.constant 0 : index
    %9 = vector.load %arg8[%c0_6, %c0_7] : memref<128x128xf32, #tpu.memory_space<vmem>>, vector<128x128xf32>
    tpu.vector_store %arg8[%c0_6, %c0_7], %8 {strides = array<i32>} : memref<128x128xf32, #tpu.memory_space<vmem>>, vector<128x128xf32>,
    %c0_i32_8 = arith.constant 0 : i32
    %10 = arith.cmpi eq, %arg2, %c0_i32_8 : i32
    %11 = arith.extui %10 : i1 to i32
    %c0_i32_9 = arith.constant 0 : i32
    %12 = arith.cmpi ne, %11, %c0_i32_9 : i32
    scf.if %12 {
      %c0_10 = arith.constant 0 : index
      %c0_11 = arith.constant 0 : index
      %13 = vector.load %arg8[%c0_10, %c0_11] : memref<128x128xf32, #tpu.memory_space<vmem>>, vector<128x128xf32>
      %c0_12 = arith.constant 0 : index
      %c0_13 = arith.constant 0 : index
      %14 = vector.load %arg5[%c0_12, %c0_13] : memref<1x128xf32, #tpu.memory_space<vmem>>, vector<1x128xf32>
      %15 = vector.broadcast %14 : vector<1x128xf32> to vector<128x128xf32>
      %16 = arith.addf %13, %15 : vector<128x128xf32>
      %c0_14 = arith.constant 0 : index
      %c0_15 = arith.constant 0 : index
      %17 = vector.load %arg6[%c0_14, %c0_15] : memref<128x128xf32, #tpu.memory_space<vmem>>, vector<128x128xf32>
      %18 = arith.addf %16, %17 : vector<128x128xf32>
      %c0_16 = arith.constant 0 : index
      %c0_17 = arith.constant 0 : index
      %19 = vector.load %arg7[%c0_16, %c0_17] : memref<128x128xf32, #tpu.memory_space<vmem>>, vector<128x128xf32>
      tpu.vector_store %arg7[%c0_16, %c0_17], %18 {strides = array<i32>} : memref<128x128xf32, #tpu.memory_space<vmem>>, vector<128x128xf32>,
    } else {
    }
    return
  }
  func.func @transform_0(%arg0: i32, %arg1: i32, %arg2: i32) -> (i32, i32) {
    %c0_i32 = arith.constant 0 : i32
    return %arg0, %arg2 : i32, i32
  }
  func.func @transform_1(%arg0: i32, %arg1: i32, %arg2: i32) -> (i32, i32) {
    %c0_i32 = arith.constant 0 : i32
    return %arg2, %arg1 : i32, i32
  }
  func.func @transform_2(%arg0: i32, %arg1: i32, %arg2: i32) -> (i32, i32) {
    %c0_i32 = arith.constant 0 : i32
    %c0_i32_0 = arith.constant 0 : i32
    return %c0_i32, %arg1 : i32, i32
  }
  func.func @transform_3(%arg0: i32, %arg1: i32, %arg2: i32) -> (i32, i32) {
    %c0_i32 = arith.constant 0 : i32
    return %arg0, %arg1 : i32, i32
  }
  func.func @transform_4(%arg0: i32, %arg1: i32, %arg2: i32) -> (i32, i32) {
    %c0_i32 = arith.constant 0 : i32
    return %arg0, %arg1 : i32, i32
  }
}

module attributes {stable_mosaic.version = 11 : i64} {
  func.func @_flash_attn_kernel(%arg0: i32, %arg1: i32, %arg2: i32, %arg3: memref<1x128x128xf32, #tpu.memory_space<vmem>>, %arg4: memref<1x128x128xf32, #tpu.memory_space<vmem>>, %arg5: memref<1x128x128xf32, #tpu.memory_space<vmem>>, %arg6: memref<1x128x128xf32, #tpu.memory_space<vmem>>, %arg7: memref<2x128x1xf32, #tpu.memory_space<vmem>>, %arg8: memref<2x128x1xf32, #tpu.memory_space<vmem>>, %arg9: memref<2x128x64xf32, #tpu.memory_space<vmem>>) attributes {dimension_semantics = [#tpu.dimension_semantics<parallel>, #tpu.dimension_semantics<parallel>, #tpu.dimension_semantics<arbitrary>], iteration_bounds = array<i64: 2, 2, 2>, scalar_prefetch = 0 : i64, scratch_operands = 3 : i64, tpu.core_type = #tpu.core_type<tc>, window_params = [{transform_indices = @transform_0, window_bounds = array<i64: 1, 128, 128>}, {transform_indices = @transform_1, window_bounds = array<i64: 1, 128, 128>}, {transform_indices = @transform_2, window_bounds = array<i64: 1, 128, 128>}, {transform_indices = @transform_3, window_bounds = array<i64: 1, 128, 128>}]} {
    %c0_i32 = arith.constant 0 : i32
    %0 = arith.cmpi eq, %arg2, %c0_i32 : i32
    %1 = arith.extui %0 : i1 to i32
    %c0_i32_0 = arith.constant 0 : i32
    %2 = arith.cmpi ne, %1, %c0_i32_0 : i32
    scf.if %2 {
      %cst = arith.constant -1.000000e+30 : f32
      %12 = vector.broadcast %cst : f32 to vector<2x128x1xf32>
      %c0 = arith.constant 0 : index
      %c0_4 = arith.constant 0 : index
      %c0_5 = arith.constant 0 : index
      %13 = vector.load %arg7[%c0, %c0_4, %c0_5] : memref<2x128x1xf32, #tpu.memory_space<vmem>>, vector<2x128x1xf32>
      tpu.vector_store %arg7[%c0, %c0_4, %c0_5], %12 {strides = array<i32>} : memref<2x128x1xf32, #tpu.memory_space<vmem>>, vector<2x128x1xf32>,
      %cst_6 = arith.constant 0.000000e+00 : f32
      %14 = vector.broadcast %cst_6 : f32 to vector<2x128x1xf32>
      %c0_7 = arith.constant 0 : index
      %c0_8 = arith.constant 0 : index
      %c0_9 = arith.constant 0 : index
      %15 = vector.load %arg8[%c0_7, %c0_8, %c0_9] : memref<2x128x1xf32, #tpu.memory_space<vmem>>, vector<2x128x1xf32>
      tpu.vector_store %arg8[%c0_7, %c0_8, %c0_9], %14 {strides = array<i32>} : memref<2x128x1xf32, #tpu.memory_space<vmem>>, vector<2x128x1xf32>,
      %cst_10 = arith.constant 0.000000e+00 : f32
      %16 = vector.broadcast %cst_10 : f32 to vector<2x128x64xf32>
      %c0_11 = arith.constant 0 : index
      %c0_12 = arith.constant 0 : index
      %c0_13 = arith.constant 0 : index
      %17 = vector.load %arg9[%c0_11, %c0_12, %c0_13] : memref<2x128x64xf32, #tpu.memory_space<vmem>>, vector<2x128x64xf32>
      tpu.vector_store %arg9[%c0_11, %c0_12, %c0_13], %16 {strides = array<i32>} : memref<2x128x64xf32, #tpu.memory_space<vmem>>, vector<2x128x64xf32>,
    } else {
    }
    %c128_i32 = arith.constant 128 : i32
    %3 = arith.muli %arg2, %c128_i32 : i32
    %c128_i32_1 = arith.constant 128 : i32
    %4 = arith.muli %arg1, %c128_i32_1 : i32
    %c127_i32 = arith.constant 127 : i32
    %5 = arith.addi %4, %c127_i32 : i32
    %6 = arith.cmpi sle, %3, %5 : i32
    %7 = arith.extui %6 : i1 to i32
    %c0_i32_2 = arith.constant 0 : i32
    %8 = arith.cmpi ne, %7, %c0_i32_2 : i32
    scf.if %8 {
      %c0 = arith.constant 0 : index
      %c0_4 = arith.constant 0 : index
      %c0_5 = arith.constant 0 : index
      %12 = vector.load %arg3[%c0, %c0_4, %c0_5] : memref<1x128x128xf32, #tpu.memory_space<vmem>>, vector<1x128x128xf32>
      %13 = vector.shape_cast %12 : vector<1x128x128xf32> to vector<128x128xf32>
      %c0_6 = arith.constant 0 : index
      %c0_7 = arith.constant 0 : index
      %c0_8 = arith.constant 0 : index
      %14 = vector.load %arg4[%c0_6, %c0_7, %c0_8] : memref<1x128x128xf32, #tpu.memory_space<vmem>>, vector<1x128x128xf32>
      %15 = vector.shape_cast %14 : vector<1x128x128xf32> to vector<128x128xf32>
      %c0_9 = arith.constant 0 : index
      %c0_10 = arith.constant 0 : index
      %c0_11 = arith.constant 0 : index
      %16 = vector.load %arg5[%c0_9, %c0_10, %c0_11] : memref<1x128x128xf32, #tpu.memory_space<vmem>>, vector<1x128x128xf32>
      %17 = vector.shape_cast %16 : vector<1x128x128xf32> to vector<128x128xf32>
      %c128_i32_12 = arith.constant 128 : i32
      %18 = arith.muli %arg1, %c128_i32_12 : i32
      %19 = tpu.iota {dimensions = array<i32: 0>} : vector<128x128xi32>
      %20 = vector.broadcast %18 : i32 to vector<128x128xi32>
      %21 = arith.addi %20, %19 : vector<128x128xi32>
      %c128_i32_13 = arith.constant 128 : i32
      %22 = arith.muli %arg2, %c128_i32_13 : i32
      %23 = tpu.iota {dimensions = array<i32: 1>} : vector<128x128xi32>
      %24 = vector.broadcast %22 : i32 to vector<128x128xi32>
      %25 = arith.addi %24, %23 : vector<128x128xi32>
      %26 = arith.cmpi sle, %25, %21 : vector<128x128xi32>
      %27 = vector.extract_strided_slice %13 {offsets = [0, 0], sizes = [128, 64], strides = [1, 1]} : vector<128x128xf32> to vector<128x64xf32>
      %28 = arith.truncf %27 : vector<128x64xf32> to vector<128x64xbf16>
      %29 = vector.extract_strided_slice %15 {offsets = [0, 0], sizes = [128, 64], strides = [1, 1]} : vector<128x128xf32> to vector<128x64xf32>
      %30 = arith.truncf %29 : vector<128x64xf32> to vector<128x64xbf16>
      %31 = vector.extract_strided_slice %17 {offsets = [0, 0], sizes = [128, 64], strides = [1, 1]} : vector<128x128xf32> to vector<128x64xf32>
      %32 = arith.truncf %31 : vector<128x64xf32> to vector<128x64xbf16>
      %cst = arith.constant dense<0.000000e+00> : vector<128x128xf32>
      %33 = tpu.matmul %28, %30, %cst {dimension_numbers = #tpu.dot_dimension_numbers<[1], [1], [0], [0], [0, 0, 1, 0], [], []>} : vector<128x64xbf16>, vector<128x64xbf16>, vector<128x128xf32> -> vector<128x128xf32>
      %cst_14 = arith.constant 1.250000e-01 : f32
      %34 = vector.broadcast %cst_14 : f32 to vector<128x128xf32>
      %35 = arith.mulf %33, %34 : vector<128x128xf32>
      %cst_15 = arith.constant -1.000000e+30 : f32
      %36 = vector.broadcast %cst_15 : f32 to vector<128x128xf32>
      %37 = arith.select %26, %35, %36 : vector<128x128xi1>, vector<128x128xf32>
      %c0_16 = arith.constant 0 : index
      %c0_17 = arith.constant 0 : index
      %c0_18 = arith.constant 0 : index
      %38 = vector.load %arg7[%c0_16, %c0_17, %c0_18] : memref<2x128x1xf32, #tpu.memory_space<vmem>>, vector<1x128x1xf32>
      %39 = vector.shape_cast %38 : vector<1x128x1xf32> to vector<128x1xf32>
      %c0_19 = arith.constant 0 : index
      %c0_20 = arith.constant 0 : index
      %c0_21 = arith.constant 0 : index
      %40 = vector.load %arg8[%c0_19, %c0_20, %c0_21] : memref<2x128x1xf32, #tpu.memory_space<vmem>>, vector<1x128x1xf32>
      %41 = vector.shape_cast %40 : vector<1x128x1xf32> to vector<128x1xf32>
      %cst_22 = arith.constant dense<0xFF800000> : vector<128xf32>
      %42 = vector.multi_reduction <maximumf>, %37, %cst_22 [1] : vector<128x128xf32> to vector<128xf32>
      %43 = vector.shape_cast %42 : vector<128xf32> to vector<128x1xf32>
      %44 = arith.maximumf %39, %43 : vector<128x1xf32>
      %45 = arith.subf %39, %44 : vector<128x1xf32>
      %46 = math.exp %45 : vector<128x1xf32>
      %47 = vector.broadcast %44 : vector<128x1xf32> to vector<128x128xf32>
      %48 = arith.subf %37, %47 : vector<128x128xf32>
      %49 = math.exp %48 : vector<128x128xf32>
      %50 = arith.mulf %46, %41 : vector<128x1xf32>
      %cst_23 = arith.constant dense<0.000000e+00> : vector<128xf32>
      %51 = vector.multi_reduction <add>, %49, %cst_23 [1] : vector<128x128xf32> to vector<128xf32>
      %52 = vector.shape_cast %51 : vector<128xf32> to vector<128x1xf32>
      %53 = arith.addf %50, %52 : vector<128x1xf32>
      %c0_24 = arith.constant 0 : index
      %c0_25 = arith.constant 0 : index
      %c0_26 = arith.constant 0 : index
      %54 = vector.load %arg8[%c0_24, %c0_25, %c0_26] : memref<2x128x1xf32, #tpu.memory_space<vmem>>, vector<1x128x1xf32>
      %55 = vector.shape_cast %54 : vector<1x128x1xf32> to vector<128x1xf32>
      %56 = vector.shape_cast %53 : vector<128x1xf32> to vector<1x128x1xf32>
      tpu.vector_store %arg8[%c0_24, %c0_25, %c0_26], %56 {strides = array<i32>} : memref<2x128x1xf32, #tpu.memory_space<vmem>>, vector<1x128x1xf32>,
      %c0_27 = arith.constant 0 : index
      %c0_28 = arith.constant 0 : index
      %c0_29 = arith.constant 0 : index
      %57 = vector.load %arg9[%c0_27, %c0_28, %c0_29] : memref<2x128x64xf32, #tpu.memory_space<vmem>>, vector<1x128x64xf32>
      %58 = vector.shape_cast %57 : vector<1x128x64xf32> to vector<128x64xf32>
      %59 = vector.broadcast %46 : vector<128x1xf32> to vector<128x64xf32>
      %60 = arith.mulf %59, %58 : vector<128x64xf32>
      %61 = arith.truncf %49 : vector<128x128xf32> to vector<128x128xbf16>
      %cst_30 = arith.constant dense<0.000000e+00> : vector<128x64xf32>
      %62 = tpu.matmul %61, %32, %cst_30 {dimension_numbers = #tpu.dot_dimension_numbers<[1], [0], [0], [1], [0, 0, 1, 1], [], []>} : vector<128x128xbf16>, vector<128x64xbf16>, vector<128x64xf32> -> vector<128x64xf32>
      %63 = arith.addf %60, %62 : vector<128x64xf32>
      %c0_31 = arith.constant 0 : index
      %c0_32 = arith.constant 0 : index
      %c0_33 = arith.constant 0 : index
      %64 = vector.load %arg9[%c0_31, %c0_32, %c0_33] : memref<2x128x64xf32, #tpu.memory_space<vmem>>, vector<1x128x64xf32>
      %65 = vector.shape_cast %64 : vector<1x128x64xf32> to vector<128x64xf32>
      %66 = vector.shape_cast %63 : vector<128x64xf32> to vector<1x128x64xf32>
      tpu.vector_store %arg9[%c0_31, %c0_32, %c0_33], %66 {strides = array<i32>} : memref<2x128x64xf32, #tpu.memory_space<vmem>>, vector<1x128x64xf32>,
      %c0_34 = arith.constant 0 : index
      %c0_35 = arith.constant 0 : index
      %c0_36 = arith.constant 0 : index
      %67 = vector.load %arg7[%c0_34, %c0_35, %c0_36] : memref<2x128x1xf32, #tpu.memory_space<vmem>>, vector<1x128x1xf32>
      %68 = vector.shape_cast %67 : vector<1x128x1xf32> to vector<128x1xf32>
      %69 = vector.shape_cast %44 : vector<128x1xf32> to vector<1x128x1xf32>
      tpu.vector_store %arg7[%c0_34, %c0_35, %c0_36], %69 {strides = array<i32>} : memref<2x128x1xf32, #tpu.memory_space<vmem>>, vector<1x128x1xf32>,
      %70 = vector.extract_strided_slice %13 {offsets = [0, 64], sizes = [128, 64], strides = [1, 1]} : vector<128x128xf32> to vector<128x64xf32>
      %71 = arith.truncf %70 : vector<128x64xf32> to vector<128x64xbf16>
      %72 = vector.extract_strided_slice %15 {offsets = [0, 64], sizes = [128, 64], strides = [1, 1]} : vector<128x128xf32> to vector<128x64xf32>
      %73 = arith.truncf %72 : vector<128x64xf32> to vector<128x64xbf16>
      %74 = vector.extract_strided_slice %17 {offsets = [0, 64], sizes = [128, 64], strides = [1, 1]} : vector<128x128xf32> to vector<128x64xf32>
      %75 = arith.truncf %74 : vector<128x64xf32> to vector<128x64xbf16>
      %cst_37 = arith.constant dense<0.000000e+00> : vector<128x128xf32>
      %76 = tpu.matmul %71, %73, %cst_37 {dimension_numbers = #tpu.dot_dimension_numbers<[1], [1], [0], [0], [0, 0, 1, 0], [], []>} : vector<128x64xbf16>, vector<128x64xbf16>, vector<128x128xf32> -> vector<128x128xf32>
      %cst_38 = arith.constant 1.250000e-01 : f32
      %77 = vector.broadcast %cst_38 : f32 to vector<128x128xf32>
      %78 = arith.mulf %76, %77 : vector<128x128xf32>
      %cst_39 = arith.constant -1.000000e+30 : f32
      %79 = vector.broadcast %cst_39 : f32 to vector<128x128xf32>
      %80 = arith.select %26, %78, %79 : vector<128x128xi1>, vector<128x128xf32>
      %c1 = arith.constant 1 : index
      %c0_40 = arith.constant 0 : index
      %c0_41 = arith.constant 0 : index
      %81 = vector.load %arg7[%c1, %c0_40, %c0_41] : memref<2x128x1xf32, #tpu.memory_space<vmem>>, vector<1x128x1xf32>
      %82 = vector.shape_cast %81 : vector<1x128x1xf32> to vector<128x1xf32>
      %c1_42 = arith.constant 1 : index
      %c0_43 = arith.constant 0 : index
      %c0_44 = arith.constant 0 : index
      %83 = vector.load %arg8[%c1_42, %c0_43, %c0_44] : memref<2x128x1xf32, #tpu.memory_space<vmem>>, vector<1x128x1xf32>
      %84 = vector.shape_cast %83 : vector<1x128x1xf32> to vector<128x1xf32>
      %cst_45 = arith.constant dense<0xFF800000> : vector<128xf32>
      %85 = vector.multi_reduction <maximumf>, %80, %cst_45 [1] : vector<128x128xf32> to vector<128xf32>
      %86 = vector.shape_cast %85 : vector<128xf32> to vector<128x1xf32>
      %87 = arith.maximumf %82, %86 : vector<128x1xf32>
      %88 = arith.subf %82, %87 : vector<128x1xf32>
      %89 = math.exp %88 : vector<128x1xf32>
      %90 = vector.broadcast %87 : vector<128x1xf32> to vector<128x128xf32>
      %91 = arith.subf %80, %90 : vector<128x128xf32>
      %92 = math.exp %91 : vector<128x128xf32>
      %93 = arith.mulf %89, %84 : vector<128x1xf32>
      %cst_46 = arith.constant dense<0.000000e+00> : vector<128xf32>
      %94 = vector.multi_reduction <add>, %92, %cst_46 [1] : vector<128x128xf32> to vector<128xf32>
      %95 = vector.shape_cast %94 : vector<128xf32> to vector<128x1xf32>
      %96 = arith.addf %93, %95 : vector<128x1xf32>
      %c1_47 = arith.constant 1 : index
      %c0_48 = arith.constant 0 : index
      %c0_49 = arith.constant 0 : index
      %97 = vector.load %arg8[%c1_47, %c0_48, %c0_49] : memref<2x128x1xf32, #tpu.memory_space<vmem>>, vector<1x128x1xf32>
      %98 = vector.shape_cast %97 : vector<1x128x1xf32> to vector<128x1xf32>
      %99 = vector.shape_cast %96 : vector<128x1xf32> to vector<1x128x1xf32>
      tpu.vector_store %arg8[%c1_47, %c0_48, %c0_49], %99 {strides = array<i32>} : memref<2x128x1xf32, #tpu.memory_space<vmem>>, vector<1x128x1xf32>,
      %c1_50 = arith.constant 1 : index
      %c0_51 = arith.constant 0 : index
      %c0_52 = arith.constant 0 : index
      %100 = vector.load %arg9[%c1_50, %c0_51, %c0_52] : memref<2x128x64xf32, #tpu.memory_space<vmem>>, vector<1x128x64xf32>
      %101 = vector.shape_cast %100 : vector<1x128x64xf32> to vector<128x64xf32>
      %102 = vector.broadcast %89 : vector<128x1xf32> to vector<128x64xf32>
      %103 = arith.mulf %102, %101 : vector<128x64xf32>
      %104 = arith.truncf %92 : vector<128x128xf32> to vector<128x128xbf16>
      %cst_53 = arith.constant dense<0.000000e+00> : vector<128x64xf32>
      %105 = tpu.matmul %104, %75, %cst_53 {dimension_numbers = #tpu.dot_dimension_numbers<[1], [0], [0], [1], [0, 0, 1, 1], [], []>} : vector<128x128xbf16>, vector<128x64xbf16>, vector<128x64xf32> -> vector<128x64xf32>
      %106 = arith.addf %103, %105 : vector<128x64xf32>
      %c1_54 = arith.constant 1 : index
      %c0_55 = arith.constant 0 : index
      %c0_56 = arith.constant 0 : index
      %107 = vector.load %arg9[%c1_54, %c0_55, %c0_56] : memref<2x128x64xf32, #tpu.memory_space<vmem>>, vector<1x128x64xf32>
      %108 = vector.shape_cast %107 : vector<1x128x64xf32> to vector<128x64xf32>
      %109 = vector.shape_cast %106 : vector<128x64xf32> to vector<1x128x64xf32>
      tpu.vector_store %arg9[%c1_54, %c0_55, %c0_56], %109 {strides = array<i32>} : memref<2x128x64xf32, #tpu.memory_space<vmem>>, vector<1x128x64xf32>,
      %c1_57 = arith.constant 1 : index
      %c0_58 = arith.constant 0 : index
      %c0_59 = arith.constant 0 : index
      %110 = vector.load %arg7[%c1_57, %c0_58, %c0_59] : memref<2x128x1xf32, #tpu.memory_space<vmem>>, vector<1x128x1xf32>
      %111 = vector.shape_cast %110 : vector<1x128x1xf32> to vector<128x1xf32>
      %112 = vector.shape_cast %87 : vector<128x1xf32> to vector<1x128x1xf32>
      tpu.vector_store %arg7[%c1_57, %c0_58, %c0_59], %112 {strides = array<i32>} : memref<2x128x1xf32, #tpu.memory_space<vmem>>, vector<1x128x1xf32>,
    } else {
    }
    %c1_i32 = arith.constant 1 : i32
    %9 = arith.cmpi eq, %arg2, %c1_i32 : i32
    %10 = arith.extui %9 : i1 to i32
    %c0_i32_3 = arith.constant 0 : i32
    %11 = arith.cmpi ne, %10, %c0_i32_3 : i32
    scf.if %11 {
      %c0 = arith.constant 0 : index
      %c0_4 = arith.constant 0 : index
      %c0_5 = arith.constant 0 : index
      %12 = vector.load %arg8[%c0, %c0_4, %c0_5] : memref<2x128x1xf32, #tpu.memory_space<vmem>>, vector<1x128x1xf32>
      %13 = vector.shape_cast %12 : vector<1x128x1xf32> to vector<128x1xf32>
      %14 = tpu.reciprocal %13 {approx = true} : vector<128x1xf32> -> vector<128x1xf32>
      %c0_6 = arith.constant 0 : index
      %c0_7 = arith.constant 0 : index
      %c0_8 = arith.constant 0 : index
      %15 = vector.load %arg9[%c0_6, %c0_7, %c0_8] : memref<2x128x64xf32, #tpu.memory_space<vmem>>, vector<1x128x64xf32>
      %16 = vector.shape_cast %15 : vector<1x128x64xf32> to vector<128x64xf32>
      %17 = vector.broadcast %14 : vector<128x1xf32> to vector<128x64xf32>
      %18 = arith.mulf %16, %17 : vector<128x64xf32>
      %c0_9 = arith.constant 0 : index
      %c0_10 = arith.constant 0 : index
      %c0_11 = arith.constant 0 : index
      %19 = vector.load %arg6[%c0_9, %c0_10, %c0_11] : memref<1x128x128xf32, #tpu.memory_space<vmem>>, vector<1x128x64xf32>
      %20 = vector.shape_cast %19 : vector<1x128x64xf32> to vector<128x64xf32>
      %21 = vector.shape_cast %18 : vector<128x64xf32> to vector<1x128x64xf32>
      tpu.vector_store %arg6[%c0_9, %c0_10, %c0_11], %21 {strides = array<i32>} : memref<1x128x128xf32, #tpu.memory_space<vmem>>, vector<1x128x64xf32>,
      %c1 = arith.constant 1 : index
      %c0_12 = arith.constant 0 : index
      %c0_13 = arith.constant 0 : index
      %22 = vector.load %arg8[%c1, %c0_12, %c0_13] : memref<2x128x1xf32, #tpu.memory_space<vmem>>, vector<1x128x1xf32>
      %23 = vector.shape_cast %22 : vector<1x128x1xf32> to vector<128x1xf32>
      %24 = tpu.reciprocal %23 {approx = true} : vector<128x1xf32> -> vector<128x1xf32>
      %c1_14 = arith.constant 1 : index
      %c0_15 = arith.constant 0 : index
      %c0_16 = arith.constant 0 : index
      %25 = vector.load %arg9[%c1_14, %c0_15, %c0_16] : memref<2x128x64xf32, #tpu.memory_space<vmem>>, vector<1x128x64xf32>
      %26 = vector.shape_cast %25 : vector<1x128x64xf32> to vector<128x64xf32>
      %27 = vector.broadcast %24 : vector<128x1xf32> to vector<128x64xf32>
      %28 = arith.mulf %26, %27 : vector<128x64xf32>
      %c0_17 = arith.constant 0 : index
      %c0_18 = arith.constant 0 : index
      %c64 = arith.constant 64 : index
      %29 = vector.load %arg6[%c0_17, %c0_18, %c64] : memref<1x128x128xf32, #tpu.memory_space<vmem>>, vector<1x128x64xf32>
      %30 = vector.shape_cast %29 : vector<1x128x64xf32> to vector<128x64xf32>
      %31 = vector.shape_cast %28 : vector<128x64xf32> to vector<1x128x64xf32>
      tpu.vector_store %arg6[%c0_17, %c0_18, %c64], %31 {strides = array<i32>} : memref<1x128x128xf32, #tpu.memory_space<vmem>>, vector<1x128x64xf32>,
    } else {
    }
    return
  }
  func.func @transform_0(%arg0: i32, %arg1: i32, %arg2: i32) -> (i32, i32, i32) {
    %c0_i32 = arith.constant 0 : i32
    %c0_i32_0 = arith.constant 0 : i32
    return %arg0, %arg1, %c0_i32 : i32, i32, i32
  }
  func.func @transform_1(%arg0: i32, %arg1: i32, %arg2: i32) -> (i32, i32, i32) {
    %c1_i32 = arith.constant 1 : i32
    %c0_i32 = arith.constant 0 : i32
    return %arg0, %arg2, %c1_i32 : i32, i32, i32
  }
  func.func @transform_2(%arg0: i32, %arg1: i32, %arg2: i32) -> (i32, i32, i32) {
    %c2_i32 = arith.constant 2 : i32
    %c0_i32 = arith.constant 0 : i32
    return %arg0, %arg2, %c2_i32 : i32, i32, i32
  }
  func.func @transform_3(%arg0: i32, %arg1: i32, %arg2: i32) -> (i32, i32, i32) {
    %c0_i32 = arith.constant 0 : i32
    %c0_i32_0 = arith.constant 0 : i32
    return %arg0, %arg1, %c0_i32 : i32, i32, i32
  }
}

module attributes {stable_mosaic.version = 11 : i64} {
  func.func @_ln_matmul_kernel(%arg0: i32, %arg1: i32, %arg2: memref<128x128xf32, #tpu.memory_space<vmem>>, %arg3: memref<1x128xf32, #tpu.memory_space<vmem>>, %arg4: memref<1x128xf32, #tpu.memory_space<vmem>>, %arg5: memref<128x256xbf16, #tpu.memory_space<vmem>>, %arg6: memref<1x256xf32, #tpu.memory_space<vmem>>, %arg7: memref<128x256xf32, #tpu.memory_space<vmem>>) attributes {dimension_semantics = [#tpu.dimension_semantics<parallel>, #tpu.dimension_semantics<parallel>], iteration_bounds = array<i64: 4, 2>, scalar_prefetch = 0 : i64, scratch_operands = 0 : i64, tpu.core_type = #tpu.core_type<tc>, window_params = [{transform_indices = @transform_0, window_bounds = array<i64: 128, 128>}, {pipeline_mode = #tpu.pipeline_mode<synchronous>, transform_indices = @transform_1, window_bounds = array<i64: 1, 128>}, {pipeline_mode = #tpu.pipeline_mode<synchronous>, transform_indices = @transform_2, window_bounds = array<i64: 1, 128>}, {transform_indices = @transform_3, window_bounds = array<i64: 128, 256>}, {transform_indices = @transform_4, window_bounds = array<i64: 1, 256>}, {transform_indices = @transform_5, window_bounds = array<i64: 128, 256>}]} {
    %c0 = arith.constant 0 : index
    %c0_0 = arith.constant 0 : index
    %0 = vector.load %arg2[%c0, %c0_0] : memref<128x128xf32, #tpu.memory_space<vmem>>, vector<128x128xf32>
    %cst = arith.constant dense<0.000000e+00> : vector<128xf32>
    %1 = vector.multi_reduction <add>, %0, %cst [1] : vector<128x128xf32> to vector<128xf32>
    %2 = vector.shape_cast %1 : vector<128xf32> to vector<128x1xf32>
    %cst_1 = arith.constant 1.280000e+02 : f32
    %3 = vector.broadcast %cst_1 : f32 to vector<128x1xf32>
    %4 = arith.divf %2, %3 : vector<128x1xf32>
    %5 = vector.broadcast %4 : vector<128x1xf32> to vector<128x128xf32>
    %6 = arith.subf %0, %5 : vector<128x128xf32>
    %7 = arith.mulf %6, %6 : vector<128x128xf32>
    %cst_2 = arith.constant dense<0.000000e+00> : vector<128xf32>
    %8 = vector.multi_reduction <add>, %7, %cst_2 [1] : vector<128x128xf32> to vector<128xf32>
    %9 = vector.shape_cast %8 : vector<128xf32> to vector<128x1xf32>
    %cst_3 = arith.constant 1.280000e+02 : f32
    %10 = vector.broadcast %cst_3 : f32 to vector<128x1xf32>
    %11 = arith.divf %9, %10 : vector<128x1xf32>
    %cst_4 = arith.constant 9.99999974E-6 : f32
    %12 = vector.broadcast %cst_4 : f32 to vector<128x1xf32>
    %13 = arith.addf %11, %12 : vector<128x1xf32>
    %14 = math.rsqrt %13 : vector<128x1xf32>
    %15 = vector.broadcast %14 : vector<128x1xf32> to vector<128x128xf32>
    %16 = arith.mulf %6, %15 : vector<128x128xf32>
    %c0_5 = arith.constant 0 : index
    %c0_6 = arith.constant 0 : index
    %17 = vector.load %arg3[%c0_5, %c0_6] : memref<1x128xf32, #tpu.memory_space<vmem>>, vector<1x128xf32>
    %18 = vector.broadcast %17 : vector<1x128xf32> to vector<128x128xf32>
    %19 = arith.mulf %16, %18 : vector<128x128xf32>
    %c0_7 = arith.constant 0 : index
    %c0_8 = arith.constant 0 : index
    %20 = vector.load %arg4[%c0_7, %c0_8] : memref<1x128xf32, #tpu.memory_space<vmem>>, vector<1x128xf32>
    %21 = vector.broadcast %20 : vector<1x128xf32> to vector<128x128xf32>
    %22 = arith.addf %19, %21 : vector<128x128xf32>
    %23 = arith.truncf %22 : vector<128x128xf32> to vector<128x128xbf16>
    %c0_9 = arith.constant 0 : index
    %c0_10 = arith.constant 0 : index
    %24 = vector.load %arg5[%c0_9, %c0_10] : memref<128x256xbf16, #tpu.memory_space<vmem>>, vector<128x256xbf16>
    %cst_11 = arith.constant dense<0.000000e+00> : vector<128x256xf32>
    %25 = tpu.matmul %23, %24, %cst_11 {dimension_numbers = #tpu.dot_dimension_numbers<[1], [0], [0], [1], [0, 0, 1, 1], [], []>} : vector<128x128xbf16>, vector<128x256xbf16>, vector<128x256xf32> -> vector<128x256xf32>
    %c0_12 = arith.constant 0 : index
    %c0_13 = arith.constant 0 : index
    %26 = vector.load %arg6[%c0_12, %c0_13] : memref<1x256xf32, #tpu.memory_space<vmem>>, vector<1x256xf32>
    %27 = vector.broadcast %26 : vector<1x256xf32> to vector<128x256xf32>
    %28 = arith.addf %25, %27 : vector<128x256xf32>
    %cst_14 = arith.constant 5.000000e-01 : f32
    %29 = vector.broadcast %cst_14 : f32 to vector<128x256xf32>
    %30 = arith.mulf %29, %28 : vector<128x256xf32>
    %cst_15 = arith.constant 4.471500e-02 : f32
    %31 = vector.broadcast %cst_15 : f32 to vector<128x256xf32>
    %32 = arith.mulf %31, %28 : vector<128x256xf32>
    %33 = arith.mulf %32, %28 : vector<128x256xf32>
    %34 = arith.mulf %33, %28 : vector<128x256xf32>
    %35 = arith.addf %28, %34 : vector<128x256xf32>
    %cst_16 = arith.constant 0.797884583 : f32
    %36 = vector.broadcast %cst_16 : f32 to vector<128x256xf32>
    %37 = arith.mulf %36, %35 : vector<128x256xf32>
    %38 = math.tanh %37 : vector<128x256xf32>
    %cst_17 = arith.constant 1.000000e+00 : f32
    %39 = vector.broadcast %cst_17 : f32 to vector<128x256xf32>
    %40 = arith.addf %39, %38 : vector<128x256xf32>
    %41 = arith.mulf %30, %40 : vector<128x256xf32>
    %c0_18 = arith.constant 0 : index
    %c0_19 = arith.constant 0 : index
    %42 = vector.load %arg7[%c0_18, %c0_19] : memref<128x256xf32, #tpu.memory_space<vmem>>, vector<128x256xf32>
    tpu.vector_store %arg7[%c0_18, %c0_19], %41 {strides = array<i32>} : memref<128x256xf32, #tpu.memory_space<vmem>>, vector<128x256xf32>,
    return
  }
  func.func @transform_0(%arg0: i32, %arg1: i32) -> (i32, i32) {
    %c0_i32 = arith.constant 0 : i32
    %c0_i32_0 = arith.constant 0 : i32
    return %arg0, %c0_i32 : i32, i32
  }
  func.func @transform_1(%arg0: i32, %arg1: i32) -> (i32, i32) {
    %c0_i32 = arith.constant 0 : i32
    %c0_i32_0 = arith.constant 0 : i32
    %c0_i32_1 = arith.constant 0 : i32
    return %c0_i32, %c0_i32_0 : i32, i32
  }
  func.func @transform_2(%arg0: i32, %arg1: i32) -> (i32, i32) {
    %c0_i32 = arith.constant 0 : i32
    %c0_i32_0 = arith.constant 0 : i32
    %c0_i32_1 = arith.constant 0 : i32
    return %c0_i32, %c0_i32_0 : i32, i32
  }
  func.func @transform_3(%arg0: i32, %arg1: i32) -> (i32, i32) {
    %c0_i32 = arith.constant 0 : i32
    %c0_i32_0 = arith.constant 0 : i32
    return %c0_i32, %arg1 : i32, i32
  }
  func.func @transform_4(%arg0: i32, %arg1: i32) -> (i32, i32) {
    %c0_i32 = arith.constant 0 : i32
    %c0_i32_0 = arith.constant 0 : i32
    return %c0_i32, %arg1 : i32, i32
  }
  func.func @transform_5(%arg0: i32, %arg1: i32) -> (i32, i32) {
    %c0_i32 = arith.constant 0 : i32
    return %arg0, %arg1 : i32, i32
  }
}

module attributes {stable_mosaic.version = 11 : i64} {
  func.func @_matmul_resid_kernel(%arg0: i32, %arg1: i32, %arg2: i32, %arg3: memref<128x256xf32, #tpu.memory_space<vmem>>, %arg4: memref<256x128xbf16, #tpu.memory_space<vmem>>, %arg5: memref<1x128xf32, #tpu.memory_space<vmem>>, %arg6: memref<128x128xf32, #tpu.memory_space<vmem>>, %arg7: memref<128x128xf32, #tpu.memory_space<vmem>>, %arg8: memref<128x128xf32, #tpu.memory_space<vmem>>) attributes {dimension_semantics = [#tpu.dimension_semantics<parallel>, #tpu.dimension_semantics<parallel>, #tpu.dimension_semantics<arbitrary>], iteration_bounds = array<i64: 4, 1, 2>, scalar_prefetch = 0 : i64, scratch_operands = 1 : i64, tpu.core_type = #tpu.core_type<tc>, window_params = [{transform_indices = @transform_0, window_bounds = array<i64: 128, 256>}, {transform_indices = @transform_1, window_bounds = array<i64: 256, 128>}, {transform_indices = @transform_2, window_bounds = array<i64: 1, 128>}, {transform_indices = @transform_3, window_bounds = array<i64: 128, 128>}, {transform_indices = @transform_4, window_bounds = array<i64: 128, 128>}]} {
    %c0_i32 = arith.constant 0 : i32
    %0 = arith.cmpi eq, %arg2, %c0_i32 : i32
    %1 = arith.extui %0 : i1 to i32
    %c0_i32_0 = arith.constant 0 : i32
    %2 = arith.cmpi ne, %1, %c0_i32_0 : i32
    scf.if %2 {
      %cst_9 = arith.constant 0.000000e+00 : f32
      %13 = vector.broadcast %cst_9 : f32 to vector<128x128xf32>
      %c0_10 = arith.constant 0 : index
      %c0_11 = arith.constant 0 : index
      %14 = vector.load %arg8[%c0_10, %c0_11] : memref<128x128xf32, #tpu.memory_space<vmem>>, vector<128x128xf32>
      tpu.vector_store %arg8[%c0_10, %c0_11], %13 {strides = array<i32>} : memref<128x128xf32, #tpu.memory_space<vmem>>, vector<128x128xf32>,
    } else {
    }
    %c0 = arith.constant 0 : index
    %c0_1 = arith.constant 0 : index
    %3 = vector.load %arg8[%c0, %c0_1] : memref<128x128xf32, #tpu.memory_space<vmem>>, vector<128x128xf32>
    %c0_2 = arith.constant 0 : index
    %c0_3 = arith.constant 0 : index
    %4 = vector.load %arg3[%c0_2, %c0_3] : memref<128x256xf32, #tpu.memory_space<vmem>>, vector<128x256xf32>
    %5 = arith.truncf %4 : vector<128x256xf32> to vector<128x256xbf16>
    %c0_4 = arith.constant 0 : index
    %c0_5 = arith.constant 0 : index
    %6 = vector.load %arg4[%c0_4, %c0_5] : memref<256x128xbf16, #tpu.memory_space<vmem>>, vector<256x128xbf16>
    %cst = arith.constant dense<0.000000e+00> : vector<128x128xf32>
    %7 = tpu.matmul %5, %6, %cst {dimension_numbers = #tpu.dot_dimension_numbers<[1], [0], [0], [1], [0, 0, 1, 1], [], []>} : vector<128x256xbf16>, vector<256x128xbf16>, vector<128x128xf32> -> vector<128x128xf32>
    %8 = arith.addf %3, %7 : vector<128x128xf32>
    %c0_6 = arith.constant 0 : index
    %c0_7 = arith.constant 0 : index
    %9 = vector.load %arg8[%c0_6, %c0_7] : memref<128x128xf32, #tpu.memory_space<vmem>>, vector<128x128xf32>
    tpu.vector_store %arg8[%c0_6, %c0_7], %8 {strides = array<i32>} : memref<128x128xf32, #tpu.memory_space<vmem>>, vector<128x128xf32>,
    %c1_i32 = arith.constant 1 : i32
    %10 = arith.cmpi eq, %arg2, %c1_i32 : i32
    %11 = arith.extui %10 : i1 to i32
    %c0_i32_8 = arith.constant 0 : i32
    %12 = arith.cmpi ne, %11, %c0_i32_8 : i32
    scf.if %12 {
      %c0_9 = arith.constant 0 : index
      %c0_10 = arith.constant 0 : index
      %13 = vector.load %arg8[%c0_9, %c0_10] : memref<128x128xf32, #tpu.memory_space<vmem>>, vector<128x128xf32>
      %c0_11 = arith.constant 0 : index
      %c0_12 = arith.constant 0 : index
      %14 = vector.load %arg5[%c0_11, %c0_12] : memref<1x128xf32, #tpu.memory_space<vmem>>, vector<1x128xf32>
      %15 = vector.broadcast %14 : vector<1x128xf32> to vector<128x128xf32>
      %16 = arith.addf %13, %15 : vector<128x128xf32>
      %c0_13 = arith.constant 0 : index
      %c0_14 = arith.constant 0 : index
      %17 = vector.load %arg6[%c0_13, %c0_14] : memref<128x128xf32, #tpu.memory_space<vmem>>, vector<128x128xf32>
      %18 = arith.addf %16, %17 : vector<128x128xf32>
      %c0_15 = arith.constant 0 : index
      %c0_16 = arith.constant 0 : index
      %19 = vector.load %arg7[%c0_15, %c0_16] : memref<128x128xf32, #tpu.memory_space<vmem>>, vector<128x128xf32>
      tpu.vector_store %arg7[%c0_15, %c0_16], %18 {strides = array<i32>} : memref<128x128xf32, #tpu.memory_space<vmem>>, vector<128x128xf32>,
    } else {
    }
    return
  }
  func.func @transform_0(%arg0: i32, %arg1: i32, %arg2: i32) -> (i32, i32) {
    %c0_i32 = arith.constant 0 : i32
    return %arg0, %arg2 : i32, i32
  }
  func.func @transform_1(%arg0: i32, %arg1: i32, %arg2: i32) -> (i32, i32) {
    %c0_i32 = arith.constant 0 : i32
    return %arg2, %arg1 : i32, i32
  }
  func.func @transform_2(%arg0: i32, %arg1: i32, %arg2: i32) -> (i32, i32) {
    %c0_i32 = arith.constant 0 : i32
    %c0_i32_0 = arith.constant 0 : i32
    return %c0_i32, %arg1 : i32, i32
  }
  func.func @transform_3(%arg0: i32, %arg1: i32, %arg2: i32) -> (i32, i32) {
    %c0_i32 = arith.constant 0 : i32
    return %arg0, %arg1 : i32, i32
  }
  func.func @transform_4(%arg0: i32, %arg1: i32, %arg2: i32) -> (i32, i32) {
    %c0_i32 = arith.constant 0 : i32
    return %arg0, %arg1 : i32, i32
  }
}

module attributes {stable_mosaic.version = 11 : i64} {
  func.func @_matmul_acc_kernel(%arg0: i32, %arg1: i32, %arg2: i32, %arg3: memref<128x128xf32, #tpu.memory_space<vmem>>, %arg4: memref<128x256xbf16, #tpu.memory_space<vmem>>, %arg5: memref<128x256xf32, #tpu.memory_space<vmem>>, %arg6: memref<128x256xf32, #tpu.memory_space<vmem>>) attributes {dimension_semantics = [#tpu.dimension_semantics<parallel>, #tpu.dimension_semantics<parallel>, #tpu.dimension_semantics<arbitrary>], iteration_bounds = array<i64: 4, 1, 1>, scalar_prefetch = 0 : i64, scratch_operands = 1 : i64, tpu.core_type = #tpu.core_type<tc>, window_params = [{transform_indices = @transform_0, window_bounds = array<i64: 128, 128>}, {transform_indices = @transform_1, window_bounds = array<i64: 128, 256>}, {transform_indices = @transform_2, window_bounds = array<i64: 128, 256>}]} {
    %c0_i32 = arith.constant 0 : i32
    %0 = arith.cmpi eq, %arg2, %c0_i32 : i32
    %1 = arith.extui %0 : i1 to i32
    %c0_i32_0 = arith.constant 0 : i32
    %2 = arith.cmpi ne, %1, %c0_i32_0 : i32
    scf.if %2 {
      %cst_10 = arith.constant 0.000000e+00 : f32
      %13 = vector.broadcast %cst_10 : f32 to vector<128x256xf32>
      %c0_11 = arith.constant 0 : index
      %c0_12 = arith.constant 0 : index
      %14 = vector.load %arg6[%c0_11, %c0_12] : memref<128x256xf32, #tpu.memory_space<vmem>>, vector<128x256xf32>
      tpu.vector_store %arg6[%c0_11, %c0_12], %13 {strides = array<i32>} : memref<128x256xf32, #tpu.memory_space<vmem>>, vector<128x256xf32>,
    } else {
    }
    %c0 = arith.constant 0 : index
    %c0_1 = arith.constant 0 : index
    %3 = vector.load %arg6[%c0, %c0_1] : memref<128x256xf32, #tpu.memory_space<vmem>>, vector<128x256xf32>
    %c0_2 = arith.constant 0 : index
    %c0_3 = arith.constant 0 : index
    %4 = vector.load %arg3[%c0_2, %c0_3] : memref<128x128xf32, #tpu.memory_space<vmem>>, vector<128x128xf32>
    %5 = arith.truncf %4 : vector<128x128xf32> to vector<128x128xbf16>
    %c0_4 = arith.constant 0 : index
    %c0_5 = arith.constant 0 : index
    %6 = vector.load %arg4[%c0_4, %c0_5] : memref<128x256xbf16, #tpu.memory_space<vmem>>, vector<128x256xbf16>
    %cst = arith.constant dense<0.000000e+00> : vector<128x256xf32>
    %7 = tpu.matmul %5, %6, %cst {dimension_numbers = #tpu.dot_dimension_numbers<[1], [0], [0], [1], [0, 0, 1, 1], [], []>} : vector<128x128xbf16>, vector<128x256xbf16>, vector<128x256xf32> -> vector<128x256xf32>
    %8 = arith.addf %3, %7 : vector<128x256xf32>
    %c0_6 = arith.constant 0 : index
    %c0_7 = arith.constant 0 : index
    %9 = vector.load %arg6[%c0_6, %c0_7] : memref<128x256xf32, #tpu.memory_space<vmem>>, vector<128x256xf32>
    tpu.vector_store %arg6[%c0_6, %c0_7], %8 {strides = array<i32>} : memref<128x256xf32, #tpu.memory_space<vmem>>, vector<128x256xf32>,
    %c0_i32_8 = arith.constant 0 : i32
    %10 = arith.cmpi eq, %arg2, %c0_i32_8 : i32
    %11 = arith.extui %10 : i1 to i32
    %c0_i32_9 = arith.constant 0 : i32
    %12 = arith.cmpi ne, %11, %c0_i32_9 : i32
    scf.if %12 {
      %c0_10 = arith.constant 0 : index
      %c0_11 = arith.constant 0 : index
      %13 = vector.load %arg6[%c0_10, %c0_11] : memref<128x256xf32, #tpu.memory_space<vmem>>, vector<128x256xf32>
      %c0_12 = arith.constant 0 : index
      %c0_13 = arith.constant 0 : index
      %14 = vector.load %arg5[%c0_12, %c0_13] : memref<128x256xf32, #tpu.memory_space<vmem>>, vector<128x256xf32>
      tpu.vector_store %arg5[%c0_12, %c0_13], %13 {strides = array<i32>} : memref<128x256xf32, #tpu.memory_space<vmem>>, vector<128x256xf32>,
    } else {
    }
    return
  }
  func.func @transform_0(%arg0: i32, %arg1: i32, %arg2: i32) -> (i32, i32) {
    %c0_i32 = arith.constant 0 : i32
    return %arg0, %arg2 : i32, i32
  }
  func.func @transform_1(%arg0: i32, %arg1: i32, %arg2: i32) -> (i32, i32) {
    %c0_i32 = arith.constant 0 : i32
    return %arg2, %arg1 : i32, i32
  }
  func.func @transform_2(%arg0: i32, %arg1: i32, %arg2: i32) -> (i32, i32) {
    %c0_i32 = arith.constant 0 : i32
    return %arg0, %arg1 : i32, i32
  }
}

module attributes {stable_mosaic.version = 11 : i64} {
  func.func @_layernorm_kernel(%arg0: i32, %arg1: memref<256x128xf32, #tpu.memory_space<vmem>>, %arg2: memref<1x128xf32, #tpu.memory_space<vmem>>, %arg3: memref<1x128xf32, #tpu.memory_space<vmem>>, %arg4: memref<256x128xf32, #tpu.memory_space<vmem>>) attributes {dimension_semantics = [#tpu.dimension_semantics<parallel>], iteration_bounds = array<i64: 2>, scalar_prefetch = 0 : i64, scratch_operands = 0 : i64, tpu.core_type = #tpu.core_type<tc>, window_params = [{transform_indices = @transform_0, window_bounds = array<i64: 256, 128>}, {pipeline_mode = #tpu.pipeline_mode<synchronous>, transform_indices = @transform_1, window_bounds = array<i64: 1, 128>}, {pipeline_mode = #tpu.pipeline_mode<synchronous>, transform_indices = @transform_2, window_bounds = array<i64: 1, 128>}, {transform_indices = @transform_3, window_bounds = array<i64: 256, 128>}]} {
    %c0 = arith.constant 0 : index
    %c0_0 = arith.constant 0 : index
    %0 = vector.load %arg1[%c0, %c0_0] : memref<256x128xf32, #tpu.memory_space<vmem>>, vector<256x128xf32>
    %cst = arith.constant dense<0.000000e+00> : vector<256xf32>
    %1 = vector.multi_reduction <add>, %0, %cst [1] : vector<256x128xf32> to vector<256xf32>
    %2 = vector.shape_cast %1 : vector<256xf32> to vector<256x1xf32>
    %cst_1 = arith.constant 1.280000e+02 : f32
    %3 = vector.broadcast %cst_1 : f32 to vector<256x1xf32>
    %4 = arith.divf %2, %3 : vector<256x1xf32>
    %5 = vector.broadcast %4 : vector<256x1xf32> to vector<256x128xf32>
    %6 = arith.subf %0, %5 : vector<256x128xf32>
    %7 = arith.mulf %6, %6 : vector<256x128xf32>
    %cst_2 = arith.constant dense<0.000000e+00> : vector<256xf32>
    %8 = vector.multi_reduction <add>, %7, %cst_2 [1] : vector<256x128xf32> to vector<256xf32>
    %9 = vector.shape_cast %8 : vector<256xf32> to vector<256x1xf32>
    %cst_3 = arith.constant 1.280000e+02 : f32
    %10 = vector.broadcast %cst_3 : f32 to vector<256x1xf32>
    %11 = arith.divf %9, %10 : vector<256x1xf32>
    %cst_4 = arith.constant 9.99999974E-6 : f32
    %12 = vector.broadcast %cst_4 : f32 to vector<256x1xf32>
    %13 = arith.addf %11, %12 : vector<256x1xf32>
    %14 = math.rsqrt %13 : vector<256x1xf32>
    %15 = vector.broadcast %14 : vector<256x1xf32> to vector<256x128xf32>
    %16 = arith.mulf %6, %15 : vector<256x128xf32>
    %c0_5 = arith.constant 0 : index
    %c0_6 = arith.constant 0 : index
    %17 = vector.load %arg2[%c0_5, %c0_6] : memref<1x128xf32, #tpu.memory_space<vmem>>, vector<1x128xf32>
    %18 = vector.broadcast %17 : vector<1x128xf32> to vector<256x128xf32>
    %19 = arith.mulf %16, %18 : vector<256x128xf32>
    %c0_7 = arith.constant 0 : index
    %c0_8 = arith.constant 0 : index
    %20 = vector.load %arg3[%c0_7, %c0_8] : memref<1x128xf32, #tpu.memory_space<vmem>>, vector<1x128xf32>
    %21 = vector.broadcast %20 : vector<1x128xf32> to vector<256x128xf32>
    %22 = arith.addf %19, %21 : vector<256x128xf32>
    %c0_9 = arith.constant 0 : index
    %c0_10 = arith.constant 0 : index
    %23 = vector.load %arg4[%c0_9, %c0_10] : memref<256x128xf32, #tpu.memory_space<vmem>>, vector<256x128xf32>
    tpu.vector_store %arg4[%c0_9, %c0_10], %22 {strides = array<i32>} : memref<256x128xf32, #tpu.memory_space<vmem>>, vector<256x128xf32>,
    return
  }
  func.func @transform_0(%arg0: i32) -> (i32, i32) {
    %c0_i32 = arith.constant 0 : i32
    %c0_i32_0 = arith.constant 0 : i32
    return %arg0, %c0_i32 : i32, i32
  }
  func.func @transform_1(%arg0: i32) -> (i32, i32) {
    %c0_i32 = arith.constant 0 : i32
    %c0_i32_0 = arith.constant 0 : i32
    %c0_i32_1 = arith.constant 0 : i32
    return %c0_i32, %c0_i32_0 : i32, i32
  }
  func.func @transform_2(%arg0: i32) -> (i32, i32) {
    %c0_i32 = arith.constant 0 : i32
    %c0_i32_0 = arith.constant 0 : i32
    %c0_i32_1 = arith.constant 0 : i32
    return %c0_i32, %c0_i32_0 : i32, i32
  }
  func.func @transform_3(%arg0: i32) -> (i32, i32) {
    %c0_i32 = arith.constant 0 : i32
    %c0_i32_0 = arith.constant 0 : i32
    return %arg0, %c0_i32 : i32, i32
  }
}

</mosaic_0001>

<llo_original>
// kernel: gpt_forward.12
$region0: #{gpt_forward.12}
  #allocation0 [shape = 'u32[]', space=smem, size = 0x4, offset = 0x4, fixed_abs, tag = 'smem constant byte address 0x4 - core index']
  #allocation1 [shape = 'u32[72,128]{1,0:T(1,128)}', space=vmem, size = 0x9000, scoped, tag = 'internal scratch']
  %s0 = inlined_call_operand.vmem [shape: f32[512,128], index: 0, kind: input, shape index: {}]
  %s1 = inlined_call_operand.vmem [shape: f32[1,128], index: 1, kind: input, shape index: {}]
  %s2 = inlined_call_operand.vmem [shape: f32[1,128], index: 2, kind: input, shape index: {}]
  %s3 = inlined_call_operand.vmem [shape: bf16[128,384], index: 3, kind: input, shape index: {}]
  %s4 = inlined_call_operand.vmem [shape: f32[1,384], index: 4, kind: input, shape index: {}]
  %s5 = inlined_call_operand.vmem [shape: f32[512,384], index: 5, kind: output, shape index: {}]
  %s6 = sld [smem:[#allocation0]]
  $region128: #{gpt_forward.12} parent=0
    _
  %s8 = ssub.s32 1, %s6
  %s9 = scalar_select 0, %s8, %s6
  $region1: #{gpt_forward.12} parent=0
    #allocation2 [shape = 'u8[65536]{0}', space=vmem, size = 0x10000, scoped, tag = 'input window, operand 3']
    #allocation3 [shape = 'u8[131072]{0}', space=vmem, size = 0x20000, scoped, tag = 'output window, operand 0']
    loop: start=0, step=1, limit=14
    $region2: #{gpt_forward.12} parent=1 // loop_pre_header
      _
    $region3: #{gpt_forward.12} parent=1 // loop_header
      %s11 = sphi 0, %s15
      %p12 = scmp.ge.s32.totalorder %s11, 14
      %s18 = sphi 0, %s30
      %s19 = sphi 0, %s26
      %s20 = sphi 0, %s18
      %s21 = sphi 0, %s19
      %s22 = sphi 0, %s20
      %s23 = sphi 0, %s21
      %s33 = sphi 0, %s35
      %s36 = sphi 0, %s33
      %s37 = sphi 0, %s36
      %s53 = sphi 0, %s37
      %s57 = sphi 0, %s57
      %s59 = sphi 0, %s57
      %s60 = sphi 0, %s59
      %s74 = sphi 0, %s60
      %s78 = sphi 0, %s78
      %s80 = sphi 0, %s78
      %s81 = sphi 0, %s80
      %s95 = sphi 0, %s81
      %s101 = sphi 0, %s103
      %s104 = sphi 0, %s101
      %s105 = sphi 0, %s104
      %s121 = sphi 0, %s105
      %s127 = sphi 0, %s129
      %s130 = sphi 0, %s127
      %s131 = sphi 0, %s130
      %s147 = sphi 0, %s131
      %s155 = sphi 0, %s157
      %s158 = sphi 0, %s155
      %s159 = sphi 0, %s158
      %s175 = sphi 0, %s159
    $region4: #{gpt_forward.12} parent=1 // loop_header_branch
      %14 = sbr.rel (%p12) target = $region8
    $region5: #{gpt_forward.12} parent=1 // loop_body
      %s16 = ssub.s32 %s11, 1
      %s17 = ssub.s32 %s11, 2
      %s24 = sadd.s32 1, %s19
      %p25 = scmp.ge.s32.totalorder %s24, 3
      %s26 = scalar_select %p25, 0, %s24
      %s27 = sadd.s32 1, %s18
      %s28 = scalar_select %p25, %s27, %s18
      %p29 = scmp.ge.s32.totalorder %s28, 4
      %s30 = scalar_select %p29, 0, %s28
      %s31 = ssub.s32 %s18, %s30
      %p32 = scmp.eq.s32.totalorder %s31, 0
      %s34 = sadd.s32 %s33, 1
      %s35 = scalar_select %p32, %s33, %s34
      %p38 = pneg %p32
      %p39 = scmp.eq.s32.totalorder %s11, 11
      %p40 = por %p38, %p39
      %p41 = scmp.ne.s32.totalorder %s33, %s36
      %p42 = scmp.eq.s32.totalorder %s11, 0
      %p43 = por %p41, %p42
      %p44 = scmp.ne.s32.totalorder %s33, %s36
      %p45 = scmp.eq.s32.totalorder %s16, 11
      %p46 = por %p44, %p45
      %p47 = scmp.ne.s32.totalorder %s36, %s37
      %p48 = scmp.eq.s32.totalorder %s16, 0
      %p49 = por %p47, %p48
      %p50 = scmp.ne.s32.totalorder %s36, %s37
      %p51 = scmp.eq.s32.totalorder %s17, 11
      %p52 = por %p50, %p51
      %p54 = scmp.ne.s32.totalorder %s37, %s53
      %p55 = scmp.eq.s32.totalorder %s17, 0
      %p56 = por %p54, %p55
      %s58 = sadd.s32 %s57, 1
      %p61 = scmp.eq.s32.totalorder %s11, 11
      %p62 = scmp.ne.s32.totalorder %s57, %s59
      %p63 = scmp.eq.s32.totalorder %s11, 0
      %p64 = por %p62, %p63
      %p65 = scmp.ne.s32.totalorder %s57, %s59
      %p66 = scmp.eq.s32.totalorder %s16, 11
      %p67 = por %p65, %p66
      %p68 = scmp.ne.s32.totalorder %s59, %s60
      %p69 = scmp.eq.s32.totalorder %s16, 0
      %p70 = por %p68, %p69
      %p71 = scmp.ne.s32.totalorder %s59, %s60
      %p72 = scmp.eq.s32.totalorder %s17, 11
      %p73 = por %p71, %p72
      %p75 = scmp.ne.s32.totalorder %s60, %s74
      %p76 = scmp.eq.s32.totalorder %s17, 0
      %p77 = por %p75, %p76
      %s79 = sadd.s32 %s78, 1
      %p82 = scmp.eq.s32.totalorder %s11, 11
      %p83 = scmp.ne.s32.totalorder %s78, %s80
      %p84 = scmp.eq.s32.totalorder %s11, 0
      %p85 = por %p83, %p84
      %p86 = scmp.ne.s32.totalorder %s78, %s80
      %p87 = scmp.eq.s32.totalorder %s16, 11
      %p88 = por %p86, %p87
      %p89 = scmp.ne.s32.totalorder %s80, %s81
      %p90 = scmp.eq.s32.totalorder %s16, 0
      %p91 = por %p89, %p90
      %p92 = scmp.ne.s32.totalorder %s80, %s81
      %p93 = scmp.eq.s32.totalorder %s17, 11
      %p94 = por %p92, %p93
      %p96 = scmp.ne.s32.totalorder %s81, %s95
      %p97 = scmp.eq.s32.totalorder %s17, 0
      %p98 = por %p96, %p97
      %s99 = ssub.s32 %s19, %s26
      %p100 = scmp.eq.s32.totalorder %s99, 0
      %s102 = sadd.s32 %s101, 1
      %s103 = scalar_select %p100, %s101, %s102
      %p106 = pneg %p100
      %p107 = scmp.eq.s32.totalorder %s11, 11
      %p108 = por %p106, %p107
      %p109 = scmp.ne.s32.totalorder %s101, %s104
      %p110 = scmp.eq.s32.totalorder %s11, 0
      %p111 = por %p109, %p110
      %p112 = scmp.ne.s32.totalorder %s101, %s104
      %p113 = scmp.eq.s32.totalorder %s16, 11
      %p114 = por %p112, %p113
      %p115 = scmp.ne.s32.totalorder %s104, %s105
      %p116 = scmp.eq.s32.totalorder %s16, 0
      %p117 = por %p115, %p116
      %p118 = scmp.ne.s32.totalorder %s104, %s105
      %p119 = scmp.eq.s32.totalorder %s17, 11
      %p120 = por %p118, %p119
      %p122 = scmp.ne.s32.totalorder %s105, %s121
      %p123 = scmp.eq.s32.totalorder %s17, 0
      %p124 = por %p122, %p123
      %s125 = ssub.s32 %s19, %s26
      %p126 = scmp.eq.s32.totalorder %s125, 0
      %s128 = sadd.s32 %s127, 1
      %s129 = scalar_select %p126, %s127, %s128
      %p132 = pneg %p126
      %p133 = scmp.eq.s32.totalorder %s11, 11
      %p134 = por %p132, %p133
      %p135 = scmp.ne.s32.totalorder %s127, %s130
      %p136 = scmp.eq.s32.totalorder %s11, 0
      %p137 = por %p135, %p136
      %p138 = scmp.ne.s32.totalorder %s127, %s130
      %p139 = scmp.eq.s32.totalorder %s16, 11
      %p140 = por %p138, %p139
      %p141 = scmp.ne.s32.totalorder %s130, %s131
      %p142 = scmp.eq.s32.totalorder %s16, 0
      %p143 = por %p141, %p142
      %p144 = scmp.ne.s32.totalorder %s130, %s131
      %p145 = scmp.eq.s32.totalorder %s17, 11
      %p146 = por %p144, %p145
      %p148 = scmp.ne.s32.totalorder %s131, %s147
      %p149 = scmp.eq.s32.totalorder %s17, 0
      %p150 = por %p148, %p149
      %s151 = ssub.s32 %s18, %s30
      %s152 = ssub.s32 %s19, %s26
      %s153 = sor.u32 %s151, %s152
      %p154 = scmp.eq.s32.totalorder %s153, 0
      %s156 = sadd.s32 %s155, 1
      %s157 = scalar_select %p154, %s155, %s156
      %p160 = pneg %p154
      %p161 = scmp.eq.s32.totalorder %s11, 11
      %p162 = por %p160, %p161
      %p163 = scmp.ne.s32.totalorder %s155, %s158
      %p164 = scmp.eq.s32.totalorder %s11, 0
      %p165 = por %p163, %p164
      %p166 = scmp.ne.s32.totalorder %s155, %s158
      %p167 = scmp.eq.s32.totalorder %s16, 11
      %p168 = por %p166, %p167
      %p169 = scmp.ne.s32.totalorder %s158, %s159
      %p170 = scmp.eq.s32.totalorder %s16, 0
      %p171 = por %p169, %p170
      %p172 = scmp.ne.s32.totalorder %s158, %s159
      %p173 = scmp.eq.s32.totalorder %s17, 11
      %p174 = por %p172, %p173
      %p176 = scmp.ne.s32.totalorder %s159, %s175
      %p177 = scmp.eq.s32.totalorder %s17, 0
      %p178 = por %p176, %p177
      %p179 = scmp.le.s32.totalorder 1, %s11
      %p180 = scmp.lt.s32.totalorder %s11, 13
      %p181 = pnand %p179, %p180
      %p182 = pneg %p181
      // Predicated region
      $region9: #{gpt_forward.12} parent=5 // pred_check
        _
      $region10: #{gpt_forward.12} parent=5 // pred_check_branch
        %184 = sbr.rel (%p181) target = $region12
      $region11: #{gpt_forward.12} parent=5 // pred_region
        %s185 = ssub.s32 %s11, 1
        // Predicated region
        $region13: #{gpt_forward.12} parent=11 // pred_check
          %p186 = pneg %p70
        $region14: #{gpt_forward.12} parent=11 // pred_check_branch
          %188 = sbr.rel (%p186) target = $region16
        $region15: #{gpt_forward.12} parent=11 // pred_region
          _
        $region16: #{gpt_forward.12} parent=11 // pred_fallthru
          _
        // Predicated region
        $region17: #{gpt_forward.12} parent=11 // pred_check
          %p189 = pneg %p91
        $region18: #{gpt_forward.12} parent=11 // pred_check_branch
          %191 = sbr.rel (%p189) target = $region20
        $region19: #{gpt_forward.12} parent=11 // pred_region
          _
        $region20: #{gpt_forward.12} parent=11 // pred_fallthru
          _
      $region12: #{gpt_forward.12} parent=5 // pred_fallthru
        _
      %p192 = scmp.lt.s32.totalorder %s11, 12
      // Predicated region
      $region21: #{gpt_forward.12} parent=5 // pred_check
        %p193 = pneg %p192
      $region22: #{gpt_forward.12} parent=5 // pred_check_branch
        %195 = sbr.rel (%p193) target = $region24
      $region23: #{gpt_forward.12} parent=5 // pred_region
        // Predicated region
        $region25: #{gpt_forward.12} parent=23 // pred_check
          %p196 = pneg %p43
        $region26: #{gpt_forward.12} parent=23 // pred_check_branch
          %198 = sbr.rel (%p196) target = $region28
        $region27: #{gpt_forward.12} parent=23 // pred_region
          %s199 = smul.u32 16, %s18
          %p200 = scmp.lt.s32.totalorder %s199, 63
          %s201 = scalar_select %p200, %s199, 63
          %s202 = smul.addr %s201, 8
          %s203 = scalar_lea.vmem %s0, %s202
          %s204 = smul.u32 16, %s18
        $region28: #{gpt_forward.12} parent=23 // pred_fallthru
          _
        // Predicated region
        $region29: #{gpt_forward.12} parent=23 // pred_check
          %p205 = pneg %p111
        $region30: #{gpt_forward.12} parent=23 // pred_check_branch
          %207 = sbr.rel (%p205) target = $region32
        $region31: #{gpt_forward.12} parent=23 // pred_region
          %s208 = sand.u32 %s101, 1
          %s209 = sand.u32 %s101, 1
          %s210 = smul.addr %s209, 64
          %s211 = scalar_lea.vmem [#allocation2], %s210
          %s212 = smul.addr %s19, 4
          %s213 = scalar_lea.vmem %s3, %s212
          // Predicated region
          $region33: #{gpt_forward.12} parent=31 // pred_check
            _
          $region34: #{gpt_forward.12} parent=31 // pred_check_branch
            %215 = sbr.rel (0) target = $region36
          $region35: #{gpt_forward.12} parent=31 // pred_region
            // Predicated region
            $region37: #{gpt_forward.12} parent=35 // pred_check
              _
            $region38: #{gpt_forward.12} parent=35 // pred_check_branch
              %217 = sbr.rel target = $region40
            $region39: #{gpt_forward.12} parent=35 // pred_region
              // Predicated region
              $region52: #{gpt_forward.12} parent=39 // pred_check
                _
              $region53: #{gpt_forward.12} parent=39 // pred_check_branch
                %263 = sbr.rel (0) target = $region55
              $region54: #{gpt_forward.12} parent=39 // pred_region
                loop: start=0, step=1, limit=1
                $region56: #{gpt_forward.12} parent=54 // loop_pre_header
                  _
                $region57: #{gpt_forward.12} parent=54 // loop_header
                  %s265 = sphi 0, %s269
                  %p266 = scmp.ge.s32.totalorder %s265, 1
                  %s270 = sphi %s213, %s213
                  %s271 = sphi %s211, %s211
                $region58: #{gpt_forward.12} parent=54 // loop_header_branch
                  %268 = sbr.rel (%p266) target = $region62
                $region59: #{gpt_forward.12} parent=54 // loop_body
                  _
                $region60: #{gpt_forward.12} parent=54 // loop_footer
                  %s269 = sadd.s32 1, %s265
                $region61: #{gpt_forward.12} parent=54 // loop_footer_branch
                  %264 = sbr.rel target = $region57
                $region62: #{gpt_forward.12} parent=54 // loop_exit
                  _
                %s273 = ssub.s32 16, 1
                loop: start=0, step=1, limit=1
                $region63: #{gpt_forward.12} parent=54 // loop_pre_header
                  _
                $region64: #{gpt_forward.12} parent=54 // loop_header
                  %s275 = sphi 0, %s279
                  %p276 = scmp.ge.s32.totalorder %s275, 1
                  %s280 = sphi %s213, %s213
                  %s281 = sphi %s211, %s211
                $region65: #{gpt_forward.12} parent=54 // loop_header_branch
                  %278 = sbr.rel (%p276) target = $region69
                $region66: #{gpt_forward.12} parent=54 // loop_body
                  %v282 = vld [vmem:[%s280] sm:%s273]
                  %283 = vst [vmem:[%s281] sm:%s273] %v282
                  %v284 = vld [vmem:[%s280 + $0xc] sm:%s273]
                  %285 = vst [vmem:[%s281 + $0x4] sm:%s273] %v284
                  %v286 = vld [vmem:[%s280 + $0x18] sm:%s273]
                  %287 = vst [vmem:[%s281 + $0x8] sm:%s273] %v286
                  %v288 = vld [vmem:[%s280 + $0x24] sm:%s273]
                  %289 = vst [vmem:[%s281 + $0xc] sm:%s273] %v288
                  %v290 = vld [vmem:[%s280 + $0x30] sm:%s273]
                  %291 = vst [vmem:[%s281 + $0x10] sm:%s273] %v290
                  %v292 = vld [vmem:[%s280 + $0x3c] sm:%s273]
                  %293 = vst [vmem:[%s281 + $0x14] sm:%s273] %v292
                  %v294 = vld [vmem:[%s280 + $0x48] sm:%s273]
                  %295 = vst [vmem:[%s281 + $0x18] sm:%s273] %v294
                  %v296 = vld [vmem:[%s280 + $0x54] sm:%s273]
                  %297 = vst [vmem:[%s281 + $0x1c] sm:%s273] %v296
                  %v298 = vld [vmem:[%s280 + $0x60] sm:%s273]
                  %299 = vst [vmem:[%s281 + $0x20] sm:%s273] %v298
                  %v300 = vld [vmem:[%s280 + $0x6c] sm:%s273]
                  %301 = vst [vmem:[%s281 + $0x24] sm:%s273] %v300
                  %v302 = vld [vmem:[%s280 + $0x78] sm:%s273]
                  %303 = vst [vmem:[%s281 + $0x28] sm:%s273] %v302
                  %v304 = vld [vmem:[%s280 + $0x84] sm:%s273]
                  %305 = vst [vmem:[%s281 + $0x2c] sm:%s273] %v304
                  %v306 = vld [vmem:[%s280 + $0x90] sm:%s273]
                  %307 = vst [vmem:[%s281 + $0x30] sm:%s273] %v306
                  %v308 = vld [vmem:[%s280 + $0x9c] sm:%s273]
                  %309 = vst [vmem:[%s281 + $0x34] sm:%s273] %v308
                  %v310 = vld [vmem:[%s280 + $0xa8] sm:%s273]
                  %311 = vst [vmem:[%s281 + $0x38] sm:%s273] %v310
                  %v312 = vld [vmem:[%s280 + $0xb4] sm:%s273]
                  %313 = vst [vmem:[%s281 + $0x3c] sm:%s273] %v312
                $region67: #{gpt_forward.12} parent=54 // loop_footer
                  %s279 = sadd.s32 1, %s275
                $region68: #{gpt_forward.12} parent=54 // loop_footer_branch
                  %274 = sbr.rel target = $region64
                $region69: #{gpt_forward.12} parent=54 // loop_exit
                  _
              $region55: #{gpt_forward.12} parent=39 // pred_fallthru
                _
            $region40: #{gpt_forward.12} parent=35 // pred_fallthru
              _
            // Predicated region
            $region41: #{gpt_forward.12} parent=35 // pred_check
              _
            $region42: #{gpt_forward.12} parent=35 // pred_check_branch
              %219 = sbr.rel (0) target = $region44
            $region43: #{gpt_forward.12} parent=35 // pred_region
              %s221 = ssub.s32 16, 1
              loop: start=0, step=1, limit=1
              $region45: #{gpt_forward.12} parent=43 // loop_pre_header
                _
              $region46: #{gpt_forward.12} parent=43 // loop_header
                %s223 = sphi 0, %s227
                %p224 = scmp.ge.s32.totalorder %s223, 1
                %s228 = sphi %s213, %s213
                %s229 = sphi %s211, %s211
              $region47: #{gpt_forward.12} parent=43 // loop_header_branch
                %226 = sbr.rel (%p224) target = $region51
              $region48: #{gpt_forward.12} parent=43 // loop_body
                %v230 = vld [vmem:[%s228] sm:%s221]
                %231 = vst [vmem:[%s229] sm:%s221] %v230
                %v232 = vld [vmem:[%s228 + $0xc] sm:%s221]
                %233 = vst [vmem:[%s229 + $0x4] sm:%s221] %v232
                %v234 = vld [vmem:[%s228 + $0x18] sm:%s221]
                %235 = vst [vmem:[%s229 + $0x8] sm:%s221] %v234
                %v236 = vld [vmem:[%s228 + $0x24] sm:%s221]
                %237 = vst [vmem:[%s229 + $0xc] sm:%s221] %v236
                %v238 = vld [vmem:[%s228 + $0x30] sm:%s221]
                %239 = vst [vmem:[%s229 + $0x10] sm:%s221] %v238
                %v240 = vld [vmem:[%s228 + $0x3c] sm:%s221]
                %241 = vst [vmem:[%s229 + $0x14] sm:%s221] %v240
                %v242 = vld [vmem:[%s228 + $0x48] sm:%s221]
                %243 = vst [vmem:[%s229 + $0x18] sm:%s221] %v242
                %v244 = vld [vmem:[%s228 + $0x54] sm:%s221]
                %245 = vst [vmem:[%s229 + $0x1c] sm:%s221] %v244
                %v246 = vld [vmem:[%s228 + $0x60] sm:%s221]
                %247 = vst [vmem:[%s229 + $0x20] sm:%s221] %v246
                %v248 = vld [vmem:[%s228 + $0x6c] sm:%s221]
                %249 = vst [vmem:[%s229 + $0x24] sm:%s221] %v248
                %v250 = vld [vmem:[%s228 + $0x78] sm:%s221]
                %251 = vst [vmem:[%s229 + $0x28] sm:%s221] %v250
                %v252 = vld [vmem:[%s228 + $0x84] sm:%s221]
                %253 = vst [vmem:[%s229 + $0x2c] sm:%s221] %v252
                %v254 = vld [vmem:[%s228 + $0x90] sm:%s221]
                %255 = vst [vmem:[%s229 + $0x30] sm:%s221] %v254
                %v256 = vld [vmem:[%s228 + $0x9c] sm:%s221]
                %257 = vst [vmem:[%s229 + $0x34] sm:%s221] %v256
                %v258 = vld [vmem:[%s228 + $0xa8] sm:%s221]
                %259 = vst [vmem:[%s229 + $0x38] sm:%s221] %v258
                %v260 = vld [vmem:[%s228 + $0xb4] sm:%s221]
                %261 = vst [vmem:[%s229 + $0x3c] sm:%s221] %v260
              $region49: #{gpt_forward.12} parent=43 // loop_footer
                %s227 = sadd.s32 1, %s223
              $region50: #{gpt_forward.12} parent=43 // loop_footer_branch
                %222 = sbr.rel target = $region46
              $region51: #{gpt_forward.12} parent=43 // loop_exit
                _
            $region44: #{gpt_forward.12} parent=35 // pred_fallthru
              _
          $region36: #{gpt_forward.12} parent=31 // pred_fallthru
            _
          %314 = vnop
        $region32: #{gpt_forward.12} parent=23 // pred_fallthru
          _
        // Predicated region
        $region70: #{gpt_forward.12} parent=23 // pred_check
          %p315 = pneg %p137
        $region71: #{gpt_forward.12} parent=23 // pred_check_branch
          %317 = sbr.rel (%p315) target = $region73
        $region72: #{gpt_forward.12} parent=23 // pred_region
          %p318 = scmp.lt.s32.totalorder %s19, 2
          %s319 = scalar_select %p318, %s19, 2
          %s320 = scalar_lea.vmem %s4, %s319
        $region73: #{gpt_forward.12} parent=23 // pred_fallthru
          _
      $region24: #{gpt_forward.12} parent=5 // pred_fallthru
        _
      %p321 = scmp.le.s32.totalorder 1, %s11
      %p322 = scmp.lt.s32.totalorder %s11, 13
      %p323 = pnand %p321, %p322
      %p324 = pneg %p323
      // Predicated region
      $region74: #{gpt_forward.12} parent=5 // pred_check
        _
      $region75: #{gpt_forward.12} parent=5 // pred_check_branch
        %326 = sbr.rel (%p323) target = $region77
      $region76: #{gpt_forward.12} parent=5 // pred_region
        %s327 = ssub.s32 %s11, 1
        %s328 = sand.u32 %s104, 1
        %s329 = sand.u32 %s104, 1
        %s330 = smul.addr %s329, 64
        %s331 = scalar_lea.vmem [#allocation2], %s330
        // Predicated region
        $region78: #{gpt_forward.12} parent=76 // pred_check
          %p332 = pneg %p117
        $region79: #{gpt_forward.12} parent=76 // pred_check_branch
          %334 = sbr.rel (%p332) target = $region81
        $region80: #{gpt_forward.12} parent=76 // pred_region
          _
        $region81: #{gpt_forward.12} parent=76 // pred_fallthru
          _
        %s335 = smul.u32 16, %s20
        %p336 = scmp.lt.s32.totalorder %s335, 63
        %s337 = scalar_select %p336, %s335, 63
        %s338 = smul.addr %s337, 8
        %s339 = scalar_lea.vmem %s0, %s338
        %p340 = pneg %p49
        %p341 = pneg %p46
        %p342 = pneg %p70
        %p343 = pneg %p67
        %p344 = pneg %p91
        %p345 = pneg %p88
        %s346 = sand.u32 %s104, 1
        %s347 = sand.u32 %s104, 1
        %s348 = smul.addr %s347, 64
        %s349 = scalar_lea.vmem [#allocation2], %s348
        %p350 = pneg %p117
        %p351 = pneg %p114
        %p352 = scmp.lt.s32.totalorder %s21, 2
        %s353 = scalar_select %p352, %s21, 2
        %s354 = scalar_lea.vmem %s4, %s353
        %p355 = pneg %p143
        %p356 = pneg %p140
        %p357 = pneg %p171
        %p358 = pneg %p168
        %s359 = sand.u32 %s158, 1
        %s360 = sand.u32 %s158, 1
        %s361 = smul.addr %s360, 128
        %s362 = scalar_lea.vmem [#allocation3], %s361
        %s363 = smul.u32 16, %s20
        %p364 = scmp.lt.s32.totalorder %s363, 63
        %s365 = scalar_select %p364, %s363, 63
        %s366 = smul.addr %s365, 8
        %s367 = scalar_lea.vmem %s0, %s366
        %s368 = smul.u32 16, %s20
        %p369 = scmp.lt.s32.totalorder %s21, 2
        %s370 = scalar_select %p369, %s21, 2
        %s371 = scalar_lea.vmem %s4, %s370
        %s372 = smul.u32 16, %s20
        %v373 = vld [vmem:[%s367] sm:$0xff]
        %v374 = vld [vmem:[%s367 + $0x8] sm:$0xff]
        %v375 = vld [vmem:[%s367 + $0x10] sm:$0xff]
        %v376 = vld [vmem:[%s367 + $0x18] sm:$0xff]
        %v377 = vld [vmem:[%s367 + $0x20] sm:$0xff]
        %v378 = vld [vmem:[%s367 + $0x28] sm:$0xff]
        %v379 = vld [vmem:[%s367 + $0x30] sm:$0xff]
        %v380 = vld [vmem:[%s367 + $0x38] sm:$0xff]
        %v381 = vld [vmem:[%s367 + $0x40] sm:$0xff]
        %v382 = vld [vmem:[%s367 + $0x48] sm:$0xff]
        %v383 = vld [vmem:[%s367 + $0x50] sm:$0xff]
        %v384 = vld [vmem:[%s367 + $0x58] sm:$0xff]
        %v385 = vld [vmem:[%s367 + $0x60] sm:$0xff]
        %v386 = vld [vmem:[%s367 + $0x68] sm:$0xff]
        %v387 = vld [vmem:[%s367 + $0x70] sm:$0xff]
        %v388 = vld [vmem:[%s367 + $0x78] sm:$0xff]
        %389 = vadd.xlane.f32.xlu0 %v373
        %v390 = vpop.xlane.xlu0 %389
        %391 = vadd.xlane.f32.xlu0 %v374
        %v392 = vpop.xlane.xlu0 %391
        %393 = vadd.xlane.f32.xlu0 %v375
        %v394 = vpop.xlane.xlu0 %393
        %395 = vadd.xlane.f32.xlu0 %v376
        %v396 = vpop.xlane.xlu0 %395
        %397 = vadd.xlane.f32.xlu0 %v377
        %v398 = vpop.xlane.xlu0 %397
        %399 = vadd.xlane.f32.xlu0 %v378
        %v400 = vpop.xlane.xlu0 %399
        %401 = vadd.xlane.f32.xlu0 %v379
        %v402 = vpop.xlane.xlu0 %401
        %403 = vadd.xlane.f32.xlu0 %v380
        %v404 = vpop.xlane.xlu0 %403
        %405 = vadd.xlane.f32.xlu0 %v381
        %v406 = vpop.xlane.xlu0 %405
        %407 = vadd.xlane.f32.xlu0 %v382
        %v408 = vpop.xlane.xlu0 %407
        %409 = vadd.xlane.f32.xlu0 %v383
        %v410 = vpop.xlane.xlu0 %409
        %411 = vadd.xlane.f32.xlu0 %v384
        %v412 = vpop.xlane.xlu0 %411
        %413 = vadd.xlane.f32.xlu0 %v385
        %v414 = vpop.xlane.xlu0 %413
        %415 = vadd.xlane.f32.xlu0 %v386
        %v416 = vpop.xlane.xlu0 %415
        %417 = vadd.xlane.f32.xlu0 %v387
        %v418 = vpop.xlane.xlu0 %417
        %419 = vadd.xlane.f32.xlu0 %v388
        %v420 = vpop.xlane.xlu0 %419
        %v421 = vrcp.pop 128.0
        %v422 = vmul.f32 128.0, %v421
        %v423 = vsub.f32 1.0, %v422
        %v424 = vmul.f32 %v421, %v423
        %v425 = vadd.f32 %v421, %v424
        %vm426 = vweird.f32 %v421
        %v427 = vsel %vm426, %v421, %v425
        %v428 = vmul.f32 %v390, %v427
        %v429 = vmul.f32 %v392, %v427
        %v430 = vmul.f32 %v394, %v427
        %v431 = vmul.f32 %v396, %v427
        %v432 = vmul.f32 %v398, %v427
        %v433 = vmul.f32 %v400, %v427
        %v434 = vmul.f32 %v402, %v427
        %v435 = vmul.f32 %v404, %v427
        %v436 = vmul.f32 %v406, %v427
        %v437 = vmul.f32 %v408, %v427
        %v438 = vmul.f32 %v410, %v427
        %v439 = vmul.f32 %v412, %v427
        %v440 = vmul.f32 %v414, %v427
        %v441 = vmul.f32 %v416, %v427
        %v442 = vmul.f32 %v418, %v427
        %v443 = vmul.f32 %v420, %v427
        %v444 = vsub.f32 %v373, %v428
        %v445 = vsub.f32 %v374, %v429
        %v446 = vsub.f32 %v375, %v430
        %v447 = vsub.f32 %v376, %v431
        %v448 = vsub.f32 %v377, %v432
        %v449 = vsub.f32 %v378, %v433
        %v450 = vsub.f32 %v379, %v434
        %v451 = vsub.f32 %v380, %v435
        %v452 = vsub.f32 %v381, %v436
        %v453 = vsub.f32 %v382, %v437
        %v454 = vsub.f32 %v383, %v438
        %v455 = vsub.f32 %v384, %v439
        %v456 = vsub.f32 %v385, %v440
        %v457 = vsub.f32 %v386, %v441
        %v458 = vsub.f32 %v387, %v442
        %v459 = vsub.f32 %v388, %v443
        %v460 = vmul.f32 %v444, %v444
        %v461 = vmul.f32 %v445, %v445
        %v462 = vmul.f32 %v446, %v446
        %v463 = vmul.f32 %v447, %v447
        %v464 = vmul.f32 %v448, %v448
        %v465 = vmul.f32 %v449, %v449
        %v466 = vmul.f32 %v450, %v450
        %v467 = vmul.f32 %v451, %v451
        %v468 = vmul.f32 %v452, %v452
        %v469 = vmul.f32 %v453, %v453
        %v470 = vmul.f32 %v454, %v454
        %v471 = vmul.f32 %v455, %v455
        %v472 = vmul.f32 %v456, %v456
        %v473 = vmul.f32 %v457, %v457
        %v474 = vmul.f32 %v458, %v458
        %v475 = vmul.f32 %v459, %v459
        %476 = vadd.xlane.f32.xlu0 %v460
        %v477 = vpop.xlane.xlu0 %476
        %478 = vadd.xlane.f32.xlu0 %v461
        %v479 = vpop.xlane.xlu0 %478
        %480 = vadd.xlane.f32.xlu0 %v462
        %v481 = vpop.xlane.xlu0 %480
        %482 = vadd.xlane.f32.xlu0 %v463
        %v483 = vpop.xlane.xlu0 %482
        %484 = vadd.xlane.f32.xlu0 %v464
        %v485 = vpop.xlane.xlu0 %484
        %486 = vadd.xlane.f32.xlu0 %v465
        %v487 = vpop.xlane.xlu0 %486
        %488 = vadd.xlane.f32.xlu0 %v466
        %v489 = vpop.xlane.xlu0 %488
        %490 = vadd.xlane.f32.xlu0 %v467
        %v491 = vpop.xlane.xlu0 %490
        %492 = vadd.xlane.f32.xlu0 %v468
        %v493 = vpop.xlane.xlu0 %492
        %494 = vadd.xlane.f32.xlu0 %v469
        %v495 = vpop.xlane.xlu0 %494
        %496 = vadd.xlane.f32.xlu0 %v470
        %v497 = vpop.xlane.xlu0 %496
        %498 = vadd.xlane.f32.xlu0 %v471
        %v499 = vpop.xlane.xlu0 %498
        %500 = vadd.xlane.f32.xlu0 %v472
        %v501 = vpop.xlane.xlu0 %500
        %502 = vadd.xlane.f32.xlu0 %v473
        %v503 = vpop.xlane.xlu0 %502
        %504 = vadd.xlane.f32.xlu0 %v474
        %v505 = vpop.xlane.xlu0 %504
        %506 = vadd.xlane.f32.xlu0 %v475
        %v507 = vpop.xlane.xlu0 %506
        %v508 = vmul.f32 %v477, %v427
        %v509 = vmul.f32 %v479, %v427
        %v510 = vmul.f32 %v481, %v427
        %v511 = vmul.f32 %v483, %v427
        %v512 = vmul.f32 %v485, %v427
        %v513 = vmul.f32 %v487, %v427
        %v514 = vmul.f32 %v489, %v427
        %v515 = vmul.f32 %v491, %v427
        %v516 = vmul.f32 %v493, %v427
        %v517 = vmul.f32 %v495, %v427
        %v518 = vmul.f32 %v497, %v427
        %v519 = vmul.f32 %v499, %v427
        %v520 = vmul.f32 %v501, %v427
        %v521 = vmul.f32 %v503, %v427
        %v522 = vmul.f32 %v505, %v427
        %v523 = vmul.f32 %v507, %v427
        %v524 = vadd.f32 %v508, 1e-05
        %v525 = vadd.f32 %v509, 1e-05
        %v526 = vadd.f32 %v510, 1e-05
        %v527 = vadd.f32 %v511, 1e-05
        %v528 = vadd.f32 %v512, 1e-05
        %v529 = vadd.f32 %v513, 1e-05
        %v530 = vadd.f32 %v514, 1e-05
        %v531 = vadd.f32 %v515, 1e-05
        %v532 = vadd.f32 %v516, 1e-05
        %v533 = vadd.f32 %v517, 1e-05
        %v534 = vadd.f32 %v518, 1e-05
        %v535 = vadd.f32 %v519, 1e-05
        %v536 = vadd.f32 %v520, 1e-05
        %v537 = vadd.f32 %v521, 1e-05
        %v538 = vadd.f32 %v522, 1e-05
        %v539 = vadd.f32 %v523, 1e-05
        %v540 = vrsqrt.pop %v524
        %v541 = vmul.f32 %v540, %v524
        %v542 = vmul.f32 %v541, %v540
        %v543 = vmul.f32 0.5, %v542
        %v544 = vsub.f32 1.5, %v543
        %v545 = vmul.f32 %v540, %v544
        %vm546 = vweird.f32 %v524
        %vm547 = vweird.f32 %v540
        %vm548 = vmor %vm546, %vm547
        %v549 = vsel %vm548, %v540, %v545
        %v550 = vrsqrt.pop %v525
        %v551 = vmul.f32 %v550, %v525
        %v552 = vmul.f32 %v551, %v550
        %v553 = vmul.f32 0.5, %v552
        %v554 = vsub.f32 1.5, %v553
        %v555 = vmul.f32 %v550, %v554
        %vm556 = vweird.f32 %v525
        %vm557 = vweird.f32 %v550
        %vm558 = vmor %vm556, %vm557
        %v559 = vsel %vm558, %v550, %v555
        %v560 = vrsqrt.pop %v526
        %v561 = vmul.f32 %v560, %v526
        %v562 = vmul.f32 %v561, %v560
        %v563 = vmul.f32 0.5, %v562
        %v564 = vsub.f32 1.5, %v563
        %v565 = vmul.f32 %v560, %v564
        %vm566 = vweird.f32 %v526
        %vm567 = vweird.f32 %v560
        %vm568 = vmor %vm566, %vm567
        %v569 = vsel %vm568, %v560, %v565
        %v570 = vrsqrt.pop %v527
        %v571 = vmul.f32 %v570, %v527
        %v572 = vmul.f32 %v571, %v570
        %v573 = vmul.f32 0.5, %v572
        %v574 = vsub.f32 1.5, %v573
        %v575 = vmul.f32 %v570, %v574
        %vm576 = vweird.f32 %v527
        %vm577 = vweird.f32 %v570
        %vm578 = vmor %vm576, %vm577
        %v579 = vsel %vm578, %v570, %v575
        %v580 = vrsqrt.pop %v528
        %v581 = vmul.f32 %v580, %v528
        %v582 = vmul.f32 %v581, %v580
        %v583 = vmul.f32 0.5, %v582
        %v584 = vsub.f32 1.5, %v583
        %v585 = vmul.f32 %v580, %v584
        %vm586 = vweird.f32 %v528
        %vm587 = vweird.f32 %v580
        %vm588 = vmor %vm586, %vm587
        %v589 = vsel %vm588, %v580, %v585
        %v590 = vrsqrt.pop %v529
        %v591 = vmul.f32 %v590, %v529
        %v592 = vmul.f32 %v591, %v590
        %v593 = vmul.f32 0.5, %v592
        %v594 = vsub.f32 1.5, %v593
        %v595 = vmul.f32 %v590, %v594
        %vm596 = vweird.f32 %v529
        %vm597 = vweird.f32 %v590
        %vm598 = vmor %vm596, %vm597
        %v599 = vsel %vm598, %v590, %v595
        %v600 = vrsqrt.pop %v530
        %v601 = vmul.f32 %v600, %v530
        %v602 = vmul.f32 %v601, %v600
        %v603 = vmul.f32 0.5, %v602
        %v604 = vsub.f32 1.5, %v603
        %v605 = vmul.f32 %v600, %v604
        %vm606 = vweird.f32 %v530
        %vm607 = vweird.f32 %v600
        %vm608 = vmor %vm606, %vm607
        %v609 = vsel %vm608, %v600, %v605
        %v610 = vrsqrt.pop %v531
        %v611 = vmul.f32 %v610, %v531
        %v612 = vmul.f32 %v611, %v610
        %v613 = vmul.f32 0.5, %v612
        %v614 = vsub.f32 1.5, %v613
        %v615 = vmul.f32 %v610, %v614
        %vm616 = vweird.f32 %v531
        %vm617 = vweird.f32 %v610
        %vm618 = vmor %vm616, %vm617
        %v619 = vsel %vm618, %v610, %v615
        %v620 = vrsqrt.pop %v532
        %v621 = vmul.f32 %v620, %v532
        %v622 = vmul.f32 %v621, %v620
        %v623 = vmul.f32 0.5, %v622
        %v624 = vsub.f32 1.5, %v623
        %v625 = vmul.f32 %v620, %v624
        %vm626 = vweird.f32 %v532
        %vm627 = vweird.f32 %v620
        %vm628 = vmor %vm626, %vm627
        %v629 = vsel %vm628, %v620, %v625
        %v630 = vrsqrt.pop %v533
        %v631 = vmul.f32 %v630, %v533
        %v632 = vmul.f32 %v631, %v630
        %v633 = vmul.f32 0.5, %v632
        %v634 = vsub.f32 1.5, %v633
        %v635 = vmul.f32 %v630, %v634
        %vm636 = vweird.f32 %v533
        %vm637 = vweird.f32 %v630
        %vm638 = vmor %vm636, %vm637
        %v639 = vsel %vm638, %v630, %v635
        %v640 = vrsqrt.pop %v534
        %v641 = vmul.f32 %v640, %v534
        %v642 = vmul.f32 %v641, %v640
        %v643 = vmul.f32 0.5, %v642
        %v644 = vsub.f32 1.5, %v643
        %v645 = vmul.f32 %v640, %v644
        %vm646 = vweird.f32 %v534
        %vm647 = vweird.f32 %v640
        %vm648 = vmor %vm646, %vm647
        %v649 = vsel %vm648, %v640, %v645
        %v650 = vrsqrt.pop %v535
        %v651 = vmul.f32 %v650, %v535
        %v652 = vmul.f32 %v651, %v650
        %v653 = vmul.f32 0.5, %v652
        %v654 = vsub.f32 1.5, %v653
        %v655 = vmul.f32 %v650, %v654
        %vm656 = vweird.f32 %v535
        %vm657 = vweird.f32 %v650
        %vm658 = vmor %vm656, %vm657
        %v659 = vsel %vm658, %v650, %v655
        %v660 = vrsqrt.pop %v536
        %v661 = vmul.f32 %v660, %v536
        %v662 = vmul.f32 %v661, %v660
        %v663 = vmul.f32 0.5, %v662
        %v664 = vsub.f32 1.5, %v663
        %v665 = vmul.f32 %v660, %v664
        %vm666 = vweird.f32 %v536
        %vm667 = vweird.f32 %v660
        %vm668 = vmor %vm666, %vm667
        %v669 = vsel %vm668, %v660, %v665
        %v670 = vrsqrt.pop %v537
        %v671 = vmul.f32 %v670, %v537
        %v672 = vmul.f32 %v671, %v670
        %v673 = vmul.f32 0.5, %v672
        %v674 = vsub.f32 1.5, %v673
        %v675 = vmul.f32 %v670, %v674
        %vm676 = vweird.f32 %v537
        %vm677 = vweird.f32 %v670
        %vm678 = vmor %vm676, %vm677
        %v679 = vsel %vm678, %v670, %v675
        %v680 = vrsqrt.pop %v538
        %v681 = vmul.f32 %v680, %v538
        %v682 = vmul.f32 %v681, %v680
        %v683 = vmul.f32 0.5, %v682
        %v684 = vsub.f32 1.5, %v683
        %v685 = vmul.f32 %v680, %v684
        %vm686 = vweird.f32 %v538
        %vm687 = vweird.f32 %v680
        %vm688 = vmor %vm686, %vm687
        %v689 = vsel %vm688, %v680, %v685
        %v690 = vrsqrt.pop %v539
        %v691 = vmul.f32 %v690, %v539
        %v692 = vmul.f32 %v691, %v690
        %v693 = vmul.f32 0.5, %v692
        %v694 = vsub.f32 1.5, %v693
        %v695 = vmul.f32 %v690, %v694
        %vm696 = vweird.f32 %v539
        %vm697 = vweird.f32 %v690
        %vm698 = vmor %vm696, %vm697
        %v699 = vsel %vm698, %v690, %v695
        %v700 = vmul.f32 %v444, %v549
        %v701 = vmul.f32 %v445, %v559
        %v702 = vmul.f32 %v446, %v569
        %v703 = vmul.f32 %v447, %v579
        %v704 = vmul.f32 %v448, %v589
        %v705 = vmul.f32 %v449, %v599
        %v706 = vmul.f32 %v450, %v609
        %v707 = vmul.f32 %v451, %v619
        %v708 = vmul.f32 %v452, %v629
        %v709 = vmul.f32 %v453, %v639
        %v710 = vmul.f32 %v454, %v649
        %v711 = vmul.f32 %v455, %v659
        %v712 = vmul.f32 %v456, %v669
        %v713 = vmul.f32 %v457, %v679
        %v714 = vmul.f32 %v458, %v689
        %v715 = vmul.f32 %v459, %v699
        %v716 = vld [vmem:[%s1] sm:$0x1]
        %v718 = vperm.slane %v716, 0
        %v720 = vmul.f32 %v700, %v718
        %v721 = vmul.f32 %v701, %v718
        %v722 = vmul.f32 %v702, %v718
        %v723 = vmul.f32 %v703, %v718
        %v724 = vmul.f32 %v704, %v718
        %v725 = vmul.f32 %v705, %v718
        %v726 = vmul.f32 %v706, %v718
        %v727 = vmul.f32 %v707, %v718
        %v728 = vmul.f32 %v708, %v718
        %v729 = vmul.f32 %v709, %v718
        %v730 = vmul.f32 %v710, %v718
        %v731 = vmul.f32 %v711, %v718
        %v732 = vmul.f32 %v712, %v718
        %v733 = vmul.f32 %v713, %v718
        %v734 = vmul.f32 %v714, %v718
        %v735 = vmul.f32 %v715, %v718
        %v736 = vld [vmem:[%s2] sm:$0x1]
        %v738 = vperm.slane %v736, 0
        %v740 = vadd.f32 %v720, %v738
        %v741 = vadd.f32 %v721, %v738
        %v742 = vadd.f32 %v722, %v738
        %v743 = vadd.f32 %v723, %v738
        %v744 = vadd.f32 %v724, %v738
        %v745 = vadd.f32 %v725, %v738
        %v746 = vadd.f32 %v726, %v738
        %v747 = vadd.f32 %v727, %v738
        %v748 = vadd.f32 %v728, %v738
        %v749 = vadd.f32 %v729, %v738
        %v750 = vadd.f32 %v730, %v738
        %v751 = vadd.f32 %v731, %v738
        %v752 = vadd.f32 %v732, %v738
        %v753 = vadd.f32 %v733, %v738
        %v754 = vadd.f32 %v734, %v738
        %v755 = vadd.f32 %v735, %v738
        %v756 = vpack.c.bf16 %v741, %v740
        %v757 = vpack.c.bf16 %v743, %v742
        %v758 = vpack.c.bf16 %v745, %v744
        %v759 = vpack.c.bf16 %v747, %v746
        %v760 = vpack.c.bf16 %v749, %v748
        %v761 = vpack.c.bf16 %v751, %v750
        %v762 = vpack.c.bf16 %v753, %v752
        %v763 = vpack.c.bf16 %v755, %v754
        %v764 = vld [vmem:[%s331] sm:$0xf]
        %v765 = vld [vmem:[%s331 + $0x4] sm:$0xf]
        %v766 = vld [vmem:[%s331 + $0x8] sm:$0xf]
        %v767 = vld [vmem:[%s331 + $0xc] sm:$0xf]
        %v768 = vld [vmem:[%s331 + $0x10] sm:$0xf]
        %v769 = vld [vmem:[%s331 + $0x14] sm:$0xf]
        %v770 = vld [vmem:[%s331 + $0x18] sm:$0xf]
        %v771 = vld [vmem:[%s331 + $0x1c] sm:$0xf]
        %v772 = vld [vmem:[%s331 + $0x20] sm:$0xf]
        %v773 = vld [vmem:[%s331 + $0x24] sm:$0xf]
        %v774 = vld [vmem:[%s331 + $0x28] sm:$0xf]
        %v775 = vld [vmem:[%s331 + $0x2c] sm:$0xf]
        %v776 = vld [vmem:[%s331 + $0x30] sm:$0xf]
        %v777 = vld [vmem:[%s331 + $0x34] sm:$0xf]
        %v778 = vld [vmem:[%s331 + $0x38] sm:$0xf]
        %v779 = vld [vmem:[%s331 + $0x3c] sm:$0xf]
        %v780 = vld [vmem:[%s371] sm:$0x1]
        %v782 = vperm.slane %v780, 0
        %v800 = vunpack.c.l.b16 %v764
        %v801 = vunpack.c.l.b16 %v765
        %v802 = vunpack.c.l.b16 %v766
        %v803 = vunpack.c.l.b16 %v767
        %v804 = vunpack.c.l.b16 %v768
        %v805 = vunpack.c.l.b16 %v769
        %v806 = vunpack.c.l.b16 %v770
        %v807 = vunpack.c.l.b16 %v771
        %v808 = vunpack.c.l.b16 %v772
        %v809 = vunpack.c.l.b16 %v773
        %v810 = vunpack.c.l.b16 %v774
        %v811 = vunpack.c.l.b16 %v775
        %v812 = vunpack.c.l.b16 %v776
        %v813 = vunpack.c.l.b16 %v777
        %v814 = vunpack.c.l.b16 %v778
        %v815 = vunpack.c.l.b16 %v779
        %v816 = vpack.c.b16 %v801, %v800
        %v817 = vpack.c.b16 %v803, %v802
        %v818 = vpack.c.b16 %v805, %v804
        %v819 = vpack.c.b16 %v807, %v806
        %v820 = vpack.c.b16 %v809, %v808
        %v821 = vpack.c.b16 %v811, %v810
        %v822 = vpack.c.b16 %v813, %v812
        %v823 = vpack.c.b16 %v815, %v814
        %832 = vmatpush.bf16.msra.mxu0 %v823
        %833 = vmatpush.bf16.msra.mxu0 %v822
        %834 = vmatpush.bf16.msra.mxu0 %v821
        %835 = vmatpush.bf16.msra.mxu0 %v820
        %836 = vmatpush.bf16.msra.mxu0 %v819
        %837 = vmatpush.bf16.msra.mxu0 %v818
        %838 = vmatpush.bf16.msra.mxu0 %v817
        %839 = vmatpush.bf16.msra.mxu0 %v816
        %840 = vmatmul.bf16.gmra.mxu0 %v756
        %v841 = vpop.f32.mrf.mxu0
        %v842 = vadd.f32 %v782, %v841
        %v843 = vpop.f32.mrf.mxu0
        %v844 = vadd.f32 %v782, %v843
        %845 = vmatmul.bf16.gmra.mxu0 %v757
        %v846 = vpop.f32.mrf.mxu0
        %v847 = vadd.f32 %v782, %v846
        %v848 = vpop.f32.mrf.mxu0
        %v849 = vadd.f32 %v782, %v848
        %850 = vmatmul.bf16.gmra.mxu0 %v758
        %v851 = vpop.f32.mrf.mxu0
        %v852 = vadd.f32 %v782, %v851
        %v853 = vpop.f32.mrf.mxu0
        %v854 = vadd.f32 %v782, %v853
        %855 = vmatmul.bf16.gmra.mxu0 %v759
        %v856 = vpop.f32.mrf.mxu0
        %v857 = vadd.f32 %v782, %v856
        %v858 = vpop.f32.mrf.mxu0
        %v859 = vadd.f32 %v782, %v858
        %860 = vmatmul.bf16.gmra.mxu0 %v760
        %v861 = vpop.f32.mrf.mxu0
        %v862 = vadd.f32 %v782, %v861
        %v863 = vpop.f32.mrf.mxu0
        %v864 = vadd.f32 %v782, %v863
        %865 = vmatmul.bf16.gmra.mxu0 %v761
        %v866 = vpop.f32.mrf.mxu0
        %v867 = vadd.f32 %v782, %v866
        %v868 = vpop.f32.mrf.mxu0
        %v869 = vadd.f32 %v782, %v868
        %870 = vmatmul.bf16.gmra.mxu0 %v762
        %v871 = vpop.f32.mrf.mxu0
        %v872 = vadd.f32 %v782, %v871
        %v873 = vpop.f32.mrf.mxu0
        %v874 = vadd.f32 %v782, %v873
        %875 = vmatmul.bf16.gmra.mxu0 %v763
        %v876 = vpop.f32.mrf.mxu0
        %v877 = vadd.f32 %v782, %v876
        %v878 = vpop.f32.mrf.mxu0
        %v879 = vadd.f32 %v782, %v878
        %880 = vdwg.mxu0
        %881 = vst [vmem:[%s362] sm:$0xff] %v842
        %882 = vst [vmem:[%s362 + $0x8] sm:$0xff] %v844
        %883 = vst [vmem:[%s362 + $0x10] sm:$0xff] %v847
        %884 = vst [vmem:[%s362 + $0x18] sm:$0xff] %v849
        %885 = vst [vmem:[%s362 + $0x20] sm:$0xff] %v852
        %886 = vst [vmem:[%s362 + $0x28] sm:$0xff] %v854
        %887 = vst [vmem:[%s362 + $0x30] sm:$0xff] %v857
        %888 = vst [vmem:[%s362 + $0x38] sm:$0xff] %v859
        %889 = vst [vmem:[%s362 + $0x40] sm:$0xff] %v862
        %890 = vst [vmem:[%s362 + $0x48] sm:$0xff] %v864
        %891 = vst [vmem:[%s362 + $0x50] sm:$0xff] %v867
        %892 = vst [vmem:[%s362 + $0x58] sm:$0xff] %v869
        %893 = vst [vmem:[%s362 + $0x60] sm:$0xff] %v872
        %894 = vst [vmem:[%s362 + $0x68] sm:$0xff] %v874
        %895 = vst [vmem:[%s362 + $0x70] sm:$0xff] %v877
        %896 = vst [vmem:[%s362 + $0x78] sm:$0xff] %v879
        %s897 = sand.u32 %s158, 1
        %s898 = sand.u32 %s158, 1
        %s899 = smul.addr %s898, 128
        %s900 = scalar_lea.vmem [#allocation3], %s899
        // Predicated region
        $region82: #{gpt_forward.12} parent=76 // pred_check
          %p901 = pneg %p168
        $region83: #{gpt_forward.12} parent=76 // pred_check_branch
          %903 = sbr.rel (%p901) target = $region85
        $region84: #{gpt_forward.12} parent=76 // pred_region
          %s904 = smul.u32 16, %s20
          %s905 = smul.addr %s904, 3
          %s906 = sadd.s32 %s21, %s905
          %s907 = smul.addr %s906, 8
          %s908 = scalar_lea.vmem %s5, %s907
          // Predicated region
          $region86: #{gpt_forward.12} parent=84 // pred_check
            _
          $region87: #{gpt_forward.12} parent=84 // pred_check_branch
            %910 = sbr.rel (0) target = $region89
          $region88: #{gpt_forward.12} parent=84 // pred_region
            // Predicated region
            $region90: #{gpt_forward.12} parent=88 // pred_check
              _
            $region91: #{gpt_forward.12} parent=88 // pred_check_branch
              %912 = sbr.rel (0) target = $region93
            $region92: #{gpt_forward.12} parent=88 // pred_region
              // Predicated region
              $region105: #{gpt_forward.12} parent=92 // pred_check
                _
              $region106: #{gpt_forward.12} parent=92 // pred_check_branch
                %958 = sbr.rel (0) target = $region108
              $region107: #{gpt_forward.12} parent=92 // pred_region
                loop: start=0, step=1, limit=1
                $region109: #{gpt_forward.12} parent=107 // loop_pre_header
                  _
                $region110: #{gpt_forward.12} parent=107 // loop_header
                  %s960 = sphi 0, %s964
                  %p961 = scmp.ge.s32.totalorder %s960, 1
                  %s965 = sphi %s900, %s900
                  %s966 = sphi %s908, %s908
                $region111: #{gpt_forward.12} parent=107 // loop_header_branch
                  %963 = sbr.rel (%p961) target = $region115
                $region112: #{gpt_forward.12} parent=107 // loop_body
                  %v967 = vld [vmem:[%s965] sm:$0xff]
                  %968 = vst [vmem:[%s966] sm:$0xff] %v967
                  %v969 = vld [vmem:[%s965 + $0x8] sm:$0xff]
                  %970 = vst [vmem:[%s966 + $0x18] sm:$0xff] %v969
                  %v971 = vld [vmem:[%s965 + $0x10] sm:$0xff]
                  %972 = vst [vmem:[%s966 + $0x30] sm:$0xff] %v971
                  %v973 = vld [vmem:[%s965 + $0x18] sm:$0xff]
                  %974 = vst [vmem:[%s966 + $0x48] sm:$0xff] %v973
                  %v975 = vld [vmem:[%s965 + $0x20] sm:$0xff]
                  %976 = vst [vmem:[%s966 + $0x60] sm:$0xff] %v975
                  %v977 = vld [vmem:[%s965 + $0x28] sm:$0xff]
                  %978 = vst [vmem:[%s966 + $0x78] sm:$0xff] %v977
                  %v979 = vld [vmem:[%s965 + $0x30] sm:$0xff]
                  %980 = vst [vmem:[%s966 + $0x90] sm:$0xff] %v979
                  %v981 = vld [vmem:[%s965 + $0x38] sm:$0xff]
                  %982 = vst [vmem:[%s966 + $0xa8] sm:$0xff] %v981
                  %v983 = vld [vmem:[%s965 + $0x40] sm:$0xff]
                  %984 = vst [vmem:[%s966 + $0xc0] sm:$0xff] %v983
                  %v985 = vld [vmem:[%s965 + $0x48] sm:$0xff]
                  %986 = vst [vmem:[%s966 + $0xd8] sm:$0xff] %v985
                  %v987 = vld [vmem:[%s965 + $0x50] sm:$0xff]
                  %988 = vst [vmem:[%s966 + $0xf0] sm:$0xff] %v987
                  %v989 = vld [vmem:[%s965 + $0x58] sm:$0xff]
                  %990 = vst [vmem:[%s966 + $0x108] sm:$0xff] %v989
                  %v991 = vld [vmem:[%s965 + $0x60] sm:$0xff]
                  %992 = vst [vmem:[%s966 + $0x120] sm:$0xff] %v991
                  %v993 = vld [vmem:[%s965 + $0x68] sm:$0xff]
                  %994 = vst [vmem:[%s966 + $0x138] sm:$0xff] %v993
                  %v995 = vld [vmem:[%s965 + $0x70] sm:$0xff]
                  %996 = vst [vmem:[%s966 + $0x150] sm:$0xff] %v995
                  %v997 = vld [vmem:[%s965 + $0x78] sm:$0xff]
                  %998 = vst [vmem:[%s966 + $0x168] sm:$0xff] %v997
                $region113: #{gpt_forward.12} parent=107 // loop_footer
                  %s964 = sadd.s32 1, %s960
                $region114: #{gpt_forward.12} parent=107 // loop_footer_branch
                  %959 = sbr.rel target = $region110
                $region115: #{gpt_forward.12} parent=107 // loop_exit
                  _
              $region108: #{gpt_forward.12} parent=92 // pred_fallthru
                _
              // Predicated region
              $region116: #{gpt_forward.12} parent=92 // pred_check
                _
              $region117: #{gpt_forward.12} parent=92 // pred_check_branch
                %1000 = sbr.rel target = $region119
              $region118: #{gpt_forward.12} parent=92 // pred_region
                _
              $region119: #{gpt_forward.12} parent=92 // pred_fallthru
                _
            $region93: #{gpt_forward.12} parent=88 // pred_fallthru
              _
            // Predicated region
            $region94: #{gpt_forward.12} parent=88 // pred_check
              _
            $region95: #{gpt_forward.12} parent=88 // pred_check_branch
              %914 = sbr.rel target = $region97
            $region96: #{gpt_forward.12} parent=88 // pred_region
              %s916 = ssub.s32 256, 1
              loop: start=0, step=1, limit=1
              $region98: #{gpt_forward.12} parent=96 // loop_pre_header
                _
              $region99: #{gpt_forward.12} parent=96 // loop_header
                %s918 = sphi 0, %s922
                %p919 = scmp.ge.s32.totalorder %s918, 1
                %s923 = sphi %s900, %s900
                %s924 = sphi %s908, %s908
              $region100: #{gpt_forward.12} parent=96 // loop_header_branch
                %921 = sbr.rel (%p919) target = $region104
              $region101: #{gpt_forward.12} parent=96 // loop_body
                %v925 = vld [vmem:[%s923] sm:%s916]
                %926 = vst [vmem:[%s924] sm:%s916] %v925
                %v927 = vld [vmem:[%s923 + $0x8] sm:%s916]
                %928 = vst [vmem:[%s924 + $0x18] sm:%s916] %v927
                %v929 = vld [vmem:[%s923 + $0x10] sm:%s916]
                %930 = vst [vmem:[%s924 + $0x30] sm:%s916] %v929
                %v931 = vld [vmem:[%s923 + $0x18] sm:%s916]
                %932 = vst [vmem:[%s924 + $0x48] sm:%s916] %v931
                %v933 = vld [vmem:[%s923 + $0x20] sm:%s916]
                %934 = vst [vmem:[%s924 + $0x60] sm:%s916] %v933
                %v935 = vld [vmem:[%s923 + $0x28] sm:%s916]
                %936 = vst [vmem:[%s924 + $0x78] sm:%s916] %v935
                %v937 = vld [vmem:[%s923 + $0x30] sm:%s916]
                %938 = vst [vmem:[%s924 + $0x90] sm:%s916] %v937
                %v939 = vld [vmem:[%s923 + $0x38] sm:%s916]
                %940 = vst [vmem:[%s924 + $0xa8] sm:%s916] %v939
                %v941 = vld [vmem:[%s923 + $0x40] sm:%s916]
                %942 = vst [vmem:[%s924 + $0xc0] sm:%s916] %v941
                %v943 = vld [vmem:[%s923 + $0x48] sm:%s916]
                %944 = vst [vmem:[%s924 + $0xd8] sm:%s916] %v943
                %v945 = vld [vmem:[%s923 + $0x50] sm:%s916]
                %946 = vst [vmem:[%s924 + $0xf0] sm:%s916] %v945
                %v947 = vld [vmem:[%s923 + $0x58] sm:%s916]
                %948 = vst [vmem:[%s924 + $0x108] sm:%s916] %v947
                %v949 = vld [vmem:[%s923 + $0x60] sm:%s916]
                %950 = vst [vmem:[%s924 + $0x120] sm:%s916] %v949
                %v951 = vld [vmem:[%s923 + $0x68] sm:%s916]
                %952 = vst [vmem:[%s924 + $0x138] sm:%s916] %v951
                %v953 = vld [vmem:[%s923 + $0x70] sm:%s916]
                %954 = vst [vmem:[%s924 + $0x150] sm:%s916] %v953
                %v955 = vld [vmem:[%s923 + $0x78] sm:%s916]
                %956 = vst [vmem:[%s924 + $0x168] sm:%s916] %v955
              $region102: #{gpt_forward.12} parent=96 // loop_footer
                %s922 = sadd.s32 1, %s918
              $region103: #{gpt_forward.12} parent=96 // loop_footer_branch
                %917 = sbr.rel target = $region99
              $region104: #{gpt_forward.12} parent=96 // loop_exit
                _
            $region97: #{gpt_forward.12} parent=88 // pred_fallthru
              _
          $region89: #{gpt_forward.12} parent=84 // pred_fallthru
            _
          %1001 = vnop
        $region85: #{gpt_forward.12} parent=76 // pred_fallthru
          _
      $region77: #{gpt_forward.12} parent=5 // pred_fallthru
        _
      %p1002 = scmp.le.s32.totalorder 2, %s11
      // Predicated region
      $region120: #{gpt_forward.12} parent=5 // pred_check
        %p1003 = pneg %p1002
      $region121: #{gpt_forward.12} parent=5 // pred_check_branch
        %1005 = sbr.rel (%p1003) target = $region123
      $region122: #{gpt_forward.12} parent=5 // pred_region
        %s1006 = ssub.s32 %s11, 2
        // Predicated region
        $region124: #{gpt_forward.12} parent=122 // pred_check
          %p1007 = pneg %p174
        $region125: #{gpt_forward.12} parent=122 // pred_check_branch
          %1009 = sbr.rel (%p1007) target = $region127
        $region126: #{gpt_forward.12} parent=122 // pred_region
          %s1010 = sand.u32 %s159, 1
          %s1011 = sand.u32 %s159, 1
          %s1012 = smul.addr %s1011, 128
          %s1013 = scalar_lea.vmem [#allocation3], %s1012
        $region127: #{gpt_forward.12} parent=122 // pred_fallthru
          _
      $region123: #{gpt_forward.12} parent=5 // pred_fallthru
        _
    $region6: #{gpt_forward.12} parent=1 // loop_footer
      %s15 = sadd.s32 1, %s11
    $region7: #{gpt_forward.12} parent=1 // loop_footer_branch
      %10 = sbr.rel target = $region3
    $region8: #{gpt_forward.12} parent=1 // loop_exit
      _

// kernel: gpt_forward.14
$region0: #{gpt_forward.14}
  #allocation0 [shape = 'u32[]', space=smem, size = 0x4, offset = 0x4, fixed_abs, tag = 'smem constant byte address 0x4 - core index']
  #allocation1 [shape = 'u32[72,128]{1,0:T(1,128)}', space=vmem, size = 0x9000, scoped, tag = 'internal scratch']
  #allocation2 [shape = 'f32[128,128]{1,0:T(8,128)}', space=vmem, size = 0x10000, scoped, tag = 'scratch operand']
  %s0 = inlined_call_operand.vmem [shape: f32[512,128], index: 0, kind: input, shape index: {}]
  %s1 = inlined_call_operand.vmem [shape: bf16[128,128], index: 1, kind: input, shape index: {}]
  %s2 = inlined_call_operand.vmem [shape: f32[1,128], index: 2, kind: input, shape index: {}]
  %s3 = inlined_call_operand.vmem [shape: f32[512,128], index: 3, kind: input, shape index: {}]
  %s4 = inlined_call_operand.vmem [shape: f32[512,128], index: 4, kind: output, shape index: {}]
  %s5 = sld [smem:[#allocation0]]
  $region57: #{gpt_forward.14} parent=0
    _
  %s7 = ssub.s32 1, %s5
  %s8 = scalar_select 0, %s7, %s5
  loop: start=0, step=1, limit=6
  $region2: #{gpt_forward.14} parent=0 // loop_pre_header
    _
  $region3: #{gpt_forward.14} parent=0 // loop_header
    %s10 = sphi 0, %s14
    %p11 = scmp.ge.s32.totalorder %s10, 6
    %s17 = sphi 0, %s36
    %s18 = sphi 0, %s32
    %s19 = sphi 0, %s28
    %s20 = sphi 0, %s17
    %s21 = sphi 0, %s18
    %s22 = sphi 0, %s19
    %s23 = sphi 0, %s20
    %s24 = sphi 0, %s21
    %s25 = sphi 0, %s22
    %s41 = sphi 0, %s43
    %s44 = sphi 0, %s41
    %s45 = sphi 0, %s44
    %s61 = sphi 0, %s45
    %s69 = sphi 0, %s71
    %s72 = sphi 0, %s69
    %s73 = sphi 0, %s72
    %s89 = sphi 0, %s73
    %s95 = sphi 0, %s97
    %s98 = sphi 0, %s95
    %s99 = sphi 0, %s98
    %s115 = sphi 0, %s99
    %s123 = sphi 0, %s125
    %s126 = sphi 0, %s123
    %s127 = sphi 0, %s126
    %s143 = sphi 0, %s127
    %s151 = sphi 0, %s153
    %s154 = sphi 0, %s151
    %s155 = sphi 0, %s154
    %s171 = sphi 0, %s155
  $region4: #{gpt_forward.14} parent=0 // loop_header_branch
    %13 = sbr.rel (%p11) target = $region8
  $region5: #{gpt_forward.14} parent=0 // loop_body
    %s15 = ssub.s32 %s10, 1
    %s16 = ssub.s32 %s10, 2
    %s26 = sadd.s32 1, %s19
    %p27 = scmp.ge.s32.totalorder %s26, 1
    %s28 = scalar_select %p27, 0, %s26
    %s29 = sadd.s32 1, %s18
    %s30 = scalar_select %p27, %s29, %s18
    %p31 = scmp.ge.s32.totalorder %s30, 1
    %s32 = scalar_select %p31, 0, %s30
    %s33 = sadd.s32 1, %s17
    %s34 = scalar_select %p31, %s33, %s17
    %p35 = scmp.ge.s32.totalorder %s34, 4
    %s36 = scalar_select %p35, 0, %s34
    %s37 = ssub.s32 %s17, %s36
    %s38 = ssub.s32 %s19, %s28
    %s39 = sor.u32 %s37, %s38
    %p40 = scmp.eq.s32.totalorder %s39, 0
    %s42 = sadd.s32 %s41, 1
    %s43 = scalar_select %p40, %s41, %s42
    %p46 = pneg %p40
    %p47 = scmp.eq.s32.totalorder %s10, 3
    %p48 = por %p46, %p47
    %p49 = scmp.ne.s32.totalorder %s41, %s44
    %p50 = scmp.eq.s32.totalorder %s10, 0
    %p51 = por %p49, %p50
    %p52 = scmp.ne.s32.totalorder %s41, %s44
    %p53 = scmp.eq.s32.totalorder %s15, 3
    %p54 = por %p52, %p53
    %p55 = scmp.ne.s32.totalorder %s44, %s45
    %p56 = scmp.eq.s32.totalorder %s15, 0
    %p57 = por %p55, %p56
    %p58 = scmp.ne.s32.totalorder %s44, %s45
    %p59 = scmp.eq.s32.totalorder %s16, 3
    %p60 = por %p58, %p59
    %p62 = scmp.ne.s32.totalorder %s45, %s61
    %p63 = scmp.eq.s32.totalorder %s16, 0
    %p64 = por %p62, %p63
    %s65 = ssub.s32 %s19, %s28
    %s66 = ssub.s32 %s18, %s32
    %s67 = sor.u32 %s65, %s66
    %p68 = scmp.eq.s32.totalorder %s67, 0
    %s70 = sadd.s32 %s69, 1
    %s71 = scalar_select %p68, %s69, %s70
    %p74 = pneg %p68
    %p75 = scmp.eq.s32.totalorder %s10, 3
    %p76 = por %p74, %p75
    %p77 = scmp.ne.s32.totalorder %s69, %s72
    %p78 = scmp.eq.s32.totalorder %s10, 0
    %p79 = por %p77, %p78
    %p80 = scmp.ne.s32.totalorder %s69, %s72
    %p81 = scmp.eq.s32.totalorder %s15, 3
    %p82 = por %p80, %p81
    %p83 = scmp.ne.s32.totalorder %s72, %s73
    %p84 = scmp.eq.s32.totalorder %s15, 0
    %p85 = por %p83, %p84
    %p86 = scmp.ne.s32.totalorder %s72, %s73
    %p87 = scmp.eq.s32.totalorder %s16, 3
    %p88 = por %p86, %p87
    %p90 = scmp.ne.s32.totalorder %s73, %s89
    %p91 = scmp.eq.s32.totalorder %s16, 0
    %p92 = por %p90, %p91
    %s93 = ssub.s32 %s18, %s32
    %p94 = scmp.eq.s32.totalorder %s93, 0
    %s96 = sadd.s32 %s95, 1
    %s97 = scalar_select %p94, %s95, %s96
    %p100 = pneg %p94
    %p101 = scmp.eq.s32.totalorder %s10, 3
    %p102 = por %p100, %p101
    %p103 = scmp.ne.s32.totalorder %s95, %s98
    %p104 = scmp.eq.s32.totalorder %s10, 0
    %p105 = por %p103, %p104
    %p106 = scmp.ne.s32.totalorder %s95, %s98
    %p107 = scmp.eq.s32.totalorder %s15, 3
    %p108 = por %p106, %p107
    %p109 = scmp.ne.s32.totalorder %s98, %s99
    %p110 = scmp.eq.s32.totalorder %s15, 0
    %p111 = por %p109, %p110
    %p112 = scmp.ne.s32.totalorder %s98, %s99
    %p113 = scmp.eq.s32.totalorder %s16, 3
    %p114 = por %p112, %p113
    %p116 = scmp.ne.s32.totalorder %s99, %s115
    %p117 = scmp.eq.s32.totalorder %s16, 0
    %p118 = por %p116, %p117
    %s119 = ssub.s32 %s17, %s36
    %s120 = ssub.s32 %s18, %s32
    %s121 = sor.u32 %s119, %s120
    %p122 = scmp.eq.s32.totalorder %s121, 0
    %s124 = sadd.s32 %s123, 1
    %s125 = scalar_select %p122, %s123, %s124
    %p128 = pneg %p122
    %p129 = scmp.eq.s32.totalorder %s10, 3
    %p130 = por %p128, %p129
    %p131 = scmp.ne.s32.totalorder %s123, %s126
    %p132 = scmp.eq.s32.totalorder %s10, 0
    %p133 = por %p131, %p132
    %p134 = scmp.ne.s32.totalorder %s123, %s126
    %p135 = scmp.eq.s32.totalorder %s15, 3
    %p136 = por %p134, %p135
    %p137 = scmp.ne.s32.totalorder %s126, %s127
    %p138 = scmp.eq.s32.totalorder %s15, 0
    %p139 = por %p137, %p138
    %p140 = scmp.ne.s32.totalorder %s126, %s127
    %p141 = scmp.eq.s32.totalorder %s16, 3
    %p142 = por %p140, %p141
    %p144 = scmp.ne.s32.totalorder %s127, %s143
    %p145 = scmp.eq.s32.totalorder %s16, 0
    %p146 = por %p144, %p145
    %s147 = ssub.s32 %s17, %s36
    %s148 = ssub.s32 %s18, %s32
    %s149 = sor.u32 %s147, %s148
    %p150 = scmp.eq.s32.totalorder %s149, 0
    %s152 = sadd.s32 %s151, 1
    %s153 = scalar_select %p150, %s151, %s152
    %p156 = pneg %p150
    %p157 = scmp.eq.s32.totalorder %s10, 3
    %p158 = por %p156, %p157
    %p159 = scmp.ne.s32.totalorder %s151, %s154
    %p160 = scmp.eq.s32.totalorder %s10, 0
    %p161 = por %p159, %p160
    %p162 = scmp.ne.s32.totalorder %s151, %s154
    %p163 = scmp.eq.s32.totalorder %s15, 3
    %p164 = por %p162, %p163
    %p165 = scmp.ne.s32.totalorder %s154, %s155
    %p166 = scmp.eq.s32.totalorder %s15, 0
    %p167 = por %p165, %p166
    %p168 = scmp.ne.s32.totalorder %s154, %s155
    %p169 = scmp.eq.s32.totalorder %s16, 3
    %p170 = por %p168, %p169
    %p172 = scmp.ne.s32.totalorder %s155, %s171
    %p173 = scmp.eq.s32.totalorder %s16, 0
    %p174 = por %p172, %p173
    %p175 = scmp.le.s32.totalorder 1, %s10
    %p176 = scmp.lt.s32.totalorder %s10, 5
    %p177 = pnand %p175, %p176
    %p178 = pneg %p177
    // Predicated region
    $region9: #{gpt_forward.14} parent=5 // pred_check
      _
    $region10: #{gpt_forward.14} parent=5 // pred_check_branch
      %180 = sbr.rel (%p177) target = $region12
    $region11: #{gpt_forward.14} parent=5 // pred_region
      %s181 = ssub.s32 %s10, 1
      // Predicated region
      $region13: #{gpt_forward.14} parent=11 // pred_check
        %p182 = pneg %p85
      $region14: #{gpt_forward.14} parent=11 // pred_check_branch
        %184 = sbr.rel (%p182) target = $region16
      $region15: #{gpt_forward.14} parent=11 // pred_region
        %s185 = smul.u32 16, %s22
        %p186 = scmp.lt.s32.totalorder %s185, 15
        %s187 = scalar_select %p186, %s185, 15
        %p188 = scmp.lt.s32.totalorder %s21, 0
        %s189 = scalar_select %p188, %s21, 0
        %s190 = sadd.s32 %s189, %s187
        %s191 = smul.addr %s190, 4
        %s192 = scalar_lea.vmem %s1, %s191
        %s193 = smul.u32 16, %s22
      $region16: #{gpt_forward.14} parent=11 // pred_fallthru
        _
      // Predicated region
      $region17: #{gpt_forward.14} parent=11 // pred_check
        %p194 = pneg %p111
      $region18: #{gpt_forward.14} parent=11 // pred_check_branch
        %196 = sbr.rel (%p194) target = $region20
      $region19: #{gpt_forward.14} parent=11 // pred_region
        %p197 = scmp.lt.s32.totalorder %s21, 0
        %s198 = scalar_select %p197, %s21, 0
        %s199 = scalar_lea.vmem %s2, %s198
      $region20: #{gpt_forward.14} parent=11 // pred_fallthru
        _
    $region12: #{gpt_forward.14} parent=5 // pred_fallthru
      _
    %p200 = scmp.lt.s32.totalorder %s10, 4
    // Predicated region
    $region21: #{gpt_forward.14} parent=5 // pred_check
      %p201 = pneg %p200
    $region22: #{gpt_forward.14} parent=5 // pred_check_branch
      %203 = sbr.rel (%p201) target = $region24
    $region23: #{gpt_forward.14} parent=5 // pred_region
      // Predicated region
      $region25: #{gpt_forward.14} parent=23 // pred_check
        %p204 = pneg %p51
      $region26: #{gpt_forward.14} parent=23 // pred_check_branch
        %206 = sbr.rel (%p204) target = $region28
      $region27: #{gpt_forward.14} parent=23 // pred_region
        %s207 = smul.u32 16, %s17
        %p208 = scmp.lt.s32.totalorder %s207, 63
        %s209 = scalar_select %p208, %s207, 63
        %p210 = scmp.lt.s32.totalorder %s19, 0
        %s211 = scalar_select %p210, %s19, 0
        %s212 = sadd.s32 %s211, %s209
        %s213 = smul.addr %s212, 8
        %s214 = scalar_lea.vmem %s0, %s213
        %s215 = smul.u32 16, %s17
      $region28: #{gpt_forward.14} parent=23 // pred_fallthru
        _
      // Predicated region
      $region29: #{gpt_forward.14} parent=23 // pred_check
        %p216 = pneg %p133
      $region30: #{gpt_forward.14} parent=23 // pred_check_branch
        %218 = sbr.rel (%p216) target = $region32
      $region31: #{gpt_forward.14} parent=23 // pred_region
        %s219 = smul.u32 16, %s17
        %p220 = scmp.lt.s32.totalorder %s219, 63
        %s221 = scalar_select %p220, %s219, 63
        %p222 = scmp.lt.s32.totalorder %s18, 0
        %s223 = scalar_select %p222, %s18, 0
        %s224 = sadd.s32 %s223, %s221
        %s225 = smul.addr %s224, 8
        %s226 = scalar_lea.vmem %s3, %s225
        %s227 = smul.u32 16, %s17
      $region32: #{gpt_forward.14} parent=23 // pred_fallthru
        _
    $region24: #{gpt_forward.14} parent=5 // pred_fallthru
      _
    %p228 = scmp.le.s32.totalorder 1, %s10
    %p229 = scmp.lt.s32.totalorder %s10, 5
    %p230 = pnand %p228, %p229
    %p231 = pneg %p230
    // Predicated region
    $region33: #{gpt_forward.14} parent=5 // pred_check
      _
    $region34: #{gpt_forward.14} parent=5 // pred_check_branch
      %233 = sbr.rel (%p230) target = $region36
    $region35: #{gpt_forward.14} parent=5 // pred_region
      %s234 = ssub.s32 %s10, 1
      %s235 = smul.u32 16, %s20
      %p236 = scmp.lt.s32.totalorder %s235, 63
      %s237 = scalar_select %p236, %s235, 63
      %p238 = scmp.lt.s32.totalorder %s22, 0
      %s239 = scalar_select %p238, %s22, 0
      %s240 = sadd.s32 %s239, %s237
      %s241 = smul.addr %s240, 8
      %s242 = scalar_lea.vmem %s0, %s241
      %p243 = pneg %p57
      %p244 = pneg %p54
      %s245 = smul.u32 16, %s22
      %p246 = scmp.lt.s32.totalorder %s245, 15
      %s247 = scalar_select %p246, %s245, 15
      %p248 = scmp.lt.s32.totalorder %s21, 0
      %s249 = scalar_select %p248, %s21, 0
      %s250 = sadd.s32 %s249, %s247
      %s251 = smul.addr %s250, 4
      %s252 = scalar_lea.vmem %s1, %s251
      %p253 = pneg %p85
      %p254 = pneg %p82
      %p255 = scmp.lt.s32.totalorder %s21, 0
      %s256 = scalar_select %p255, %s21, 0
      %s257 = scalar_lea.vmem %s2, %s256
      %p258 = pneg %p111
      %p259 = pneg %p108
      %s260 = smul.u32 16, %s20
      %p261 = scmp.lt.s32.totalorder %s260, 63
      %s262 = scalar_select %p261, %s260, 63
      %p263 = scmp.lt.s32.totalorder %s21, 0
      %s264 = scalar_select %p263, %s21, 0
      %s265 = sadd.s32 %s264, %s262
      %s266 = smul.addr %s265, 8
      %s267 = scalar_lea.vmem %s3, %s266
      %p268 = pneg %p139
      %p269 = pneg %p136
      %p270 = pneg %p167
      %p271 = pneg %p164
      %s272 = smul.u32 16, %s20
      %p273 = scmp.lt.s32.totalorder %s272, 63
      %s274 = scalar_select %p273, %s272, 63
      %p275 = scmp.lt.s32.totalorder %s21, 0
      %s276 = scalar_select %p275, %s21, 0
      %s277 = sadd.s32 %s276, %s274
      %s278 = smul.addr %s277, 8
      %s279 = scalar_lea.vmem %s4, %s278
      %s280 = smul.u32 16, %s20
      %p281 = scmp.lt.s32.totalorder %s280, 63
      %s282 = scalar_select %p281, %s280, 63
      %p283 = scmp.lt.s32.totalorder %s22, 0
      %s284 = scalar_select %p283, %s22, 0
      %s285 = sadd.s32 %s284, %s282
      %s286 = smul.addr %s285, 8
      %s287 = scalar_lea.vmem %s0, %s286
      %s288 = smul.u32 16, %s20
      %s289 = smul.u32 16, %s22
      %p290 = scmp.lt.s32.totalorder %s289, 15
      %s291 = scalar_select %p290, %s289, 15
      %p292 = scmp.lt.s32.totalorder %s21, 0
      %s293 = scalar_select %p292, %s21, 0
      %s294 = sadd.s32 %s293, %s291
      %s295 = smul.addr %s294, 4
      %s296 = scalar_lea.vmem %s1, %s295
      %s297 = smul.u32 16, %s22
      %p298 = scmp.lt.s32.totalorder %s21, 0
      %s299 = scalar_select %p298, %s21, 0
      %s300 = scalar_lea.vmem %s2, %s299
      %s301 = smul.u32 16, %s20
      %p302 = scmp.lt.s32.totalorder %s301, 63
      %s303 = scalar_select %p302, %s301, 63
      %p304 = scmp.lt.s32.totalorder %s21, 0
      %s305 = scalar_select %p304, %s21, 0
      %s306 = sadd.s32 %s305, %s303
      %s307 = smul.addr %s306, 8
      %s308 = scalar_lea.vmem %s3, %s307
      %s309 = smul.u32 16, %s20
      %s310 = smul.u32 16, %s20
      %p311 = scmp.lt.s32.totalorder %s310, 63
      %s312 = scalar_select %p311, %s310, 63
      %p313 = scmp.lt.s32.totalorder %s21, 0
      %s314 = scalar_select %p313, %s21, 0
      %s315 = sadd.s32 %s314, %s312
      %s316 = smul.addr %s315, 8
      %s317 = scalar_lea.vmem %s4, %s316
      %s318 = smul.u32 16, %s20
      %p319 = scmp.eq.s32.totalorder %s22, 0
      // Predicated region
      $region37: #{gpt_forward.14} parent=35 // pred_check
        %p320 = pneg %p319
      $region38: #{gpt_forward.14} parent=35 // pred_check_branch
        %322 = sbr.rel (%p320) target = $region40
      $region39: #{gpt_forward.14} parent=35 // pred_region
        %323 = vst [vmem:[#allocation2] sm:$0xff] 0.0
        %324 = vst [vmem:[#allocation2 + $0x8] sm:$0xff] 0.0
        %325 = vst [vmem:[#allocation2 + $0x10] sm:$0xff] 0.0
        %326 = vst [vmem:[#allocation2 + $0x18] sm:$0xff] 0.0
        %327 = vst [vmem:[#allocation2 + $0x20] sm:$0xff] 0.0
        %328 = vst [vmem:[#allocation2 + $0x28] sm:$0xff] 0.0
        %329 = vst [vmem:[#allocation2 + $0x30] sm:$0xff] 0.0
        %330 = vst [vmem:[#allocation2 + $0x38] sm:$0xff] 0.0
        %331 = vst [vmem:[#allocation2 + $0x40] sm:$0xff] 0.0
        %332 = vst [vmem:[#allocation2 + $0x48] sm:$0xff] 0.0
        %333 = vst [vmem:[#allocation2 + $0x50] sm:$0xff] 0.0
        %334 = vst [vmem:[#allocation2 + $0x58] sm:$0xff] 0.0
        %335 = vst [vmem:[#allocation2 + $0x60] sm:$0xff] 0.0
        %336 = vst [vmem:[#allocation2 + $0x68] sm:$0xff] 0.0
        %337 = vst [vmem:[#allocation2 + $0x70] sm:$0xff] 0.0
        %338 = vst [vmem:[#allocation2 + $0x78] sm:$0xff] 0.0
      $region40: #{gpt_forward.14} parent=35 // pred_fallthru
        _
      %v339 = vld [vmem:[#allocation2] sm:$0xff]
      %v340 = vld [vmem:[#allocation2 + $0x8] sm:$0xff]
      %v341 = vld [vmem:[#allocation2 + $0x10] sm:$0xff]
      %v342 = vld [vmem:[#allocation2 + $0x18] sm:$0xff]
      %v343 = vld [vmem:[#allocation2 + $0x20] sm:$0xff]
      %v344 = vld [vmem:[#allocation2 + $0x28] sm:$0xff]
      %v345 = vld [vmem:[#allocation2 + $0x30] sm:$0xff]
      %v346 = vld [vmem:[#allocation2 + $0x38] sm:$0xff]
      %v347 = vld [vmem:[#allocation2 + $0x40] sm:$0xff]
      %v348 = vld [vmem:[#allocation2 + $0x48] sm:$0xff]
      %v349 = vld [vmem:[#allocation2 + $0x50] sm:$0xff]
      %v350 = vld [vmem:[#allocation2 + $0x58] sm:$0xff]
      %v351 = vld [vmem:[#allocation2 + $0x60] sm:$0xff]
      %v352 = vld [vmem:[#allocation2 + $0x68] sm:$0xff]
      %v353 = vld [vmem:[#allocation2 + $0x70] sm:$0xff]
      %v354 = vld [vmem:[#allocation2 + $0x78] sm:$0xff]
      %v355 = vld [vmem:[%s287] sm:$0xff]
      %v356 = vld [vmem:[%s287 + $0x8] sm:$0xff]
      %v357 = vld [vmem:[%s287 + $0x10] sm:$0xff]
      %v358 = vld [vmem:[%s287 + $0x18] sm:$0xff]
      %v359 = vld [vmem:[%s287 + $0x20] sm:$0xff]
      %v360 = vld [vmem:[%s287 + $0x28] sm:$0xff]
      %v361 = vld [vmem:[%s287 + $0x30] sm:$0xff]
      %v362 = vld [vmem:[%s287 + $0x38] sm:$0xff]
      %v363 = vld [vmem:[%s287 + $0x40] sm:$0xff]
      %v364 = vld [vmem:[%s287 + $0x48] sm:$0xff]
      %v365 = vld [vmem:[%s287 + $0x50] sm:$0xff]
      %v366 = vld [vmem:[%s287 + $0x58] sm:$0xff]
      %v367 = vld [vmem:[%s287 + $0x60] sm:$0xff]
      %v368 = vld [vmem:[%s287 + $0x68] sm:$0xff]
      %v369 = vld [vmem:[%s287 + $0x70] sm:$0xff]
      %v370 = vld [vmem:[%s287 + $0x78] sm:$0xff]
      %v371 = vpack.c.bf16 %v356, %v355
      %v372 = vpack.c.bf16 %v358, %v357
      %v373 = vpack.c.bf16 %v360, %v359
      %v374 = vpack.c.bf16 %v362, %v361
      %v375 = vpack.c.bf16 %v364, %v363
      %v376 = vpack.c.bf16 %v366, %v365
      %v377 = vpack.c.bf16 %v368, %v367
      %v378 = vpack.c.bf16 %v370, %v369
      %v379 = vld [vmem:[%s296] sm:$0xf]
      %v380 = vld [vmem:[%s296 + $0x4] sm:$0xf]
      %v381 = vld [vmem:[%s296 + $0x8] sm:$0xf]
      %v382 = vld [vmem:[%s296 + $0xc] sm:$0xf]
      %v383 = vld [vmem:[%s296 + $0x10] sm:$0xf]
      %v384 = vld [vmem:[%s296 + $0x14] sm:$0xf]
      %v385 = vld [vmem:[%s296 + $0x18] sm:$0xf]
      %v386 = vld [vmem:[%s296 + $0x1c] sm:$0xf]
      %v387 = vld [vmem:[%s296 + $0x20] sm:$0xf]
      %v388 = vld [vmem:[%s296 + $0x24] sm:$0xf]
      %v389 = vld [vmem:[%s296 + $0x28] sm:$0xf]
      %v390 = vld [vmem:[%s296 + $0x2c] sm:$0xf]
      %v391 = vld [vmem:[%s296 + $0x30] sm:$0xf]
      %v392 = vld [vmem:[%s296 + $0x34] sm:$0xf]
      %v393 = vld [vmem:[%s296 + $0x38] sm:$0xf]
      %v394 = vld [vmem:[%s296 + $0x3c] sm:$0xf]
      %v411 = vunpack.c.l.b16 %v379
      %v412 = vunpack.c.l.b16 %v380
      %v413 = vunpack.c.l.b16 %v381
      %v414 = vunpack.c.l.b16 %v382
      %v415 = vunpack.c.l.b16 %v383
      %v416 = vunpack.c.l.b16 %v384
      %v417 = vunpack.c.l.b16 %v385
      %v418 = vunpack.c.l.b16 %v386
      %v419 = vunpack.c.l.b16 %v387
      %v420 = vunpack.c.l.b16 %v388
      %v421 = vunpack.c.l.b16 %v389
      %v422 = vunpack.c.l.b16 %v390
      %v423 = vunpack.c.l.b16 %v391
      %v424 = vunpack.c.l.b16 %v392
      %v425 = vunpack.c.l.b16 %v393
      %v426 = vunpack.c.l.b16 %v394
      %v427 = vpack.c.b16 %v412, %v411
      %v428 = vpack.c.b16 %v414, %v413
      %v429 = vpack.c.b16 %v416, %v415
      %v430 = vpack.c.b16 %v418, %v417
      %v431 = vpack.c.b16 %v420, %v419
      %v432 = vpack.c.b16 %v422, %v421
      %v433 = vpack.c.b16 %v424, %v423
      %v434 = vpack.c.b16 %v426, %v425
      %443 = vmatpush.bf16.msra.mxu0 %v434
      %444 = vmatpush.bf16.msra.mxu0 %v433
      %445 = vmatpush.bf16.msra.mxu0 %v432
      %446 = vmatpush.bf16.msra.mxu0 %v431
      %447 = vmatpush.bf16.msra.mxu0 %v430
      %448 = vmatpush.bf16.msra.mxu0 %v429
      %449 = vmatpush.bf16.msra.mxu0 %v428
      %450 = vmatpush.bf16.msra.mxu0 %v427
      %451 = vmatmul.bf16.gmra.mxu0 %v371
      %v452 = vpop.f32.mrf.mxu0
      %v453 = vadd.f32 0.0, %v452
      %v454 = vpop.f32.mrf.mxu0
      %v455 = vadd.f32 0.0, %v454
      %456 = vmatmul.bf16.gmra.mxu0 %v372
      %v457 = vpop.f32.mrf.mxu0
      %v458 = vadd.f32 0.0, %v457
      %v459 = vpop.f32.mrf.mxu0
      %v460 = vadd.f32 0.0, %v459
      %461 = vmatmul.bf16.gmra.mxu0 %v373
      %v462 = vpop.f32.mrf.mxu0
      %v463 = vadd.f32 0.0, %v462
      %v464 = vpop.f32.mrf.mxu0
      %v465 = vadd.f32 0.0, %v464
      %466 = vmatmul.bf16.gmra.mxu0 %v374
      %v467 = vpop.f32.mrf.mxu0
      %v468 = vadd.f32 0.0, %v467
      %v469 = vpop.f32.mrf.mxu0
      %v470 = vadd.f32 0.0, %v469
      %471 = vmatmul.bf16.gmra.mxu0 %v375
      %v472 = vpop.f32.mrf.mxu0
      %v473 = vadd.f32 0.0, %v472
      %v474 = vpop.f32.mrf.mxu0
      %v475 = vadd.f32 0.0, %v474
      %476 = vmatmul.bf16.gmra.mxu0 %v376
      %v477 = vpop.f32.mrf.mxu0
      %v478 = vadd.f32 0.0, %v477
      %v479 = vpop.f32.mrf.mxu0
      %v480 = vadd.f32 0.0, %v479
      %481 = vmatmul.bf16.gmra.mxu0 %v377
      %v482 = vpop.f32.mrf.mxu0
      %v483 = vadd.f32 0.0, %v482
      %v484 = vpop.f32.mrf.mxu0
      %v485 = vadd.f32 0.0, %v484
      %486 = vmatmul.bf16.gmra.mxu0 %v378
      %v487 = vpop.f32.mrf.mxu0
      %v488 = vadd.f32 0.0, %v487
      %v489 = vpop.f32.mrf.mxu0
      %v490 = vadd.f32 0.0, %v489
      %491 = vdwg.mxu0
      %v492 = vadd.f32 %v339, %v453
      %v493 = vadd.f32 %v340, %v455
      %v494 = vadd.f32 %v341, %v458
      %v495 = vadd.f32 %v342, %v460
      %v496 = vadd.f32 %v343, %v463
      %v497 = vadd.f32 %v344, %v465
      %v498 = vadd.f32 %v345, %v468
      %v499 = vadd.f32 %v346, %v470
      %v500 = vadd.f32 %v347, %v473
      %v501 = vadd.f32 %v348, %v475
      %v502 = vadd.f32 %v349, %v478
      %v503 = vadd.f32 %v350, %v480
      %v504 = vadd.f32 %v351, %v483
      %v505 = vadd.f32 %v352, %v485
      %v506 = vadd.f32 %v353, %v488
      %v507 = vadd.f32 %v354, %v490
      %508 = vst [vmem:[#allocation2] sm:$0xff] %v492
      %509 = vst [vmem:[#allocation2 + $0x8] sm:$0xff] %v493
      %510 = vst [vmem:[#allocation2 + $0x10] sm:$0xff] %v494
      %511 = vst [vmem:[#allocation2 + $0x18] sm:$0xff] %v495
      %512 = vst [vmem:[#allocation2 + $0x20] sm:$0xff] %v496
      %513 = vst [vmem:[#allocation2 + $0x28] sm:$0xff] %v497
      %514 = vst [vmem:[#allocation2 + $0x30] sm:$0xff] %v498
      %515 = vst [vmem:[#allocation2 + $0x38] sm:$0xff] %v499
      %516 = vst [vmem:[#allocation2 + $0x40] sm:$0xff] %v500
      %517 = vst [vmem:[#allocation2 + $0x48] sm:$0xff] %v501
      %518 = vst [vmem:[#allocation2 + $0x50] sm:$0xff] %v502
      %519 = vst [vmem:[#allocation2 + $0x58] sm:$0xff] %v503
      %520 = vst [vmem:[#allocation2 + $0x60] sm:$0xff] %v504
      %521 = vst [vmem:[#allocation2 + $0x68] sm:$0xff] %v505
      %522 = vst [vmem:[#allocation2 + $0x70] sm:$0xff] %v506
      %523 = vst [vmem:[#allocation2 + $0x78] sm:$0xff] %v507
      // Predicated region
      $region41: #{gpt_forward.14} parent=35 // pred_check
        %p524 = pneg %p319
      $region42: #{gpt_forward.14} parent=35 // pred_check_branch
        %526 = sbr.rel (%p524) target = $region44
      $region43: #{gpt_forward.14} parent=35 // pred_region
        %v527 = vld [vmem:[#allocation2] sm:$0xff]
        %v528 = vld [vmem:[#allocation2 + $0x8] sm:$0xff]
        %v529 = vld [vmem:[#allocation2 + $0x10] sm:$0xff]
        %v530 = vld [vmem:[#allocation2 + $0x18] sm:$0xff]
        %v531 = vld [vmem:[#allocation2 + $0x20] sm:$0xff]
        %v532 = vld [vmem:[#allocation2 + $0x28] sm:$0xff]
        %v533 = vld [vmem:[#allocation2 + $0x30] sm:$0xff]
        %v534 = vld [vmem:[#allocation2 + $0x38] sm:$0xff]
        %v535 = vld [vmem:[#allocation2 + $0x40] sm:$0xff]
        %v536 = vld [vmem:[#allocation2 + $0x48] sm:$0xff]
        %v537 = vld [vmem:[#allocation2 + $0x50] sm:$0xff]
        %v538 = vld [vmem:[#allocation2 + $0x58] sm:$0xff]
        %v539 = vld [vmem:[#allocation2 + $0x60] sm:$0xff]
        %v540 = vld [vmem:[#allocation2 + $0x68] sm:$0xff]
        %v541 = vld [vmem:[#allocation2 + $0x70] sm:$0xff]
        %v542 = vld [vmem:[#allocation2 + $0x78] sm:$0xff]
        %v543 = vld [vmem:[%s300] sm:$0x1]
        %v545 = vperm.slane %v543, 0
        %v547 = vadd.f32 %v527, %v545
        %v548 = vadd.f32 %v528, %v545
        %v549 = vadd.f32 %v529, %v545
        %v550 = vadd.f32 %v530, %v545
        %v551 = vadd.f32 %v531, %v545
        %v552 = vadd.f32 %v532, %v545
        %v553 = vadd.f32 %v533, %v545
        %v554 = vadd.f32 %v534, %v545
        %v555 = vadd.f32 %v535, %v545
        %v556 = vadd.f32 %v536, %v545
        %v557 = vadd.f32 %v537, %v545
        %v558 = vadd.f32 %v538, %v545
        %v559 = vadd.f32 %v539, %v545
        %v560 = vadd.f32 %v540, %v545
        %v561 = vadd.f32 %v541, %v545
        %v562 = vadd.f32 %v542, %v545
        %v563 = vld [vmem:[%s308] sm:$0xff]
        %v564 = vld [vmem:[%s308 + $0x8] sm:$0xff]
        %v565 = vld [vmem:[%s308 + $0x10] sm:$0xff]
        %v566 = vld [vmem:[%s308 + $0x18] sm:$0xff]
        %v567 = vld [vmem:[%s308 + $0x20] sm:$0xff]
        %v568 = vld [vmem:[%s308 + $0x28] sm:$0xff]
        %v569 = vld [vmem:[%s308 + $0x30] sm:$0xff]
        %v570 = vld [vmem:[%s308 + $0x38] sm:$0xff]
        %v571 = vld [vmem:[%s308 + $0x40] sm:$0xff]
        %v572 = vld [vmem:[%s308 + $0x48] sm:$0xff]
        %v573 = vld [vmem:[%s308 + $0x50] sm:$0xff]
        %v574 = vld [vmem:[%s308 + $0x58] sm:$0xff]
        %v575 = vld [vmem:[%s308 + $0x60] sm:$0xff]
        %v576 = vld [vmem:[%s308 + $0x68] sm:$0xff]
        %v577 = vld [vmem:[%s308 + $0x70] sm:$0xff]
        %v578 = vld [vmem:[%s308 + $0x78] sm:$0xff]
        %v579 = vadd.f32 %v547, %v563
        %v580 = vadd.f32 %v548, %v564
        %v581 = vadd.f32 %v549, %v565
        %v582 = vadd.f32 %v550, %v566
        %v583 = vadd.f32 %v551, %v567
        %v584 = vadd.f32 %v552, %v568
        %v585 = vadd.f32 %v553, %v569
        %v586 = vadd.f32 %v554, %v570
        %v587 = vadd.f32 %v555, %v571
        %v588 = vadd.f32 %v556, %v572
        %v589 = vadd.f32 %v557, %v573
        %v590 = vadd.f32 %v558, %v574
        %v591 = vadd.f32 %v559, %v575
        %v592 = vadd.f32 %v560, %v576
        %v593 = vadd.f32 %v561, %v577
        %v594 = vadd.f32 %v562, %v578
        %595 = vst [vmem:[%s317] sm:$0xff] %v579
        %596 = vst [vmem:[%s317 + $0x8] sm:$0xff] %v580
        %597 = vst [vmem:[%s317 + $0x10] sm:$0xff] %v581
        %598 = vst [vmem:[%s317 + $0x18] sm:$0xff] %v582
        %599 = vst [vmem:[%s317 + $0x20] sm:$0xff] %v583
        %600 = vst [vmem:[%s317 + $0x28] sm:$0xff] %v584
        %601 = vst [vmem:[%s317 + $0x30] sm:$0xff] %v585
        %602 = vst [vmem:[%s317 + $0x38] sm:$0xff] %v586
        %603 = vst [vmem:[%s317 + $0x40] sm:$0xff] %v587
        %604 = vst [vmem:[%s317 + $0x48] sm:$0xff] %v588
        %605 = vst [vmem:[%s317 + $0x50] sm:$0xff] %v589
        %606 = vst [vmem:[%s317 + $0x58] sm:$0xff] %v590
        %607 = vst [vmem:[%s317 + $0x60] sm:$0xff] %v591
        %608 = vst [vmem:[%s317 + $0x68] sm:$0xff] %v592
        %609 = vst [vmem:[%s317 + $0x70] sm:$0xff] %v593
        %610 = vst [vmem:[%s317 + $0x78] sm:$0xff] %v594
      $region44: #{gpt_forward.14} parent=35 // pred_fallthru
        _
      %s611 = smul.u32 16, %s20
      %p612 = scmp.lt.s32.totalorder %s611, 63
      %s613 = scalar_select %p612, %s611, 63
      %p614 = scmp.lt.s32.totalorder %s21, 0
      %s615 = scalar_select %p614, %s21, 0
      %s616 = sadd.s32 %s615, %s613
      %s617 = smul.addr %s616, 8
      %s618 = scalar_lea.vmem %s4, %s617
      // Predicated region
      $region45: #{gpt_forward.14} parent=35 // pred_check
        %p619 = pneg %p164
      $region46: #{gpt_forward.14} parent=35 // pred_check_branch
        %621 = sbr.rel (%p619) target = $region48
      $region47: #{gpt_forward.14} parent=35 // pred_region
        %s622 = smul.u32 16, %s20
      $region48: #{gpt_forward.14} parent=35 // pred_fallthru
        _
    $region36: #{gpt_forward.14} parent=5 // pred_fallthru
      _
    %p623 = scmp.le.s32.totalorder 2, %s10
    // Predicated region
    $region49: #{gpt_forward.14} parent=5 // pred_check
      %p624 = pneg %p623
    $region50: #{gpt_forward.14} parent=5 // pred_check_branch
      %626 = sbr.rel (%p624) target = $region52
    $region51: #{gpt_forward.14} parent=5 // pred_region
      %s627 = ssub.s32 %s10, 2
      // Predicated region
      $region53: #{gpt_forward.14} parent=51 // pred_check
        %p628 = pneg %p170
      $region54: #{gpt_forward.14} parent=51 // pred_check_branch
        %630 = sbr.rel (%p628) target = $region56
      $region55: #{gpt_forward.14} parent=51 // pred_region
        %s631 = smul.u32 16, %s23
        %p632 = scmp.lt.s32.totalorder %s631, 63
        %s633 = scalar_select %p632, %s631, 63
        %p634 = scmp.lt.s32.totalorder %s24, 0
        %s635 = scalar_select %p634, %s24, 0
        %s636 = sadd.s32 %s635, %s633
        %s637 = smul.addr %s636, 8
        %s638 = scalar_lea.vmem %s4, %s637
      $region56: #{gpt_forward.14} parent=51 // pred_fallthru
        _
    $region52: #{gpt_forward.14} parent=5 // pred_fallthru
      _
  $region6: #{gpt_forward.14} parent=0 // loop_footer
    %s14 = sadd.s32 1, %s10
  $region7: #{gpt_forward.14} parent=0 // loop_footer_branch
    %9 = sbr.rel target = $region3
  $region8: #{gpt_forward.14} parent=0 // loop_exit
    _

// kernel: gpt_forward.15
$region0: #{gpt_forward.15}
  #allocation0 [shape = 'u32[]', space=smem, size = 0x4, offset = 0x4, fixed_abs, tag = 'smem constant byte address 0x4 - core index']
  #allocation1 [shape = 'u32[72,128]{1,0:T(1,128)}', space=vmem, size = 0x9000, scoped, tag = 'internal scratch']
  %s0 = inlined_call_operand.vmem [shape: f32[512,128], index: 0, kind: input, shape index: {}]
  %s1 = inlined_call_operand.vmem [shape: f32[1,128], index: 1, kind: input, shape index: {}]
  %s2 = inlined_call_operand.vmem [shape: f32[1,128], index: 2, kind: input, shape index: {}]
  %s3 = inlined_call_operand.vmem [shape: bf16[128,512], index: 3, kind: input, shape index: {}]
  %s4 = inlined_call_operand.vmem [shape: f32[1,512], index: 4, kind: input, shape index: {}]
  %s5 = inlined_call_operand.vmem [shape: f32[512,512], index: 5, kind: output, shape index: {}]
  %s6 = sld [smem:[#allocation0]]
  $region110: #{gpt_forward.15} parent=0
    _
  %s8 = ssub.s32 1, %s6
  %s9 = scalar_select 0, %s8, %s6
  $region1: #{gpt_forward.15} parent=0
    #allocation2 [shape = 'u8[131072]{0}', space=vmem, size = 0x20000, scoped, tag = 'input window, operand 3']
    #allocation3 [shape = 'u8[262144]{0}', space=vmem, size = 0x40000, scoped, tag = 'output window, operand 0']
    loop: start=0, step=1, limit=10
    $region2: #{gpt_forward.15} parent=1 // loop_pre_header
      _
    $region3: #{gpt_forward.15} parent=1 // loop_header
      %s11 = sphi 0, %s15
      %p12 = scmp.ge.s32.totalorder %s11, 10
      %s18 = sphi 0, %s30
      %s19 = sphi 0, %s26
      %s20 = sphi 0, %s18
      %s21 = sphi 0, %s19
      %s22 = sphi 0, %s20
      %s23 = sphi 0, %s21
      %s33 = sphi 0, %s35
      %s36 = sphi 0, %s33
      %s37 = sphi 0, %s36
      %s53 = sphi 0, %s37
      %s57 = sphi 0, %s57
      %s59 = sphi 0, %s57
      %s60 = sphi 0, %s59
      %s74 = sphi 0, %s60
      %s78 = sphi 0, %s78
      %s80 = sphi 0, %s78
      %s81 = sphi 0, %s80
      %s95 = sphi 0, %s81
      %s101 = sphi 0, %s103
      %s104 = sphi 0, %s101
      %s105 = sphi 0, %s104
      %s121 = sphi 0, %s105
      %s127 = sphi 0, %s129
      %s130 = sphi 0, %s127
      %s131 = sphi 0, %s130
      %s147 = sphi 0, %s131
      %s155 = sphi 0, %s157
      %s158 = sphi 0, %s155
      %s159 = sphi 0, %s158
      %s175 = sphi 0, %s159
    $region4: #{gpt_forward.15} parent=1 // loop_header_branch
      %14 = sbr.rel (%p12) target = $region8
    $region5: #{gpt_forward.15} parent=1 // loop_body
      %s16 = ssub.s32 %s11, 1
      %s17 = ssub.s32 %s11, 2
      %s24 = sadd.s32 1, %s19
      %p25 = scmp.ge.s32.totalorder %s24, 2
      %s26 = scalar_select %p25, 0, %s24
      %s27 = sadd.s32 1, %s18
      %s28 = scalar_select %p25, %s27, %s18
      %p29 = scmp.ge.s32.totalorder %s28, 4
      %s30 = scalar_select %p29, 0, %s28
      %s31 = ssub.s32 %s18, %s30
      %p32 = scmp.eq.s32.totalorder %s31, 0
      %s34 = sadd.s32 %s33, 1
      %s35 = scalar_select %p32, %s33, %s34
      %p38 = pneg %p32
      %p39 = scmp.eq.s32.totalorder %s11, 7
      %p40 = por %p38, %p39
      %p41 = scmp.ne.s32.totalorder %s33, %s36
      %p42 = scmp.eq.s32.totalorder %s11, 0
      %p43 = por %p41, %p42
      %p44 = scmp.ne.s32.totalorder %s33, %s36
      %p45 = scmp.eq.s32.totalorder %s16, 7
      %p46 = por %p44, %p45
      %p47 = scmp.ne.s32.totalorder %s36, %s37
      %p48 = scmp.eq.s32.totalorder %s16, 0
      %p49 = por %p47, %p48
      %p50 = scmp.ne.s32.totalorder %s36, %s37
      %p51 = scmp.eq.s32.totalorder %s17, 7
      %p52 = por %p50, %p51
      %p54 = scmp.ne.s32.totalorder %s37, %s53
      %p55 = scmp.eq.s32.totalorder %s17, 0
      %p56 = por %p54, %p55
      %s58 = sadd.s32 %s57, 1
      %p61 = scmp.eq.s32.totalorder %s11, 7
      %p62 = scmp.ne.s32.totalorder %s57, %s59
      %p63 = scmp.eq.s32.totalorder %s11, 0
      %p64 = por %p62, %p63
      %p65 = scmp.ne.s32.totalorder %s57, %s59
      %p66 = scmp.eq.s32.totalorder %s16, 7
      %p67 = por %p65, %p66
      %p68 = scmp.ne.s32.totalorder %s59, %s60
      %p69 = scmp.eq.s32.totalorder %s16, 0
      %p70 = por %p68, %p69
      %p71 = scmp.ne.s32.totalorder %s59, %s60
      %p72 = scmp.eq.s32.totalorder %s17, 7
      %p73 = por %p71, %p72
      %p75 = scmp.ne.s32.totalorder %s60, %s74
      %p76 = scmp.eq.s32.totalorder %s17, 0
      %p77 = por %p75, %p76
      %s79 = sadd.s32 %s78, 1
      %p82 = scmp.eq.s32.totalorder %s11, 7
      %p83 = scmp.ne.s32.totalorder %s78, %s80
      %p84 = scmp.eq.s32.totalorder %s11, 0
      %p85 = por %p83, %p84
      %p86 = scmp.ne.s32.totalorder %s78, %s80
      %p87 = scmp.eq.s32.totalorder %s16, 7
      %p88 = por %p86, %p87
      %p89 = scmp.ne.s32.totalorder %s80, %s81
      %p90 = scmp.eq.s32.totalorder %s16, 0
      %p91 = por %p89, %p90
      %p92 = scmp.ne.s32.totalorder %s80, %s81
      %p93 = scmp.eq.s32.totalorder %s17, 7
      %p94 = por %p92, %p93
      %p96 = scmp.ne.s32.totalorder %s81, %s95
      %p97 = scmp.eq.s32.totalorder %s17, 0
      %p98 = por %p96, %p97
      %s99 = ssub.s32 %s19, %s26
      %p100 = scmp.eq.s32.totalorder %s99, 0
      %s102 = sadd.s32 %s101, 1
      %s103 = scalar_select %p100, %s101, %s102
      %p106 = pneg %p100
      %p107 = scmp.eq.s32.totalorder %s11, 7
      %p108 = por %p106, %p107
      %p109 = scmp.ne.s32.totalorder %s101, %s104
      %p110 = scmp.eq.s32.totalorder %s11, 0
      %p111 = por %p109, %p110
      %p112 = scmp.ne.s32.totalorder %s101, %s104
      %p113 = scmp.eq.s32.totalorder %s16, 7
      %p114 = por %p112, %p113
      %p115 = scmp.ne.s32.totalorder %s104, %s105
      %p116 = scmp.eq.s32.totalorder %s16, 0
      %p117 = por %p115, %p116
      %p118 = scmp.ne.s32.totalorder %s104, %s105
      %p119 = scmp.eq.s32.totalorder %s17, 7
      %p120 = por %p118, %p119
      %p122 = scmp.ne.s32.totalorder %s105, %s121
      %p123 = scmp.eq.s32.totalorder %s17, 0
      %p124 = por %p122, %p123
      %s125 = ssub.s32 %s19, %s26
      %p126 = scmp.eq.s32.totalorder %s125, 0
      %s128 = sadd.s32 %s127, 1
      %s129 = scalar_select %p126, %s127, %s128
      %p132 = pneg %p126
      %p133 = scmp.eq.s32.totalorder %s11, 7
      %p134 = por %p132, %p133
      %p135 = scmp.ne.s32.totalorder %s127, %s130
      %p136 = scmp.eq.s32.totalorder %s11, 0
      %p137 = por %p135, %p136
      %p138 = scmp.ne.s32.totalorder %s127, %s130
      %p139 = scmp.eq.s32.totalorder %s16, 7
      %p140 = por %p138, %p139
      %p141 = scmp.ne.s32.totalorder %s130, %s131
      %p142 = scmp.eq.s32.totalorder %s16, 0
      %p143 = por %p141, %p142
      %p144 = scmp.ne.s32.totalorder %s130, %s131
      %p145 = scmp.eq.s32.totalorder %s17, 7
      %p146 = por %p144, %p145
      %p148 = scmp.ne.s32.totalorder %s131, %s147
      %p149 = scmp.eq.s32.totalorder %s17, 0
      %p150 = por %p148, %p149
      %s151 = ssub.s32 %s18, %s30
      %s152 = ssub.s32 %s19, %s26
      %s153 = sor.u32 %s151, %s152
      %p154 = scmp.eq.s32.totalorder %s153, 0
      %s156 = sadd.s32 %s155, 1
      %s157 = scalar_select %p154, %s155, %s156
      %p160 = pneg %p154
      %p161 = scmp.eq.s32.totalorder %s11, 7
      %p162 = por %p160, %p161
      %p163 = scmp.ne.s32.totalorder %s155, %s158
      %p164 = scmp.eq.s32.totalorder %s11, 0
      %p165 = por %p163, %p164
      %p166 = scmp.ne.s32.totalorder %s155, %s158
      %p167 = scmp.eq.s32.totalorder %s16, 7
      %p168 = por %p166, %p167
      %p169 = scmp.ne.s32.totalorder %s158, %s159
      %p170 = scmp.eq.s32.totalorder %s16, 0
      %p171 = por %p169, %p170
      %p172 = scmp.ne.s32.totalorder %s158, %s159
      %p173 = scmp.eq.s32.totalorder %s17, 7
      %p174 = por %p172, %p173
      %p176 = scmp.ne.s32.totalorder %s159, %s175
      %p177 = scmp.eq.s32.totalorder %s17, 0
      %p178 = por %p176, %p177
      %p179 = scmp.le.s32.totalorder 1, %s11
      %p180 = scmp.lt.s32.totalorder %s11, 9
      %p181 = pnand %p179, %p180
      %p182 = pneg %p181
      // Predicated region
      $region9: #{gpt_forward.15} parent=5 // pred_check
        _
      $region10: #{gpt_forward.15} parent=5 // pred_check_branch
        %184 = sbr.rel (%p181) target = $region12
      $region11: #{gpt_forward.15} parent=5 // pred_region
        %s185 = ssub.s32 %s11, 1
        // Predicated region
        $region13: #{gpt_forward.15} parent=11 // pred_check
          %p186 = pneg %p70
        $region14: #{gpt_forward.15} parent=11 // pred_check_branch
          %188 = sbr.rel (%p186) target = $region16
        $region15: #{gpt_forward.15} parent=11 // pred_region
          _
        $region16: #{gpt_forward.15} parent=11 // pred_fallthru
          _
        // Predicated region
        $region17: #{gpt_forward.15} parent=11 // pred_check
          %p189 = pneg %p91
        $region18: #{gpt_forward.15} parent=11 // pred_check_branch
          %191 = sbr.rel (%p189) target = $region20
        $region19: #{gpt_forward.15} parent=11 // pred_region
          _
        $region20: #{gpt_forward.15} parent=11 // pred_fallthru
          _
      $region12: #{gpt_forward.15} parent=5 // pred_fallthru
        _
      %p192 = scmp.lt.s32.totalorder %s11, 8
      // Predicated region
      $region21: #{gpt_forward.15} parent=5 // pred_check
        %p193 = pneg %p192
      $region22: #{gpt_forward.15} parent=5 // pred_check_branch
        %195 = sbr.rel (%p193) target = $region24
      $region23: #{gpt_forward.15} parent=5 // pred_region
        // Predicated region
        $region25: #{gpt_forward.15} parent=23 // pred_check
          %p196 = pneg %p43
        $region26: #{gpt_forward.15} parent=23 // pred_check_branch
          %198 = sbr.rel (%p196) target = $region28
        $region27: #{gpt_forward.15} parent=23 // pred_region
          %s199 = smul.u32 16, %s18
          %p200 = scmp.lt.s32.totalorder %s199, 63
          %s201 = scalar_select %p200, %s199, 63
          %s202 = smul.addr %s201, 8
          %s203 = scalar_lea.vmem %s0, %s202
          %s204 = smul.u32 16, %s18
        $region28: #{gpt_forward.15} parent=23 // pred_fallthru
          _
        // Predicated region
        $region29: #{gpt_forward.15} parent=23 // pred_check
          %p205 = pneg %p111
        $region30: #{gpt_forward.15} parent=23 // pred_check_branch
          %207 = sbr.rel (%p205) target = $region32
        $region31: #{gpt_forward.15} parent=23 // pred_region
          %s208 = sand.u32 %s101, 1
          %s209 = sand.u32 %s101, 1
          %s210 = smul.addr %s209, 128
          %s211 = scalar_lea.vmem [#allocation2], %s210
          %s212 = smul.u32 2, %s19
          %s213 = smul.addr %s212, 4
          %s214 = scalar_lea.vmem %s3, %s213
          // Predicated region
          $region33: #{gpt_forward.15} parent=31 // pred_check
            _
          $region34: #{gpt_forward.15} parent=31 // pred_check_branch
            %216 = sbr.rel (0) target = $region36
          $region35: #{gpt_forward.15} parent=31 // pred_region
            // Predicated region
            $region37: #{gpt_forward.15} parent=35 // pred_check
              _
            $region38: #{gpt_forward.15} parent=35 // pred_check_branch
              %218 = sbr.rel (0) target = $region40
            $region39: #{gpt_forward.15} parent=35 // pred_region
              // Predicated region
              $region52: #{gpt_forward.15} parent=39 // pred_check
                _
              $region53: #{gpt_forward.15} parent=39 // pred_check_branch
                %264 = sbr.rel (0) target = $region55
              $region54: #{gpt_forward.15} parent=39 // pred_region
                loop: start=0, step=1, limit=1
                $region56: #{gpt_forward.15} parent=54 // loop_pre_header
                  _
                $region57: #{gpt_forward.15} parent=54 // loop_header
                  %s266 = sphi 0, %s270
                  %p267 = scmp.ge.s32.totalorder %s266, 1
                  %s271 = sphi %s214, %s214
                  %s272 = sphi %s211, %s211
                $region58: #{gpt_forward.15} parent=54 // loop_header_branch
                  %269 = sbr.rel (%p267) target = $region62
                $region59: #{gpt_forward.15} parent=54 // loop_body
                  %v273 = vld [vmem:[%s271] sm:$0xff]
                  %274 = vst [vmem:[%s272] sm:$0xff] %v273
                  %v275 = vld [vmem:[%s271 + $0x10] sm:$0xff]
                  %276 = vst [vmem:[%s272 + $0x8] sm:$0xff] %v275
                  %v277 = vld [vmem:[%s271 + $0x20] sm:$0xff]
                  %278 = vst [vmem:[%s272 + $0x10] sm:$0xff] %v277
                  %v279 = vld [vmem:[%s271 + $0x30] sm:$0xff]
                  %280 = vst [vmem:[%s272 + $0x18] sm:$0xff] %v279
                  %v281 = vld [vmem:[%s271 + $0x40] sm:$0xff]
                  %282 = vst [vmem:[%s272 + $0x20] sm:$0xff] %v281
                  %v283 = vld [vmem:[%s271 + $0x50] sm:$0xff]
                  %284 = vst [vmem:[%s272 + $0x28] sm:$0xff] %v283
                  %v285 = vld [vmem:[%s271 + $0x60] sm:$0xff]
                  %286 = vst [vmem:[%s272 + $0x30] sm:$0xff] %v285
                  %v287 = vld [vmem:[%s271 + $0x70] sm:$0xff]
                  %288 = vst [vmem:[%s272 + $0x38] sm:$0xff] %v287
                  %v289 = vld [vmem:[%s271 + $0x80] sm:$0xff]
                  %290 = vst [vmem:[%s272 + $0x40] sm:$0xff] %v289
                  %v291 = vld [vmem:[%s271 + $0x90] sm:$0xff]
                  %292 = vst [vmem:[%s272 + $0x48] sm:$0xff] %v291
                  %v293 = vld [vmem:[%s271 + $0xa0] sm:$0xff]
                  %294 = vst [vmem:[%s272 + $0x50] sm:$0xff] %v293
                  %v295 = vld [vmem:[%s271 + $0xb0] sm:$0xff]
                  %296 = vst [vmem:[%s272 + $0x58] sm:$0xff] %v295
                  %v297 = vld [vmem:[%s271 + $0xc0] sm:$0xff]
                  %298 = vst [vmem:[%s272 + $0x60] sm:$0xff] %v297
                  %v299 = vld [vmem:[%s271 + $0xd0] sm:$0xff]
                  %300 = vst [vmem:[%s272 + $0x68] sm:$0xff] %v299
                  %v301 = vld [vmem:[%s271 + $0xe0] sm:$0xff]
                  %302 = vst [vmem:[%s272 + $0x70] sm:$0xff] %v301
                  %v303 = vld [vmem:[%s271 + $0xf0] sm:$0xff]
                  %304 = vst [vmem:[%s272 + $0x78] sm:$0xff] %v303
                $region60: #{gpt_forward.15} parent=54 // loop_footer
                  %s270 = sadd.s32 1, %s266
                $region61: #{gpt_forward.15} parent=54 // loop_footer_branch
                  %265 = sbr.rel target = $region57
                $region62: #{gpt_forward.15} parent=54 // loop_exit
                  _
              $region55: #{gpt_forward.15} parent=39 // pred_fallthru
                _
              // Predicated region
              $region63: #{gpt_forward.15} parent=39 // pred_check
                _
              $region64: #{gpt_forward.15} parent=39 // pred_check_branch
                %306 = sbr.rel target = $region66
              $region65: #{gpt_forward.15} parent=39 // pred_region
                _
              $region66: #{gpt_forward.15} parent=39 // pred_fallthru
                _
            $region40: #{gpt_forward.15} parent=35 // pred_fallthru
              _
            // Predicated region
            $region41: #{gpt_forward.15} parent=35 // pred_check
              _
            $region42: #{gpt_forward.15} parent=35 // pred_check_branch
              %220 = sbr.rel target = $region44
            $region43: #{gpt_forward.15} parent=35 // pred_region
              %s222 = ssub.s32 256, 1
              loop: start=0, step=1, limit=1
              $region45: #{gpt_forward.15} parent=43 // loop_pre_header
                _
              $region46: #{gpt_forward.15} parent=43 // loop_header
                %s224 = sphi 0, %s228
                %p225 = scmp.ge.s32.totalorder %s224, 1
                %s229 = sphi %s214, %s214
                %s230 = sphi %s211, %s211
              $region47: #{gpt_forward.15} parent=43 // loop_header_branch
                %227 = sbr.rel (%p225) target = $region51
              $region48: #{gpt_forward.15} parent=43 // loop_body
                %v231 = vld [vmem:[%s229] sm:%s222]
                %232 = vst [vmem:[%s230] sm:%s222] %v231
                %v233 = vld [vmem:[%s229 + $0x10] sm:%s222]
                %234 = vst [vmem:[%s230 + $0x8] sm:%s222] %v233
                %v235 = vld [vmem:[%s229 + $0x20] sm:%s222]
                %236 = vst [vmem:[%s230 + $0x10] sm:%s222] %v235
                %v237 = vld [vmem:[%s229 + $0x30] sm:%s222]
                %238 = vst [vmem:[%s230 + $0x18] sm:%s222] %v237
                %v239 = vld [vmem:[%s229 + $0x40] sm:%s222]
                %240 = vst [vmem:[%s230 + $0x20] sm:%s222] %v239
                %v241 = vld [vmem:[%s229 + $0x50] sm:%s222]
                %242 = vst [vmem:[%s230 + $0x28] sm:%s222] %v241
                %v243 = vld [vmem:[%s229 + $0x60] sm:%s222]
                %244 = vst [vmem:[%s230 + $0x30] sm:%s222] %v243
                %v245 = vld [vmem:[%s229 + $0x70] sm:%s222]
                %246 = vst [vmem:[%s230 + $0x38] sm:%s222] %v245
                %v247 = vld [vmem:[%s229 + $0x80] sm:%s222]
                %248 = vst [vmem:[%s230 + $0x40] sm:%s222] %v247
                %v249 = vld [vmem:[%s229 + $0x90] sm:%s222]
                %250 = vst [vmem:[%s230 + $0x48] sm:%s222] %v249
                %v251 = vld [vmem:[%s229 + $0xa0] sm:%s222]
                %252 = vst [vmem:[%s230 + $0x50] sm:%s222] %v251
                %v253 = vld [vmem:[%s229 + $0xb0] sm:%s222]
                %254 = vst [vmem:[%s230 + $0x58] sm:%s222] %v253
                %v255 = vld [vmem:[%s229 + $0xc0] sm:%s222]
                %256 = vst [vmem:[%s230 + $0x60] sm:%s222] %v255
                %v257 = vld [vmem:[%s229 + $0xd0] sm:%s222]
                %258 = vst [vmem:[%s230 + $0x68] sm:%s222] %v257
                %v259 = vld [vmem:[%s229 + $0xe0] sm:%s222]
                %260 = vst [vmem:[%s230 + $0x70] sm:%s222] %v259
                %v261 = vld [vmem:[%s229 + $0xf0] sm:%s222]
                %262 = vst [vmem:[%s230 + $0x78] sm:%s222] %v261
              $region49: #{gpt_forward.15} parent=43 // loop_footer
                %s228 = sadd.s32 1, %s224
              $region50: #{gpt_forward.15} parent=43 // loop_footer_branch
                %223 = sbr.rel target = $region46
              $region51: #{gpt_forward.15} parent=43 // loop_exit
                _
            $region44: #{gpt_forward.15} parent=35 // pred_fallthru
              _
          $region36: #{gpt_forward.15} parent=31 // pred_fallthru
            _
          %307 = vnop
        $region32: #{gpt_forward.15} parent=23 // pred_fallthru
          _
        // Predicated region
        $region67: #{gpt_forward.15} parent=23 // pred_check
          %p308 = pneg %p137
        $region68: #{gpt_forward.15} parent=23 // pred_check_branch
          %310 = sbr.rel (%p308) target = $region70
        $region69: #{gpt_forward.15} parent=23 // pred_region
          %s311 = smul.u32 2, %s19
          %p312 = scmp.lt.s32.totalorder %s311, 3
          %s313 = scalar_select %p312, %s311, 3
          %s314 = scalar_lea.vmem %s4, %s313
          %s315 = smul.u32 2, %s19
        $region70: #{gpt_forward.15} parent=23 // pred_fallthru
          _
      $region24: #{gpt_forward.15} parent=5 // pred_fallthru
        _
      %p316 = scmp.le.s32.totalorder 1, %s11
      %p317 = scmp.lt.s32.totalorder %s11, 9
      %p318 = pnand %p316, %p317
      %p319 = pneg %p318
      // Predicated region
      $region71: #{gpt_forward.15} parent=5 // pred_check
        _
      $region72: #{gpt_forward.15} parent=5 // pred_check_branch
        %321 = sbr.rel (%p318) target = $region74
      $region73: #{gpt_forward.15} parent=5 // pred_region
        %s322 = ssub.s32 %s11, 1
        %s323 = sand.u32 %s104, 1
        %s324 = sand.u32 %s104, 1
        %s325 = smul.addr %s324, 128
        %s326 = scalar_lea.vmem [#allocation2], %s325
        // Predicated region
        $region75: #{gpt_forward.15} parent=73 // pred_check
          %p327 = pneg %p117
        $region76: #{gpt_forward.15} parent=73 // pred_check_branch
          %329 = sbr.rel (%p327) target = $region78
        $region77: #{gpt_forward.15} parent=73 // pred_region
          _
        $region78: #{gpt_forward.15} parent=73 // pred_fallthru
          _
        %s330 = smul.u32 16, %s20
        %p331 = scmp.lt.s32.totalorder %s330, 63
        %s332 = scalar_select %p331, %s330, 63
        %s333 = smul.addr %s332, 8
        %s334 = scalar_lea.vmem %s0, %s333
        %p335 = pneg %p49
        %p336 = pneg %p46
        %p337 = pneg %p70
        %p338 = pneg %p67
        %p339 = pneg %p91
        %p340 = pneg %p88
        %s341 = sand.u32 %s104, 1
        %s342 = sand.u32 %s104, 1
        %s343 = smul.addr %s342, 128
        %s344 = scalar_lea.vmem [#allocation2], %s343
        %p345 = pneg %p117
        %p346 = pneg %p114
        %s347 = smul.u32 2, %s21
        %p348 = scmp.lt.s32.totalorder %s347, 3
        %s349 = scalar_select %p348, %s347, 3
        %s350 = scalar_lea.vmem %s4, %s349
        %p351 = pneg %p143
        %p352 = pneg %p140
        %p353 = pneg %p171
        %p354 = pneg %p168
        %s355 = sand.u32 %s158, 1
        %s356 = sand.u32 %s158, 1
        %s357 = smul.addr %s356, 256
        %s358 = scalar_lea.vmem [#allocation3], %s357
        %s359 = smul.u32 16, %s20
        %p360 = scmp.lt.s32.totalorder %s359, 63
        %s361 = scalar_select %p360, %s359, 63
        %s362 = smul.addr %s361, 8
        %s363 = scalar_lea.vmem %s0, %s362
        %s364 = smul.u32 16, %s20
        %s365 = smul.u32 2, %s21
        %s366 = smul.u32 2, %s21
        %p367 = scmp.lt.s32.totalorder %s366, 3
        %s368 = scalar_select %p367, %s366, 3
        %s369 = scalar_lea.vmem %s4, %s368
        %s370 = smul.u32 2, %s21
        %s371 = smul.u32 16, %s20
        %s372 = smul.u32 2, %s21
        %v373 = vld [vmem:[%s363] sm:$0xff]
        %v374 = vld [vmem:[%s363 + $0x8] sm:$0xff]
        %v375 = vld [vmem:[%s363 + $0x10] sm:$0xff]
        %v376 = vld [vmem:[%s363 + $0x18] sm:$0xff]
        %v377 = vld [vmem:[%s363 + $0x20] sm:$0xff]
        %v378 = vld [vmem:[%s363 + $0x28] sm:$0xff]
        %v379 = vld [vmem:[%s363 + $0x30] sm:$0xff]
        %v380 = vld [vmem:[%s363 + $0x38] sm:$0xff]
        %v381 = vld [vmem:[%s363 + $0x40] sm:$0xff]
        %v382 = vld [vmem:[%s363 + $0x48] sm:$0xff]
        %v383 = vld [vmem:[%s363 + $0x50] sm:$0xff]
        %v384 = vld [vmem:[%s363 + $0x58] sm:$0xff]
        %v385 = vld [vmem:[%s363 + $0x60] sm:$0xff]
        %v386 = vld [vmem:[%s363 + $0x68] sm:$0xff]
        %v387 = vld [vmem:[%s363 + $0x70] sm:$0xff]
        %v388 = vld [vmem:[%s363 + $0x78] sm:$0xff]
        %389 = vadd.xlane.f32.xlu0 %v373
        %v390 = vpop.xlane.xlu0 %389
        %391 = vadd.xlane.f32.xlu0 %v374
        %v392 = vpop.xlane.xlu0 %391
        %393 = vadd.xlane.f32.xlu0 %v375
        %v394 = vpop.xlane.xlu0 %393
        %395 = vadd.xlane.f32.xlu0 %v376
        %v396 = vpop.xlane.xlu0 %395
        %397 = vadd.xlane.f32.xlu0 %v377
        %v398 = vpop.xlane.xlu0 %397
        %399 = vadd.xlane.f32.xlu0 %v378
        %v400 = vpop.xlane.xlu0 %399
        %401 = vadd.xlane.f32.xlu0 %v379
        %v402 = vpop.xlane.xlu0 %401
        %403 = vadd.xlane.f32.xlu0 %v380
        %v404 = vpop.xlane.xlu0 %403
        %405 = vadd.xlane.f32.xlu0 %v381
        %v406 = vpop.xlane.xlu0 %405
        %407 = vadd.xlane.f32.xlu0 %v382
        %v408 = vpop.xlane.xlu0 %407
        %409 = vadd.xlane.f32.xlu0 %v383
        %v410 = vpop.xlane.xlu0 %409
        %411 = vadd.xlane.f32.xlu0 %v384
        %v412 = vpop.xlane.xlu0 %411
        %413 = vadd.xlane.f32.xlu0 %v385
        %v414 = vpop.xlane.xlu0 %413
        %415 = vadd.xlane.f32.xlu0 %v386
        %v416 = vpop.xlane.xlu0 %415
        %417 = vadd.xlane.f32.xlu0 %v387
        %v418 = vpop.xlane.xlu0 %417
        %419 = vadd.xlane.f32.xlu0 %v388
        %v420 = vpop.xlane.xlu0 %419
        %v421 = vrcp.pop 128.0
        %v422 = vmul.f32 128.0, %v421
        %v423 = vsub.f32 1.0, %v422
        %v424 = vmul.f32 %v421, %v423
        %v425 = vadd.f32 %v421, %v424
        %vm426 = vweird.f32 %v421
        %v427 = vsel %vm426, %v421, %v425
        %v428 = vmul.f32 %v390, %v427
        %v429 = vmul.f32 %v392, %v427
        %v430 = vmul.f32 %v394, %v427
        %v431 = vmul.f32 %v396, %v427
        %v432 = vmul.f32 %v398, %v427
        %v433 = vmul.f32 %v400, %v427
        %v434 = vmul.f32 %v402, %v427
        %v435 = vmul.f32 %v404, %v427
        %v436 = vmul.f32 %v406, %v427
        %v437 = vmul.f32 %v408, %v427
        %v438 = vmul.f32 %v410, %v427
        %v439 = vmul.f32 %v412, %v427
        %v440 = vmul.f32 %v414, %v427
        %v441 = vmul.f32 %v416, %v427
        %v442 = vmul.f32 %v418, %v427
        %v443 = vmul.f32 %v420, %v427
        %v444 = vsub.f32 %v373, %v428
        %v445 = vsub.f32 %v374, %v429
        %v446 = vsub.f32 %v375, %v430
        %v447 = vsub.f32 %v376, %v431
        %v448 = vsub.f32 %v377, %v432
        %v449 = vsub.f32 %v378, %v433
        %v450 = vsub.f32 %v379, %v434
        %v451 = vsub.f32 %v380, %v435
        %v452 = vsub.f32 %v381, %v436
        %v453 = vsub.f32 %v382, %v437
        %v454 = vsub.f32 %v383, %v438
        %v455 = vsub.f32 %v384, %v439
        %v456 = vsub.f32 %v385, %v440
        %v457 = vsub.f32 %v386, %v441
        %v458 = vsub.f32 %v387, %v442
        %v459 = vsub.f32 %v388, %v443
        %v460 = vmul.f32 %v444, %v444
        %v461 = vmul.f32 %v445, %v445
        %v462 = vmul.f32 %v446, %v446
        %v463 = vmul.f32 %v447, %v447
        %v464 = vmul.f32 %v448, %v448
        %v465 = vmul.f32 %v449, %v449
        %v466 = vmul.f32 %v450, %v450
        %v467 = vmul.f32 %v451, %v451
        %v468 = vmul.f32 %v452, %v452
        %v469 = vmul.f32 %v453, %v453
        %v470 = vmul.f32 %v454, %v454
        %v471 = vmul.f32 %v455, %v455
        %v472 = vmul.f32 %v456, %v456
        %v473 = vmul.f32 %v457, %v457
        %v474 = vmul.f32 %v458, %v458
        %v475 = vmul.f32 %v459, %v459
        %476 = vadd.xlane.f32.xlu0 %v460
        %v477 = vpop.xlane.xlu0 %476
        %478 = vadd.xlane.f32.xlu0 %v461
        %v479 = vpop.xlane.xlu0 %478
        %480 = vadd.xlane.f32.xlu0 %v462
        %v481 = vpop.xlane.xlu0 %480
        %482 = vadd.xlane.f32.xlu0 %v463
        %v483 = vpop.xlane.xlu0 %482
        %484 = vadd.xlane.f32.xlu0 %v464
        %v485 = vpop.xlane.xlu0 %484
        %486 = vadd.xlane.f32.xlu0 %v465
        %v487 = vpop.xlane.xlu0 %486
        %488 = vadd.xlane.f32.xlu0 %v466
        %v489 = vpop.xlane.xlu0 %488
        %490 = vadd.xlane.f32.xlu0 %v467
        %v491 = vpop.xlane.xlu0 %490
        %492 = vadd.xlane.f32.xlu0 %v468
        %v493 = vpop.xlane.xlu0 %492
        %494 = vadd.xlane.f32.xlu0 %v469
        %v495 = vpop.xlane.xlu0 %494
        %496 = vadd.xlane.f32.xlu0 %v470
        %v497 = vpop.xlane.xlu0 %496
        %498 = vadd.xlane.f32.xlu0 %v471
        %v499 = vpop.xlane.xlu0 %498
        %500 = vadd.xlane.f32.xlu0 %v472
        %v501 = vpop.xlane.xlu0 %500
        %502 = vadd.xlane.f32.xlu0 %v473
        %v503 = vpop.xlane.xlu0 %502
        %504 = vadd.xlane.f32.xlu0 %v474
        %v505 = vpop.xlane.xlu0 %504
        %506 = vadd.xlane.f32.xlu0 %v475
        %v507 = vpop.xlane.xlu0 %506
        %v508 = vmul.f32 %v477, %v427
        %v509 = vmul.f32 %v479, %v427
        %v510 = vmul.f32 %v481, %v427
        %v511 = vmul.f32 %v483, %v427
        %v512 = vmul.f32 %v485, %v427
        %v513 = vmul.f32 %v487, %v427
        %v514 = vmul.f32 %v489, %v427
        %v515 = vmul.f32 %v491, %v427
        %v516 = vmul.f32 %v493, %v427
        %v517 = vmul.f32 %v495, %v427
        %v518 = vmul.f32 %v497, %v427
        %v519 = vmul.f32 %v499, %v427
        %v520 = vmul.f32 %v501, %v427
        %v521 = vmul.f32 %v503, %v427
        %v522 = vmul.f32 %v505, %v427
        %v523 = vmul.f32 %v507, %v427
        %v524 = vadd.f32 %v508, 1e-05
        %v525 = vadd.f32 %v509, 1e-05
        %v526 = vadd.f32 %v510, 1e-05
        %v527 = vadd.f32 %v511, 1e-05
        %v528 = vadd.f32 %v512, 1e-05
        %v529 = vadd.f32 %v513, 1e-05
        %v530 = vadd.f32 %v514, 1e-05
        %v531 = vadd.f32 %v515, 1e-05
        %v532 = vadd.f32 %v516, 1e-05
        %v533 = vadd.f32 %v517, 1e-05
        %v534 = vadd.f32 %v518, 1e-05
        %v535 = vadd.f32 %v519, 1e-05
        %v536 = vadd.f32 %v520, 1e-05
        %v537 = vadd.f32 %v521, 1e-05
        %v538 = vadd.f32 %v522, 1e-05
        %v539 = vadd.f32 %v523, 1e-05
        %v540 = vrsqrt.pop %v524
        %v541 = vmul.f32 %v540, %v524
        %v542 = vmul.f32 %v541, %v540
        %v543 = vmul.f32 0.5, %v542
        %v544 = vsub.f32 1.5, %v543
        %v545 = vmul.f32 %v540, %v544
        %vm546 = vweird.f32 %v524
        %vm547 = vweird.f32 %v540
        %vm548 = vmor %vm546, %vm547
        %v549 = vsel %vm548, %v540, %v545
        %v550 = vrsqrt.pop %v525
        %v551 = vmul.f32 %v550, %v525
        %v552 = vmul.f32 %v551, %v550
        %v553 = vmul.f32 0.5, %v552
        %v554 = vsub.f32 1.5, %v553
        %v555 = vmul.f32 %v550, %v554
        %vm556 = vweird.f32 %v525
        %vm557 = vweird.f32 %v550
        %vm558 = vmor %vm556, %vm557
        %v559 = vsel %vm558, %v550, %v555
        %v560 = vrsqrt.pop %v526
        %v561 = vmul.f32 %v560, %v526
        %v562 = vmul.f32 %v561, %v560
        %v563 = vmul.f32 0.5, %v562
        %v564 = vsub.f32 1.5, %v563
        %v565 = vmul.f32 %v560, %v564
        %vm566 = vweird.f32 %v526
        %vm567 = vweird.f32 %v560
        %vm568 = vmor %vm566, %vm567
        %v569 = vsel %vm568, %v560, %v565
        %v570 = vrsqrt.pop %v527
        %v571 = vmul.f32 %v570, %v527
        %v572 = vmul.f32 %v571, %v570
        %v573 = vmul.f32 0.5, %v572
        %v574 = vsub.f32 1.5, %v573
        %v575 = vmul.f32 %v570, %v574
        %vm576 = vweird.f32 %v527
        %vm577 = vweird.f32 %v570
        %vm578 = vmor %vm576, %vm577
        %v579 = vsel %vm578, %v570, %v575
        %v580 = vrsqrt.pop %v528
        %v581 = vmul.f32 %v580, %v528
        %v582 = vmul.f32 %v581, %v580
        %v583 = vmul.f32 0.5, %v582
        %v584 = vsub.f32 1.5, %v583
        %v585 = vmul.f32 %v580, %v584
        %vm586 = vweird.f32 %v528
        %vm587 = vweird.f32 %v580
        %vm588 = vmor %vm586, %vm587
        %v589 = vsel %vm588, %v580, %v585
        %v590 = vrsqrt.pop %v529
        %v591 = vmul.f32 %v590, %v529
        %v592 = vmul.f32 %v591, %v590
        %v593 = vmul.f32 0.5, %v592
        %v594 = vsub.f32 1.5, %v593
        %v595 = vmul.f32 %v590, %v594
        %vm596 = vweird.f32 %v529
        %vm597 = vweird.f32 %v590
        %vm598 = vmor %vm596, %vm597
        %v599 = vsel %vm598, %v590, %v595
        %v600 = vrsqrt.pop %v530
        %v601 = vmul.f32 %v600, %v530
        %v602 = vmul.f32 %v601, %v600
        %v603 = vmul.f32 0.5, %v602
        %v604 = vsub.f32 1.5, %v603
        %v605 = vmul.f32 %v600, %v604
        %vm606 = vweird.f32 %v530
        %vm607 = vweird.f32 %v600
        %vm608 = vmor %vm606, %vm607
        %v609 = vsel %vm608, %v600, %v605
        %v610 = vrsqrt.pop %v531
        %v611 = vmul.f32 %v610, %v531
        %v612 = vmul.f32 %v611, %v610
        %v613 = vmul.f32 0.5, %v612
        %v614 = vsub.f32 1.5, %v613
        %v615 = vmul.f32 %v610, %v614
        %vm616 = vweird.f32 %v531
        %vm617 = vweird.f32 %v610
        %vm618 = vmor %vm616, %vm617
        %v619 = vsel %vm618, %v610, %v615
        %v620 = vrsqrt.pop %v532
        %v621 = vmul.f32 %v620, %v532
        %v622 = vmul.f32 %v621, %v620
        %v623 = vmul.f32 0.5, %v622
        %v624 = vsub.f32 1.5, %v623
        %v625 = vmul.f32 %v620, %v624
        %vm626 = vweird.f32 %v532
        %vm627 = vweird.f32 %v620
        %vm628 = vmor %vm626, %vm627
        %v629 = vsel %vm628, %v620, %v625
        %v630 = vrsqrt.pop %v533
        %v631 = vmul.f32 %v630, %v533
        %v632 = vmul.f32 %v631, %v630
        %v633 = vmul.f32 0.5, %v632
        %v634 = vsub.f32 1.5, %v633
        %v635 = vmul.f32 %v630, %v634
        %vm636 = vweird.f32 %v533
        %vm637 = vweird.f32 %v630
        %vm638 = vmor %vm636, %vm637
        %v639 = vsel %vm638, %v630, %v635
        %v640 = vrsqrt.pop %v534
        %v641 = vmul.f32 %v640, %v534
        %v642 = vmul.f32 %v641, %v640
        %v643 = vmul.f32 0.5, %v642
        %v644 = vsub.f32 1.5, %v643
        %v645 = vmul.f32 %v640, %v644
        %vm646 = vweird.f32 %v534
        %vm647 = vweird.f32 %v640
        %vm648 = vmor %vm646, %vm647
        %v649 = vsel %vm648, %v640, %v645
        %v650 = vrsqrt.pop %v535
        %v651 = vmul.f32 %v650, %v535
        %v652 = vmul.f32 %v651, %v650
        %v653 = vmul.f32 0.5, %v652
        %v654 = vsub.f32 1.5, %v653
        %v655 = vmul.f32 %v650, %v654
        %vm656 = vweird.f32 %v535
        %vm657 = vweird.f32 %v650
        %vm658 = vmor %vm656, %vm657
        %v659 = vsel %vm658, %v650, %v655
        %v660 = vrsqrt.pop %v536
        %v661 = vmul.f32 %v660, %v536
        %v662 = vmul.f32 %v661, %v660
        %v663 = vmul.f32 0.5, %v662
        %v664 = vsub.f32 1.5, %v663
        %v665 = vmul.f32 %v660, %v664
        %vm666 = vweird.f32 %v536
        %vm667 = vweird.f32 %v660
        %vm668 = vmor %vm666, %vm667
        %v669 = vsel %vm668, %v660, %v665
        %v670 = vrsqrt.pop %v537
        %v671 = vmul.f32 %v670, %v537
        %v672 = vmul.f32 %v671, %v670
        %v673 = vmul.f32 0.5, %v672
        %v674 = vsub.f32 1.5, %v673
        %v675 = vmul.f32 %v670, %v674
        %vm676 = vweird.f32 %v537
        %vm677 = vweird.f32 %v670
        %vm678 = vmor %vm676, %vm677
        %v679 = vsel %vm678, %v670, %v675
        %v680 = vrsqrt.pop %v538
        %v681 = vmul.f32 %v680, %v538
        %v682 = vmul.f32 %v681, %v680
        %v683 = vmul.f32 0.5, %v682
        %v684 = vsub.f32 1.5, %v683
        %v685 = vmul.f32 %v680, %v684
        %vm686 = vweird.f32 %v538
        %vm687 = vweird.f32 %v680
        %vm688 = vmor %vm686, %vm687
        %v689 = vsel %vm688, %v680, %v685
        %v690 = vrsqrt.pop %v539
        %v691 = vmul.f32 %v690, %v539
        %v692 = vmul.f32 %v691, %v690
        %v693 = vmul.f32 0.5, %v692
        %v694 = vsub.f32 1.5, %v693
        %v695 = vmul.f32 %v690, %v694
        %vm696 = vweird.f32 %v539
        %vm697 = vweird.f32 %v690
        %vm698 = vmor %vm696, %vm697
        %v699 = vsel %vm698, %v690, %v695
        %v700 = vmul.f32 %v444, %v549
        %v701 = vmul.f32 %v445, %v559
        %v702 = vmul.f32 %v446, %v569
        %v703 = vmul.f32 %v447, %v579
        %v704 = vmul.f32 %v448, %v589
        %v705 = vmul.f32 %v449, %v599
        %v706 = vmul.f32 %v450, %v609
        %v707 = vmul.f32 %v451, %v619
        %v708 = vmul.f32 %v452, %v629
        %v709 = vmul.f32 %v453, %v639
        %v710 = vmul.f32 %v454, %v649
        %v711 = vmul.f32 %v455, %v659
        %v712 = vmul.f32 %v456, %v669
        %v713 = vmul.f32 %v457, %v679
        %v714 = vmul.f32 %v458, %v689
        %v715 = vmul.f32 %v459, %v699
        %v716 = vld [vmem:[%s1] sm:$0x1]
        %v718 = vperm.slane %v716, 0
        %v720 = vmul.f32 %v700, %v718
        %v721 = vmul.f32 %v701, %v718
        %v722 = vmul.f32 %v702, %v718
        %v723 = vmul.f32 %v703, %v718
        %v724 = vmul.f32 %v704, %v718
        %v725 = vmul.f32 %v705, %v718
        %v726 = vmul.f32 %v706, %v718
        %v727 = vmul.f32 %v707, %v718
        %v728 = vmul.f32 %v708, %v718
        %v729 = vmul.f32 %v709, %v718
        %v730 = vmul.f32 %v710, %v718
        %v731 = vmul.f32 %v711, %v718
        %v732 = vmul.f32 %v712, %v718
        %v733 = vmul.f32 %v713, %v718
        %v734 = vmul.f32 %v714, %v718
        %v735 = vmul.f32 %v715, %v718
        %v736 = vld [vmem:[%s2] sm:$0x1]
        %v738 = vperm.slane %v736, 0
        %v740 = vadd.f32 %v720, %v738
        %v741 = vadd.f32 %v721, %v738
        %v742 = vadd.f32 %v722, %v738
        %v743 = vadd.f32 %v723, %v738
        %v744 = vadd.f32 %v724, %v738
        %v745 = vadd.f32 %v725, %v738
        %v746 = vadd.f32 %v726, %v738
        %v747 = vadd.f32 %v727, %v738
        %v748 = vadd.f32 %v728, %v738
        %v749 = vadd.f32 %v729, %v738
        %v750 = vadd.f32 %v730, %v738
        %v751 = vadd.f32 %v731, %v738
        %v752 = vadd.f32 %v732, %v738
        %v753 = vadd.f32 %v733, %v738
        %v754 = vadd.f32 %v734, %v738
        %v755 = vadd.f32 %v735, %v738
        %v756 = vpack.c.bf16 %v741, %v740
        %v757 = vpack.c.bf16 %v743, %v742
        %v758 = vpack.c.bf16 %v745, %v744
        %v759 = vpack.c.bf16 %v747, %v746
        %v760 = vpack.c.bf16 %v749, %v748
        %v761 = vpack.c.bf16 %v751, %v750
        %v762 = vpack.c.bf16 %v753, %v752
        %v763 = vpack.c.bf16 %v755, %v754
        %v764 = vld [vmem:[%s326] sm:$0xff]
        %v765 = vld [vmem:[%s326 + $0x8] sm:$0xff]
        %v766 = vld [vmem:[%s326 + $0x10] sm:$0xff]
        %v767 = vld [vmem:[%s326 + $0x18] sm:$0xff]
        %v768 = vld [vmem:[%s326 + $0x20] sm:$0xff]
        %v769 = vld [vmem:[%s326 + $0x28] sm:$0xff]
        %v770 = vld [vmem:[%s326 + $0x30] sm:$0xff]
        %v771 = vld [vmem:[%s326 + $0x38] sm:$0xff]
        %v772 = vld [vmem:[%s326 + $0x40] sm:$0xff]
        %v773 = vld [vmem:[%s326 + $0x48] sm:$0xff]
        %v774 = vld [vmem:[%s326 + $0x50] sm:$0xff]
        %v775 = vld [vmem:[%s326 + $0x58] sm:$0xff]
        %v776 = vld [vmem:[%s326 + $0x60] sm:$0xff]
        %v777 = vld [vmem:[%s326 + $0x68] sm:$0xff]
        %v778 = vld [vmem:[%s326 + $0x70] sm:$0xff]
        %v779 = vld [vmem:[%s326 + $0x78] sm:$0xff]
        %v780 = vld [vmem:[%s369] sm:$0x3]
        %v782 = vperm.slane %v780, 0
        %v783 = vperm.slane %v780, 1
        %v802 = vunpack.c.l.b16 %v764
        %v803 = vunpack.c.h.b16 %v764
        %v804 = vunpack.c.l.b16 %v765
        %v805 = vunpack.c.h.b16 %v765
        %v806 = vunpack.c.l.b16 %v766
        %v807 = vunpack.c.h.b16 %v766
        %v808 = vunpack.c.l.b16 %v767
        %v809 = vunpack.c.h.b16 %v767
        %v810 = vunpack.c.l.b16 %v768
        %v811 = vunpack.c.h.b16 %v768
        %v812 = vunpack.c.l.b16 %v769
        %v813 = vunpack.c.h.b16 %v769
        %v814 = vunpack.c.l.b16 %v770
        %v815 = vunpack.c.h.b16 %v770
        %v816 = vunpack.c.l.b16 %v771
        %v817 = vunpack.c.h.b16 %v771
        %v818 = vunpack.c.l.b16 %v772
        %v819 = vunpack.c.h.b16 %v772
        %v820 = vunpack.c.l.b16 %v773
        %v821 = vunpack.c.h.b16 %v773
        %v822 = vunpack.c.l.b16 %v774
        %v823 = vunpack.c.h.b16 %v774
        %v824 = vunpack.c.l.b16 %v775
        %v825 = vunpack.c.h.b16 %v775
        %v826 = vunpack.c.l.b16 %v776
        %v827 = vunpack.c.h.b16 %v776
        %v828 = vunpack.c.l.b16 %v777
        %v829 = vunpack.c.h.b16 %v777
        %v830 = vunpack.c.l.b16 %v778
        %v831 = vunpack.c.h.b16 %v778
        %v832 = vunpack.c.l.b16 %v779
        %v833 = vunpack.c.h.b16 %v779
        %v834 = vpack.c.b16 %v804, %v802
        %v835 = vpack.c.b16 %v805, %v803
        %v836 = vpack.c.b16 %v808, %v806
        %v837 = vpack.c.b16 %v809, %v807
        %v838 = vpack.c.b16 %v812, %v810
        %v839 = vpack.c.b16 %v813, %v811
        %v840 = vpack.c.b16 %v816, %v814
        %v841 = vpack.c.b16 %v817, %v815
        %v842 = vpack.c.b16 %v820, %v818
        %v843 = vpack.c.b16 %v821, %v819
        %v844 = vpack.c.b16 %v824, %v822
        %v845 = vpack.c.b16 %v825, %v823
        %v846 = vpack.c.b16 %v828, %v826
        %v847 = vpack.c.b16 %v829, %v827
        %v848 = vpack.c.b16 %v832, %v830
        %v849 = vpack.c.b16 %v833, %v831
        %866 = vmatpush.bf16.msra.mxu0 %v848
        %867 = vmatpush.bf16.msra.mxu0 %v846
        %868 = vmatpush.bf16.msra.mxu0 %v844
        %869 = vmatpush.bf16.msra.mxu0 %v842
        %870 = vmatpush.bf16.msra.mxu0 %v840
        %871 = vmatpush.bf16.msra.mxu0 %v838
        %872 = vmatpush.bf16.msra.mxu0 %v836
        %873 = vmatpush.bf16.msra.mxu0 %v834
        %874 = vmatmul.bf16.gmra.mxu0 %v756
        %v875 = vpop.f32.mrf.mxu0
        %v876 = vadd.f32 %v782, %v875
        %v877 = vpop.f32.mrf.mxu0
        %v878 = vadd.f32 %v782, %v877
        %879 = vmatmul.bf16.gmra.mxu0 %v757
        %v880 = vpop.f32.mrf.mxu0
        %v881 = vadd.f32 %v782, %v880
        %v882 = vpop.f32.mrf.mxu0
        %v883 = vadd.f32 %v782, %v882
        %884 = vmatmul.bf16.gmra.mxu0 %v758
        %v885 = vpop.f32.mrf.mxu0
        %v886 = vadd.f32 %v782, %v885
        %v887 = vpop.f32.mrf.mxu0
        %v888 = vadd.f32 %v782, %v887
        %889 = vmatmul.bf16.gmra.mxu0 %v759
        %v890 = vpop.f32.mrf.mxu0
        %v891 = vadd.f32 %v782, %v890
        %v892 = vpop.f32.mrf.mxu0
        %v893 = vadd.f32 %v782, %v892
        %894 = vmatmul.bf16.gmra.mxu0 %v760
        %v895 = vpop.f32.mrf.mxu0
        %v896 = vadd.f32 %v782, %v895
        %v897 = vpop.f32.mrf.mxu0
        %v898 = vadd.f32 %v782, %v897
        %899 = vmatmul.bf16.gmra.mxu0 %v761
        %v900 = vpop.f32.mrf.mxu0
        %v901 = vadd.f32 %v782, %v900
        %v902 = vpop.f32.mrf.mxu0
        %v903 = vadd.f32 %v782, %v902
        %904 = vmatmul.bf16.gmra.mxu0 %v762
        %v905 = vpop.f32.mrf.mxu0
        %v906 = vadd.f32 %v782, %v905
        %v907 = vpop.f32.mrf.mxu0
        %v908 = vadd.f32 %v782, %v907
        %909 = vmatmul.bf16.gmra.mxu0 %v763
        %v910 = vpop.f32.mrf.mxu0
        %v911 = vadd.f32 %v782, %v910
        %v912 = vpop.f32.mrf.mxu0
        %v913 = vadd.f32 %v782, %v912
        %914 = vdwg.mxu0
        %915 = vmatpush.bf16.msra.mxu0 %v849
        %916 = vmatpush.bf16.msra.mxu0 %v847
        %917 = vmatpush.bf16.msra.mxu0 %v845
        %918 = vmatpush.bf16.msra.mxu0 %v843
        %919 = vmatpush.bf16.msra.mxu0 %v841
        %920 = vmatpush.bf16.msra.mxu0 %v839
        %921 = vmatpush.bf16.msra.mxu0 %v837
        %922 = vmatpush.bf16.msra.mxu0 %v835
        %923 = vmatmul.bf16.gmra.mxu0 %v756
        %v924 = vpop.f32.mrf.mxu0
        %v925 = vadd.f32 %v783, %v924
        %v926 = vpop.f32.mrf.mxu0
        %v927 = vadd.f32 %v783, %v926
        %928 = vmatmul.bf16.gmra.mxu0 %v757
        %v929 = vpop.f32.mrf.mxu0
        %v930 = vadd.f32 %v783, %v929
        %v931 = vpop.f32.mrf.mxu0
        %v932 = vadd.f32 %v783, %v931
        %933 = vmatmul.bf16.gmra.mxu0 %v758
        %v934 = vpop.f32.mrf.mxu0
        %v935 = vadd.f32 %v783, %v934
        %v936 = vpop.f32.mrf.mxu0
        %v937 = vadd.f32 %v783, %v936
        %938 = vmatmul.bf16.gmra.mxu0 %v759
        %v939 = vpop.f32.mrf.mxu0
        %v940 = vadd.f32 %v783, %v939
        %v941 = vpop.f32.mrf.mxu0
        %v942 = vadd.f32 %v783, %v941
        %943 = vmatmul.bf16.gmra.mxu0 %v760
        %v944 = vpop.f32.mrf.mxu0
        %v945 = vadd.f32 %v783, %v944
        %v946 = vpop.f32.mrf.mxu0
        %v947 = vadd.f32 %v783, %v946
        %948 = vmatmul.bf16.gmra.mxu0 %v761
        %v949 = vpop.f32.mrf.mxu0
        %v950 = vadd.f32 %v783, %v949
        %v951 = vpop.f32.mrf.mxu0
        %v952 = vadd.f32 %v783, %v951
        %953 = vmatmul.bf16.gmra.mxu0 %v762
        %v954 = vpop.f32.mrf.mxu0
        %v955 = vadd.f32 %v783, %v954
        %v956 = vpop.f32.mrf.mxu0
        %v957 = vadd.f32 %v783, %v956
        %958 = vmatmul.bf16.gmra.mxu0 %v763
        %v959 = vpop.f32.mrf.mxu0
        %v960 = vadd.f32 %v783, %v959
        %v961 = vpop.f32.mrf.mxu0
        %v962 = vadd.f32 %v783, %v961
        %963 = vdwg.mxu0
        %v964 = vmul.f32 %v876, 0.5
        %v965 = vmul.f32 %v925, 0.5
        %v966 = vmul.f32 %v878, 0.5
        %v967 = vmul.f32 %v927, 0.5
        %v968 = vmul.f32 %v881, 0.5
        %v969 = vmul.f32 %v930, 0.5
        %v970 = vmul.f32 %v883, 0.5
        %v971 = vmul.f32 %v932, 0.5
        %v972 = vmul.f32 %v886, 0.5
        %v973 = vmul.f32 %v935, 0.5
        %v974 = vmul.f32 %v888, 0.5
        %v975 = vmul.f32 %v937, 0.5
        %v976 = vmul.f32 %v891, 0.5
        %v977 = vmul.f32 %v940, 0.5
        %v978 = vmul.f32 %v893, 0.5
        %v979 = vmul.f32 %v942, 0.5
        %v980 = vmul.f32 %v896, 0.5
        %v981 = vmul.f32 %v945, 0.5
        %v982 = vmul.f32 %v898, 0.5
        %v983 = vmul.f32 %v947, 0.5
        %v984 = vmul.f32 %v901, 0.5
        %v985 = vmul.f32 %v950, 0.5
        %v986 = vmul.f32 %v903, 0.5
        %v987 = vmul.f32 %v952, 0.5
        %v988 = vmul.f32 %v906, 0.5
        %v989 = vmul.f32 %v955, 0.5
        %v990 = vmul.f32 %v908, 0.5
        %v991 = vmul.f32 %v957, 0.5
        %v992 = vmul.f32 %v911, 0.5
        %v993 = vmul.f32 %v960, 0.5
        %v994 = vmul.f32 %v913, 0.5
        %v995 = vmul.f32 %v962, 0.5
        %v996 = vmul.f32 %v876, 0.044715
        %v997 = vmul.f32 %v925, 0.044715
        %v998 = vmul.f32 %v878, 0.044715
        %v999 = vmul.f32 %v927, 0.044715
        %v1000 = vmul.f32 %v881, 0.044715
        %v1001 = vmul.f32 %v930, 0.044715
        %v1002 = vmul.f32 %v883, 0.044715
        %v1003 = vmul.f32 %v932, 0.044715
        %v1004 = vmul.f32 %v886, 0.044715
        %v1005 = vmul.f32 %v935, 0.044715
        %v1006 = vmul.f32 %v888, 0.044715
        %v1007 = vmul.f32 %v937, 0.044715
        %v1008 = vmul.f32 %v891, 0.044715
        %v1009 = vmul.f32 %v940, 0.044715
        %v1010 = vmul.f32 %v893, 0.044715
        %v1011 = vmul.f32 %v942, 0.044715
        %v1012 = vmul.f32 %v896, 0.044715
        %v1013 = vmul.f32 %v945, 0.044715
        %v1014 = vmul.f32 %v898, 0.044715
        %v1015 = vmul.f32 %v947, 0.044715
        %v1016 = vmul.f32 %v901, 0.044715
        %v1017 = vmul.f32 %v950, 0.044715
        %v1018 = vmul.f32 %v903, 0.044715
        %v1019 = vmul.f32 %v952, 0.044715
        %v1020 = vmul.f32 %v906, 0.044715
        %v1021 = vmul.f32 %v955, 0.044715
        %v1022 = vmul.f32 %v908, 0.044715
        %v1023 = vmul.f32 %v957, 0.044715
        %v1024 = vmul.f32 %v911, 0.044715
        %v1025 = vmul.f32 %v960, 0.044715
        %v1026 = vmul.f32 %v913, 0.044715
        %v1027 = vmul.f32 %v962, 0.044715
        %v1028 = vmul.f32 %v996, %v876
        %v1029 = vmul.f32 %v997, %v925
        %v1030 = vmul.f32 %v998, %v878
        %v1031 = vmul.f32 %v999, %v927
        %v1032 = vmul.f32 %v1000, %v881
        %v1033 = vmul.f32 %v1001, %v930
        %v1034 = vmul.f32 %v1002, %v883
        %v1035 = vmul.f32 %v1003, %v932
        %v1036 = vmul.f32 %v1004, %v886
        %v1037 = vmul.f32 %v1005, %v935
        %v1038 = vmul.f32 %v1006, %v888
        %v1039 = vmul.f32 %v1007, %v937
        %v1040 = vmul.f32 %v1008, %v891
        %v1041 = vmul.f32 %v1009, %v940
        %v1042 = vmul.f32 %v1010, %v893
        %v1043 = vmul.f32 %v1011, %v942
        %v1044 = vmul.f32 %v1012, %v896
        %v1045 = vmul.f32 %v1013, %v945
        %v1046 = vmul.f32 %v1014, %v898
        %v1047 = vmul.f32 %v1015, %v947
        %v1048 = vmul.f32 %v1016, %v901
        %v1049 = vmul.f32 %v1017, %v950
        %v1050 = vmul.f32 %v1018, %v903
        %v1051 = vmul.f32 %v1019, %v952
        %v1052 = vmul.f32 %v1020, %v906
        %v1053 = vmul.f32 %v1021, %v955
        %v1054 = vmul.f32 %v1022, %v908
        %v1055 = vmul.f32 %v1023, %v957
        %v1056 = vmul.f32 %v1024, %v911
        %v1057 = vmul.f32 %v1025, %v960
        %v1058 = vmul.f32 %v1026, %v913
        %v1059 = vmul.f32 %v1027, %v962
        %v1060 = vmul.f32 %v1028, %v876
        %v1061 = vmul.f32 %v1029, %v925
        %v1062 = vmul.f32 %v1030, %v878
        %v1063 = vmul.f32 %v1031, %v927
        %v1064 = vmul.f32 %v1032, %v881
        %v1065 = vmul.f32 %v1033, %v930
        %v1066 = vmul.f32 %v1034, %v883
        %v1067 = vmul.f32 %v1035, %v932
        %v1068 = vmul.f32 %v1036, %v886
        %v1069 = vmul.f32 %v1037, %v935
        %v1070 = vmul.f32 %v1038, %v888
        %v1071 = vmul.f32 %v1039, %v937
        %v1072 = vmul.f32 %v1040, %v891
        %v1073 = vmul.f32 %v1041, %v940
        %v1074 = vmul.f32 %v1042, %v893
        %v1075 = vmul.f32 %v1043, %v942
        %v1076 = vmul.f32 %v1044, %v896
        %v1077 = vmul.f32 %v1045, %v945
        %v1078 = vmul.f32 %v1046, %v898
        %v1079 = vmul.f32 %v1047, %v947
        %v1080 = vmul.f32 %v1048, %v901
        %v1081 = vmul.f32 %v1049, %v950
        %v1082 = vmul.f32 %v1050, %v903
        %v1083 = vmul.f32 %v1051, %v952
        %v1084 = vmul.f32 %v1052, %v906
        %v1085 = vmul.f32 %v1053, %v955
        %v1086 = vmul.f32 %v1054, %v908
        %v1087 = vmul.f32 %v1055, %v957
        %v1088 = vmul.f32 %v1056, %v911
        %v1089 = vmul.f32 %v1057, %v960
        %v1090 = vmul.f32 %v1058, %v913
        %v1091 = vmul.f32 %v1059, %v962
        %v1092 = vadd.f32 %v876, %v1060
        %v1093 = vadd.f32 %v925, %v1061
        %v1094 = vadd.f32 %v878, %v1062
        %v1095 = vadd.f32 %v927, %v1063
        %v1096 = vadd.f32 %v881, %v1064
        %v1097 = vadd.f32 %v930, %v1065
        %v1098 = vadd.f32 %v883, %v1066
        %v1099 = vadd.f32 %v932, %v1067
        %v1100 = vadd.f32 %v886, %v1068
        %v1101 = vadd.f32 %v935, %v1069
        %v1102 = vadd.f32 %v888, %v1070
        %v1103 = vadd.f32 %v937, %v1071
        %v1104 = vadd.f32 %v891, %v1072
        %v1105 = vadd.f32 %v940, %v1073
        %v1106 = vadd.f32 %v893, %v1074
        %v1107 = vadd.f32 %v942, %v1075
        %v1108 = vadd.f32 %v896, %v1076
        %v1109 = vadd.f32 %v945, %v1077
        %v1110 = vadd.f32 %v898, %v1078
        %v1111 = vadd.f32 %v947, %v1079
        %v1112 = vadd.f32 %v901, %v1080
        %v1113 = vadd.f32 %v950, %v1081
        %v1114 = vadd.f32 %v903, %v1082
        %v1115 = vadd.f32 %v952, %v1083
        %v1116 = vadd.f32 %v906, %v1084
        %v1117 = vadd.f32 %v955, %v1085
        %v1118 = vadd.f32 %v908, %v1086
        %v1119 = vadd.f32 %v957, %v1087
        %v1120 = vadd.f32 %v911, %v1088
        %v1121 = vadd.f32 %v960, %v1089
        %v1122 = vadd.f32 %v913, %v1090
        %v1123 = vadd.f32 %v962, %v1091
        %v1124 = vmul.f32 %v1092, 0.7978846
        %v1125 = vmul.f32 %v1093, 0.7978846
        %v1126 = vmul.f32 %v1094, 0.7978846
        %v1127 = vmul.f32 %v1095, 0.7978846
        %v1128 = vmul.f32 %v1096, 0.7978846
        %v1129 = vmul.f32 %v1097, 0.7978846
        %v1130 = vmul.f32 %v1098, 0.7978846
        %v1131 = vmul.f32 %v1099, 0.7978846
        %v1132 = vmul.f32 %v1100, 0.7978846
        %v1133 = vmul.f32 %v1101, 0.7978846
        %v1134 = vmul.f32 %v1102, 0.7978846
        %v1135 = vmul.f32 %v1103, 0.7978846
        %v1136 = vmul.f32 %v1104, 0.7978846
        %v1137 = vmul.f32 %v1105, 0.7978846
        %v1138 = vmul.f32 %v1106, 0.7978846
        %v1139 = vmul.f32 %v1107, 0.7978846
        %v1140 = vmul.f32 %v1108, 0.7978846
        %v1141 = vmul.f32 %v1109, 0.7978846
        %v1142 = vmul.f32 %v1110, 0.7978846
        %v1143 = vmul.f32 %v1111, 0.7978846
        %v1144 = vmul.f32 %v1112, 0.7978846
        %v1145 = vmul.f32 %v1113, 0.7978846
        %v1146 = vmul.f32 %v1114, 0.7978846
        %v1147 = vmul.f32 %v1115, 0.7978846
        %v1148 = vmul.f32 %v1116, 0.7978846
        %v1149 = vmul.f32 %v1117, 0.7978846
        %v1150 = vmul.f32 %v1118, 0.7978846
        %v1151 = vmul.f32 %v1119, 0.7978846
        %v1152 = vmul.f32 %v1120, 0.7978846
        %v1153 = vmul.f32 %v1121, 0.7978846
        %v1154 = vmul.f32 %v1122, 0.7978846
        %v1155 = vmul.f32 %v1123, 0.7978846
        %v1156 = vtanh.pop %v1124
        %v1157 = vtanh.pop %v1125
        %v1158 = vtanh.pop %v1126
        %v1159 = vtanh.pop %v1127
        %v1160 = vtanh.pop %v1128
        %v1161 = vtanh.pop %v1129
        %v1162 = vtanh.pop %v1130
        %v1163 = vtanh.pop %v1131
        %v1164 = vtanh.pop %v1132
        %v1165 = vtanh.pop %v1133
        %v1166 = vtanh.pop %v1134
        %v1167 = vtanh.pop %v1135
        %v1168 = vtanh.pop %v1136
        %v1169 = vtanh.pop %v1137
        %v1170 = vtanh.pop %v1138
        %v1171 = vtanh.pop %v1139
        %v1172 = vtanh.pop %v1140
        %v1173 = vtanh.pop %v1141
        %v1174 = vtanh.pop %v1142
        %v1175 = vtanh.pop %v1143
        %v1176 = vtanh.pop %v1144
        %v1177 = vtanh.pop %v1145
        %v1178 = vtanh.pop %v1146
        %v1179 = vtanh.pop %v1147
        %v1180 = vtanh.pop %v1148
        %v1181 = vtanh.pop %v1149
        %v1182 = vtanh.pop %v1150
        %v1183 = vtanh.pop %v1151
        %v1184 = vtanh.pop %v1152
        %v1185 = vtanh.pop %v1153
        %v1186 = vtanh.pop %v1154
        %v1187 = vtanh.pop %v1155
        %v1188 = vadd.f32 %v1156, 1.0
        %v1189 = vadd.f32 %v1157, 1.0
        %v1190 = vadd.f32 %v1158, 1.0
        %v1191 = vadd.f32 %v1159, 1.0
        %v1192 = vadd.f32 %v1160, 1.0
        %v1193 = vadd.f32 %v1161, 1.0
        %v1194 = vadd.f32 %v1162, 1.0
        %v1195 = vadd.f32 %v1163, 1.0
        %v1196 = vadd.f32 %v1164, 1.0
        %v1197 = vadd.f32 %v1165, 1.0
        %v1198 = vadd.f32 %v1166, 1.0
        %v1199 = vadd.f32 %v1167, 1.0
        %v1200 = vadd.f32 %v1168, 1.0
        %v1201 = vadd.f32 %v1169, 1.0
        %v1202 = vadd.f32 %v1170, 1.0
        %v1203 = vadd.f32 %v1171, 1.0
        %v1204 = vadd.f32 %v1172, 1.0
        %v1205 = vadd.f32 %v1173, 1.0
        %v1206 = vadd.f32 %v1174, 1.0
        %v1207 = vadd.f32 %v1175, 1.0
        %v1208 = vadd.f32 %v1176, 1.0
        %v1209 = vadd.f32 %v1177, 1.0
        %v1210 = vadd.f32 %v1178, 1.0
        %v1211 = vadd.f32 %v1179, 1.0
        %v1212 = vadd.f32 %v1180, 1.0
        %v1213 = vadd.f32 %v1181, 1.0
        %v1214 = vadd.f32 %v1182, 1.0
        %v1215 = vadd.f32 %v1183, 1.0
        %v1216 = vadd.f32 %v1184, 1.0
        %v1217 = vadd.f32 %v1185, 1.0
        %v1218 = vadd.f32 %v1186, 1.0
        %v1219 = vadd.f32 %v1187, 1.0
        %v1220 = vmul.f32 %v964, %v1188
        %v1221 = vmul.f32 %v965, %v1189
        %v1222 = vmul.f32 %v966, %v1190
        %v1223 = vmul.f32 %v967, %v1191
        %v1224 = vmul.f32 %v968, %v1192
        %v1225 = vmul.f32 %v969, %v1193
        %v1226 = vmul.f32 %v970, %v1194
        %v1227 = vmul.f32 %v971, %v1195
        %v1228 = vmul.f32 %v972, %v1196
        %v1229 = vmul.f32 %v973, %v1197
        %v1230 = vmul.f32 %v974, %v1198
        %v1231 = vmul.f32 %v975, %v1199
        %v1232 = vmul.f32 %v976, %v1200
        %v1233 = vmul.f32 %v977, %v1201
        %v1234 = vmul.f32 %v978, %v1202
        %v1235 = vmul.f32 %v979, %v1203
        %v1236 = vmul.f32 %v980, %v1204
        %v1237 = vmul.f32 %v981, %v1205
        %v1238 = vmul.f32 %v982, %v1206
        %v1239 = vmul.f32 %v983, %v1207
        %v1240 = vmul.f32 %v984, %v1208
        %v1241 = vmul.f32 %v985, %v1209
        %v1242 = vmul.f32 %v986, %v1210
        %v1243 = vmul.f32 %v987, %v1211
        %v1244 = vmul.f32 %v988, %v1212
        %v1245 = vmul.f32 %v989, %v1213
        %v1246 = vmul.f32 %v990, %v1214
        %v1247 = vmul.f32 %v991, %v1215
        %v1248 = vmul.f32 %v992, %v1216
        %v1249 = vmul.f32 %v993, %v1217
        %v1250 = vmul.f32 %v994, %v1218
        %v1251 = vmul.f32 %v995, %v1219
        %1252 = vst [vmem:[%s358] sm:$0xff] %v1220
        %1253 = vst [vmem:[%s358 + $0x8] sm:$0xff] %v1221
        %1254 = vst [vmem:[%s358 + $0x10] sm:$0xff] %v1222
        %1255 = vst [vmem:[%s358 + $0x18] sm:$0xff] %v1223
        %1256 = vst [vmem:[%s358 + $0x20] sm:$0xff] %v1224
        %1257 = vst [vmem:[%s358 + $0x28] sm:$0xff] %v1225
        %1258 = vst [vmem:[%s358 + $0x30] sm:$0xff] %v1226
        %1259 = vst [vmem:[%s358 + $0x38] sm:$0xff] %v1227
        %1260 = vst [vmem:[%s358 + $0x40] sm:$0xff] %v1228
        %1261 = vst [vmem:[%s358 + $0x48] sm:$0xff] %v1229
        %1262 = vst [vmem:[%s358 + $0x50] sm:$0xff] %v1230
        %1263 = vst [vmem:[%s358 + $0x58] sm:$0xff] %v1231
        %1264 = vst [vmem:[%s358 + $0x60] sm:$0xff] %v1232
        %1265 = vst [vmem:[%s358 + $0x68] sm:$0xff] %v1233
        %1266 = vst [vmem:[%s358 + $0x70] sm:$0xff] %v1234
        %1267 = vst [vmem:[%s358 + $0x78] sm:$0xff] %v1235
        %1268 = vst [vmem:[%s358 + $0x80] sm:$0xff] %v1236
        %1269 = vst [vmem:[%s358 + $0x88] sm:$0xff] %v1237
        %1270 = vst [vmem:[%s358 + $0x90] sm:$0xff] %v1238
        %1271 = vst [vmem:[%s358 + $0x98] sm:$0xff] %v1239
        %1272 = vst [vmem:[%s358 + $0xa0] sm:$0xff] %v1240
        %1273 = vst [vmem:[%s358 + $0xa8] sm:$0xff] %v1241
        %1274 = vst [vmem:[%s358 + $0xb0] sm:$0xff] %v1242
        %1275 = vst [vmem:[%s358 + $0xb8] sm:$0xff] %v1243
        %1276 = vst [vmem:[%s358 + $0xc0] sm:$0xff] %v1244
        %1277 = vst [vmem:[%s358 + $0xc8] sm:$0xff] %v1245
        %1278 = vst [vmem:[%s358 + $0xd0] sm:$0xff] %v1246
        %1279 = vst [vmem:[%s358 + $0xd8] sm:$0xff] %v1247
        %1280 = vst [vmem:[%s358 + $0xe0] sm:$0xff] %v1248
        %1281 = vst [vmem:[%s358 + $0xe8] sm:$0xff] %v1249
        %1282 = vst [vmem:[%s358 + $0xf0] sm:$0xff] %v1250
        %1283 = vst [vmem:[%s358 + $0xf8] sm:$0xff] %v1251
        %s1284 = sand.u32 %s158, 1
        %s1285 = sand.u32 %s158, 1
        %s1286 = smul.addr %s1285, 256
        %s1287 = scalar_lea.vmem [#allocation3], %s1286
        // Predicated region
        $region79: #{gpt_forward.15} parent=73 // pred_check
          %p1288 = pneg %p168
        $region80: #{gpt_forward.15} parent=73 // pred_check_branch
          %1290 = sbr.rel (%p1288) target = $region82
        $region81: #{gpt_forward.15} parent=73 // pred_region
          %s1291 = smul.u32 16, %s20
          %s1292 = smul.u32 2, %s21
          %s1293 = smul.addr %s1291, 4
          %s1294 = sadd.s32 %s1292, %s1293
          %s1295 = smul.addr %s1294, 8
          %s1296 = scalar_lea.vmem %s5, %s1295
          // Predicated region
          $region83: #{gpt_forward.15} parent=81 // pred_check
            _
          $region84: #{gpt_forward.15} parent=81 // pred_check_branch
            %1298 = sbr.rel (0) target = $region86
          $region85: #{gpt_forward.15} parent=81 // pred_region
            // Predicated region
            $region87: #{gpt_forward.15} parent=85 // pred_check
              _
            $region88: #{gpt_forward.15} parent=85 // pred_check_branch
              %1300 = sbr.rel (0) target = $region90
            $region89: #{gpt_forward.15} parent=85 // pred_region
              loop: start=0, step=1, limit=1
              $region91: #{gpt_forward.15} parent=89 // loop_pre_header
                _
              $region92: #{gpt_forward.15} parent=89 // loop_header
                %s1302 = sphi 0, %s1306
                %p1303 = scmp.ge.s32.totalorder %s1302, 1
                %s1307 = sphi %s1287, %s1287
                %s1308 = sphi %s1296, %s1296
              $region93: #{gpt_forward.15} parent=89 // loop_header_branch
                %1305 = sbr.rel (%p1303) target = $region97
              $region94: #{gpt_forward.15} parent=89 // loop_body
                %v1309 = vld [vmem:[%s1307] sm:$0xff]
                %1310 = vst [vmem:[%s1308] sm:$0xff] %v1309
                %v1311 = vld [vmem:[%s1307 + $0x8] sm:$0xff]
                %1312 = vst [vmem:[%s1308 + $0x8] sm:$0xff] %v1311
                %v1313 = vld [vmem:[%s1307 + $0x10] sm:$0xff]
                %1314 = vst [vmem:[%s1308 + $0x20] sm:$0xff] %v1313
                %v1315 = vld [vmem:[%s1307 + $0x18] sm:$0xff]
                %1316 = vst [vmem:[%s1308 + $0x28] sm:$0xff] %v1315
                %v1317 = vld [vmem:[%s1307 + $0x20] sm:$0xff]
                %1318 = vst [vmem:[%s1308 + $0x40] sm:$0xff] %v1317
                %v1319 = vld [vmem:[%s1307 + $0x28] sm:$0xff]
                %1320 = vst [vmem:[%s1308 + $0x48] sm:$0xff] %v1319
                %v1321 = vld [vmem:[%s1307 + $0x30] sm:$0xff]
                %1322 = vst [vmem:[%s1308 + $0x60] sm:$0xff] %v1321
                %v1323 = vld [vmem:[%s1307 + $0x38] sm:$0xff]
                %1324 = vst [vmem:[%s1308 + $0x68] sm:$0xff] %v1323
                %v1325 = vld [vmem:[%s1307 + $0x40] sm:$0xff]
                %1326 = vst [vmem:[%s1308 + $0x80] sm:$0xff] %v1325
                %v1327 = vld [vmem:[%s1307 + $0x48] sm:$0xff]
                %1328 = vst [vmem:[%s1308 + $0x88] sm:$0xff] %v1327
                %v1329 = vld [vmem:[%s1307 + $0x50] sm:$0xff]
                %1330 = vst [vmem:[%s1308 + $0xa0] sm:$0xff] %v1329
                %v1331 = vld [vmem:[%s1307 + $0x58] sm:$0xff]
                %1332 = vst [vmem:[%s1308 + $0xa8] sm:$0xff] %v1331
                %v1333 = vld [vmem:[%s1307 + $0x60] sm:$0xff]
                %1334 = vst [vmem:[%s1308 + $0xc0] sm:$0xff] %v1333
                %v1335 = vld [vmem:[%s1307 + $0x68] sm:$0xff]
                %1336 = vst [vmem:[%s1308 + $0xc8] sm:$0xff] %v1335
                %v1337 = vld [vmem:[%s1307 + $0x70] sm:$0xff]
                %1338 = vst [vmem:[%s1308 + $0xe0] sm:$0xff] %v1337
                %v1339 = vld [vmem:[%s1307 + $0x78] sm:$0xff]
                %1340 = vst [vmem:[%s1308 + $0xe8] sm:$0xff] %v1339
                %v1341 = vld [vmem:[%s1307 + $0x80] sm:$0xff]
                %1342 = vst [vmem:[%s1308 + $0x100] sm:$0xff] %v1341
                %v1343 = vld [vmem:[%s1307 + $0x88] sm:$0xff]
                %1344 = vst [vmem:[%s1308 + $0x108] sm:$0xff] %v1343
                %v1345 = vld [vmem:[%s1307 + $0x90] sm:$0xff]
                %1346 = vst [vmem:[%s1308 + $0x120] sm:$0xff] %v1345
                %v1347 = vld [vmem:[%s1307 + $0x98] sm:$0xff]
                %1348 = vst [vmem:[%s1308 + $0x128] sm:$0xff] %v1347
                %v1349 = vld [vmem:[%s1307 + $0xa0] sm:$0xff]
                %1350 = vst [vmem:[%s1308 + $0x140] sm:$0xff] %v1349
                %v1351 = vld [vmem:[%s1307 + $0xa8] sm:$0xff]
                %1352 = vst [vmem:[%s1308 + $0x148] sm:$0xff] %v1351
                %v1353 = vld [vmem:[%s1307 + $0xb0] sm:$0xff]
                %1354 = vst [vmem:[%s1308 + $0x160] sm:$0xff] %v1353
                %v1355 = vld [vmem:[%s1307 + $0xb8] sm:$0xff]
                %1356 = vst [vmem:[%s1308 + $0x168] sm:$0xff] %v1355
                %v1357 = vld [vmem:[%s1307 + $0xc0] sm:$0xff]
                %1358 = vst [vmem:[%s1308 + $0x180] sm:$0xff] %v1357
                %v1359 = vld [vmem:[%s1307 + $0xc8] sm:$0xff]
                %1360 = vst [vmem:[%s1308 + $0x188] sm:$0xff] %v1359
                %v1361 = vld [vmem:[%s1307 + $0xd0] sm:$0xff]
                %1362 = vst [vmem:[%s1308 + $0x1a0] sm:$0xff] %v1361
                %v1363 = vld [vmem:[%s1307 + $0xd8] sm:$0xff]
                %1364 = vst [vmem:[%s1308 + $0x1a8] sm:$0xff] %v1363
                %v1365 = vld [vmem:[%s1307 + $0xe0] sm:$0xff]
                %1366 = vst [vmem:[%s1308 + $0x1c0] sm:$0xff] %v1365
                %v1367 = vld [vmem:[%s1307 + $0xe8] sm:$0xff]
                %1368 = vst [vmem:[%s1308 + $0x1c8] sm:$0xff] %v1367
                %v1369 = vld [vmem:[%s1307 + $0xf0] sm:$0xff]
                %1370 = vst [vmem:[%s1308 + $0x1e0] sm:$0xff] %v1369
                %v1371 = vld [vmem:[%s1307 + $0xf8] sm:$0xff]
                %1372 = vst [vmem:[%s1308 + $0x1e8] sm:$0xff] %v1371
              $region95: #{gpt_forward.15} parent=89 // loop_footer
                %s1306 = sadd.s32 1, %s1302
              $region96: #{gpt_forward.15} parent=89 // loop_footer_branch
                %1301 = sbr.rel target = $region92
              $region97: #{gpt_forward.15} parent=89 // loop_exit
                _
            $region90: #{gpt_forward.15} parent=85 // pred_fallthru
              _
            // Predicated region
            $region98: #{gpt_forward.15} parent=85 // pred_check
              _
            $region99: #{gpt_forward.15} parent=85 // pred_check_branch
              %1374 = sbr.rel target = $region101
            $region100: #{gpt_forward.15} parent=85 // pred_region
              _
            $region101: #{gpt_forward.15} parent=85 // pred_fallthru
              _
          $region86: #{gpt_forward.15} parent=81 // pred_fallthru
            _
          %1375 = vnop
        $region82: #{gpt_forward.15} parent=73 // pred_fallthru
          _
      $region74: #{gpt_forward.15} parent=5 // pred_fallthru
        _
      %p1376 = scmp.le.s32.totalorder 2, %s11
      // Predicated region
      $region102: #{gpt_forward.15} parent=5 // pred_check
        %p1377 = pneg %p1376
      $region103: #{gpt_forward.15} parent=5 // pred_check_branch
        %1379 = sbr.rel (%p1377) target = $region105
      $region104: #{gpt_forward.15} parent=5 // pred_region
        %s1380 = ssub.s32 %s11, 2
        // Predicated region
        $region106: #{gpt_forward.15} parent=104 // pred_check
          %p1381 = pneg %p174
        $region107: #{gpt_forward.15} parent=104 // pred_check_branch
          %1383 = sbr.rel (%p1381) target = $region109
        $region108: #{gpt_forward.15} parent=104 // pred_region
          %s1384 = sand.u32 %s159, 1
          %s1385 = sand.u32 %s159, 1
          %s1386 = smul.addr %s1385, 256
          %s1387 = scalar_lea.vmem [#allocation3], %s1386
        $region109: #{gpt_forward.15} parent=104 // pred_fallthru
          _
      $region105: #{gpt_forward.15} parent=5 // pred_fallthru
        _
    $region6: #{gpt_forward.15} parent=1 // loop_footer
      %s15 = sadd.s32 1, %s11
    $region7: #{gpt_forward.15} parent=1 // loop_footer_branch
      %10 = sbr.rel target = $region3
    $region8: #{gpt_forward.15} parent=1 // loop_exit
      _

// kernel: gpt_forward.16
$region0: #{gpt_forward.16}
  #allocation0 [shape = 'u32[]', space=smem, size = 0x4, offset = 0x4, fixed_abs, tag = 'smem constant byte address 0x4 - core index']
  #allocation1 [shape = 'u32[72,128]{1,0:T(1,128)}', space=vmem, size = 0x9000, scoped, tag = 'internal scratch']
  #allocation2 [shape = 'f32[128,128]{1,0:T(8,128)}', space=vmem, size = 0x10000, scoped, tag = 'scratch operand']
  %s0 = inlined_call_operand.vmem [shape: f32[512,512], index: 0, kind: input, shape index: {}]
  %s1 = inlined_call_operand.vmem [shape: bf16[512,128], index: 1, kind: input, shape index: {}]
  %s2 = inlined_call_operand.vmem [shape: f32[1,128], index: 2, kind: input, shape index: {}]
  %s3 = inlined_call_operand.vmem [shape: f32[512,128], index: 3, kind: input, shape index: {}]
  %s4 = inlined_call_operand.vmem [shape: f32[512,128], index: 4, kind: output, shape index: {}]
  %s5 = sld [smem:[#allocation0]]
  $region80: #{gpt_forward.16} parent=0
    _
  %s7 = ssub.s32 1, %s5
  %s8 = scalar_select 0, %s7, %s5
  $region1: #{gpt_forward.16} parent=0
    #allocation3 [shape = 'u8[262144]{0}', space=vmem, size = 0x40000, scoped, tag = 'input window, operand 0']
    loop: start=0, step=1, limit=10
    $region2: #{gpt_forward.16} parent=1 // loop_pre_header
      _
    $region3: #{gpt_forward.16} parent=1 // loop_header
      %s10 = sphi 0, %s14
      %p11 = scmp.ge.s32.totalorder %s10, 10
      %s17 = sphi 0, %s36
      %s18 = sphi 0, %s32
      %s19 = sphi 0, %s28
      %s20 = sphi 0, %s17
      %s21 = sphi 0, %s18
      %s22 = sphi 0, %s19
      %s23 = sphi 0, %s20
      %s24 = sphi 0, %s21
      %s25 = sphi 0, %s22
      %s41 = sphi 0, %s43
      %s44 = sphi 0, %s41
      %s45 = sphi 0, %s44
      %s61 = sphi 0, %s45
      %s69 = sphi 0, %s71
      %s72 = sphi 0, %s69
      %s73 = sphi 0, %s72
      %s89 = sphi 0, %s73
      %s95 = sphi 0, %s97
      %s98 = sphi 0, %s95
      %s99 = sphi 0, %s98
      %s115 = sphi 0, %s99
      %s123 = sphi 0, %s125
      %s126 = sphi 0, %s123
      %s127 = sphi 0, %s126
      %s143 = sphi 0, %s127
      %s151 = sphi 0, %s153
      %s154 = sphi 0, %s151
      %s155 = sphi 0, %s154
      %s171 = sphi 0, %s155
    $region4: #{gpt_forward.16} parent=1 // loop_header_branch
      %13 = sbr.rel (%p11) target = $region8
    $region5: #{gpt_forward.16} parent=1 // loop_body
      %s15 = ssub.s32 %s10, 1
      %s16 = ssub.s32 %s10, 2
      %s26 = sadd.s32 1, %s19
      %p27 = scmp.ge.s32.totalorder %s26, 2
      %s28 = scalar_select %p27, 0, %s26
      %s29 = sadd.s32 1, %s18
      %s30 = scalar_select %p27, %s29, %s18
      %p31 = scmp.ge.s32.totalorder %s30, 1
      %s32 = scalar_select %p31, 0, %s30
      %s33 = sadd.s32 1, %s17
      %s34 = scalar_select %p31, %s33, %s17
      %p35 = scmp.ge.s32.totalorder %s34, 4
      %s36 = scalar_select %p35, 0, %s34
      %s37 = ssub.s32 %s17, %s36
      %s38 = ssub.s32 %s19, %s28
      %s39 = sor.u32 %s37, %s38
      %p40 = scmp.eq.s32.totalorder %s39, 0
      %s42 = sadd.s32 %s41, 1
      %s43 = scalar_select %p40, %s41, %s42
      %p46 = pneg %p40
      %p47 = scmp.eq.s32.totalorder %s10, 7
      %p48 = por %p46, %p47
      %p49 = scmp.ne.s32.totalorder %s41, %s44
      %p50 = scmp.eq.s32.totalorder %s10, 0
      %p51 = por %p49, %p50
      %p52 = scmp.ne.s32.totalorder %s41, %s44
      %p53 = scmp.eq.s32.totalorder %s15, 7
      %p54 = por %p52, %p53
      %p55 = scmp.ne.s32.totalorder %s44, %s45
      %p56 = scmp.eq.s32.totalorder %s15, 0
      %p57 = por %p55, %p56
      %p58 = scmp.ne.s32.totalorder %s44, %s45
      %p59 = scmp.eq.s32.totalorder %s16, 7
      %p60 = por %p58, %p59
      %p62 = scmp.ne.s32.totalorder %s45, %s61
      %p63 = scmp.eq.s32.totalorder %s16, 0
      %p64 = por %p62, %p63
      %s65 = ssub.s32 %s19, %s28
      %s66 = ssub.s32 %s18, %s32
      %s67 = sor.u32 %s65, %s66
      %p68 = scmp.eq.s32.totalorder %s67, 0
      %s70 = sadd.s32 %s69, 1
      %s71 = scalar_select %p68, %s69, %s70
      %p74 = pneg %p68
      %p75 = scmp.eq.s32.totalorder %s10, 7
      %p76 = por %p74, %p75
      %p77 = scmp.ne.s32.totalorder %s69, %s72
      %p78 = scmp.eq.s32.totalorder %s10, 0
      %p79 = por %p77, %p78
      %p80 = scmp.ne.s32.totalorder %s69, %s72
      %p81 = scmp.eq.s32.totalorder %s15, 7
      %p82 = por %p80, %p81
      %p83 = scmp.ne.s32.totalorder %s72, %s73
      %p84 = scmp.eq.s32.totalorder %s15, 0
      %p85 = por %p83, %p84
      %p86 = scmp.ne.s32.totalorder %s72, %s73
      %p87 = scmp.eq.s32.totalorder %s16, 7
      %p88 = por %p86, %p87
      %p90 = scmp.ne.s32.totalorder %s73, %s89
      %p91 = scmp.eq.s32.totalorder %s16, 0
      %p92 = por %p90, %p91
      %s93 = ssub.s32 %s18, %s32
      %p94 = scmp.eq.s32.totalorder %s93, 0
      %s96 = sadd.s32 %s95, 1
      %s97 = scalar_select %p94, %s95, %s96
      %p100 = pneg %p94
      %p101 = scmp.eq.s32.totalorder %s10, 7
      %p102 = por %p100, %p101
      %p103 = scmp.ne.s32.totalorder %s95, %s98
      %p104 = scmp.eq.s32.totalorder %s10, 0
      %p105 = por %p103, %p104
      %p106 = scmp.ne.s32.totalorder %s95, %s98
      %p107 = scmp.eq.s32.totalorder %s15, 7
      %p108 = por %p106, %p107
      %p109 = scmp.ne.s32.totalorder %s98, %s99
      %p110 = scmp.eq.s32.totalorder %s15, 0
      %p111 = por %p109, %p110
      %p112 = scmp.ne.s32.totalorder %s98, %s99
      %p113 = scmp.eq.s32.totalorder %s16, 7
      %p114 = por %p112, %p113
      %p116 = scmp.ne.s32.totalorder %s99, %s115
      %p117 = scmp.eq.s32.totalorder %s16, 0
      %p118 = por %p116, %p117
      %s119 = ssub.s32 %s17, %s36
      %s120 = ssub.s32 %s18, %s32
      %s121 = sor.u32 %s119, %s120
      %p122 = scmp.eq.s32.totalorder %s121, 0
      %s124 = sadd.s32 %s123, 1
      %s125 = scalar_select %p122, %s123, %s124
      %p128 = pneg %p122
      %p129 = scmp.eq.s32.totalorder %s10, 7
      %p130 = por %p128, %p129
      %p131 = scmp.ne.s32.totalorder %s123, %s126
      %p132 = scmp.eq.s32.totalorder %s10, 0
      %p133 = por %p131, %p132
      %p134 = scmp.ne.s32.totalorder %s123, %s126
      %p135 = scmp.eq.s32.totalorder %s15, 7
      %p136 = por %p134, %p135
      %p137 = scmp.ne.s32.totalorder %s126, %s127
      %p138 = scmp.eq.s32.totalorder %s15, 0
      %p139 = por %p137, %p138
      %p140 = scmp.ne.s32.totalorder %s126, %s127
      %p141 = scmp.eq.s32.totalorder %s16, 7
      %p142 = por %p140, %p141
      %p144 = scmp.ne.s32.totalorder %s127, %s143
      %p145 = scmp.eq.s32.totalorder %s16, 0
      %p146 = por %p144, %p145
      %s147 = ssub.s32 %s17, %s36
      %s148 = ssub.s32 %s18, %s32
      %s149 = sor.u32 %s147, %s148
      %p150 = scmp.eq.s32.totalorder %s149, 0
      %s152 = sadd.s32 %s151, 1
      %s153 = scalar_select %p150, %s151, %s152
      %p156 = pneg %p150
      %p157 = scmp.eq.s32.totalorder %s10, 7
      %p158 = por %p156, %p157
      %p159 = scmp.ne.s32.totalorder %s151, %s154
      %p160 = scmp.eq.s32.totalorder %s10, 0
      %p161 = por %p159, %p160
      %p162 = scmp.ne.s32.totalorder %s151, %s154
      %p163 = scmp.eq.s32.totalorder %s15, 7
      %p164 = por %p162, %p163
      %p165 = scmp.ne.s32.totalorder %s154, %s155
      %p166 = scmp.eq.s32.totalorder %s15, 0
      %p167 = por %p165, %p166
      %p168 = scmp.ne.s32.totalorder %s154, %s155
      %p169 = scmp.eq.s32.totalorder %s16, 7
      %p170 = por %p168, %p169
      %p172 = scmp.ne.s32.totalorder %s155, %s171
      %p173 = scmp.eq.s32.totalorder %s16, 0
      %p174 = por %p172, %p173
      %p175 = scmp.le.s32.totalorder 1, %s10
      %p176 = scmp.lt.s32.totalorder %s10, 9
      %p177 = pnand %p175, %p176
      %p178 = pneg %p177
      // Predicated region
      $region9: #{gpt_forward.16} parent=5 // pred_check
        _
      $region10: #{gpt_forward.16} parent=5 // pred_check_branch
        %180 = sbr.rel (%p177) target = $region12
      $region11: #{gpt_forward.16} parent=5 // pred_region
        %s181 = ssub.s32 %s10, 1
        // Predicated region
        $region13: #{gpt_forward.16} parent=11 // pred_check
          %p182 = pneg %p111
        $region14: #{gpt_forward.16} parent=11 // pred_check_branch
          %184 = sbr.rel (%p182) target = $region16
        $region15: #{gpt_forward.16} parent=11 // pred_region
          %p185 = scmp.lt.s32.totalorder %s21, 0
          %s186 = scalar_select %p185, %s21, 0
          %s187 = scalar_lea.vmem %s2, %s186
        $region16: #{gpt_forward.16} parent=11 // pred_fallthru
          _
      $region12: #{gpt_forward.16} parent=5 // pred_fallthru
        _
      %p188 = scmp.lt.s32.totalorder %s10, 8
      // Predicated region
      $region17: #{gpt_forward.16} parent=5 // pred_check
        %p189 = pneg %p188
      $region18: #{gpt_forward.16} parent=5 // pred_check_branch
        %191 = sbr.rel (%p189) target = $region20
      $region19: #{gpt_forward.16} parent=5 // pred_region
        // Predicated region
        $region21: #{gpt_forward.16} parent=19 // pred_check
          %p192 = pneg %p51
        $region22: #{gpt_forward.16} parent=19 // pred_check_branch
          %194 = sbr.rel (%p192) target = $region24
        $region23: #{gpt_forward.16} parent=19 // pred_region
          %s195 = sand.u32 %s41, 1
          %s196 = sand.u32 %s41, 1
          %s197 = smul.addr %s196, 256
          %s198 = scalar_lea.vmem [#allocation3], %s197
          %s199 = smul.u32 16, %s17
          %s200 = smul.u32 2, %s19
          %s201 = smul.addr %s199, 4
          %s202 = sadd.s32 %s200, %s201
          %s203 = smul.addr %s202, 8
          %s204 = scalar_lea.vmem %s0, %s203
          // Predicated region
          $region25: #{gpt_forward.16} parent=23 // pred_check
            _
          $region26: #{gpt_forward.16} parent=23 // pred_check_branch
            %206 = sbr.rel (0) target = $region28
          $region27: #{gpt_forward.16} parent=23 // pred_region
            // Predicated region
            $region29: #{gpt_forward.16} parent=27 // pred_check
              _
            $region30: #{gpt_forward.16} parent=27 // pred_check_branch
              %208 = sbr.rel (0) target = $region32
            $region31: #{gpt_forward.16} parent=27 // pred_region
              loop: start=0, step=1, limit=1
              $region33: #{gpt_forward.16} parent=31 // loop_pre_header
                _
              $region34: #{gpt_forward.16} parent=31 // loop_header
                %s210 = sphi 0, %s214
                %p211 = scmp.ge.s32.totalorder %s210, 1
                %s215 = sphi %s204, %s204
                %s216 = sphi %s198, %s198
              $region35: #{gpt_forward.16} parent=31 // loop_header_branch
                %213 = sbr.rel (%p211) target = $region39
              $region36: #{gpt_forward.16} parent=31 // loop_body
                %v217 = vld [vmem:[%s215] sm:$0xff]
                %218 = vst [vmem:[%s216] sm:$0xff] %v217
                %v219 = vld [vmem:[%s215 + $0x8] sm:$0xff]
                %220 = vst [vmem:[%s216 + $0x8] sm:$0xff] %v219
                %v221 = vld [vmem:[%s215 + $0x20] sm:$0xff]
                %222 = vst [vmem:[%s216 + $0x10] sm:$0xff] %v221
                %v223 = vld [vmem:[%s215 + $0x28] sm:$0xff]
                %224 = vst [vmem:[%s216 + $0x18] sm:$0xff] %v223
                %v225 = vld [vmem:[%s215 + $0x40] sm:$0xff]
                %226 = vst [vmem:[%s216 + $0x20] sm:$0xff] %v225
                %v227 = vld [vmem:[%s215 + $0x48] sm:$0xff]
                %228 = vst [vmem:[%s216 + $0x28] sm:$0xff] %v227
                %v229 = vld [vmem:[%s215 + $0x60] sm:$0xff]
                %230 = vst [vmem:[%s216 + $0x30] sm:$0xff] %v229
                %v231 = vld [vmem:[%s215 + $0x68] sm:$0xff]
                %232 = vst [vmem:[%s216 + $0x38] sm:$0xff] %v231
                %v233 = vld [vmem:[%s215 + $0x80] sm:$0xff]
                %234 = vst [vmem:[%s216 + $0x40] sm:$0xff] %v233
                %v235 = vld [vmem:[%s215 + $0x88] sm:$0xff]
                %236 = vst [vmem:[%s216 + $0x48] sm:$0xff] %v235
                %v237 = vld [vmem:[%s215 + $0xa0] sm:$0xff]
                %238 = vst [vmem:[%s216 + $0x50] sm:$0xff] %v237
                %v239 = vld [vmem:[%s215 + $0xa8] sm:$0xff]
                %240 = vst [vmem:[%s216 + $0x58] sm:$0xff] %v239
                %v241 = vld [vmem:[%s215 + $0xc0] sm:$0xff]
                %242 = vst [vmem:[%s216 + $0x60] sm:$0xff] %v241
                %v243 = vld [vmem:[%s215 + $0xc8] sm:$0xff]
                %244 = vst [vmem:[%s216 + $0x68] sm:$0xff] %v243
                %v245 = vld [vmem:[%s215 + $0xe0] sm:$0xff]
                %246 = vst [vmem:[%s216 + $0x70] sm:$0xff] %v245
                %v247 = vld [vmem:[%s215 + $0xe8] sm:$0xff]
                %248 = vst [vmem:[%s216 + $0x78] sm:$0xff] %v247
                %v249 = vld [vmem:[%s215 + $0x100] sm:$0xff]
                %250 = vst [vmem:[%s216 + $0x80] sm:$0xff] %v249
                %v251 = vld [vmem:[%s215 + $0x108] sm:$0xff]
                %252 = vst [vmem:[%s216 + $0x88] sm:$0xff] %v251
                %v253 = vld [vmem:[%s215 + $0x120] sm:$0xff]
                %254 = vst [vmem:[%s216 + $0x90] sm:$0xff] %v253
                %v255 = vld [vmem:[%s215 + $0x128] sm:$0xff]
                %256 = vst [vmem:[%s216 + $0x98] sm:$0xff] %v255
                %v257 = vld [vmem:[%s215 + $0x140] sm:$0xff]
                %258 = vst [vmem:[%s216 + $0xa0] sm:$0xff] %v257
                %v259 = vld [vmem:[%s215 + $0x148] sm:$0xff]
                %260 = vst [vmem:[%s216 + $0xa8] sm:$0xff] %v259
                %v261 = vld [vmem:[%s215 + $0x160] sm:$0xff]
                %262 = vst [vmem:[%s216 + $0xb0] sm:$0xff] %v261
                %v263 = vld [vmem:[%s215 + $0x168] sm:$0xff]
                %264 = vst [vmem:[%s216 + $0xb8] sm:$0xff] %v263
                %v265 = vld [vmem:[%s215 + $0x180] sm:$0xff]
                %266 = vst [vmem:[%s216 + $0xc0] sm:$0xff] %v265
                %v267 = vld [vmem:[%s215 + $0x188] sm:$0xff]
                %268 = vst [vmem:[%s216 + $0xc8] sm:$0xff] %v267
                %v269 = vld [vmem:[%s215 + $0x1a0] sm:$0xff]
                %270 = vst [vmem:[%s216 + $0xd0] sm:$0xff] %v269
                %v271 = vld [vmem:[%s215 + $0x1a8] sm:$0xff]
                %272 = vst [vmem:[%s216 + $0xd8] sm:$0xff] %v271
                %v273 = vld [vmem:[%s215 + $0x1c0] sm:$0xff]
                %274 = vst [vmem:[%s216 + $0xe0] sm:$0xff] %v273
                %v275 = vld [vmem:[%s215 + $0x1c8] sm:$0xff]
                %276 = vst [vmem:[%s216 + $0xe8] sm:$0xff] %v275
                %v277 = vld [vmem:[%s215 + $0x1e0] sm:$0xff]
                %278 = vst [vmem:[%s216 + $0xf0] sm:$0xff] %v277
                %v279 = vld [vmem:[%s215 + $0x1e8] sm:$0xff]
                %280 = vst [vmem:[%s216 + $0xf8] sm:$0xff] %v279
              $region37: #{gpt_forward.16} parent=31 // loop_footer
                %s214 = sadd.s32 1, %s210
              $region38: #{gpt_forward.16} parent=31 // loop_footer_branch
                %209 = sbr.rel target = $region34
              $region39: #{gpt_forward.16} parent=31 // loop_exit
                _
            $region32: #{gpt_forward.16} parent=27 // pred_fallthru
              _
            // Predicated region
            $region40: #{gpt_forward.16} parent=27 // pred_check
              _
            $region41: #{gpt_forward.16} parent=27 // pred_check_branch
              %282 = sbr.rel target = $region43
            $region42: #{gpt_forward.16} parent=27 // pred_region
              _
            $region43: #{gpt_forward.16} parent=27 // pred_fallthru
              _
          $region28: #{gpt_forward.16} parent=23 // pred_fallthru
            _
          %283 = vnop
        $region24: #{gpt_forward.16} parent=19 // pred_fallthru
          _
        // Predicated region
        $region44: #{gpt_forward.16} parent=19 // pred_check
          %p284 = pneg %p79
        $region45: #{gpt_forward.16} parent=19 // pred_check_branch
          %286 = sbr.rel (%p284) target = $region47
        $region46: #{gpt_forward.16} parent=19 // pred_region
          %s287 = smul.u32 32, %s19
          %p288 = scmp.lt.s32.totalorder %s287, 63
          %s289 = scalar_select %p288, %s287, 63
          %p290 = scmp.lt.s32.totalorder %s18, 0
          %s291 = scalar_select %p290, %s18, 0
          %s292 = sadd.s32 %s291, %s289
          %s293 = smul.addr %s292, 4
          %s294 = scalar_lea.vmem %s1, %s293
          %s295 = smul.u32 32, %s19
        $region47: #{gpt_forward.16} parent=19 // pred_fallthru
          _
        // Predicated region
        $region48: #{gpt_forward.16} parent=19 // pred_check
          %p296 = pneg %p133
        $region49: #{gpt_forward.16} parent=19 // pred_check_branch
          %298 = sbr.rel (%p296) target = $region51
        $region50: #{gpt_forward.16} parent=19 // pred_region
          %s299 = smul.u32 16, %s17
          %p300 = scmp.lt.s32.totalorder %s299, 63
          %s301 = scalar_select %p300, %s299, 63
          %p302 = scmp.lt.s32.totalorder %s18, 0
          %s303 = scalar_select %p302, %s18, 0
          %s304 = sadd.s32 %s303, %s301
          %s305 = smul.addr %s304, 8
          %s306 = scalar_lea.vmem %s3, %s305
          %s307 = smul.u32 16, %s17
        $region51: #{gpt_forward.16} parent=19 // pred_fallthru
          _
      $region20: #{gpt_forward.16} parent=5 // pred_fallthru
        _
      %p308 = scmp.le.s32.totalorder 1, %s10
      %p309 = scmp.lt.s32.totalorder %s10, 9
      %p310 = pnand %p308, %p309
      %p311 = pneg %p310
      // Predicated region
      $region52: #{gpt_forward.16} parent=5 // pred_check
        _
      $region53: #{gpt_forward.16} parent=5 // pred_check_branch
        %313 = sbr.rel (%p310) target = $region55
      $region54: #{gpt_forward.16} parent=5 // pred_region
        %s314 = ssub.s32 %s10, 1
        %s315 = sand.u32 %s44, 1
        %s316 = sand.u32 %s44, 1
        %s317 = smul.addr %s316, 256
        %s318 = scalar_lea.vmem [#allocation3], %s317
        // Predicated region
        $region56: #{gpt_forward.16} parent=54 // pred_check
          %p319 = pneg %p57
        $region57: #{gpt_forward.16} parent=54 // pred_check_branch
          %321 = sbr.rel (%p319) target = $region59
        $region58: #{gpt_forward.16} parent=54 // pred_region
          _
        $region59: #{gpt_forward.16} parent=54 // pred_fallthru
          _
        %s322 = sand.u32 %s44, 1
        %s323 = sand.u32 %s44, 1
        %s324 = smul.addr %s323, 256
        %s325 = scalar_lea.vmem [#allocation3], %s324
        %p326 = pneg %p57
        %p327 = pneg %p54
        %s328 = smul.u32 32, %s22
        %p329 = scmp.lt.s32.totalorder %s328, 63
        %s330 = scalar_select %p329, %s328, 63
        %p331 = scmp.lt.s32.totalorder %s21, 0
        %s332 = scalar_select %p331, %s21, 0
        %s333 = sadd.s32 %s332, %s330
        %s334 = smul.addr %s333, 4
        %s335 = scalar_lea.vmem %s1, %s334
        %p336 = pneg %p85
        %p337 = pneg %p82
        %p338 = scmp.lt.s32.totalorder %s21, 0
        %s339 = scalar_select %p338, %s21, 0
        %s340 = scalar_lea.vmem %s2, %s339
        %p341 = pneg %p111
        %p342 = pneg %p108
        %s343 = smul.u32 16, %s20
        %p344 = scmp.lt.s32.totalorder %s343, 63
        %s345 = scalar_select %p344, %s343, 63
        %p346 = scmp.lt.s32.totalorder %s21, 0
        %s347 = scalar_select %p346, %s21, 0
        %s348 = sadd.s32 %s347, %s345
        %s349 = smul.addr %s348, 8
        %s350 = scalar_lea.vmem %s3, %s349
        %p351 = pneg %p139
        %p352 = pneg %p136
        %p353 = pneg %p167
        %p354 = pneg %p164
        %s355 = smul.u32 16, %s20
        %p356 = scmp.lt.s32.totalorder %s355, 63
        %s357 = scalar_select %p356, %s355, 63
        %p358 = scmp.lt.s32.totalorder %s21, 0
        %s359 = scalar_select %p358, %s21, 0
        %s360 = sadd.s32 %s359, %s357
        %s361 = smul.addr %s360, 8
        %s362 = scalar_lea.vmem %s4, %s361
        %s363 = smul.u32 16, %s20
        %s364 = smul.u32 2, %s22
        %s365 = smul.u32 32, %s22
        %p366 = scmp.lt.s32.totalorder %s365, 63
        %s367 = scalar_select %p366, %s365, 63
        %p368 = scmp.lt.s32.totalorder %s21, 0
        %s369 = scalar_select %p368, %s21, 0
        %s370 = sadd.s32 %s369, %s367
        %s371 = smul.addr %s370, 4
        %s372 = scalar_lea.vmem %s1, %s371
        %s373 = smul.u32 32, %s22
        %p374 = scmp.lt.s32.totalorder %s21, 0
        %s375 = scalar_select %p374, %s21, 0
        %s376 = scalar_lea.vmem %s2, %s375
        %s377 = smul.u32 16, %s20
        %p378 = scmp.lt.s32.totalorder %s377, 63
        %s379 = scalar_select %p378, %s377, 63
        %p380 = scmp.lt.s32.totalorder %s21, 0
        %s381 = scalar_select %p380, %s21, 0
        %s382 = sadd.s32 %s381, %s379
        %s383 = smul.addr %s382, 8
        %s384 = scalar_lea.vmem %s3, %s383
        %s385 = smul.u32 16, %s20
        %s386 = smul.u32 16, %s20
        %p387 = scmp.lt.s32.totalorder %s386, 63
        %s388 = scalar_select %p387, %s386, 63
        %p389 = scmp.lt.s32.totalorder %s21, 0
        %s390 = scalar_select %p389, %s21, 0
        %s391 = sadd.s32 %s390, %s388
        %s392 = smul.addr %s391, 8
        %s393 = scalar_lea.vmem %s4, %s392
        %s394 = smul.u32 16, %s20
        %p395 = scmp.eq.s32.totalorder %s22, 0
        // Predicated region
        $region60: #{gpt_forward.16} parent=54 // pred_check
          %p396 = pneg %p395
        $region61: #{gpt_forward.16} parent=54 // pred_check_branch
          %398 = sbr.rel (%p396) target = $region63
        $region62: #{gpt_forward.16} parent=54 // pred_region
          %399 = vst [vmem:[#allocation2] sm:$0xff] 0.0
          %400 = vst [vmem:[#allocation2 + $0x8] sm:$0xff] 0.0
          %401 = vst [vmem:[#allocation2 + $0x10] sm:$0xff] 0.0
          %402 = vst [vmem:[#allocation2 + $0x18] sm:$0xff] 0.0
          %403 = vst [vmem:[#allocation2 + $0x20] sm:$0xff] 0.0
          %404 = vst [vmem:[#allocation2 + $0x28] sm:$0xff] 0.0
          %405 = vst [vmem:[#allocation2 + $0x30] sm:$0xff] 0.0
          %406 = vst [vmem:[#allocation2 + $0x38] sm:$0xff] 0.0
          %407 = vst [vmem:[#allocation2 + $0x40] sm:$0xff] 0.0
          %408 = vst [vmem:[#allocation2 + $0x48] sm:$0xff] 0.0
          %409 = vst [vmem:[#allocation2 + $0x50] sm:$0xff] 0.0
          %410 = vst [vmem:[#allocation2 + $0x58] sm:$0xff] 0.0
          %411 = vst [vmem:[#allocation2 + $0x60] sm:$0xff] 0.0
          %412 = vst [vmem:[#allocation2 + $0x68] sm:$0xff] 0.0
          %413 = vst [vmem:[#allocation2 + $0x70] sm:$0xff] 0.0
          %414 = vst [vmem:[#allocation2 + $0x78] sm:$0xff] 0.0
        $region63: #{gpt_forward.16} parent=54 // pred_fallthru
          _
        %v415 = vld [vmem:[#allocation2] sm:$0xff]
        %v416 = vld [vmem:[#allocation2 + $0x8] sm:$0xff]
        %v417 = vld [vmem:[#allocation2 + $0x10] sm:$0xff]
        %v418 = vld [vmem:[#allocation2 + $0x18] sm:$0xff]
        %v419 = vld [vmem:[#allocation2 + $0x20] sm:$0xff]
        %v420 = vld [vmem:[#allocation2 + $0x28] sm:$0xff]
        %v421 = vld [vmem:[#allocation2 + $0x30] sm:$0xff]
        %v422 = vld [vmem:[#allocation2 + $0x38] sm:$0xff]
        %v423 = vld [vmem:[#allocation2 + $0x40] sm:$0xff]
        %v424 = vld [vmem:[#allocation2 + $0x48] sm:$0xff]
        %v425 = vld [vmem:[#allocation2 + $0x50] sm:$0xff]
        %v426 = vld [vmem:[#allocation2 + $0x58] sm:$0xff]
        %v427 = vld [vmem:[#allocation2 + $0x60] sm:$0xff]
        %v428 = vld [vmem:[#allocation2 + $0x68] sm:$0xff]
        %v429 = vld [vmem:[#allocation2 + $0x70] sm:$0xff]
        %v430 = vld [vmem:[#allocation2 + $0x78] sm:$0xff]
        %v431 = vld [vmem:[%s318] sm:$0xff]
        %v432 = vld [vmem:[%s318 + $0x8] sm:$0xff]
        %v433 = vld [vmem:[%s318 + $0x10] sm:$0xff]
        %v434 = vld [vmem:[%s318 + $0x18] sm:$0xff]
        %v435 = vld [vmem:[%s318 + $0x20] sm:$0xff]
        %v436 = vld [vmem:[%s318 + $0x28] sm:$0xff]
        %v437 = vld [vmem:[%s318 + $0x30] sm:$0xff]
        %v438 = vld [vmem:[%s318 + $0x38] sm:$0xff]
        %v439 = vld [vmem:[%s318 + $0x40] sm:$0xff]
        %v440 = vld [vmem:[%s318 + $0x48] sm:$0xff]
        %v441 = vld [vmem:[%s318 + $0x50] sm:$0xff]
        %v442 = vld [vmem:[%s318 + $0x58] sm:$0xff]
        %v443 = vld [vmem:[%s318 + $0x60] sm:$0xff]
        %v444 = vld [vmem:[%s318 + $0x68] sm:$0xff]
        %v445 = vld [vmem:[%s318 + $0x70] sm:$0xff]
        %v446 = vld [vmem:[%s318 + $0x78] sm:$0xff]
        %v447 = vld [vmem:[%s318 + $0x80] sm:$0xff]
        %v448 = vld [vmem:[%s318 + $0x88] sm:$0xff]
        %v449 = vld [vmem:[%s318 + $0x90] sm:$0xff]
        %v450 = vld [vmem:[%s318 + $0x98] sm:$0xff]
        %v451 = vld [vmem:[%s318 + $0xa0] sm:$0xff]
        %v452 = vld [vmem:[%s318 + $0xa8] sm:$0xff]
        %v453 = vld [vmem:[%s318 + $0xb0] sm:$0xff]
        %v454 = vld [vmem:[%s318 + $0xb8] sm:$0xff]
        %v455 = vld [vmem:[%s318 + $0xc0] sm:$0xff]
        %v456 = vld [vmem:[%s318 + $0xc8] sm:$0xff]
        %v457 = vld [vmem:[%s318 + $0xd0] sm:$0xff]
        %v458 = vld [vmem:[%s318 + $0xd8] sm:$0xff]
        %v459 = vld [vmem:[%s318 + $0xe0] sm:$0xff]
        %v460 = vld [vmem:[%s318 + $0xe8] sm:$0xff]
        %v461 = vld [vmem:[%s318 + $0xf0] sm:$0xff]
        %v462 = vld [vmem:[%s318 + $0xf8] sm:$0xff]
        %v463 = vpack.c.bf16 %v433, %v431
        %v464 = vpack.c.bf16 %v434, %v432
        %v465 = vpack.c.bf16 %v437, %v435
        %v466 = vpack.c.bf16 %v438, %v436
        %v467 = vpack.c.bf16 %v441, %v439
        %v468 = vpack.c.bf16 %v442, %v440
        %v469 = vpack.c.bf16 %v445, %v443
        %v470 = vpack.c.bf16 %v446, %v444
        %v471 = vpack.c.bf16 %v449, %v447
        %v472 = vpack.c.bf16 %v450, %v448
        %v473 = vpack.c.bf16 %v453, %v451
        %v474 = vpack.c.bf16 %v454, %v452
        %v475 = vpack.c.bf16 %v457, %v455
        %v476 = vpack.c.bf16 %v458, %v456
        %v477 = vpack.c.bf16 %v461, %v459
        %v478 = vpack.c.bf16 %v462, %v460
        %v479 = vld [vmem:[%s372] sm:$0xf]
        %v480 = vld [vmem:[%s372 + $0x4] sm:$0xf]
        %v481 = vld [vmem:[%s372 + $0x8] sm:$0xf]
        %v482 = vld [vmem:[%s372 + $0xc] sm:$0xf]
        %v483 = vld [vmem:[%s372 + $0x10] sm:$0xf]
        %v484 = vld [vmem:[%s372 + $0x14] sm:$0xf]
        %v485 = vld [vmem:[%s372 + $0x18] sm:$0xf]
        %v486 = vld [vmem:[%s372 + $0x1c] sm:$0xf]
        %v487 = vld [vmem:[%s372 + $0x20] sm:$0xf]
        %v488 = vld [vmem:[%s372 + $0x24] sm:$0xf]
        %v489 = vld [vmem:[%s372 + $0x28] sm:$0xf]
        %v490 = vld [vmem:[%s372 + $0x2c] sm:$0xf]
        %v491 = vld [vmem:[%s372 + $0x30] sm:$0xf]
        %v492 = vld [vmem:[%s372 + $0x34] sm:$0xf]
        %v493 = vld [vmem:[%s372 + $0x38] sm:$0xf]
        %v494 = vld [vmem:[%s372 + $0x3c] sm:$0xf]
        %v495 = vld [vmem:[%s372 + $0x40] sm:$0xf]
        %v496 = vld [vmem:[%s372 + $0x44] sm:$0xf]
        %v497 = vld [vmem:[%s372 + $0x48] sm:$0xf]
        %v498 = vld [vmem:[%s372 + $0x4c] sm:$0xf]
        %v499 = vld [vmem:[%s372 + $0x50] sm:$0xf]
        %v500 = vld [vmem:[%s372 + $0x54] sm:$0xf]
        %v501 = vld [vmem:[%s372 + $0x58] sm:$0xf]
        %v502 = vld [vmem:[%s372 + $0x5c] sm:$0xf]
        %v503 = vld [vmem:[%s372 + $0x60] sm:$0xf]
        %v504 = vld [vmem:[%s372 + $0x64] sm:$0xf]
        %v505 = vld [vmem:[%s372 + $0x68] sm:$0xf]
        %v506 = vld [vmem:[%s372 + $0x6c] sm:$0xf]
        %v507 = vld [vmem:[%s372 + $0x70] sm:$0xf]
        %v508 = vld [vmem:[%s372 + $0x74] sm:$0xf]
        %v509 = vld [vmem:[%s372 + $0x78] sm:$0xf]
        %v510 = vld [vmem:[%s372 + $0x7c] sm:$0xf]
        %v543 = vunpack.c.l.b16 %v479
        %v544 = vunpack.c.l.b16 %v480
        %v545 = vunpack.c.l.b16 %v481
        %v546 = vunpack.c.l.b16 %v482
        %v547 = vunpack.c.l.b16 %v483
        %v548 = vunpack.c.l.b16 %v484
        %v549 = vunpack.c.l.b16 %v485
        %v550 = vunpack.c.l.b16 %v486
        %v551 = vunpack.c.l.b16 %v487
        %v552 = vunpack.c.l.b16 %v488
        %v553 = vunpack.c.l.b16 %v489
        %v554 = vunpack.c.l.b16 %v490
        %v555 = vunpack.c.l.b16 %v491
        %v556 = vunpack.c.l.b16 %v492
        %v557 = vunpack.c.l.b16 %v493
        %v558 = vunpack.c.l.b16 %v494
        %v559 = vunpack.c.l.b16 %v495
        %v560 = vunpack.c.l.b16 %v496
        %v561 = vunpack.c.l.b16 %v497
        %v562 = vunpack.c.l.b16 %v498
        %v563 = vunpack.c.l.b16 %v499
        %v564 = vunpack.c.l.b16 %v500
        %v565 = vunpack.c.l.b16 %v501
        %v566 = vunpack.c.l.b16 %v502
        %v567 = vunpack.c.l.b16 %v503
        %v568 = vunpack.c.l.b16 %v504
        %v569 = vunpack.c.l.b16 %v505
        %v570 = vunpack.c.l.b16 %v506
        %v571 = vunpack.c.l.b16 %v507
        %v572 = vunpack.c.l.b16 %v508
        %v573 = vunpack.c.l.b16 %v509
        %v574 = vunpack.c.l.b16 %v510
        %v575 = vpack.c.b16 %v544, %v543
        %v576 = vpack.c.b16 %v546, %v545
        %v577 = vpack.c.b16 %v548, %v547
        %v578 = vpack.c.b16 %v550, %v549
        %v579 = vpack.c.b16 %v552, %v551
        %v580 = vpack.c.b16 %v554, %v553
        %v581 = vpack.c.b16 %v556, %v555
        %v582 = vpack.c.b16 %v558, %v557
        %v583 = vpack.c.b16 %v560, %v559
        %v584 = vpack.c.b16 %v562, %v561
        %v585 = vpack.c.b16 %v564, %v563
        %v586 = vpack.c.b16 %v566, %v565
        %v587 = vpack.c.b16 %v568, %v567
        %v588 = vpack.c.b16 %v570, %v569
        %v589 = vpack.c.b16 %v572, %v571
        %v590 = vpack.c.b16 %v574, %v573
        %607 = vmatpush.bf16.msra.mxu0 %v582
        %608 = vmatpush.bf16.msra.mxu0 %v581
        %609 = vmatpush.bf16.msra.mxu0 %v580
        %610 = vmatpush.bf16.msra.mxu0 %v579
        %611 = vmatpush.bf16.msra.mxu0 %v578
        %612 = vmatpush.bf16.msra.mxu0 %v577
        %613 = vmatpush.bf16.msra.mxu0 %v576
        %614 = vmatpush.bf16.msra.mxu0 %v575
        %615 = vmatmul.bf16.gmra.mxu0 %v463
        %v616 = vpop.f32.mrf.mxu0
        %v617 = vadd.f32 0.0, %v616
        %v618 = vpop.f32.mrf.mxu0
        %v619 = vadd.f32 0.0, %v618
        %620 = vmatmul.bf16.gmra.mxu0 %v465
        %v621 = vpop.f32.mrf.mxu0
        %v622 = vadd.f32 0.0, %v621
        %v623 = vpop.f32.mrf.mxu0
        %v624 = vadd.f32 0.0, %v623
        %625 = vmatmul.bf16.gmra.mxu0 %v467
        %v626 = vpop.f32.mrf.mxu0
        %v627 = vadd.f32 0.0, %v626
        %v628 = vpop.f32.mrf.mxu0
        %v629 = vadd.f32 0.0, %v628
        %630 = vmatmul.bf16.gmra.mxu0 %v469
        %v631 = vpop.f32.mrf.mxu0
        %v632 = vadd.f32 0.0, %v631
        %v633 = vpop.f32.mrf.mxu0
        %v634 = vadd.f32 0.0, %v633
        %635 = vmatmul.bf16.gmra.mxu0 %v471
        %v636 = vpop.f32.mrf.mxu0
        %v637 = vadd.f32 0.0, %v636
        %v638 = vpop.f32.mrf.mxu0
        %v639 = vadd.f32 0.0, %v638
        %640 = vmatmul.bf16.gmra.mxu0 %v473
        %v641 = vpop.f32.mrf.mxu0
        %v642 = vadd.f32 0.0, %v641
        %v643 = vpop.f32.mrf.mxu0
        %v644 = vadd.f32 0.0, %v643
        %645 = vmatmul.bf16.gmra.mxu0 %v475
        %v646 = vpop.f32.mrf.mxu0
        %v647 = vadd.f32 0.0, %v646
        %v648 = vpop.f32.mrf.mxu0
        %v649 = vadd.f32 0.0, %v648
        %650 = vmatmul.bf16.gmra.mxu0 %v477
        %v651 = vpop.f32.mrf.mxu0
        %v652 = vadd.f32 0.0, %v651
        %v653 = vpop.f32.mrf.mxu0
        %v654 = vadd.f32 0.0, %v653
        %655 = vdwg.mxu0
        %656 = vmatpush.bf16.msra.mxu0 %v590
        %657 = vmatpush.bf16.msra.mxu0 %v589
        %658 = vmatpush.bf16.msra.mxu0 %v588
        %659 = vmatpush.bf16.msra.mxu0 %v587
        %660 = vmatpush.bf16.msra.mxu0 %v586
        %661 = vmatpush.bf16.msra.mxu0 %v585
        %662 = vmatpush.bf16.msra.mxu0 %v584
        %663 = vmatpush.bf16.msra.mxu0 %v583
        %664 = vmatmul.bf16.gmra.mxu0 %v464
        %v665 = vpop.f32.mrf.mxu0
        %v666 = vadd.f32 %v617, %v665
        %v667 = vpop.f32.mrf.mxu0
        %v668 = vadd.f32 %v619, %v667
        %669 = vmatmul.bf16.gmra.mxu0 %v466
        %v670 = vpop.f32.mrf.mxu0
        %v671 = vadd.f32 %v622, %v670
        %v672 = vpop.f32.mrf.mxu0
        %v673 = vadd.f32 %v624, %v672
        %674 = vmatmul.bf16.gmra.mxu0 %v468
        %v675 = vpop.f32.mrf.mxu0
        %v676 = vadd.f32 %v627, %v675
        %v677 = vpop.f32.mrf.mxu0
        %v678 = vadd.f32 %v629, %v677
        %679 = vmatmul.bf16.gmra.mxu0 %v470
        %v680 = vpop.f32.mrf.mxu0
        %v681 = vadd.f32 %v632, %v680
        %v682 = vpop.f32.mrf.mxu0
        %v683 = vadd.f32 %v634, %v682
        %684 = vmatmul.bf16.gmra.mxu0 %v472
        %v685 = vpop.f32.mrf.mxu0
        %v686 = vadd.f32 %v637, %v685
        %v687 = vpop.f32.mrf.mxu0
        %v688 = vadd.f32 %v639, %v687
        %689 = vmatmul.bf16.gmra.mxu0 %v474
        %v690 = vpop.f32.mrf.mxu0
        %v691 = vadd.f32 %v642, %v690
        %v692 = vpop.f32.mrf.mxu0
        %v693 = vadd.f32 %v644, %v692
        %694 = vmatmul.bf16.gmra.mxu0 %v476
        %v695 = vpop.f32.mrf.mxu0
        %v696 = vadd.f32 %v647, %v695
        %v697 = vpop.f32.mrf.mxu0
        %v698 = vadd.f32 %v649, %v697
        %699 = vmatmul.bf16.gmra.mxu0 %v478
        %v700 = vpop.f32.mrf.mxu0
        %v701 = vadd.f32 %v652, %v700
        %v702 = vpop.f32.mrf.mxu0
        %v703 = vadd.f32 %v654, %v702
        %704 = vdwg.mxu0
        %v705 = vadd.f32 %v415, %v666
        %v706 = vadd.f32 %v416, %v668
        %v707 = vadd.f32 %v417, %v671
        %v708 = vadd.f32 %v418, %v673
        %v709 = vadd.f32 %v419, %v676
        %v710 = vadd.f32 %v420, %v678
        %v711 = vadd.f32 %v421, %v681
        %v712 = vadd.f32 %v422, %v683
        %v713 = vadd.f32 %v423, %v686
        %v714 = vadd.f32 %v424, %v688
        %v715 = vadd.f32 %v425, %v691
        %v716 = vadd.f32 %v426, %v693
        %v717 = vadd.f32 %v427, %v696
        %v718 = vadd.f32 %v428, %v698
        %v719 = vadd.f32 %v429, %v701
        %v720 = vadd.f32 %v430, %v703
        %721 = vst [vmem:[#allocation2] sm:$0xff] %v705
        %722 = vst [vmem:[#allocation2 + $0x8] sm:$0xff] %v706
        %723 = vst [vmem:[#allocation2 + $0x10] sm:$0xff] %v707
        %724 = vst [vmem:[#allocation2 + $0x18] sm:$0xff] %v708
        %725 = vst [vmem:[#allocation2 + $0x20] sm:$0xff] %v709
        %726 = vst [vmem:[#allocation2 + $0x28] sm:$0xff] %v710
        %727 = vst [vmem:[#allocation2 + $0x30] sm:$0xff] %v711
        %728 = vst [vmem:[#allocation2 + $0x38] sm:$0xff] %v712
        %729 = vst [vmem:[#allocation2 + $0x40] sm:$0xff] %v713
        %730 = vst [vmem:[#allocation2 + $0x48] sm:$0xff] %v714
        %731 = vst [vmem:[#allocation2 + $0x50] sm:$0xff] %v715
        %732 = vst [vmem:[#allocation2 + $0x58] sm:$0xff] %v716
        %733 = vst [vmem:[#allocation2 + $0x60] sm:$0xff] %v717
        %734 = vst [vmem:[#allocation2 + $0x68] sm:$0xff] %v718
        %735 = vst [vmem:[#allocation2 + $0x70] sm:$0xff] %v719
        %736 = vst [vmem:[#allocation2 + $0x78] sm:$0xff] %v720
        %p737 = scmp.eq.s32.totalorder %s22, 1
        // Predicated region
        $region64: #{gpt_forward.16} parent=54 // pred_check
          %p738 = pneg %p737
        $region65: #{gpt_forward.16} parent=54 // pred_check_branch
          %740 = sbr.rel (%p738) target = $region67
        $region66: #{gpt_forward.16} parent=54 // pred_region
          %v741 = vld [vmem:[#allocation2] sm:$0xff]
          %v742 = vld [vmem:[#allocation2 + $0x8] sm:$0xff]
          %v743 = vld [vmem:[#allocation2 + $0x10] sm:$0xff]
          %v744 = vld [vmem:[#allocation2 + $0x18] sm:$0xff]
          %v745 = vld [vmem:[#allocation2 + $0x20] sm:$0xff]
          %v746 = vld [vmem:[#allocation2 + $0x28] sm:$0xff]
          %v747 = vld [vmem:[#allocation2 + $0x30] sm:$0xff]
          %v748 = vld [vmem:[#allocation2 + $0x38] sm:$0xff]
          %v749 = vld [vmem:[#allocation2 + $0x40] sm:$0xff]
          %v750 = vld [vmem:[#allocation2 + $0x48] sm:$0xff]
          %v751 = vld [vmem:[#allocation2 + $0x50] sm:$0xff]
          %v752 = vld [vmem:[#allocation2 + $0x58] sm:$0xff]
          %v753 = vld [vmem:[#allocation2 + $0x60] sm:$0xff]
          %v754 = vld [vmem:[#allocation2 + $0x68] sm:$0xff]
          %v755 = vld [vmem:[#allocation2 + $0x70] sm:$0xff]
          %v756 = vld [vmem:[#allocation2 + $0x78] sm:$0xff]
          %v757 = vld [vmem:[%s376] sm:$0x1]
          %v759 = vperm.slane %v757, 0
          %v761 = vadd.f32 %v741, %v759
          %v762 = vadd.f32 %v742, %v759
          %v763 = vadd.f32 %v743, %v759
          %v764 = vadd.f32 %v744, %v759
          %v765 = vadd.f32 %v745, %v759
          %v766 = vadd.f32 %v746, %v759
          %v767 = vadd.f32 %v747, %v759
          %v768 = vadd.f32 %v748, %v759
          %v769 = vadd.f32 %v749, %v759
          %v770 = vadd.f32 %v750, %v759
          %v771 = vadd.f32 %v751, %v759
          %v772 = vadd.f32 %v752, %v759
          %v773 = vadd.f32 %v753, %v759
          %v774 = vadd.f32 %v754, %v759
          %v775 = vadd.f32 %v755, %v759
          %v776 = vadd.f32 %v756, %v759
          %v777 = vld [vmem:[%s384] sm:$0xff]
          %v778 = vld [vmem:[%s384 + $0x8] sm:$0xff]
          %v779 = vld [vmem:[%s384 + $0x10] sm:$0xff]
          %v780 = vld [vmem:[%s384 + $0x18] sm:$0xff]
          %v781 = vld [vmem:[%s384 + $0x20] sm:$0xff]
          %v782 = vld [vmem:[%s384 + $0x28] sm:$0xff]
          %v783 = vld [vmem:[%s384 + $0x30] sm:$0xff]
          %v784 = vld [vmem:[%s384 + $0x38] sm:$0xff]
          %v785 = vld [vmem:[%s384 + $0x40] sm:$0xff]
          %v786 = vld [vmem:[%s384 + $0x48] sm:$0xff]
          %v787 = vld [vmem:[%s384 + $0x50] sm:$0xff]
          %v788 = vld [vmem:[%s384 + $0x58] sm:$0xff]
          %v789 = vld [vmem:[%s384 + $0x60] sm:$0xff]
          %v790 = vld [vmem:[%s384 + $0x68] sm:$0xff]
          %v791 = vld [vmem:[%s384 + $0x70] sm:$0xff]
          %v792 = vld [vmem:[%s384 + $0x78] sm:$0xff]
          %v793 = vadd.f32 %v761, %v777
          %v794 = vadd.f32 %v762, %v778
          %v795 = vadd.f32 %v763, %v779
          %v796 = vadd.f32 %v764, %v780
          %v797 = vadd.f32 %v765, %v781
          %v798 = vadd.f32 %v766, %v782
          %v799 = vadd.f32 %v767, %v783
          %v800 = vadd.f32 %v768, %v784
          %v801 = vadd.f32 %v769, %v785
          %v802 = vadd.f32 %v770, %v786
          %v803 = vadd.f32 %v771, %v787
          %v804 = vadd.f32 %v772, %v788
          %v805 = vadd.f32 %v773, %v789
          %v806 = vadd.f32 %v774, %v790
          %v807 = vadd.f32 %v775, %v791
          %v808 = vadd.f32 %v776, %v792
          %809 = vst [vmem:[%s393] sm:$0xff] %v793
          %810 = vst [vmem:[%s393 + $0x8] sm:$0xff] %v794
          %811 = vst [vmem:[%s393 + $0x10] sm:$0xff] %v795
          %812 = vst [vmem:[%s393 + $0x18] sm:$0xff] %v796
          %813 = vst [vmem:[%s393 + $0x20] sm:$0xff] %v797
          %814 = vst [vmem:[%s393 + $0x28] sm:$0xff] %v798
          %815 = vst [vmem:[%s393 + $0x30] sm:$0xff] %v799
          %816 = vst [vmem:[%s393 + $0x38] sm:$0xff] %v800
          %817 = vst [vmem:[%s393 + $0x40] sm:$0xff] %v801
          %818 = vst [vmem:[%s393 + $0x48] sm:$0xff] %v802
          %819 = vst [vmem:[%s393 + $0x50] sm:$0xff] %v803
          %820 = vst [vmem:[%s393 + $0x58] sm:$0xff] %v804
          %821 = vst [vmem:[%s393 + $0x60] sm:$0xff] %v805
          %822 = vst [vmem:[%s393 + $0x68] sm:$0xff] %v806
          %823 = vst [vmem:[%s393 + $0x70] sm:$0xff] %v807
          %824 = vst [vmem:[%s393 + $0x78] sm:$0xff] %v808
        $region67: #{gpt_forward.16} parent=54 // pred_fallthru
          _
        %s825 = smul.u32 16, %s20
        %p826 = scmp.lt.s32.totalorder %s825, 63
        %s827 = scalar_select %p826, %s825, 63
        %p828 = scmp.lt.s32.totalorder %s21, 0
        %s829 = scalar_select %p828, %s21, 0
        %s830 = sadd.s32 %s829, %s827
        %s831 = smul.addr %s830, 8
        %s832 = scalar_lea.vmem %s4, %s831
        // Predicated region
        $region68: #{gpt_forward.16} parent=54 // pred_check
          %p833 = pneg %p164
        $region69: #{gpt_forward.16} parent=54 // pred_check_branch
          %835 = sbr.rel (%p833) target = $region71
        $region70: #{gpt_forward.16} parent=54 // pred_region
          %s836 = smul.u32 16, %s20
        $region71: #{gpt_forward.16} parent=54 // pred_fallthru
          _
      $region55: #{gpt_forward.16} parent=5 // pred_fallthru
        _
      %p837 = scmp.le.s32.totalorder 2, %s10
      // Predicated region
      $region72: #{gpt_forward.16} parent=5 // pred_check
        %p838 = pneg %p837
      $region73: #{gpt_forward.16} parent=5 // pred_check_branch
        %840 = sbr.rel (%p838) target = $region75
      $region74: #{gpt_forward.16} parent=5 // pred_region
        %s841 = ssub.s32 %s10, 2
        // Predicated region
        $region76: #{gpt_forward.16} parent=74 // pred_check
          %p842 = pneg %p170
        $region77: #{gpt_forward.16} parent=74 // pred_check_branch
          %844 = sbr.rel (%p842) target = $region79
        $region78: #{gpt_forward.16} parent=74 // pred_region
          %s845 = smul.u32 16, %s23
          %p846 = scmp.lt.s32.totalorder %s845, 63
          %s847 = scalar_select %p846, %s845, 63
          %p848 = scmp.lt.s32.totalorder %s24, 0
          %s849 = scalar_select %p848, %s24, 0
          %s850 = sadd.s32 %s849, %s847
          %s851 = smul.addr %s850, 8
          %s852 = scalar_lea.vmem %s4, %s851
        $region79: #{gpt_forward.16} parent=74 // pred_fallthru
          _
      $region75: #{gpt_forward.16} parent=5 // pred_fallthru
        _
    $region6: #{gpt_forward.16} parent=1 // loop_footer
      %s14 = sadd.s32 1, %s10
    $region7: #{gpt_forward.16} parent=1 // loop_footer_branch
      %9 = sbr.rel target = $region3
    $region8: #{gpt_forward.16} parent=1 // loop_exit
      _

// kernel: gpt_forward.13
$region0: #{gpt_forward.13}
  #allocation0 [shape = 'u32[]', space=smem, size = 0x4, offset = 0x4, fixed_abs, tag = 'smem constant byte address 0x4 - core index']
  #allocation1 [shape = 'u32[72,128]{1,0:T(1,128)}', space=vmem, size = 0x9000, scoped, tag = 'internal scratch']
  #allocation2 [shape = 'f32[2,128,1]{2,1,0:T(8,128)}', space=vmem, size = 0x20000, scoped, tag = 'scratch operand']
  #allocation3 [shape = 'f32[2,128,1]{2,1,0:T(8,128)}', space=vmem, size = 0x20000, scoped, tag = 'scratch operand']
  #allocation4 [shape = 'f32[2,128,64]{2,1,0:T(8,128)}', space=vmem, size = 0x20000, scoped, tag = 'scratch operand']
  %s0 = inlined_call_operand.vmem [shape: f32[2,256,384], index: 0, kind: input, shape index: {}, may-alias: {0,1,2}]
  %s1 = inlined_call_operand.vmem [shape: f32[2,256,384], index: 1, kind: input, shape index: {}, may-alias: {0,1,2}]
  %s2 = inlined_call_operand.vmem [shape: f32[2,256,384], index: 2, kind: input, shape index: {}, may-alias: {0,1,2}]
  %s3 = inlined_call_operand.vmem [shape: f32[2,256,128], index: 3, kind: output, shape index: {}]
  %s4 = sld [smem:[#allocation0]]
  $region171: #{gpt_forward.13} parent=0
    _
  %s6 = ssub.s32 1, %s4
  %s7 = scalar_select 0, %s6, %s4
  $region1: #{gpt_forward.13} parent=0
    #allocation5 [shape = 'u8[131072]{0}', space=vmem, size = 0x20000, scoped, tag = 'input window, operand 0']
    #allocation6 [shape = 'u8[131072]{0}', space=vmem, size = 0x20000, scoped, tag = 'input window, operand 1']
    #allocation7 [shape = 'u8[131072]{0}', space=vmem, size = 0x20000, scoped, tag = 'input window, operand 2']
    loop: start=0, step=1, limit=10
    $region2: #{gpt_forward.13} parent=1 // loop_pre_header
      _
    $region3: #{gpt_forward.13} parent=1 // loop_header
      %s9 = sphi 0, %s13
      %p10 = scmp.ge.s32.totalorder %s9, 10
      %s16 = sphi 0, %s35
      %s17 = sphi 0, %s31
      %s18 = sphi 0, %s27
      %s19 = sphi 0, %s16
      %s20 = sphi 0, %s17
      %s21 = sphi 0, %s18
      %s22 = sphi 0, %s19
      %s23 = sphi 0, %s20
      %s24 = sphi 0, %s21
      %s40 = sphi 0, %s42
      %s43 = sphi 0, %s40
      %s44 = sphi 0, %s43
      %s60 = sphi 0, %s44
      %s68 = sphi 0, %s70
      %s71 = sphi 0, %s68
      %s72 = sphi 0, %s71
      %s88 = sphi 0, %s72
      %s96 = sphi 0, %s98
      %s99 = sphi 0, %s96
      %s100 = sphi 0, %s99
      %s116 = sphi 0, %s100
      %s124 = sphi 0, %s126
      %s127 = sphi 0, %s124
      %s128 = sphi 0, %s127
      %s144 = sphi 0, %s128
    $region4: #{gpt_forward.13} parent=1 // loop_header_branch
      %12 = sbr.rel (%p10) target = $region8
    $region5: #{gpt_forward.13} parent=1 // loop_body
      %s14 = ssub.s32 %s9, 1
      %s15 = ssub.s32 %s9, 2
      %s25 = sadd.s32 1, %s18
      %p26 = scmp.ge.s32.totalorder %s25, 2
      %s27 = scalar_select %p26, 0, %s25
      %s28 = sadd.s32 1, %s17
      %s29 = scalar_select %p26, %s28, %s17
      %p30 = scmp.ge.s32.totalorder %s29, 2
      %s31 = scalar_select %p30, 0, %s29
      %s32 = sadd.s32 1, %s16
      %s33 = scalar_select %p30, %s32, %s16
      %p34 = scmp.ge.s32.totalorder %s33, 2
      %s35 = scalar_select %p34, 0, %s33
      %s36 = ssub.s32 %s16, %s35
      %s37 = ssub.s32 %s17, %s31
      %s38 = sor.u32 %s36, %s37
      %p39 = scmp.eq.s32.totalorder %s38, 0
      %s41 = sadd.s32 %s40, 1
      %s42 = scalar_select %p39, %s40, %s41
      %p45 = pneg %p39
      %p46 = scmp.eq.s32.totalorder %s9, 7
      %p47 = por %p45, %p46
      %p48 = scmp.ne.s32.totalorder %s40, %s43
      %p49 = scmp.eq.s32.totalorder %s9, 0
      %p50 = por %p48, %p49
      %p51 = scmp.ne.s32.totalorder %s40, %s43
      %p52 = scmp.eq.s32.totalorder %s14, 7
      %p53 = por %p51, %p52
      %p54 = scmp.ne.s32.totalorder %s43, %s44
      %p55 = scmp.eq.s32.totalorder %s14, 0
      %p56 = por %p54, %p55
      %p57 = scmp.ne.s32.totalorder %s43, %s44
      %p58 = scmp.eq.s32.totalorder %s15, 7
      %p59 = por %p57, %p58
      %p61 = scmp.ne.s32.totalorder %s44, %s60
      %p62 = scmp.eq.s32.totalorder %s15, 0
      %p63 = por %p61, %p62
      %s64 = ssub.s32 %s16, %s35
      %s65 = ssub.s32 %s18, %s27
      %s66 = sor.u32 %s64, %s65
      %p67 = scmp.eq.s32.totalorder %s66, 0
      %s69 = sadd.s32 %s68, 1
      %s70 = scalar_select %p67, %s68, %s69
      %p73 = pneg %p67
      %p74 = scmp.eq.s32.totalorder %s9, 7
      %p75 = por %p73, %p74
      %p76 = scmp.ne.s32.totalorder %s68, %s71
      %p77 = scmp.eq.s32.totalorder %s9, 0
      %p78 = por %p76, %p77
      %p79 = scmp.ne.s32.totalorder %s68, %s71
      %p80 = scmp.eq.s32.totalorder %s14, 7
      %p81 = por %p79, %p80
      %p82 = scmp.ne.s32.totalorder %s71, %s72
      %p83 = scmp.eq.s32.totalorder %s14, 0
      %p84 = por %p82, %p83
      %p85 = scmp.ne.s32.totalorder %s71, %s72
      %p86 = scmp.eq.s32.totalorder %s15, 7
      %p87 = por %p85, %p86
      %p89 = scmp.ne.s32.totalorder %s72, %s88
      %p90 = scmp.eq.s32.totalorder %s15, 0
      %p91 = por %p89, %p90
      %s92 = ssub.s32 %s16, %s35
      %s93 = ssub.s32 %s18, %s27
      %s94 = sor.u32 %s92, %s93
      %p95 = scmp.eq.s32.totalorder %s94, 0
      %s97 = sadd.s32 %s96, 1
      %s98 = scalar_select %p95, %s96, %s97
      %p101 = pneg %p95
      %p102 = scmp.eq.s32.totalorder %s9, 7
      %p103 = por %p101, %p102
      %p104 = scmp.ne.s32.totalorder %s96, %s99
      %p105 = scmp.eq.s32.totalorder %s9, 0
      %p106 = por %p104, %p105
      %p107 = scmp.ne.s32.totalorder %s96, %s99
      %p108 = scmp.eq.s32.totalorder %s14, 7
      %p109 = por %p107, %p108
      %p110 = scmp.ne.s32.totalorder %s99, %s100
      %p111 = scmp.eq.s32.totalorder %s14, 0
      %p112 = por %p110, %p111
      %p113 = scmp.ne.s32.totalorder %s99, %s100
      %p114 = scmp.eq.s32.totalorder %s15, 7
      %p115 = por %p113, %p114
      %p117 = scmp.ne.s32.totalorder %s100, %s116
      %p118 = scmp.eq.s32.totalorder %s15, 0
      %p119 = por %p117, %p118
      %s120 = ssub.s32 %s16, %s35
      %s121 = ssub.s32 %s17, %s31
      %s122 = sor.u32 %s120, %s121
      %p123 = scmp.eq.s32.totalorder %s122, 0
      %s125 = sadd.s32 %s124, 1
      %s126 = scalar_select %p123, %s124, %s125
      %p129 = pneg %p123
      %p130 = scmp.eq.s32.totalorder %s9, 7
      %p131 = por %p129, %p130
      %p132 = scmp.ne.s32.totalorder %s124, %s127
      %p133 = scmp.eq.s32.totalorder %s9, 0
      %p134 = por %p132, %p133
      %p135 = scmp.ne.s32.totalorder %s124, %s127
      %p136 = scmp.eq.s32.totalorder %s14, 7
      %p137 = por %p135, %p136
      %p138 = scmp.ne.s32.totalorder %s127, %s128
      %p139 = scmp.eq.s32.totalorder %s14, 0
      %p140 = por %p138, %p139
      %p141 = scmp.ne.s32.totalorder %s127, %s128
      %p142 = scmp.eq.s32.totalorder %s15, 7
      %p143 = por %p141, %p142
      %p145 = scmp.ne.s32.totalorder %s128, %s144
      %p146 = scmp.eq.s32.totalorder %s15, 0
      %p147 = por %p145, %p146
      %p148 = scmp.le.s32.totalorder 1, %s9
      %p149 = scmp.lt.s32.totalorder %s9, 9
      %p150 = pnand %p148, %p149
      %p151 = pneg %p150
      // Predicated region
      $region9: #{gpt_forward.13} parent=5 // pred_check
        _
      $region10: #{gpt_forward.13} parent=5 // pred_check_branch
        %153 = sbr.rel (%p150) target = $region12
      $region11: #{gpt_forward.13} parent=5 // pred_region
        %s154 = ssub.s32 %s9, 1
      $region12: #{gpt_forward.13} parent=5 // pred_fallthru
        _
      %p155 = scmp.lt.s32.totalorder %s9, 8
      // Predicated region
      $region13: #{gpt_forward.13} parent=5 // pred_check
        %p156 = pneg %p155
      $region14: #{gpt_forward.13} parent=5 // pred_check_branch
        %158 = sbr.rel (%p156) target = $region16
      $region15: #{gpt_forward.13} parent=5 // pred_region
        // Predicated region
        $region17: #{gpt_forward.13} parent=15 // pred_check
          %p159 = pneg %p50
        $region18: #{gpt_forward.13} parent=15 // pred_check_branch
          %161 = sbr.rel (%p159) target = $region20
        $region19: #{gpt_forward.13} parent=15 // pred_region
          %s162 = sand.u32 %s40, 1
          %s163 = sand.u32 %s40, 1
          %s164 = smul.addr %s163, 128
          %s165 = scalar_lea.vmem [#allocation5], %s164
          %s166 = smul.u32 16, %s17
          %s167 = smul.addr %s166, 3
          %s168 = smul.addr %s16, 96
          %s169 = sadd.s32 %s167, %s168
          %s170 = smul.addr %s169, 8
          %s171 = scalar_lea.vmem %s0, %s170
          // Predicated region
          $region21: #{gpt_forward.13} parent=19 // pred_check
            _
          $region22: #{gpt_forward.13} parent=19 // pred_check_branch
            %173 = sbr.rel (0) target = $region24
          $region23: #{gpt_forward.13} parent=19 // pred_region
            // Predicated region
            $region25: #{gpt_forward.13} parent=23 // pred_check
              _
            $region26: #{gpt_forward.13} parent=23 // pred_check_branch
              %175 = sbr.rel (0) target = $region28
            $region27: #{gpt_forward.13} parent=23 // pred_region
              // Predicated region
              $region40: #{gpt_forward.13} parent=27 // pred_check
                _
              $region41: #{gpt_forward.13} parent=27 // pred_check_branch
                %221 = sbr.rel (0) target = $region43
              $region42: #{gpt_forward.13} parent=27 // pred_region
                loop: start=0, step=1, limit=1
                $region44: #{gpt_forward.13} parent=42 // loop_pre_header
                  _
                $region45: #{gpt_forward.13} parent=42 // loop_header
                  %s223 = sphi 0, %s227
                  %p224 = scmp.ge.s32.totalorder %s223, 1
                  %s228 = sphi %s171, %s171
                  %s229 = sphi %s165, %s165
                $region46: #{gpt_forward.13} parent=42 // loop_header_branch
                  %226 = sbr.rel (%p224) target = $region50
                $region47: #{gpt_forward.13} parent=42 // loop_body
                  %v230 = vld [vmem:[%s228] sm:$0xff]
                  %231 = vst [vmem:[%s229] sm:$0xff] %v230
                  %v232 = vld [vmem:[%s228 + $0x18] sm:$0xff]
                  %233 = vst [vmem:[%s229 + $0x8] sm:$0xff] %v232
                  %v234 = vld [vmem:[%s228 + $0x30] sm:$0xff]
                  %235 = vst [vmem:[%s229 + $0x10] sm:$0xff] %v234
                  %v236 = vld [vmem:[%s228 + $0x48] sm:$0xff]
                  %237 = vst [vmem:[%s229 + $0x18] sm:$0xff] %v236
                  %v238 = vld [vmem:[%s228 + $0x60] sm:$0xff]
                  %239 = vst [vmem:[%s229 + $0x20] sm:$0xff] %v238
                  %v240 = vld [vmem:[%s228 + $0x78] sm:$0xff]
                  %241 = vst [vmem:[%s229 + $0x28] sm:$0xff] %v240
                  %v242 = vld [vmem:[%s228 + $0x90] sm:$0xff]
                  %243 = vst [vmem:[%s229 + $0x30] sm:$0xff] %v242
                  %v244 = vld [vmem:[%s228 + $0xa8] sm:$0xff]
                  %245 = vst [vmem:[%s229 + $0x38] sm:$0xff] %v244
                  %v246 = vld [vmem:[%s228 + $0xc0] sm:$0xff]
                  %247 = vst [vmem:[%s229 + $0x40] sm:$0xff] %v246
                  %v248 = vld [vmem:[%s228 + $0xd8] sm:$0xff]
                  %249 = vst [vmem:[%s229 + $0x48] sm:$0xff] %v248
                  %v250 = vld [vmem:[%s228 + $0xf0] sm:$0xff]
                  %251 = vst [vmem:[%s229 + $0x50] sm:$0xff] %v250
                  %v252 = vld [vmem:[%s228 + $0x108] sm:$0xff]
                  %253 = vst [vmem:[%s229 + $0x58] sm:$0xff] %v252
                  %v254 = vld [vmem:[%s228 + $0x120] sm:$0xff]
                  %255 = vst [vmem:[%s229 + $0x60] sm:$0xff] %v254
                  %v256 = vld [vmem:[%s228 + $0x138] sm:$0xff]
                  %257 = vst [vmem:[%s229 + $0x68] sm:$0xff] %v256
                  %v258 = vld [vmem:[%s228 + $0x150] sm:$0xff]
                  %259 = vst [vmem:[%s229 + $0x70] sm:$0xff] %v258
                  %v260 = vld [vmem:[%s228 + $0x168] sm:$0xff]
                  %261 = vst [vmem:[%s229 + $0x78] sm:$0xff] %v260
                $region48: #{gpt_forward.13} parent=42 // loop_footer
                  %s227 = sadd.s32 1, %s223
                $region49: #{gpt_forward.13} parent=42 // loop_footer_branch
                  %222 = sbr.rel target = $region45
                $region50: #{gpt_forward.13} parent=42 // loop_exit
                  _
              $region43: #{gpt_forward.13} parent=27 // pred_fallthru
                _
              // Predicated region
              $region51: #{gpt_forward.13} parent=27 // pred_check
                _
              $region52: #{gpt_forward.13} parent=27 // pred_check_branch
                %263 = sbr.rel target = $region54
              $region53: #{gpt_forward.13} parent=27 // pred_region
                _
              $region54: #{gpt_forward.13} parent=27 // pred_fallthru
                _
            $region28: #{gpt_forward.13} parent=23 // pred_fallthru
              _
            // Predicated region
            $region29: #{gpt_forward.13} parent=23 // pred_check
              _
            $region30: #{gpt_forward.13} parent=23 // pred_check_branch
              %177 = sbr.rel target = $region32
            $region31: #{gpt_forward.13} parent=23 // pred_region
              %s179 = ssub.s32 256, 1
              loop: start=0, step=1, limit=1
              $region33: #{gpt_forward.13} parent=31 // loop_pre_header
                _
              $region34: #{gpt_forward.13} parent=31 // loop_header
                %s181 = sphi 0, %s185
                %p182 = scmp.ge.s32.totalorder %s181, 1
                %s186 = sphi %s171, %s171
                %s187 = sphi %s165, %s165
              $region35: #{gpt_forward.13} parent=31 // loop_header_branch
                %184 = sbr.rel (%p182) target = $region39
              $region36: #{gpt_forward.13} parent=31 // loop_body
                %v188 = vld [vmem:[%s186] sm:%s179]
                %189 = vst [vmem:[%s187] sm:%s179] %v188
                %v190 = vld [vmem:[%s186 + $0x18] sm:%s179]
                %191 = vst [vmem:[%s187 + $0x8] sm:%s179] %v190
                %v192 = vld [vmem:[%s186 + $0x30] sm:%s179]
                %193 = vst [vmem:[%s187 + $0x10] sm:%s179] %v192
                %v194 = vld [vmem:[%s186 + $0x48] sm:%s179]
                %195 = vst [vmem:[%s187 + $0x18] sm:%s179] %v194
                %v196 = vld [vmem:[%s186 + $0x60] sm:%s179]
                %197 = vst [vmem:[%s187 + $0x20] sm:%s179] %v196
                %v198 = vld [vmem:[%s186 + $0x78] sm:%s179]
                %199 = vst [vmem:[%s187 + $0x28] sm:%s179] %v198
                %v200 = vld [vmem:[%s186 + $0x90] sm:%s179]
                %201 = vst [vmem:[%s187 + $0x30] sm:%s179] %v200
                %v202 = vld [vmem:[%s186 + $0xa8] sm:%s179]
                %203 = vst [vmem:[%s187 + $0x38] sm:%s179] %v202
                %v204 = vld [vmem:[%s186 + $0xc0] sm:%s179]
                %205 = vst [vmem:[%s187 + $0x40] sm:%s179] %v204
                %v206 = vld [vmem:[%s186 + $0xd8] sm:%s179]
                %207 = vst [vmem:[%s187 + $0x48] sm:%s179] %v206
                %v208 = vld [vmem:[%s186 + $0xf0] sm:%s179]
                %209 = vst [vmem:[%s187 + $0x50] sm:%s179] %v208
                %v210 = vld [vmem:[%s186 + $0x108] sm:%s179]
                %211 = vst [vmem:[%s187 + $0x58] sm:%s179] %v210
                %v212 = vld [vmem:[%s186 + $0x120] sm:%s179]
                %213 = vst [vmem:[%s187 + $0x60] sm:%s179] %v212
                %v214 = vld [vmem:[%s186 + $0x138] sm:%s179]
                %215 = vst [vmem:[%s187 + $0x68] sm:%s179] %v214
                %v216 = vld [vmem:[%s186 + $0x150] sm:%s179]
                %217 = vst [vmem:[%s187 + $0x70] sm:%s179] %v216
                %v218 = vld [vmem:[%s186 + $0x168] sm:%s179]
                %219 = vst [vmem:[%s187 + $0x78] sm:%s179] %v218
              $region37: #{gpt_forward.13} parent=31 // loop_footer
                %s185 = sadd.s32 1, %s181
              $region38: #{gpt_forward.13} parent=31 // loop_footer_branch
                %180 = sbr.rel target = $region34
              $region39: #{gpt_forward.13} parent=31 // loop_exit
                _
            $region32: #{gpt_forward.13} parent=23 // pred_fallthru
              _
          $region24: #{gpt_forward.13} parent=19 // pred_fallthru
            _
          %264 = vnop
        $region20: #{gpt_forward.13} parent=15 // pred_fallthru
          _
        // Predicated region
        $region55: #{gpt_forward.13} parent=15 // pred_check
          %p265 = pneg %p78
        $region56: #{gpt_forward.13} parent=15 // pred_check_branch
          %267 = sbr.rel (%p265) target = $region58
        $region57: #{gpt_forward.13} parent=15 // pred_region
          %s268 = sand.u32 %s68, 1
          %s269 = sand.u32 %s68, 1
          %s270 = smul.addr %s269, 128
          %s271 = scalar_lea.vmem [#allocation6], %s270
          %s272 = smul.u32 16, %s18
          %s273 = smul.addr %s272, 3
          %s274 = sadd.s32 1, %s273
          %s275 = smul.addr %s16, 96
          %s276 = sadd.s32 %s274, %s275
          %s277 = smul.addr %s276, 8
          %s278 = scalar_lea.vmem %s1, %s277
          // Predicated region
          $region59: #{gpt_forward.13} parent=57 // pred_check
            _
          $region60: #{gpt_forward.13} parent=57 // pred_check_branch
            %280 = sbr.rel (0) target = $region62
          $region61: #{gpt_forward.13} parent=57 // pred_region
            // Predicated region
            $region63: #{gpt_forward.13} parent=61 // pred_check
              _
            $region64: #{gpt_forward.13} parent=61 // pred_check_branch
              %282 = sbr.rel (0) target = $region66
            $region65: #{gpt_forward.13} parent=61 // pred_region
              // Predicated region
              $region78: #{gpt_forward.13} parent=65 // pred_check
                _
              $region79: #{gpt_forward.13} parent=65 // pred_check_branch
                %328 = sbr.rel (0) target = $region81
              $region80: #{gpt_forward.13} parent=65 // pred_region
                loop: start=0, step=1, limit=1
                $region82: #{gpt_forward.13} parent=80 // loop_pre_header
                  _
                $region83: #{gpt_forward.13} parent=80 // loop_header
                  %s330 = sphi 0, %s334
                  %p331 = scmp.ge.s32.totalorder %s330, 1
                  %s335 = sphi %s278, %s278
                  %s336 = sphi %s271, %s271
                $region84: #{gpt_forward.13} parent=80 // loop_header_branch
                  %333 = sbr.rel (%p331) target = $region88
                $region85: #{gpt_forward.13} parent=80 // loop_body
                  %v337 = vld [vmem:[%s335] sm:$0xff]
                  %338 = vst [vmem:[%s336] sm:$0xff] %v337
                  %v339 = vld [vmem:[%s335 + $0x18] sm:$0xff]
                  %340 = vst [vmem:[%s336 + $0x8] sm:$0xff] %v339
                  %v341 = vld [vmem:[%s335 + $0x30] sm:$0xff]
                  %342 = vst [vmem:[%s336 + $0x10] sm:$0xff] %v341
                  %v343 = vld [vmem:[%s335 + $0x48] sm:$0xff]
                  %344 = vst [vmem:[%s336 + $0x18] sm:$0xff] %v343
                  %v345 = vld [vmem:[%s335 + $0x60] sm:$0xff]
                  %346 = vst [vmem:[%s336 + $0x20] sm:$0xff] %v345
                  %v347 = vld [vmem:[%s335 + $0x78] sm:$0xff]
                  %348 = vst [vmem:[%s336 + $0x28] sm:$0xff] %v347
                  %v349 = vld [vmem:[%s335 + $0x90] sm:$0xff]
                  %350 = vst [vmem:[%s336 + $0x30] sm:$0xff] %v349
                  %v351 = vld [vmem:[%s335 + $0xa8] sm:$0xff]
                  %352 = vst [vmem:[%s336 + $0x38] sm:$0xff] %v351
                  %v353 = vld [vmem:[%s335 + $0xc0] sm:$0xff]
                  %354 = vst [vmem:[%s336 + $0x40] sm:$0xff] %v353
                  %v355 = vld [vmem:[%s335 + $0xd8] sm:$0xff]
                  %356 = vst [vmem:[%s336 + $0x48] sm:$0xff] %v355
                  %v357 = vld [vmem:[%s335 + $0xf0] sm:$0xff]
                  %358 = vst [vmem:[%s336 + $0x50] sm:$0xff] %v357
                  %v359 = vld [vmem:[%s335 + $0x108] sm:$0xff]
                  %360 = vst [vmem:[%s336 + $0x58] sm:$0xff] %v359
                  %v361 = vld [vmem:[%s335 + $0x120] sm:$0xff]
                  %362 = vst [vmem:[%s336 + $0x60] sm:$0xff] %v361
                  %v363 = vld [vmem:[%s335 + $0x138] sm:$0xff]
                  %364 = vst [vmem:[%s336 + $0x68] sm:$0xff] %v363
                  %v365 = vld [vmem:[%s335 + $0x150] sm:$0xff]
                  %366 = vst [vmem:[%s336 + $0x70] sm:$0xff] %v365
                  %v367 = vld [vmem:[%s335 + $0x168] sm:$0xff]
                  %368 = vst [vmem:[%s336 + $0x78] sm:$0xff] %v367
                $region86: #{gpt_forward.13} parent=80 // loop_footer
                  %s334 = sadd.s32 1, %s330
                $region87: #{gpt_forward.13} parent=80 // loop_footer_branch
                  %329 = sbr.rel target = $region83
                $region88: #{gpt_forward.13} parent=80 // loop_exit
                  _
              $region81: #{gpt_forward.13} parent=65 // pred_fallthru
                _
              // Predicated region
              $region89: #{gpt_forward.13} parent=65 // pred_check
                _
              $region90: #{gpt_forward.13} parent=65 // pred_check_branch
                %370 = sbr.rel target = $region92
              $region91: #{gpt_forward.13} parent=65 // pred_region
                _
              $region92: #{gpt_forward.13} parent=65 // pred_fallthru
                _
            $region66: #{gpt_forward.13} parent=61 // pred_fallthru
              _
            // Predicated region
            $region67: #{gpt_forward.13} parent=61 // pred_check
              _
            $region68: #{gpt_forward.13} parent=61 // pred_check_branch
              %284 = sbr.rel target = $region70
            $region69: #{gpt_forward.13} parent=61 // pred_region
              %s286 = ssub.s32 256, 1
              loop: start=0, step=1, limit=1
              $region71: #{gpt_forward.13} parent=69 // loop_pre_header
                _
              $region72: #{gpt_forward.13} parent=69 // loop_header
                %s288 = sphi 0, %s292
                %p289 = scmp.ge.s32.totalorder %s288, 1
                %s293 = sphi %s278, %s278
                %s294 = sphi %s271, %s271
              $region73: #{gpt_forward.13} parent=69 // loop_header_branch
                %291 = sbr.rel (%p289) target = $region77
              $region74: #{gpt_forward.13} parent=69 // loop_body
                %v295 = vld [vmem:[%s293] sm:%s286]
                %296 = vst [vmem:[%s294] sm:%s286] %v295
                %v297 = vld [vmem:[%s293 + $0x18] sm:%s286]
                %298 = vst [vmem:[%s294 + $0x8] sm:%s286] %v297
                %v299 = vld [vmem:[%s293 + $0x30] sm:%s286]
                %300 = vst [vmem:[%s294 + $0x10] sm:%s286] %v299
                %v301 = vld [vmem:[%s293 + $0x48] sm:%s286]
                %302 = vst [vmem:[%s294 + $0x18] sm:%s286] %v301
                %v303 = vld [vmem:[%s293 + $0x60] sm:%s286]
                %304 = vst [vmem:[%s294 + $0x20] sm:%s286] %v303
                %v305 = vld [vmem:[%s293 + $0x78] sm:%s286]
                %306 = vst [vmem:[%s294 + $0x28] sm:%s286] %v305
                %v307 = vld [vmem:[%s293 + $0x90] sm:%s286]
                %308 = vst [vmem:[%s294 + $0x30] sm:%s286] %v307
                %v309 = vld [vmem:[%s293 + $0xa8] sm:%s286]
                %310 = vst [vmem:[%s294 + $0x38] sm:%s286] %v309
                %v311 = vld [vmem:[%s293 + $0xc0] sm:%s286]
                %312 = vst [vmem:[%s294 + $0x40] sm:%s286] %v311
                %v313 = vld [vmem:[%s293 + $0xd8] sm:%s286]
                %314 = vst [vmem:[%s294 + $0x48] sm:%s286] %v313
                %v315 = vld [vmem:[%s293 + $0xf0] sm:%s286]
                %316 = vst [vmem:[%s294 + $0x50] sm:%s286] %v315
                %v317 = vld [vmem:[%s293 + $0x108] sm:%s286]
                %318 = vst [vmem:[%s294 + $0x58] sm:%s286] %v317
                %v319 = vld [vmem:[%s293 + $0x120] sm:%s286]
                %320 = vst [vmem:[%s294 + $0x60] sm:%s286] %v319
                %v321 = vld [vmem:[%s293 + $0x138] sm:%s286]
                %322 = vst [vmem:[%s294 + $0x68] sm:%s286] %v321
                %v323 = vld [vmem:[%s293 + $0x150] sm:%s286]
                %324 = vst [vmem:[%s294 + $0x70] sm:%s286] %v323
                %v325 = vld [vmem:[%s293 + $0x168] sm:%s286]
                %326 = vst [vmem:[%s294 + $0x78] sm:%s286] %v325
              $region75: #{gpt_forward.13} parent=69 // loop_footer
                %s292 = sadd.s32 1, %s288
              $region76: #{gpt_forward.13} parent=69 // loop_footer_branch
                %287 = sbr.rel target = $region72
              $region77: #{gpt_forward.13} parent=69 // loop_exit
                _
            $region70: #{gpt_forward.13} parent=61 // pred_fallthru
              _
          $region62: #{gpt_forward.13} parent=57 // pred_fallthru
            _
          %371 = vnop
        $region58: #{gpt_forward.13} parent=15 // pred_fallthru
          _
        // Predicated region
        $region93: #{gpt_forward.13} parent=15 // pred_check
          %p372 = pneg %p106
        $region94: #{gpt_forward.13} parent=15 // pred_check_branch
          %374 = sbr.rel (%p372) target = $region96
        $region95: #{gpt_forward.13} parent=15 // pred_region
          %s375 = sand.u32 %s96, 1
          %s376 = sand.u32 %s96, 1
          %s377 = smul.addr %s376, 128
          %s378 = scalar_lea.vmem [#allocation7], %s377
          %s379 = smul.u32 16, %s18
          %s380 = smul.addr %s379, 3
          %s381 = sadd.s32 2, %s380
          %s382 = smul.addr %s16, 96
          %s383 = sadd.s32 %s381, %s382
          %s384 = smul.addr %s383, 8
          %s385 = scalar_lea.vmem %s2, %s384
          // Predicated region
          $region97: #{gpt_forward.13} parent=95 // pred_check
            _
          $region98: #{gpt_forward.13} parent=95 // pred_check_branch
            %387 = sbr.rel (0) target = $region100
          $region99: #{gpt_forward.13} parent=95 // pred_region
            // Predicated region
            $region101: #{gpt_forward.13} parent=99 // pred_check
              _
            $region102: #{gpt_forward.13} parent=99 // pred_check_branch
              %389 = sbr.rel (0) target = $region104
            $region103: #{gpt_forward.13} parent=99 // pred_region
              // Predicated region
              $region116: #{gpt_forward.13} parent=103 // pred_check
                _
              $region117: #{gpt_forward.13} parent=103 // pred_check_branch
                %435 = sbr.rel (0) target = $region119
              $region118: #{gpt_forward.13} parent=103 // pred_region
                loop: start=0, step=1, limit=1
                $region120: #{gpt_forward.13} parent=118 // loop_pre_header
                  _
                $region121: #{gpt_forward.13} parent=118 // loop_header
                  %s437 = sphi 0, %s441
                  %p438 = scmp.ge.s32.totalorder %s437, 1
                  %s442 = sphi %s385, %s385
                  %s443 = sphi %s378, %s378
                $region122: #{gpt_forward.13} parent=118 // loop_header_branch
                  %440 = sbr.rel (%p438) target = $region126
                $region123: #{gpt_forward.13} parent=118 // loop_body
                  %v444 = vld [vmem:[%s442] sm:$0xff]
                  %445 = vst [vmem:[%s443] sm:$0xff] %v444
                  %v446 = vld [vmem:[%s442 + $0x18] sm:$0xff]
                  %447 = vst [vmem:[%s443 + $0x8] sm:$0xff] %v446
                  %v448 = vld [vmem:[%s442 + $0x30] sm:$0xff]
                  %449 = vst [vmem:[%s443 + $0x10] sm:$0xff] %v448
                  %v450 = vld [vmem:[%s442 + $0x48] sm:$0xff]
                  %451 = vst [vmem:[%s443 + $0x18] sm:$0xff] %v450
                  %v452 = vld [vmem:[%s442 + $0x60] sm:$0xff]
                  %453 = vst [vmem:[%s443 + $0x20] sm:$0xff] %v452
                  %v454 = vld [vmem:[%s442 + $0x78] sm:$0xff]
                  %455 = vst [vmem:[%s443 + $0x28] sm:$0xff] %v454
                  %v456 = vld [vmem:[%s442 + $0x90] sm:$0xff]
                  %457 = vst [vmem:[%s443 + $0x30] sm:$0xff] %v456
                  %v458 = vld [vmem:[%s442 + $0xa8] sm:$0xff]
                  %459 = vst [vmem:[%s443 + $0x38] sm:$0xff] %v458
                  %v460 = vld [vmem:[%s442 + $0xc0] sm:$0xff]
                  %461 = vst [vmem:[%s443 + $0x40] sm:$0xff] %v460
                  %v462 = vld [vmem:[%s442 + $0xd8] sm:$0xff]
                  %463 = vst [vmem:[%s443 + $0x48] sm:$0xff] %v462
                  %v464 = vld [vmem:[%s442 + $0xf0] sm:$0xff]
                  %465 = vst [vmem:[%s443 + $0x50] sm:$0xff] %v464
                  %v466 = vld [vmem:[%s442 + $0x108] sm:$0xff]
                  %467 = vst [vmem:[%s443 + $0x58] sm:$0xff] %v466
                  %v468 = vld [vmem:[%s442 + $0x120] sm:$0xff]
                  %469 = vst [vmem:[%s443 + $0x60] sm:$0xff] %v468
                  %v470 = vld [vmem:[%s442 + $0x138] sm:$0xff]
                  %471 = vst [vmem:[%s443 + $0x68] sm:$0xff] %v470
                  %v472 = vld [vmem:[%s442 + $0x150] sm:$0xff]
                  %473 = vst [vmem:[%s443 + $0x70] sm:$0xff] %v472
                  %v474 = vld [vmem:[%s442 + $0x168] sm:$0xff]
                  %475 = vst [vmem:[%s443 + $0x78] sm:$0xff] %v474
                $region124: #{gpt_forward.13} parent=118 // loop_footer
                  %s441 = sadd.s32 1, %s437
                $region125: #{gpt_forward.13} parent=118 // loop_footer_branch
                  %436 = sbr.rel target = $region121
                $region126: #{gpt_forward.13} parent=118 // loop_exit
                  _
              $region119: #{gpt_forward.13} parent=103 // pred_fallthru
                _
              // Predicated region
              $region127: #{gpt_forward.13} parent=103 // pred_check
                _
              $region128: #{gpt_forward.13} parent=103 // pred_check_branch
                %477 = sbr.rel target = $region130
              $region129: #{gpt_forward.13} parent=103 // pred_region
                _
              $region130: #{gpt_forward.13} parent=103 // pred_fallthru
                _
            $region104: #{gpt_forward.13} parent=99 // pred_fallthru
              _
            // Predicated region
            $region105: #{gpt_forward.13} parent=99 // pred_check
              _
            $region106: #{gpt_forward.13} parent=99 // pred_check_branch
              %391 = sbr.rel target = $region108
            $region107: #{gpt_forward.13} parent=99 // pred_region
              %s393 = ssub.s32 256, 1
              loop: start=0, step=1, limit=1
              $region109: #{gpt_forward.13} parent=107 // loop_pre_header
                _
              $region110: #{gpt_forward.13} parent=107 // loop_header
                %s395 = sphi 0, %s399
                %p396 = scmp.ge.s32.totalorder %s395, 1
                %s400 = sphi %s385, %s385
                %s401 = sphi %s378, %s378
              $region111: #{gpt_forward.13} parent=107 // loop_header_branch
                %398 = sbr.rel (%p396) target = $region115
              $region112: #{gpt_forward.13} parent=107 // loop_body
                %v402 = vld [vmem:[%s400] sm:%s393]
                %403 = vst [vmem:[%s401] sm:%s393] %v402
                %v404 = vld [vmem:[%s400 + $0x18] sm:%s393]
                %405 = vst [vmem:[%s401 + $0x8] sm:%s393] %v404
                %v406 = vld [vmem:[%s400 + $0x30] sm:%s393]
                %407 = vst [vmem:[%s401 + $0x10] sm:%s393] %v406
                %v408 = vld [vmem:[%s400 + $0x48] sm:%s393]
                %409 = vst [vmem:[%s401 + $0x18] sm:%s393] %v408
                %v410 = vld [vmem:[%s400 + $0x60] sm:%s393]
                %411 = vst [vmem:[%s401 + $0x20] sm:%s393] %v410
                %v412 = vld [vmem:[%s400 + $0x78] sm:%s393]
                %413 = vst [vmem:[%s401 + $0x28] sm:%s393] %v412
                %v414 = vld [vmem:[%s400 + $0x90] sm:%s393]
                %415 = vst [vmem:[%s401 + $0x30] sm:%s393] %v414
                %v416 = vld [vmem:[%s400 + $0xa8] sm:%s393]
                %417 = vst [vmem:[%s401 + $0x38] sm:%s393] %v416
                %v418 = vld [vmem:[%s400 + $0xc0] sm:%s393]
                %419 = vst [vmem:[%s401 + $0x40] sm:%s393] %v418
                %v420 = vld [vmem:[%s400 + $0xd8] sm:%s393]
                %421 = vst [vmem:[%s401 + $0x48] sm:%s393] %v420
                %v422 = vld [vmem:[%s400 + $0xf0] sm:%s393]
                %423 = vst [vmem:[%s401 + $0x50] sm:%s393] %v422
                %v424 = vld [vmem:[%s400 + $0x108] sm:%s393]
                %425 = vst [vmem:[%s401 + $0x58] sm:%s393] %v424
                %v426 = vld [vmem:[%s400 + $0x120] sm:%s393]
                %427 = vst [vmem:[%s401 + $0x60] sm:%s393] %v426
                %v428 = vld [vmem:[%s400 + $0x138] sm:%s393]
                %429 = vst [vmem:[%s401 + $0x68] sm:%s393] %v428
                %v430 = vld [vmem:[%s400 + $0x150] sm:%s393]
                %431 = vst [vmem:[%s401 + $0x70] sm:%s393] %v430
                %v432 = vld [vmem:[%s400 + $0x168] sm:%s393]
                %433 = vst [vmem:[%s401 + $0x78] sm:%s393] %v432
              $region113: #{gpt_forward.13} parent=107 // loop_footer
                %s399 = sadd.s32 1, %s395
              $region114: #{gpt_forward.13} parent=107 // loop_footer_branch
                %394 = sbr.rel target = $region110
              $region115: #{gpt_forward.13} parent=107 // loop_exit
                _
            $region108: #{gpt_forward.13} parent=99 // pred_fallthru
              _
          $region100: #{gpt_forward.13} parent=95 // pred_fallthru
            _
          %478 = vnop
        $region96: #{gpt_forward.13} parent=15 // pred_fallthru
          _
      $region16: #{gpt_forward.13} parent=5 // pred_fallthru
        _
      %p479 = scmp.le.s32.totalorder 1, %s9
      %p480 = scmp.lt.s32.totalorder %s9, 9
      %p481 = pnand %p479, %p480
      %p482 = pneg %p481
      // Predicated region
      $region131: #{gpt_forward.13} parent=5 // pred_check
        _
      $region132: #{gpt_forward.13} parent=5 // pred_check_branch
        %484 = sbr.rel (%p481) target = $region134
      $region133: #{gpt_forward.13} parent=5 // pred_region
        %s485 = ssub.s32 %s9, 1
        %s486 = sand.u32 %s43, 1
        %s487 = sand.u32 %s43, 1
        %s488 = smul.addr %s487, 128
        %s489 = scalar_lea.vmem [#allocation5], %s488
        // Predicated region
        $region135: #{gpt_forward.13} parent=133 // pred_check
          %p490 = pneg %p56
        $region136: #{gpt_forward.13} parent=133 // pred_check_branch
          %492 = sbr.rel (%p490) target = $region138
        $region137: #{gpt_forward.13} parent=133 // pred_region
          _
        $region138: #{gpt_forward.13} parent=133 // pred_fallthru
          _
        %s493 = sand.u32 %s71, 1
        %s494 = sand.u32 %s71, 1
        %s495 = smul.addr %s494, 128
        %s496 = scalar_lea.vmem [#allocation6], %s495
        // Predicated region
        $region139: #{gpt_forward.13} parent=133 // pred_check
          %p497 = pneg %p84
        $region140: #{gpt_forward.13} parent=133 // pred_check_branch
          %499 = sbr.rel (%p497) target = $region142
        $region141: #{gpt_forward.13} parent=133 // pred_region
          _
        $region142: #{gpt_forward.13} parent=133 // pred_fallthru
          _
        %s500 = sand.u32 %s99, 1
        %s501 = sand.u32 %s99, 1
        %s502 = smul.addr %s501, 128
        %s503 = scalar_lea.vmem [#allocation7], %s502
        // Predicated region
        $region143: #{gpt_forward.13} parent=133 // pred_check
          %p504 = pneg %p112
        $region144: #{gpt_forward.13} parent=133 // pred_check_branch
          %506 = sbr.rel (%p504) target = $region146
        $region145: #{gpt_forward.13} parent=133 // pred_region
          _
        $region146: #{gpt_forward.13} parent=133 // pred_fallthru
          _
        %s507 = sand.u32 %s43, 1
        %s508 = sand.u32 %s43, 1
        %s509 = smul.addr %s508, 128
        %s510 = scalar_lea.vmem [#allocation5], %s509
        %p511 = pneg %p56
        %p512 = pneg %p53
        %s513 = sand.u32 %s71, 1
        %s514 = sand.u32 %s71, 1
        %s515 = smul.addr %s514, 128
        %s516 = scalar_lea.vmem [#allocation6], %s515
        %p517 = pneg %p84
        %p518 = pneg %p81
        %s519 = sand.u32 %s99, 1
        %s520 = sand.u32 %s99, 1
        %s521 = smul.addr %s520, 128
        %s522 = scalar_lea.vmem [#allocation7], %s521
        %p523 = pneg %p112
        %p524 = pneg %p109
        %p525 = pneg %p140
        %p526 = pneg %p137
        %s527 = smul.u32 16, %s20
        %p528 = scmp.lt.s32.totalorder %s19, 1
        %s529 = scalar_select %p528, %s19, 1
        %p530 = scmp.lt.s32.totalorder %s527, 31
        %s531 = scalar_select %p530, %s527, 31
        %s532 = smul.addr %s529, 32
        %s533 = sadd.s32 %s531, %s532
        %s534 = smul.addr %s533, 8
        %s535 = scalar_lea.vmem %s3, %s534
        %s536 = smul.u32 16, %s20
        %s537 = smul.u32 16, %s21
        %s538 = smul.u32 16, %s21
        %s539 = smul.u32 16, %s20
        %p540 = scmp.lt.s32.totalorder %s19, 1
        %s541 = scalar_select %p540, %s19, 1
        %p542 = scmp.lt.s32.totalorder %s539, 31
        %s543 = scalar_select %p542, %s539, 31
        %s544 = smul.addr %s541, 32
        %s545 = sadd.s32 %s543, %s544
        %s546 = smul.addr %s545, 8
        %s547 = scalar_lea.vmem %s3, %s546
        %s548 = smul.u32 16, %s20
        %p549 = scmp.eq.s32.totalorder %s21, 0
        // Predicated region
        $region147: #{gpt_forward.13} parent=133 // pred_check
          %p550 = pneg %p549
        $region148: #{gpt_forward.13} parent=133 // pred_check_branch
          %552 = sbr.rel (%p550) target = $region150
        $region149: #{gpt_forward.13} parent=133 // pred_region
          %vm553 = vcmask 7168
          %554 = vst.msk [vmem:[#allocation2] sm:$0xff] %vm553, -1e+30
          %555 = vst.msk [vmem:[#allocation2 + $0x8] sm:$0xff] %vm553, -1e+30
          %556 = vst.msk [vmem:[#allocation2 + $0x10] sm:$0xff] %vm553, -1e+30
          %557 = vst.msk [vmem:[#allocation2 + $0x18] sm:$0xff] %vm553, -1e+30
          %558 = vst.msk [vmem:[#allocation2 + $0x20] sm:$0xff] %vm553, -1e+30
          %559 = vst.msk [vmem:[#allocation2 + $0x28] sm:$0xff] %vm553, -1e+30
          %560 = vst.msk [vmem:[#allocation2 + $0x30] sm:$0xff] %vm553, -1e+30
          %561 = vst.msk [vmem:[#allocation2 + $0x38] sm:$0xff] %vm553, -1e+30
          %562 = vst.msk [vmem:[#allocation2 + $0x40] sm:$0xff] %vm553, -1e+30
          %563 = vst.msk [vmem:[#allocation2 + $0x48] sm:$0xff] %vm553, -1e+30
          %564 = vst.msk [vmem:[#allocation2 + $0x50] sm:$0xff] %vm553, -1e+30
          %565 = vst.msk [vmem:[#allocation2 + $0x58] sm:$0xff] %vm553, -1e+30
          %566 = vst.msk [vmem:[#allocation2 + $0x60] sm:$0xff] %vm553, -1e+30
          %567 = vst.msk [vmem:[#allocation2 + $0x68] sm:$0xff] %vm553, -1e+30
          %568 = vst.msk [vmem:[#allocation2 + $0x70] sm:$0xff] %vm553, -1e+30
          %569 = vst.msk [vmem:[#allocation2 + $0x78] sm:$0xff] %vm553, -1e+30
          %570 = vst.msk [vmem:[#allocation2 + $0x80] sm:$0xff] %vm553, -1e+30
          %571 = vst.msk [vmem:[#allocation2 + $0x88] sm:$0xff] %vm553, -1e+30
          %572 = vst.msk [vmem:[#allocation2 + $0x90] sm:$0xff] %vm553, -1e+30
          %573 = vst.msk [vmem:[#allocation2 + $0x98] sm:$0xff] %vm553, -1e+30
          %574 = vst.msk [vmem:[#allocation2 + $0xa0] sm:$0xff] %vm553, -1e+30
          %575 = vst.msk [vmem:[#allocation2 + $0xa8] sm:$0xff] %vm553, -1e+30
          %576 = vst.msk [vmem:[#allocation2 + $0xb0] sm:$0xff] %vm553, -1e+30
          %577 = vst.msk [vmem:[#allocation2 + $0xb8] sm:$0xff] %vm553, -1e+30
          %578 = vst.msk [vmem:[#allocation2 + $0xc0] sm:$0xff] %vm553, -1e+30
          %579 = vst.msk [vmem:[#allocation2 + $0xc8] sm:$0xff] %vm553, -1e+30
          %580 = vst.msk [vmem:[#allocation2 + $0xd0] sm:$0xff] %vm553, -1e+30
          %581 = vst.msk [vmem:[#allocation2 + $0xd8] sm:$0xff] %vm553, -1e+30
          %582 = vst.msk [vmem:[#allocation2 + $0xe0] sm:$0xff] %vm553, -1e+30
          %583 = vst.msk [vmem:[#allocation2 + $0xe8] sm:$0xff] %vm553, -1e+30
          %584 = vst.msk [vmem:[#allocation2 + $0xf0] sm:$0xff] %vm553, -1e+30
          %585 = vst.msk [vmem:[#allocation2 + $0xf8] sm:$0xff] %vm553, -1e+30
          %586 = vst.msk [vmem:[#allocation3] sm:$0xff] %vm553, 0.0
          %587 = vst.msk [vmem:[#allocation3 + $0x8] sm:$0xff] %vm553, 0.0
          %588 = vst.msk [vmem:[#allocation3 + $0x10] sm:$0xff] %vm553, 0.0
          %589 = vst.msk [vmem:[#allocation3 + $0x18] sm:$0xff] %vm553, 0.0
          %590 = vst.msk [vmem:[#allocation3 + $0x20] sm:$0xff] %vm553, 0.0
          %591 = vst.msk [vmem:[#allocation3 + $0x28] sm:$0xff] %vm553, 0.0
          %592 = vst.msk [vmem:[#allocation3 + $0x30] sm:$0xff] %vm553, 0.0
          %593 = vst.msk [vmem:[#allocation3 + $0x38] sm:$0xff] %vm553, 0.0
          %594 = vst.msk [vmem:[#allocation3 + $0x40] sm:$0xff] %vm553, 0.0
          %595 = vst.msk [vmem:[#allocation3 + $0x48] sm:$0xff] %vm553, 0.0
          %596 = vst.msk [vmem:[#allocation3 + $0x50] sm:$0xff] %vm553, 0.0
          %597 = vst.msk [vmem:[#allocation3 + $0x58] sm:$0xff] %vm553, 0.0
          %598 = vst.msk [vmem:[#allocation3 + $0x60] sm:$0xff] %vm553, 0.0
          %599 = vst.msk [vmem:[#allocation3 + $0x68] sm:$0xff] %vm553, 0.0
          %600 = vst.msk [vmem:[#allocation3 + $0x70] sm:$0xff] %vm553, 0.0
          %601 = vst.msk [vmem:[#allocation3 + $0x78] sm:$0xff] %vm553, 0.0
          %602 = vst.msk [vmem:[#allocation3 + $0x80] sm:$0xff] %vm553, 0.0
          %603 = vst.msk [vmem:[#allocation3 + $0x88] sm:$0xff] %vm553, 0.0
          %604 = vst.msk [vmem:[#allocation3 + $0x90] sm:$0xff] %vm553, 0.0
          %605 = vst.msk [vmem:[#allocation3 + $0x98] sm:$0xff] %vm553, 0.0
          %606 = vst.msk [vmem:[#allocation3 + $0xa0] sm:$0xff] %vm553, 0.0
          %607 = vst.msk [vmem:[#allocation3 + $0xa8] sm:$0xff] %vm553, 0.0
          %608 = vst.msk [vmem:[#allocation3 + $0xb0] sm:$0xff] %vm553, 0.0
          %609 = vst.msk [vmem:[#allocation3 + $0xb8] sm:$0xff] %vm553, 0.0
          %610 = vst.msk [vmem:[#allocation3 + $0xc0] sm:$0xff] %vm553, 0.0
          %611 = vst.msk [vmem:[#allocation3 + $0xc8] sm:$0xff] %vm553, 0.0
          %612 = vst.msk [vmem:[#allocation3 + $0xd0] sm:$0xff] %vm553, 0.0
          %613 = vst.msk [vmem:[#allocation3 + $0xd8] sm:$0xff] %vm553, 0.0
          %614 = vst.msk [vmem:[#allocation3 + $0xe0] sm:$0xff] %vm553, 0.0
          %615 = vst.msk [vmem:[#allocation3 + $0xe8] sm:$0xff] %vm553, 0.0
          %616 = vst.msk [vmem:[#allocation3 + $0xf0] sm:$0xff] %vm553, 0.0
          %617 = vst.msk [vmem:[#allocation3 + $0xf8] sm:$0xff] %vm553, 0.0
          %vm618 = vcmask 523264
          %619 = vst.msk [vmem:[#allocation4] sm:$0xff] %vm618, 0.0
          %620 = vst.msk [vmem:[#allocation4 + $0x8] sm:$0xff] %vm618, 0.0
          %621 = vst.msk [vmem:[#allocation4 + $0x10] sm:$0xff] %vm618, 0.0
          %622 = vst.msk [vmem:[#allocation4 + $0x18] sm:$0xff] %vm618, 0.0
          %623 = vst.msk [vmem:[#allocation4 + $0x20] sm:$0xff] %vm618, 0.0
          %624 = vst.msk [vmem:[#allocation4 + $0x28] sm:$0xff] %vm618, 0.0
          %625 = vst.msk [vmem:[#allocation4 + $0x30] sm:$0xff] %vm618, 0.0
          %626 = vst.msk [vmem:[#allocation4 + $0x38] sm:$0xff] %vm618, 0.0
          %627 = vst.msk [vmem:[#allocation4 + $0x40] sm:$0xff] %vm618, 0.0
          %628 = vst.msk [vmem:[#allocation4 + $0x48] sm:$0xff] %vm618, 0.0
          %629 = vst.msk [vmem:[#allocation4 + $0x50] sm:$0xff] %vm618, 0.0
          %630 = vst.msk [vmem:[#allocation4 + $0x58] sm:$0xff] %vm618, 0.0
          %631 = vst.msk [vmem:[#allocation4 + $0x60] sm:$0xff] %vm618, 0.0
          %632 = vst.msk [vmem:[#allocation4 + $0x68] sm:$0xff] %vm618, 0.0
          %633 = vst.msk [vmem:[#allocation4 + $0x70] sm:$0xff] %vm618, 0.0
          %634 = vst.msk [vmem:[#allocation4 + $0x78] sm:$0xff] %vm618, 0.0
          %635 = vst.msk [vmem:[#allocation4 + $0x80] sm:$0xff] %vm618, 0.0
          %636 = vst.msk [vmem:[#allocation4 + $0x88] sm:$0xff] %vm618, 0.0
          %637 = vst.msk [vmem:[#allocation4 + $0x90] sm:$0xff] %vm618, 0.0
          %638 = vst.msk [vmem:[#allocation4 + $0x98] sm:$0xff] %vm618, 0.0
          %639 = vst.msk [vmem:[#allocation4 + $0xa0] sm:$0xff] %vm618, 0.0
          %640 = vst.msk [vmem:[#allocation4 + $0xa8] sm:$0xff] %vm618, 0.0
          %641 = vst.msk [vmem:[#allocation4 + $0xb0] sm:$0xff] %vm618, 0.0
          %642 = vst.msk [vmem:[#allocation4 + $0xb8] sm:$0xff] %vm618, 0.0
          %643 = vst.msk [vmem:[#allocation4 + $0xc0] sm:$0xff] %vm618, 0.0
          %644 = vst.msk [vmem:[#allocation4 + $0xc8] sm:$0xff] %vm618, 0.0
          %645 = vst.msk [vmem:[#allocation4 + $0xd0] sm:$0xff] %vm618, 0.0
          %646 = vst.msk [vmem:[#allocation4 + $0xd8] sm:$0xff] %vm618, 0.0
          %647 = vst.msk [vmem:[#allocation4 + $0xe0] sm:$0xff] %vm618, 0.0
          %648 = vst.msk [vmem:[#allocation4 + $0xe8] sm:$0xff] %vm618, 0.0
          %649 = vst.msk [vmem:[#allocation4 + $0xf0] sm:$0xff] %vm618, 0.0
          %650 = vst.msk [vmem:[#allocation4 + $0xf8] sm:$0xff] %vm618, 0.0
        $region150: #{gpt_forward.13} parent=133 // pred_fallthru
          _
        %s651 = smul.u32 %s21, 128
        %s652 = smul.u32 %s20, 128
        %s653 = sadd.s32 %s652, 127
        %p654 = scmp.le.s32.totalorder %s651, %s653
        // Predicated region
        $region151: #{gpt_forward.13} parent=133 // pred_check
          %p655 = pneg %p654
        $region152: #{gpt_forward.13} parent=133 // pred_check_branch
          %657 = sbr.rel (%p655) target = $region154
        $region153: #{gpt_forward.13} parent=133 // pred_region
          %v658 = vld [vmem:[%s489] sm:$0xff]
          %v659 = vld [vmem:[%s489 + $0x8] sm:$0xff]
          %v660 = vld [vmem:[%s489 + $0x10] sm:$0xff]
          %v661 = vld [vmem:[%s489 + $0x18] sm:$0xff]
          %v662 = vld [vmem:[%s489 + $0x20] sm:$0xff]
          %v663 = vld [vmem:[%s489 + $0x28] sm:$0xff]
          %v664 = vld [vmem:[%s489 + $0x30] sm:$0xff]
          %v665 = vld [vmem:[%s489 + $0x38] sm:$0xff]
          %v666 = vld [vmem:[%s489 + $0x40] sm:$0xff]
          %v667 = vld [vmem:[%s489 + $0x48] sm:$0xff]
          %v668 = vld [vmem:[%s489 + $0x50] sm:$0xff]
          %v669 = vld [vmem:[%s489 + $0x58] sm:$0xff]
          %v670 = vld [vmem:[%s489 + $0x60] sm:$0xff]
          %v671 = vld [vmem:[%s489 + $0x68] sm:$0xff]
          %v672 = vld [vmem:[%s489 + $0x70] sm:$0xff]
          %v673 = vld [vmem:[%s489 + $0x78] sm:$0xff]
          %v674 = vld [vmem:[%s496] sm:$0xff]
          %v675 = vld [vmem:[%s496 + $0x8] sm:$0xff]
          %v676 = vld [vmem:[%s496 + $0x10] sm:$0xff]
          %v677 = vld [vmem:[%s496 + $0x18] sm:$0xff]
          %v678 = vld [vmem:[%s496 + $0x20] sm:$0xff]
          %v679 = vld [vmem:[%s496 + $0x28] sm:$0xff]
          %v680 = vld [vmem:[%s496 + $0x30] sm:$0xff]
          %v681 = vld [vmem:[%s496 + $0x38] sm:$0xff]
          %v682 = vld [vmem:[%s496 + $0x40] sm:$0xff]
          %v683 = vld [vmem:[%s496 + $0x48] sm:$0xff]
          %v684 = vld [vmem:[%s496 + $0x50] sm:$0xff]
          %v685 = vld [vmem:[%s496 + $0x58] sm:$0xff]
          %v686 = vld [vmem:[%s496 + $0x60] sm:$0xff]
          %v687 = vld [vmem:[%s496 + $0x68] sm:$0xff]
          %v688 = vld [vmem:[%s496 + $0x70] sm:$0xff]
          %v689 = vld [vmem:[%s496 + $0x78] sm:$0xff]
          %v690 = vld [vmem:[%s503] sm:$0xff]
          %v691 = vld [vmem:[%s503 + $0x8] sm:$0xff]
          %v692 = vld [vmem:[%s503 + $0x10] sm:$0xff]
          %v693 = vld [vmem:[%s503 + $0x18] sm:$0xff]
          %v694 = vld [vmem:[%s503 + $0x20] sm:$0xff]
          %v695 = vld [vmem:[%s503 + $0x28] sm:$0xff]
          %v696 = vld [vmem:[%s503 + $0x30] sm:$0xff]
          %v697 = vld [vmem:[%s503 + $0x38] sm:$0xff]
          %v698 = vld [vmem:[%s503 + $0x40] sm:$0xff]
          %v699 = vld [vmem:[%s503 + $0x48] sm:$0xff]
          %v700 = vld [vmem:[%s503 + $0x50] sm:$0xff]
          %v701 = vld [vmem:[%s503 + $0x58] sm:$0xff]
          %v702 = vld [vmem:[%s503 + $0x60] sm:$0xff]
          %v703 = vld [vmem:[%s503 + $0x68] sm:$0xff]
          %v704 = vld [vmem:[%s503 + $0x70] sm:$0xff]
          %v705 = vld [vmem:[%s503 + $0x78] sm:$0xff]
          %v706 = vlaneseq
          %v707 = vshrl.u32 %v706, 7
          %v708 = vadd.s32 %v707, 8
          %v709 = vadd.s32 %v707, 16
          %v710 = vadd.s32 %v707, 24
          %v711 = vadd.s32 %v707, 32
          %v712 = vadd.s32 %v707, 40
          %v713 = vadd.s32 %v707, 48
          %v714 = vadd.s32 %v707, 56
          %v715 = vadd.s32 %v707, 64
          %v716 = vadd.s32 %v707, 72
          %v717 = vadd.s32 %v707, 80
          %v718 = vadd.s32 %v707, 88
          %v719 = vadd.s32 %v707, 96
          %v720 = vadd.s32 %v707, 104
          %v721 = vadd.s32 %v707, 112
          %v722 = vadd.s32 %v707, 120
          %v723 = vstv %s652
          %v724 = vadd.s32 %v723, %v707
          %v725 = vadd.s32 %v723, %v708
          %v726 = vadd.s32 %v723, %v709
          %v727 = vadd.s32 %v723, %v710
          %v728 = vadd.s32 %v723, %v711
          %v729 = vadd.s32 %v723, %v712
          %v730 = vadd.s32 %v723, %v713
          %v731 = vadd.s32 %v723, %v714
          %v732 = vadd.s32 %v723, %v715
          %v733 = vadd.s32 %v723, %v716
          %v734 = vadd.s32 %v723, %v717
          %v735 = vadd.s32 %v723, %v718
          %v736 = vadd.s32 %v723, %v719
          %v737 = vadd.s32 %v723, %v720
          %v738 = vadd.s32 %v723, %v721
          %v739 = vadd.s32 %v723, %v722
          %v740 = vlaneseq
          %v741 = vand.u32 %v740, 127
          %v742 = vstv %s651
          %v743 = vadd.s32 %v742, %v741
          %vm744 = vcmp.le.s32.totalorder %v743, %v724
          %vm745 = vcmp.le.s32.totalorder %v743, %v725
          %vm746 = vcmp.le.s32.totalorder %v743, %v726
          %vm747 = vcmp.le.s32.totalorder %v743, %v727
          %vm748 = vcmp.le.s32.totalorder %v743, %v728
          %vm749 = vcmp.le.s32.totalorder %v743, %v729
          %vm750 = vcmp.le.s32.totalorder %v743, %v730
          %vm751 = vcmp.le.s32.totalorder %v743, %v731
          %vm752 = vcmp.le.s32.totalorder %v743, %v732
          %vm753 = vcmp.le.s32.totalorder %v743, %v733
          %vm754 = vcmp.le.s32.totalorder %v743, %v734
          %vm755 = vcmp.le.s32.totalorder %v743, %v735
          %vm756 = vcmp.le.s32.totalorder %v743, %v736
          %vm757 = vcmp.le.s32.totalorder %v743, %v737
          %vm758 = vcmp.le.s32.totalorder %v743, %v738
          %vm759 = vcmp.le.s32.totalorder %v743, %v739
          %v760 = vpack.c.bf16 %v659, %v658
          %v761 = vpack.c.bf16 %v661, %v660
          %v762 = vpack.c.bf16 %v663, %v662
          %v763 = vpack.c.bf16 %v665, %v664
          %v764 = vpack.c.bf16 %v667, %v666
          %v765 = vpack.c.bf16 %v669, %v668
          %v766 = vpack.c.bf16 %v671, %v670
          %v767 = vpack.c.bf16 %v673, %v672
          %v768 = vpack.c.bf16 %v675, %v674
          %v769 = vpack.c.bf16 %v677, %v676
          %v770 = vpack.c.bf16 %v679, %v678
          %v771 = vpack.c.bf16 %v681, %v680
          %v772 = vpack.c.bf16 %v683, %v682
          %v773 = vpack.c.bf16 %v685, %v684
          %v774 = vpack.c.bf16 %v687, %v686
          %v775 = vpack.c.bf16 %v689, %v688
          %v776 = vpack.c.bf16 %v691, %v690
          %v777 = vpack.c.bf16 %v693, %v692
          %v778 = vpack.c.bf16 %v695, %v694
          %v779 = vpack.c.bf16 %v697, %v696
          %v780 = vpack.c.bf16 %v699, %v698
          %v781 = vpack.c.bf16 %v701, %v700
          %v782 = vpack.c.bf16 %v703, %v702
          %v783 = vpack.c.bf16 %v705, %v704
          %vm784 = vcmask 523264
          %v786 = vsel %vm784, %v760, 0
          %v789 = vsel %vm784, %v761, 0
          %v792 = vsel %vm784, %v762, 0
          %v795 = vsel %vm784, %v763, 0
          %v798 = vsel %vm784, %v764, 0
          %v801 = vsel %vm784, %v765, 0
          %v804 = vsel %vm784, %v766, 0
          %v807 = vsel %vm784, %v767, 0
          %v810 = vsel %vm784, %v768, 0
          %v813 = vsel %vm784, %v769, 0
          %v816 = vsel %vm784, %v770, 0
          %v819 = vsel %vm784, %v771, 0
          %v822 = vsel %vm784, %v772, 0
          %v825 = vsel %vm784, %v773, 0
          %v828 = vsel %vm784, %v774, 0
          %v831 = vsel %vm784, %v775, 0
          %833 = vmatpush.bf16.xpose.msra.mxu0 %v831
          %834 = vmatpush.bf16.xpose.msra.mxu0 %v828
          %835 = vmatpush.bf16.xpose.msra.mxu0 %v825
          %836 = vmatpush.bf16.xpose.msra.mxu0 %v822
          %837 = vmatpush.bf16.xpose.msra.mxu0 %v819
          %838 = vmatpush.bf16.xpose.msra.mxu0 %v816
          %839 = vmatpush.bf16.xpose.msra.mxu0 %v813
          %840 = vmatpush.bf16.xpose.msra.mxu0 %v810
          %841 = vmatmul.bf16.gmra.mxu0 %v786
          %v842 = vpop.f32.mrf.mxu0
          %v843 = vadd.f32 0.0, %v842
          %v844 = vpop.f32.mrf.mxu0
          %v845 = vadd.f32 0.0, %v844
          %846 = vmatmul.bf16.gmra.mxu0 %v789
          %v847 = vpop.f32.mrf.mxu0
          %v848 = vadd.f32 0.0, %v847
          %v849 = vpop.f32.mrf.mxu0
          %v850 = vadd.f32 0.0, %v849
          %851 = vmatmul.bf16.gmra.mxu0 %v792
          %v852 = vpop.f32.mrf.mxu0
          %v853 = vadd.f32 0.0, %v852
          %v854 = vpop.f32.mrf.mxu0
          %v855 = vadd.f32 0.0, %v854
          %856 = vmatmul.bf16.gmra.mxu0 %v795
          %v857 = vpop.f32.mrf.mxu0
          %v858 = vadd.f32 0.0, %v857
          %v859 = vpop.f32.mrf.mxu0
          %v860 = vadd.f32 0.0, %v859
          %861 = vmatmul.bf16.gmra.mxu0 %v798
          %v862 = vpop.f32.mrf.mxu0
          %v863 = vadd.f32 0.0, %v862
          %v864 = vpop.f32.mrf.mxu0
          %v865 = vadd.f32 0.0, %v864
          %866 = vmatmul.bf16.gmra.mxu0 %v801
          %v867 = vpop.f32.mrf.mxu0
          %v868 = vadd.f32 0.0, %v867
          %v869 = vpop.f32.mrf.mxu0
          %v870 = vadd.f32 0.0, %v869
          %871 = vmatmul.bf16.gmra.mxu0 %v804
          %v872 = vpop.f32.mrf.mxu0
          %v873 = vadd.f32 0.0, %v872
          %v874 = vpop.f32.mrf.mxu0
          %v875 = vadd.f32 0.0, %v874
          %876 = vmatmul.bf16.gmra.mxu0 %v807
          %v877 = vpop.f32.mrf.mxu0
          %v878 = vadd.f32 0.0, %v877
          %v879 = vpop.f32.mrf.mxu0
          %v880 = vadd.f32 0.0, %v879
          %881 = vdwg.mxu0
          %v882 = vmul.f32 %v843, 0.125
          %v883 = vmul.f32 %v845, 0.125
          %v884 = vmul.f32 %v848, 0.125
          %v885 = vmul.f32 %v850, 0.125
          %v886 = vmul.f32 %v853, 0.125
          %v887 = vmul.f32 %v855, 0.125
          %v888 = vmul.f32 %v858, 0.125
          %v889 = vmul.f32 %v860, 0.125
          %v890 = vmul.f32 %v863, 0.125
          %v891 = vmul.f32 %v865, 0.125
          %v892 = vmul.f32 %v868, 0.125
          %v893 = vmul.f32 %v870, 0.125
          %v894 = vmul.f32 %v873, 0.125
          %v895 = vmul.f32 %v875, 0.125
          %v896 = vmul.f32 %v878, 0.125
          %v897 = vmul.f32 %v880, 0.125
          %v898 = vsel %vm744, %v882, -1e+30
          %v899 = vsel %vm745, %v883, -1e+30
          %v900 = vsel %vm746, %v884, -1e+30
          %v901 = vsel %vm747, %v885, -1e+30
          %v902 = vsel %vm748, %v886, -1e+30
          %v903 = vsel %vm749, %v887, -1e+30
          %v904 = vsel %vm750, %v888, -1e+30
          %v905 = vsel %vm751, %v889, -1e+30
          %v906 = vsel %vm752, %v890, -1e+30
          %v907 = vsel %vm753, %v891, -1e+30
          %v908 = vsel %vm754, %v892, -1e+30
          %v909 = vsel %vm755, %v893, -1e+30
          %v910 = vsel %vm756, %v894, -1e+30
          %v911 = vsel %vm757, %v895, -1e+30
          %v912 = vsel %vm758, %v896, -1e+30
          %v913 = vsel %vm759, %v897, -1e+30
          %v914 = vld [vmem:[#allocation2] sm:$0xff]
          %v915 = vld [vmem:[#allocation2 + $0x8] sm:$0xff]
          %v916 = vld [vmem:[#allocation2 + $0x10] sm:$0xff]
          %v917 = vld [vmem:[#allocation2 + $0x18] sm:$0xff]
          %v918 = vld [vmem:[#allocation2 + $0x20] sm:$0xff]
          %v919 = vld [vmem:[#allocation2 + $0x28] sm:$0xff]
          %v920 = vld [vmem:[#allocation2 + $0x30] sm:$0xff]
          %v921 = vld [vmem:[#allocation2 + $0x38] sm:$0xff]
          %v922 = vld [vmem:[#allocation2 + $0x40] sm:$0xff]
          %v923 = vld [vmem:[#allocation2 + $0x48] sm:$0xff]
          %v924 = vld [vmem:[#allocation2 + $0x50] sm:$0xff]
          %v925 = vld [vmem:[#allocation2 + $0x58] sm:$0xff]
          %v926 = vld [vmem:[#allocation2 + $0x60] sm:$0xff]
          %v927 = vld [vmem:[#allocation2 + $0x68] sm:$0xff]
          %v928 = vld [vmem:[#allocation2 + $0x70] sm:$0xff]
          %v929 = vld [vmem:[#allocation2 + $0x78] sm:$0xff]
          %v930 = vld [vmem:[#allocation3] sm:$0xff]
          %v931 = vld [vmem:[#allocation3 + $0x8] sm:$0xff]
          %v932 = vld [vmem:[#allocation3 + $0x10] sm:$0xff]
          %v933 = vld [vmem:[#allocation3 + $0x18] sm:$0xff]
          %v934 = vld [vmem:[#allocation3 + $0x20] sm:$0xff]
          %v935 = vld [vmem:[#allocation3 + $0x28] sm:$0xff]
          %v936 = vld [vmem:[#allocation3 + $0x30] sm:$0xff]
          %v937 = vld [vmem:[#allocation3 + $0x38] sm:$0xff]
          %v938 = vld [vmem:[#allocation3 + $0x40] sm:$0xff]
          %v939 = vld [vmem:[#allocation3 + $0x48] sm:$0xff]
          %v940 = vld [vmem:[#allocation3 + $0x50] sm:$0xff]
          %v941 = vld [vmem:[#allocation3 + $0x58] sm:$0xff]
          %v942 = vld [vmem:[#allocation3 + $0x60] sm:$0xff]
          %v943 = vld [vmem:[#allocation3 + $0x68] sm:$0xff]
          %v944 = vld [vmem:[#allocation3 + $0x70] sm:$0xff]
          %v945 = vld [vmem:[#allocation3 + $0x78] sm:$0xff]
          %946 = vmax.xlane.f32.xlu0 %v898
          %v947 = vpop.xlane.xlu0 %946
          %948 = vmax.xlane.f32.xlu0 %v899
          %v949 = vpop.xlane.xlu0 %948
          %950 = vmax.xlane.f32.xlu0 %v900
          %v951 = vpop.xlane.xlu0 %950
          %952 = vmax.xlane.f32.xlu0 %v901
          %v953 = vpop.xlane.xlu0 %952
          %954 = vmax.xlane.f32.xlu0 %v902
          %v955 = vpop.xlane.xlu0 %954
          %956 = vmax.xlane.f32.xlu0 %v903
          %v957 = vpop.xlane.xlu0 %956
          %958 = vmax.xlane.f32.xlu0 %v904
          %v959 = vpop.xlane.xlu0 %958
          %960 = vmax.xlane.f32.xlu0 %v905
          %v961 = vpop.xlane.xlu0 %960
          %962 = vmax.xlane.f32.xlu0 %v906
          %v963 = vpop.xlane.xlu0 %962
          %964 = vmax.xlane.f32.xlu0 %v907
          %v965 = vpop.xlane.xlu0 %964
          %966 = vmax.xlane.f32.xlu0 %v908
          %v967 = vpop.xlane.xlu0 %966
          %968 = vmax.xlane.f32.xlu0 %v909
          %v969 = vpop.xlane.xlu0 %968
          %970 = vmax.xlane.f32.xlu0 %v910
          %v971 = vpop.xlane.xlu0 %970
          %972 = vmax.xlane.f32.xlu0 %v911
          %v973 = vpop.xlane.xlu0 %972
          %974 = vmax.xlane.f32.xlu0 %v912
          %v975 = vpop.xlane.xlu0 %974
          %976 = vmax.xlane.f32.xlu0 %v913
          %v977 = vpop.xlane.xlu0 %976
          %v978 = vmax.f32 %v914, %v947
          %v979 = vmax.f32 %v915, %v949
          %v980 = vmax.f32 %v916, %v951
          %v981 = vmax.f32 %v917, %v953
          %v982 = vmax.f32 %v918, %v955
          %v983 = vmax.f32 %v919, %v957
          %v984 = vmax.f32 %v920, %v959
          %v985 = vmax.f32 %v921, %v961
          %v986 = vmax.f32 %v922, %v963
          %v987 = vmax.f32 %v923, %v965
          %v988 = vmax.f32 %v924, %v967
          %v989 = vmax.f32 %v925, %v969
          %v990 = vmax.f32 %v926, %v971
          %v991 = vmax.f32 %v927, %v973
          %v992 = vmax.f32 %v928, %v975
          %v993 = vmax.f32 %v929, %v977
          %v994 = vsub.f32 %v914, %v978
          %v995 = vsub.f32 %v915, %v979
          %v996 = vsub.f32 %v916, %v980
          %v997 = vsub.f32 %v917, %v981
          %v998 = vsub.f32 %v918, %v982
          %v999 = vsub.f32 %v919, %v983
          %v1000 = vsub.f32 %v920, %v984
          %v1001 = vsub.f32 %v921, %v985
          %v1002 = vsub.f32 %v922, %v986
          %v1003 = vsub.f32 %v923, %v987
          %v1004 = vsub.f32 %v924, %v988
          %v1005 = vsub.f32 %v925, %v989
          %v1006 = vsub.f32 %v926, %v990
          %v1007 = vsub.f32 %v927, %v991
          %v1008 = vsub.f32 %v928, %v992
          %v1009 = vsub.f32 %v929, %v993
          %v1010 = vmul.f32 %v994, 1.442695
          %v1011 = vpow.pop %v1010
          %v1012 = vmul.f32 %v995, 1.442695
          %v1013 = vpow.pop %v1012
          %v1014 = vmul.f32 %v996, 1.442695
          %v1015 = vpow.pop %v1014
          %v1016 = vmul.f32 %v997, 1.442695
          %v1017 = vpow.pop %v1016
          %v1018 = vmul.f32 %v998, 1.442695
          %v1019 = vpow.pop %v1018
          %v1020 = vmul.f32 %v999, 1.442695
          %v1021 = vpow.pop %v1020
          %v1022 = vmul.f32 %v1000, 1.442695
          %v1023 = vpow.pop %v1022
          %v1024 = vmul.f32 %v1001, 1.442695
          %v1025 = vpow.pop %v1024
          %v1026 = vmul.f32 %v1002, 1.442695
          %v1027 = vpow.pop %v1026
          %v1028 = vmul.f32 %v1003, 1.442695
          %v1029 = vpow.pop %v1028
          %v1030 = vmul.f32 %v1004, 1.442695
          %v1031 = vpow.pop %v1030
          %v1032 = vmul.f32 %v1005, 1.442695
          %v1033 = vpow.pop %v1032
          %v1034 = vmul.f32 %v1006, 1.442695
          %v1035 = vpow.pop %v1034
          %v1036 = vmul.f32 %v1007, 1.442695
          %v1037 = vpow.pop %v1036
          %v1038 = vmul.f32 %v1008, 1.442695
          %v1039 = vpow.pop %v1038
          %v1040 = vmul.f32 %v1009, 1.442695
          %v1041 = vpow.pop %v1040
          %1043 = vset.pattern.permute.xlu0 0
          %1044 = vperm.xlu0 %1043, %v978
          %v1045 = vpop.permute.xlu0 %1044
          %1048 = vset.pattern.permute.xlu0 0
          %1049 = vperm.xlu0 %1048, %v979
          %v1050 = vpop.permute.xlu0 %1049
          %1053 = vset.pattern.permute.xlu0 0
          %1054 = vperm.xlu0 %1053, %v980
          %v1055 = vpop.permute.xlu0 %1054
          %1058 = vset.pattern.permute.xlu0 0
          %1059 = vperm.xlu0 %1058, %v981
          %v1060 = vpop.permute.xlu0 %1059
          %1063 = vset.pattern.permute.xlu0 0
          %1064 = vperm.xlu0 %1063, %v982
          %v1065 = vpop.permute.xlu0 %1064
          %1068 = vset.pattern.permute.xlu0 0
          %1069 = vperm.xlu0 %1068, %v983
          %v1070 = vpop.permute.xlu0 %1069
          %1073 = vset.pattern.permute.xlu0 0
          %1074 = vperm.xlu0 %1073, %v984
          %v1075 = vpop.permute.xlu0 %1074
          %1078 = vset.pattern.permute.xlu0 0
          %1079 = vperm.xlu0 %1078, %v985
          %v1080 = vpop.permute.xlu0 %1079
          %1083 = vset.pattern.permute.xlu0 0
          %1084 = vperm.xlu0 %1083, %v986
          %v1085 = vpop.permute.xlu0 %1084
          %1088 = vset.pattern.permute.xlu0 0
          %1089 = vperm.xlu0 %1088, %v987
          %v1090 = vpop.permute.xlu0 %1089
          %1093 = vset.pattern.permute.xlu0 0
          %1094 = vperm.xlu0 %1093, %v988
          %v1095 = vpop.permute.xlu0 %1094
          %1098 = vset.pattern.permute.xlu0 0
          %1099 = vperm.xlu0 %1098, %v989
          %v1100 = vpop.permute.xlu0 %1099
          %1103 = vset.pattern.permute.xlu0 0
          %1104 = vperm.xlu0 %1103, %v990
          %v1105 = vpop.permute.xlu0 %1104
          %1108 = vset.pattern.permute.xlu0 0
          %1109 = vperm.xlu0 %1108, %v991
          %v1110 = vpop.permute.xlu0 %1109
          %1113 = vset.pattern.permute.xlu0 0
          %1114 = vperm.xlu0 %1113, %v992
          %v1115 = vpop.permute.xlu0 %1114
          %1118 = vset.pattern.permute.xlu0 0
          %1119 = vperm.xlu0 %1118, %v993
          %v1120 = vpop.permute.xlu0 %1119
          %v1122 = vsub.f32 %v898, %v1045
          %v1123 = vsub.f32 %v899, %v1050
          %v1124 = vsub.f32 %v900, %v1055
          %v1125 = vsub.f32 %v901, %v1060
          %v1126 = vsub.f32 %v902, %v1065
          %v1127 = vsub.f32 %v903, %v1070
          %v1128 = vsub.f32 %v904, %v1075
          %v1129 = vsub.f32 %v905, %v1080
          %v1130 = vsub.f32 %v906, %v1085
          %v1131 = vsub.f32 %v907, %v1090
          %v1132 = vsub.f32 %v908, %v1095
          %v1133 = vsub.f32 %v909, %v1100
          %v1134 = vsub.f32 %v910, %v1105
          %v1135 = vsub.f32 %v911, %v1110
          %v1136 = vsub.f32 %v912, %v1115
          %v1137 = vsub.f32 %v913, %v1120
          %v1138 = vmul.f32 %v1122, 1.442695
          %v1139 = vpow.pop %v1138
          %v1140 = vmul.f32 %v1123, 1.442695
          %v1141 = vpow.pop %v1140
          %v1142 = vmul.f32 %v1124, 1.442695
          %v1143 = vpow.pop %v1142
          %v1144 = vmul.f32 %v1125, 1.442695
          %v1145 = vpow.pop %v1144
          %v1146 = vmul.f32 %v1126, 1.442695
          %v1147 = vpow.pop %v1146
          %v1148 = vmul.f32 %v1127, 1.442695
          %v1149 = vpow.pop %v1148
          %v1150 = vmul.f32 %v1128, 1.442695
          %v1151 = vpow.pop %v1150
          %v1152 = vmul.f32 %v1129, 1.442695
          %v1153 = vpow.pop %v1152
          %v1154 = vmul.f32 %v1130, 1.442695
          %v1155 = vpow.pop %v1154
          %v1156 = vmul.f32 %v1131, 1.442695
          %v1157 = vpow.pop %v1156
          %v1158 = vmul.f32 %v1132, 1.442695
          %v1159 = vpow.pop %v1158
          %v1160 = vmul.f32 %v1133, 1.442695
          %v1161 = vpow.pop %v1160
          %v1162 = vmul.f32 %v1134, 1.442695
          %v1163 = vpow.pop %v1162
          %v1164 = vmul.f32 %v1135, 1.442695
          %v1165 = vpow.pop %v1164
          %v1166 = vmul.f32 %v1136, 1.442695
          %v1167 = vpow.pop %v1166
          %v1168 = vmul.f32 %v1137, 1.442695
          %v1169 = vpow.pop %v1168
          %v1170 = vmul.f32 %v1011, %v930
          %v1171 = vmul.f32 %v1013, %v931
          %v1172 = vmul.f32 %v1015, %v932
          %v1173 = vmul.f32 %v1017, %v933
          %v1174 = vmul.f32 %v1019, %v934
          %v1175 = vmul.f32 %v1021, %v935
          %v1176 = vmul.f32 %v1023, %v936
          %v1177 = vmul.f32 %v1025, %v937
          %v1178 = vmul.f32 %v1027, %v938
          %v1179 = vmul.f32 %v1029, %v939
          %v1180 = vmul.f32 %v1031, %v940
          %v1181 = vmul.f32 %v1033, %v941
          %v1182 = vmul.f32 %v1035, %v942
          %v1183 = vmul.f32 %v1037, %v943
          %v1184 = vmul.f32 %v1039, %v944
          %v1185 = vmul.f32 %v1041, %v945
          %1186 = vadd.xlane.f32.xlu0 %v1139
          %v1187 = vpop.xlane.xlu0 %1186
          %1188 = vadd.xlane.f32.xlu0 %v1141
          %v1189 = vpop.xlane.xlu0 %1188
          %1190 = vadd.xlane.f32.xlu0 %v1143
          %v1191 = vpop.xlane.xlu0 %1190
          %1192 = vadd.xlane.f32.xlu0 %v1145
          %v1193 = vpop.xlane.xlu0 %1192
          %1194 = vadd.xlane.f32.xlu0 %v1147
          %v1195 = vpop.xlane.xlu0 %1194
          %1196 = vadd.xlane.f32.xlu0 %v1149
          %v1197 = vpop.xlane.xlu0 %1196
          %1198 = vadd.xlane.f32.xlu0 %v1151
          %v1199 = vpop.xlane.xlu0 %1198
          %1200 = vadd.xlane.f32.xlu0 %v1153
          %v1201 = vpop.xlane.xlu0 %1200
          %1202 = vadd.xlane.f32.xlu0 %v1155
          %v1203 = vpop.xlane.xlu0 %1202
          %1204 = vadd.xlane.f32.xlu0 %v1157
          %v1205 = vpop.xlane.xlu0 %1204
          %1206 = vadd.xlane.f32.xlu0 %v1159
          %v1207 = vpop.xlane.xlu0 %1206
          %1208 = vadd.xlane.f32.xlu0 %v1161
          %v1209 = vpop.xlane.xlu0 %1208
          %1210 = vadd.xlane.f32.xlu0 %v1163
          %v1211 = vpop.xlane.xlu0 %1210
          %1212 = vadd.xlane.f32.xlu0 %v1165
          %v1213 = vpop.xlane.xlu0 %1212
          %1214 = vadd.xlane.f32.xlu0 %v1167
          %v1215 = vpop.xlane.xlu0 %1214
          %1216 = vadd.xlane.f32.xlu0 %v1169
          %v1217 = vpop.xlane.xlu0 %1216
          %v1218 = vadd.f32 %v1170, %v1187
          %v1219 = vadd.f32 %v1171, %v1189
          %v1220 = vadd.f32 %v1172, %v1191
          %v1221 = vadd.f32 %v1173, %v1193
          %v1222 = vadd.f32 %v1174, %v1195
          %v1223 = vadd.f32 %v1175, %v1197
          %v1224 = vadd.f32 %v1176, %v1199
          %v1225 = vadd.f32 %v1177, %v1201
          %v1226 = vadd.f32 %v1178, %v1203
          %v1227 = vadd.f32 %v1179, %v1205
          %v1228 = vadd.f32 %v1180, %v1207
          %v1229 = vadd.f32 %v1181, %v1209
          %v1230 = vadd.f32 %v1182, %v1211
          %v1231 = vadd.f32 %v1183, %v1213
          %v1232 = vadd.f32 %v1184, %v1215
          %v1233 = vadd.f32 %v1185, %v1217
          %vm1234 = vcmask 7168
          %1235 = vst.msk [vmem:[#allocation3] sm:$0xff] %vm1234, %v1218
          %1236 = vst.msk [vmem:[#allocation3 + $0x8] sm:$0xff] %vm1234, %v1219
          %1237 = vst.msk [vmem:[#allocation3 + $0x10] sm:$0xff] %vm1234, %v1220
          %1238 = vst.msk [vmem:[#allocation3 + $0x18] sm:$0xff] %vm1234, %v1221
          %1239 = vst.msk [vmem:[#allocation3 + $0x20] sm:$0xff] %vm1234, %v1222
          %1240 = vst.msk [vmem:[#allocation3 + $0x28] sm:$0xff] %vm1234, %v1223
          %1241 = vst.msk [vmem:[#allocation3 + $0x30] sm:$0xff] %vm1234, %v1224
          %1242 = vst.msk [vmem:[#allocation3 + $0x38] sm:$0xff] %vm1234, %v1225
          %1243 = vst.msk [vmem:[#allocation3 + $0x40] sm:$0xff] %vm1234, %v1226
          %1244 = vst.msk [vmem:[#allocation3 + $0x48] sm:$0xff] %vm1234, %v1227
          %1245 = vst.msk [vmem:[#allocation3 + $0x50] sm:$0xff] %vm1234, %v1228
          %1246 = vst.msk [vmem:[#allocation3 + $0x58] sm:$0xff] %vm1234, %v1229
          %1247 = vst.msk [vmem:[#allocation3 + $0x60] sm:$0xff] %vm1234, %v1230
          %1248 = vst.msk [vmem:[#allocation3 + $0x68] sm:$0xff] %vm1234, %v1231
          %1249 = vst.msk [vmem:[#allocation3 + $0x70] sm:$0xff] %vm1234, %v1232
          %1250 = vst.msk [vmem:[#allocation3 + $0x78] sm:$0xff] %vm1234, %v1233
          %v1251 = vld [vmem:[#allocation4] sm:$0xff]
          %v1252 = vld [vmem:[#allocation4 + $0x8] sm:$0xff]
          %v1253 = vld [vmem:[#allocation4 + $0x10] sm:$0xff]
          %v1254 = vld [vmem:[#allocation4 + $0x18] sm:$0xff]
          %v1255 = vld [vmem:[#allocation4 + $0x20] sm:$0xff]
          %v1256 = vld [vmem:[#allocation4 + $0x28] sm:$0xff]
          %v1257 = vld [vmem:[#allocation4 + $0x30] sm:$0xff]
          %v1258 = vld [vmem:[#allocation4 + $0x38] sm:$0xff]
          %v1259 = vld [vmem:[#allocation4 + $0x40] sm:$0xff]
          %v1260 = vld [vmem:[#allocation4 + $0x48] sm:$0xff]
          %v1261 = vld [vmem:[#allocation4 + $0x50] sm:$0xff]
          %v1262 = vld [vmem:[#allocation4 + $0x58] sm:$0xff]
          %v1263 = vld [vmem:[#allocation4 + $0x60] sm:$0xff]
          %v1264 = vld [vmem:[#allocation4 + $0x68] sm:$0xff]
          %v1265 = vld [vmem:[#allocation4 + $0x70] sm:$0xff]
          %v1266 = vld [vmem:[#allocation4 + $0x78] sm:$0xff]
          %1268 = vset.pattern.permute.xlu0 0
          %1269 = vperm.xlu0 %1268, %v1011
          %v1270 = vpop.permute.xlu0 %1269
          %1273 = vset.pattern.permute.xlu0 0
          %1274 = vperm.xlu0 %1273, %v1013
          %v1275 = vpop.permute.xlu0 %1274
          %1278 = vset.pattern.permute.xlu0 0
          %1279 = vperm.xlu0 %1278, %v1015
          %v1280 = vpop.permute.xlu0 %1279
          %1283 = vset.pattern.permute.xlu0 0
          %1284 = vperm.xlu0 %1283, %v1017
          %v1285 = vpop.permute.xlu0 %1284
          %1288 = vset.pattern.permute.xlu0 0
          %1289 = vperm.xlu0 %1288, %v1019
          %v1290 = vpop.permute.xlu0 %1289
          %1293 = vset.pattern.permute.xlu0 0
          %1294 = vperm.xlu0 %1293, %v1021
          %v1295 = vpop.permute.xlu0 %1294
          %1298 = vset.pattern.permute.xlu0 0
          %1299 = vperm.xlu0 %1298, %v1023
          %v1300 = vpop.permute.xlu0 %1299
          %1303 = vset.pattern.permute.xlu0 0
          %1304 = vperm.xlu0 %1303, %v1025
          %v1305 = vpop.permute.xlu0 %1304
          %1308 = vset.pattern.permute.xlu0 0
          %1309 = vperm.xlu0 %1308, %v1027
          %v1310 = vpop.permute.xlu0 %1309
          %1313 = vset.pattern.permute.xlu0 0
          %1314 = vperm.xlu0 %1313, %v1029
          %v1315 = vpop.permute.xlu0 %1314
          %1318 = vset.pattern.permute.xlu0 0
          %1319 = vperm.xlu0 %1318, %v1031
          %v1320 = vpop.permute.xlu0 %1319
          %1323 = vset.pattern.permute.xlu0 0
          %1324 = vperm.xlu0 %1323, %v1033
          %v1325 = vpop.permute.xlu0 %1324
          %1328 = vset.pattern.permute.xlu0 0
          %1329 = vperm.xlu0 %1328, %v1035
          %v1330 = vpop.permute.xlu0 %1329
          %1333 = vset.pattern.permute.xlu0 0
          %1334 = vperm.xlu0 %1333, %v1037
          %v1335 = vpop.permute.xlu0 %1334
          %1338 = vset.pattern.permute.xlu0 0
          %1339 = vperm.xlu0 %1338, %v1039
          %v1340 = vpop.permute.xlu0 %1339
          %1343 = vset.pattern.permute.xlu0 0
          %1344 = vperm.xlu0 %1343, %v1041
          %v1345 = vpop.permute.xlu0 %1344
          %v1347 = vmul.f32 %v1270, %v1251
          %v1348 = vmul.f32 %v1275, %v1252
          %v1349 = vmul.f32 %v1280, %v1253
          %v1350 = vmul.f32 %v1285, %v1254
          %v1351 = vmul.f32 %v1290, %v1255
          %v1352 = vmul.f32 %v1295, %v1256
          %v1353 = vmul.f32 %v1300, %v1257
          %v1354 = vmul.f32 %v1305, %v1258
          %v1355 = vmul.f32 %v1310, %v1259
          %v1356 = vmul.f32 %v1315, %v1260
          %v1357 = vmul.f32 %v1320, %v1261
          %v1358 = vmul.f32 %v1325, %v1262
          %v1359 = vmul.f32 %v1330, %v1263
          %v1360 = vmul.f32 %v1335, %v1264
          %v1361 = vmul.f32 %v1340, %v1265
          %v1362 = vmul.f32 %v1345, %v1266
          %v1363 = vpack.c.bf16 %v1141, %v1139
          %v1364 = vpack.c.bf16 %v1145, %v1143
          %v1365 = vpack.c.bf16 %v1149, %v1147
          %v1366 = vpack.c.bf16 %v1153, %v1151
          %v1367 = vpack.c.bf16 %v1157, %v1155
          %v1368 = vpack.c.bf16 %v1161, %v1159
          %v1369 = vpack.c.bf16 %v1165, %v1163
          %v1370 = vpack.c.bf16 %v1169, %v1167
          %1371 = vmatpush.bf16.msra.mxu0 %v783
          %1372 = vmatpush.bf16.msra.mxu0 %v782
          %1373 = vmatpush.bf16.msra.mxu0 %v781
          %1374 = vmatpush.bf16.msra.mxu0 %v780
          %1375 = vmatpush.bf16.msra.mxu0 %v779
          %1376 = vmatpush.bf16.msra.mxu0 %v778
          %1377 = vmatpush.bf16.msra.mxu0 %v777
          %1378 = vmatpush.bf16.msra.mxu0 %v776
          %1379 = vmatmul.bf16.gmra.mxu0 %v1363
          %v1380 = vpop.f32.mrf.mxu0
          %v1381 = vadd.f32 0.0, %v1380
          %v1382 = vpop.f32.mrf.mxu0
          %v1383 = vadd.f32 0.0, %v1382
          %1384 = vmatmul.bf16.gmra.mxu0 %v1364
          %v1385 = vpop.f32.mrf.mxu0
          %v1386 = vadd.f32 0.0, %v1385
          %v1387 = vpop.f32.mrf.mxu0
          %v1388 = vadd.f32 0.0, %v1387
          %1389 = vmatmul.bf16.gmra.mxu0 %v1365
          %v1390 = vpop.f32.mrf.mxu0
          %v1391 = vadd.f32 0.0, %v1390
          %v1392 = vpop.f32.mrf.mxu0
          %v1393 = vadd.f32 0.0, %v1392
          %1394 = vmatmul.bf16.gmra.mxu0 %v1366
          %v1395 = vpop.f32.mrf.mxu0
          %v1396 = vadd.f32 0.0, %v1395
          %v1397 = vpop.f32.mrf.mxu0
          %v1398 = vadd.f32 0.0, %v1397
          %1399 = vmatmul.bf16.gmra.mxu0 %v1367
          %v1400 = vpop.f32.mrf.mxu0
          %v1401 = vadd.f32 0.0, %v1400
          %v1402 = vpop.f32.mrf.mxu0
          %v1403 = vadd.f32 0.0, %v1402
          %1404 = vmatmul.bf16.gmra.mxu0 %v1368
          %v1405 = vpop.f32.mrf.mxu0
          %v1406 = vadd.f32 0.0, %v1405
          %v1407 = vpop.f32.mrf.mxu0
          %v1408 = vadd.f32 0.0, %v1407
          %1409 = vmatmul.bf16.gmra.mxu0 %v1369
          %v1410 = vpop.f32.mrf.mxu0
          %v1411 = vadd.f32 0.0, %v1410
          %v1412 = vpop.f32.mrf.mxu0
          %v1413 = vadd.f32 0.0, %v1412
          %1414 = vmatmul.bf16.gmra.mxu0 %v1370
          %v1415 = vpop.f32.mrf.mxu0
          %v1416 = vadd.f32 0.0, %v1415
          %v1417 = vpop.f32.mrf.mxu0
          %v1418 = vadd.f32 0.0, %v1417
          %1419 = vdwg.mxu0
          %v1420 = vadd.f32 %v1347, %v1381
          %v1421 = vadd.f32 %v1348, %v1383
          %v1422 = vadd.f32 %v1349, %v1386
          %v1423 = vadd.f32 %v1350, %v1388
          %v1424 = vadd.f32 %v1351, %v1391
          %v1425 = vadd.f32 %v1352, %v1393
          %v1426 = vadd.f32 %v1353, %v1396
          %v1427 = vadd.f32 %v1354, %v1398
          %v1428 = vadd.f32 %v1355, %v1401
          %v1429 = vadd.f32 %v1356, %v1403
          %v1430 = vadd.f32 %v1357, %v1406
          %v1431 = vadd.f32 %v1358, %v1408
          %v1432 = vadd.f32 %v1359, %v1411
          %v1433 = vadd.f32 %v1360, %v1413
          %v1434 = vadd.f32 %v1361, %v1416
          %v1435 = vadd.f32 %v1362, %v1418
          %1436 = vst.msk [vmem:[#allocation4] sm:$0xff] %vm784, %v1420
          %1437 = vst.msk [vmem:[#allocation4 + $0x8] sm:$0xff] %vm784, %v1421
          %1438 = vst.msk [vmem:[#allocation4 + $0x10] sm:$0xff] %vm784, %v1422
          %1439 = vst.msk [vmem:[#allocation4 + $0x18] sm:$0xff] %vm784, %v1423
          %1440 = vst.msk [vmem:[#allocation4 + $0x20] sm:$0xff] %vm784, %v1424
          %1441 = vst.msk [vmem:[#allocation4 + $0x28] sm:$0xff] %vm784, %v1425
          %1442 = vst.msk [vmem:[#allocation4 + $0x30] sm:$0xff] %vm784, %v1426
          %1443 = vst.msk [vmem:[#allocation4 + $0x38] sm:$0xff] %vm784, %v1427
          %1444 = vst.msk [vmem:[#allocation4 + $0x40] sm:$0xff] %vm784, %v1428
          %1445 = vst.msk [vmem:[#allocation4 + $0x48] sm:$0xff] %vm784, %v1429
          %1446 = vst.msk [vmem:[#allocation4 + $0x50] sm:$0xff] %vm784, %v1430
          %1447 = vst.msk [vmem:[#allocation4 + $0x58] sm:$0xff] %vm784, %v1431
          %1448 = vst.msk [vmem:[#allocation4 + $0x60] sm:$0xff] %vm784, %v1432
          %1449 = vst.msk [vmem:[#allocation4 + $0x68] sm:$0xff] %vm784, %v1433
          %1450 = vst.msk [vmem:[#allocation4 + $0x70] sm:$0xff] %vm784, %v1434
          %1451 = vst.msk [vmem:[#allocation4 + $0x78] sm:$0xff] %vm784, %v1435
          %1452 = vst.msk [vmem:[#allocation2] sm:$0xff] %vm1234, %v978
          %1453 = vst.msk [vmem:[#allocation2 + $0x8] sm:$0xff] %vm1234, %v979
          %1454 = vst.msk [vmem:[#allocation2 + $0x10] sm:$0xff] %vm1234, %v980
          %1455 = vst.msk [vmem:[#allocation2 + $0x18] sm:$0xff] %vm1234, %v981
          %1456 = vst.msk [vmem:[#allocation2 + $0x20] sm:$0xff] %vm1234, %v982
          %1457 = vst.msk [vmem:[#allocation2 + $0x28] sm:$0xff] %vm1234, %v983
          %1458 = vst.msk [vmem:[#allocation2 + $0x30] sm:$0xff] %vm1234, %v984
          %1459 = vst.msk [vmem:[#allocation2 + $0x38] sm:$0xff] %vm1234, %v985
          %1460 = vst.msk [vmem:[#allocation2 + $0x40] sm:$0xff] %vm1234, %v986
          %1461 = vst.msk [vmem:[#allocation2 + $0x48] sm:$0xff] %vm1234, %v987
          %1462 = vst.msk [vmem:[#allocation2 + $0x50] sm:$0xff] %vm1234, %v988
          %1463 = vst.msk [vmem:[#allocation2 + $0x58] sm:$0xff] %vm1234, %v989
          %1464 = vst.msk [vmem:[#allocation2 + $0x60] sm:$0xff] %vm1234, %v990
          %1465 = vst.msk [vmem:[#allocation2 + $0x68] sm:$0xff] %vm1234, %v991
          %1466 = vst.msk [vmem:[#allocation2 + $0x70] sm:$0xff] %vm1234, %v992
          %1467 = vst.msk [vmem:[#allocation2 + $0x78] sm:$0xff] %vm1234, %v993
          %1476 = vrot.lane.b32.xlu0 %v760, 64
          %v1477 = vpop.permute.xlu0 %1476
          %1478 = vrot.lane.b32.xlu0 %v761, 64
          %v1479 = vpop.permute.xlu0 %1478
          %1480 = vrot.lane.b32.xlu0 %v762, 64
          %v1481 = vpop.permute.xlu0 %1480
          %1482 = vrot.lane.b32.xlu0 %v763, 64
          %v1483 = vpop.permute.xlu0 %1482
          %1484 = vrot.lane.b32.xlu0 %v764, 64
          %v1485 = vpop.permute.xlu0 %1484
          %1486 = vrot.lane.b32.xlu0 %v765, 64
          %v1487 = vpop.permute.xlu0 %1486
          %1488 = vrot.lane.b32.xlu0 %v766, 64
          %v1489 = vpop.permute.xlu0 %1488
          %1490 = vrot.lane.b32.xlu0 %v767, 64
          %v1491 = vpop.permute.xlu0 %1490
          %1500 = vrot.lane.b32.xlu0 %v768, 64
          %v1501 = vpop.permute.xlu0 %1500
          %1502 = vrot.lane.b32.xlu0 %v769, 64
          %v1503 = vpop.permute.xlu0 %1502
          %1504 = vrot.lane.b32.xlu0 %v770, 64
          %v1505 = vpop.permute.xlu0 %1504
          %1506 = vrot.lane.b32.xlu0 %v771, 64
          %v1507 = vpop.permute.xlu0 %1506
          %1508 = vrot.lane.b32.xlu0 %v772, 64
          %v1509 = vpop.permute.xlu0 %1508
          %1510 = vrot.lane.b32.xlu0 %v773, 64
          %v1511 = vpop.permute.xlu0 %1510
          %1512 = vrot.lane.b32.xlu0 %v774, 64
          %v1513 = vpop.permute.xlu0 %1512
          %1514 = vrot.lane.b32.xlu0 %v775, 64
          %v1515 = vpop.permute.xlu0 %1514
          %v1517 = vsel %vm784, %v1477, 0
          %v1520 = vsel %vm784, %v1479, 0
          %v1523 = vsel %vm784, %v1481, 0
          %v1526 = vsel %vm784, %v1483, 0
          %v1529 = vsel %vm784, %v1485, 0
          %v1532 = vsel %vm784, %v1487, 0
          %v1535 = vsel %vm784, %v1489, 0
          %v1538 = vsel %vm784, %v1491, 0
          %v1541 = vsel %vm784, %v1501, 0
          %v1544 = vsel %vm784, %v1503, 0
          %v1547 = vsel %vm784, %v1505, 0
          %v1550 = vsel %vm784, %v1507, 0
          %v1553 = vsel %vm784, %v1509, 0
          %v1556 = vsel %vm784, %v1511, 0
          %v1559 = vsel %vm784, %v1513, 0
          %v1562 = vsel %vm784, %v1515, 0
          %1564 = vmatpush.bf16.xpose.msra.mxu0 %v1562
          %1565 = vmatpush.bf16.xpose.msra.mxu0 %v1559
          %1566 = vmatpush.bf16.xpose.msra.mxu0 %v1556
          %1567 = vmatpush.bf16.xpose.msra.mxu0 %v1553
          %1568 = vmatpush.bf16.xpose.msra.mxu0 %v1550
          %1569 = vmatpush.bf16.xpose.msra.mxu0 %v1547
          %1570 = vmatpush.bf16.xpose.msra.mxu0 %v1544
          %1571 = vmatpush.bf16.xpose.msra.mxu0 %v1541
          %1572 = vmatmul.bf16.gmra.mxu0 %v1517
          %v1573 = vpop.f32.mrf.mxu0
          %v1574 = vadd.f32 0.0, %v1573
          %v1575 = vpop.f32.mrf.mxu0
          %v1576 = vadd.f32 0.0, %v1575
          %1577 = vmatmul.bf16.gmra.mxu0 %v1520
          %v1578 = vpop.f32.mrf.mxu0
          %v1579 = vadd.f32 0.0, %v1578
          %v1580 = vpop.f32.mrf.mxu0
          %v1581 = vadd.f32 0.0, %v1580
          %1582 = vmatmul.bf16.gmra.mxu0 %v1523
          %v1583 = vpop.f32.mrf.mxu0
          %v1584 = vadd.f32 0.0, %v1583
          %v1585 = vpop.f32.mrf.mxu0
          %v1586 = vadd.f32 0.0, %v1585
          %1587 = vmatmul.bf16.gmra.mxu0 %v1526
          %v1588 = vpop.f32.mrf.mxu0
          %v1589 = vadd.f32 0.0, %v1588
          %v1590 = vpop.f32.mrf.mxu0
          %v1591 = vadd.f32 0.0, %v1590
          %1592 = vmatmul.bf16.gmra.mxu0 %v1529
          %v1593 = vpop.f32.mrf.mxu0
          %v1594 = vadd.f32 0.0, %v1593
          %v1595 = vpop.f32.mrf.mxu0
          %v1596 = vadd.f32 0.0, %v1595
          %1597 = vmatmul.bf16.gmra.mxu0 %v1532
          %v1598 = vpop.f32.mrf.mxu0
          %v1599 = vadd.f32 0.0, %v1598
          %v1600 = vpop.f32.mrf.mxu0
          %v1601 = vadd.f32 0.0, %v1600
          %1602 = vmatmul.bf16.gmra.mxu0 %v1535
          %v1603 = vpop.f32.mrf.mxu0
          %v1604 = vadd.f32 0.0, %v1603
          %v1605 = vpop.f32.mrf.mxu0
          %v1606 = vadd.f32 0.0, %v1605
          %1607 = vmatmul.bf16.gmra.mxu0 %v1538
          %v1608 = vpop.f32.mrf.mxu0
          %v1609 = vadd.f32 0.0, %v1608
          %v1610 = vpop.f32.mrf.mxu0
          %v1611 = vadd.f32 0.0, %v1610
          %1612 = vdwg.mxu0
          %v1613 = vmul.f32 %v1574, 0.125
          %v1614 = vmul.f32 %v1576, 0.125
          %v1615 = vmul.f32 %v1579, 0.125
          %v1616 = vmul.f32 %v1581, 0.125
          %v1617 = vmul.f32 %v1584, 0.125
          %v1618 = vmul.f32 %v1586, 0.125
          %v1619 = vmul.f32 %v1589, 0.125
          %v1620 = vmul.f32 %v1591, 0.125
          %v1621 = vmul.f32 %v1594, 0.125
          %v1622 = vmul.f32 %v1596, 0.125
          %v1623 = vmul.f32 %v1599, 0.125
          %v1624 = vmul.f32 %v1601, 0.125
          %v1625 = vmul.f32 %v1604, 0.125
          %v1626 = vmul.f32 %v1606, 0.125
          %v1627 = vmul.f32 %v1609, 0.125
          %v1628 = vmul.f32 %v1611, 0.125
          %v1629 = vsel %vm744, %v1613, -1e+30
          %v1630 = vsel %vm745, %v1614, -1e+30
          %v1631 = vsel %vm746, %v1615, -1e+30
          %v1632 = vsel %vm747, %v1616, -1e+30
          %v1633 = vsel %vm748, %v1617, -1e+30
          %v1634 = vsel %vm749, %v1618, -1e+30
          %v1635 = vsel %vm750, %v1619, -1e+30
          %v1636 = vsel %vm751, %v1620, -1e+30
          %v1637 = vsel %vm752, %v1621, -1e+30
          %v1638 = vsel %vm753, %v1622, -1e+30
          %v1639 = vsel %vm754, %v1623, -1e+30
          %v1640 = vsel %vm755, %v1624, -1e+30
          %v1641 = vsel %vm756, %v1625, -1e+30
          %v1642 = vsel %vm757, %v1626, -1e+30
          %v1643 = vsel %vm758, %v1627, -1e+30
          %v1644 = vsel %vm759, %v1628, -1e+30
          %s1645 = scalar_lea.vmem [#allocation2], 128
          %v1646 = vld [vmem:[%s1645] sm:$0xff]
          %v1647 = vld [vmem:[%s1645 + $0x8] sm:$0xff]
          %v1648 = vld [vmem:[%s1645 + $0x10] sm:$0xff]
          %v1649 = vld [vmem:[%s1645 + $0x18] sm:$0xff]
          %v1650 = vld [vmem:[%s1645 + $0x20] sm:$0xff]
          %v1651 = vld [vmem:[%s1645 + $0x28] sm:$0xff]
          %v1652 = vld [vmem:[%s1645 + $0x30] sm:$0xff]
          %v1653 = vld [vmem:[%s1645 + $0x38] sm:$0xff]
          %v1654 = vld [vmem:[%s1645 + $0x40] sm:$0xff]
          %v1655 = vld [vmem:[%s1645 + $0x48] sm:$0xff]
          %v1656 = vld [vmem:[%s1645 + $0x50] sm:$0xff]
          %v1657 = vld [vmem:[%s1645 + $0x58] sm:$0xff]
          %v1658 = vld [vmem:[%s1645 + $0x60] sm:$0xff]
          %v1659 = vld [vmem:[%s1645 + $0x68] sm:$0xff]
          %v1660 = vld [vmem:[%s1645 + $0x70] sm:$0xff]
          %v1661 = vld [vmem:[%s1645 + $0x78] sm:$0xff]
          %s1662 = scalar_lea.vmem [#allocation3], 128
          %v1663 = vld [vmem:[%s1662] sm:$0xff]
          %v1664 = vld [vmem:[%s1662 + $0x8] sm:$0xff]
          %v1665 = vld [vmem:[%s1662 + $0x10] sm:$0xff]
          %v1666 = vld [vmem:[%s1662 + $0x18] sm:$0xff]
          %v1667 = vld [vmem:[%s1662 + $0x20] sm:$0xff]
          %v1668 = vld [vmem:[%s1662 + $0x28] sm:$0xff]
          %v1669 = vld [vmem:[%s1662 + $0x30] sm:$0xff]
          %v1670 = vld [vmem:[%s1662 + $0x38] sm:$0xff]
          %v1671 = vld [vmem:[%s1662 + $0x40] sm:$0xff]
          %v1672 = vld [vmem:[%s1662 + $0x48] sm:$0xff]
          %v1673 = vld [vmem:[%s1662 + $0x50] sm:$0xff]
          %v1674 = vld [vmem:[%s1662 + $0x58] sm:$0xff]
          %v1675 = vld [vmem:[%s1662 + $0x60] sm:$0xff]
          %v1676 = vld [vmem:[%s1662 + $0x68] sm:$0xff]
          %v1677 = vld [vmem:[%s1662 + $0x70] sm:$0xff]
          %v1678 = vld [vmem:[%s1662 + $0x78] sm:$0xff]
          %1679 = vmax.xlane.f32.xlu0 %v1629
          %v1680 = vpop.xlane.xlu0 %1679
          %1681 = vmax.xlane.f32.xlu0 %v1630
          %v1682 = vpop.xlane.xlu0 %1681
          %1683 = vmax.xlane.f32.xlu0 %v1631
          %v1684 = vpop.xlane.xlu0 %1683
          %1685 = vmax.xlane.f32.xlu0 %v1632
          %v1686 = vpop.xlane.xlu0 %1685
          %1687 = vmax.xlane.f32.xlu0 %v1633
          %v1688 = vpop.xlane.xlu0 %1687
          %1689 = vmax.xlane.f32.xlu0 %v1634
          %v1690 = vpop.xlane.xlu0 %1689
          %1691 = vmax.xlane.f32.xlu0 %v1635
          %v1692 = vpop.xlane.xlu0 %1691
          %1693 = vmax.xlane.f32.xlu0 %v1636
          %v1694 = vpop.xlane.xlu0 %1693
          %1695 = vmax.xlane.f32.xlu0 %v1637
          %v1696 = vpop.xlane.xlu0 %1695
          %1697 = vmax.xlane.f32.xlu0 %v1638
          %v1698 = vpop.xlane.xlu0 %1697
          %1699 = vmax.xlane.f32.xlu0 %v1639
          %v1700 = vpop.xlane.xlu0 %1699
          %1701 = vmax.xlane.f32.xlu0 %v1640
          %v1702 = vpop.xlane.xlu0 %1701
          %1703 = vmax.xlane.f32.xlu0 %v1641
          %v1704 = vpop.xlane.xlu0 %1703
          %1705 = vmax.xlane.f32.xlu0 %v1642
          %v1706 = vpop.xlane.xlu0 %1705
          %1707 = vmax.xlane.f32.xlu0 %v1643
          %v1708 = vpop.xlane.xlu0 %1707
          %1709 = vmax.xlane.f32.xlu0 %v1644
          %v1710 = vpop.xlane.xlu0 %1709
          %v1711 = vmax.f32 %v1646, %v1680
          %v1712 = vmax.f32 %v1647, %v1682
          %v1713 = vmax.f32 %v1648, %v1684
          %v1714 = vmax.f32 %v1649, %v1686
          %v1715 = vmax.f32 %v1650, %v1688
          %v1716 = vmax.f32 %v1651, %v1690
          %v1717 = vmax.f32 %v1652, %v1692
          %v1718 = vmax.f32 %v1653, %v1694
          %v1719 = vmax.f32 %v1654, %v1696
          %v1720 = vmax.f32 %v1655, %v1698
          %v1721 = vmax.f32 %v1656, %v1700
          %v1722 = vmax.f32 %v1657, %v1702
          %v1723 = vmax.f32 %v1658, %v1704
          %v1724 = vmax.f32 %v1659, %v1706
          %v1725 = vmax.f32 %v1660, %v1708
          %v1726 = vmax.f32 %v1661, %v1710
          %v1727 = vsub.f32 %v1646, %v1711
          %v1728 = vsub.f32 %v1647, %v1712
          %v1729 = vsub.f32 %v1648, %v1713
          %v1730 = vsub.f32 %v1649, %v1714
          %v1731 = vsub.f32 %v1650, %v1715
          %v1732 = vsub.f32 %v1651, %v1716
          %v1733 = vsub.f32 %v1652, %v1717
          %v1734 = vsub.f32 %v1653, %v1718
          %v1735 = vsub.f32 %v1654, %v1719
          %v1736 = vsub.f32 %v1655, %v1720
          %v1737 = vsub.f32 %v1656, %v1721
          %v1738 = vsub.f32 %v1657, %v1722
          %v1739 = vsub.f32 %v1658, %v1723
          %v1740 = vsub.f32 %v1659, %v1724
          %v1741 = vsub.f32 %v1660, %v1725
          %v1742 = vsub.f32 %v1661, %v1726
          %v1743 = vmul.f32 %v1727, 1.442695
          %v1744 = vpow.pop %v1743
          %v1745 = vmul.f32 %v1728, 1.442695
          %v1746 = vpow.pop %v1745
          %v1747 = vmul.f32 %v1729, 1.442695
          %v1748 = vpow.pop %v1747
          %v1749 = vmul.f32 %v1730, 1.442695
          %v1750 = vpow.pop %v1749
          %v1751 = vmul.f32 %v1731, 1.442695
          %v1752 = vpow.pop %v1751
          %v1753 = vmul.f32 %v1732, 1.442695
          %v1754 = vpow.pop %v1753
          %v1755 = vmul.f32 %v1733, 1.442695
          %v1756 = vpow.pop %v1755
          %v1757 = vmul.f32 %v1734, 1.442695
          %v1758 = vpow.pop %v1757
          %v1759 = vmul.f32 %v1735, 1.442695
          %v1760 = vpow.pop %v1759
          %v1761 = vmul.f32 %v1736, 1.442695
          %v1762 = vpow.pop %v1761
          %v1763 = vmul.f32 %v1737, 1.442695
          %v1764 = vpow.pop %v1763
          %v1765 = vmul.f32 %v1738, 1.442695
          %v1766 = vpow.pop %v1765
          %v1767 = vmul.f32 %v1739, 1.442695
          %v1768 = vpow.pop %v1767
          %v1769 = vmul.f32 %v1740, 1.442695
          %v1770 = vpow.pop %v1769
          %v1771 = vmul.f32 %v1741, 1.442695
          %v1772 = vpow.pop %v1771
          %v1773 = vmul.f32 %v1742, 1.442695
          %v1774 = vpow.pop %v1773
          %1776 = vset.pattern.permute.xlu0 0
          %1777 = vperm.xlu0 %1776, %v1711
          %v1778 = vpop.permute.xlu0 %1777
          %1781 = vset.pattern.permute.xlu0 0
          %1782 = vperm.xlu0 %1781, %v1712
          %v1783 = vpop.permute.xlu0 %1782
          %1786 = vset.pattern.permute.xlu0 0
          %1787 = vperm.xlu0 %1786, %v1713
          %v1788 = vpop.permute.xlu0 %1787
          %1791 = vset.pattern.permute.xlu0 0
          %1792 = vperm.xlu0 %1791, %v1714
          %v1793 = vpop.permute.xlu0 %1792
          %1796 = vset.pattern.permute.xlu0 0
          %1797 = vperm.xlu0 %1796, %v1715
          %v1798 = vpop.permute.xlu0 %1797
          %1801 = vset.pattern.permute.xlu0 0
          %1802 = vperm.xlu0 %1801, %v1716
          %v1803 = vpop.permute.xlu0 %1802
          %1806 = vset.pattern.permute.xlu0 0
          %1807 = vperm.xlu0 %1806, %v1717
          %v1808 = vpop.permute.xlu0 %1807
          %1811 = vset.pattern.permute.xlu0 0
          %1812 = vperm.xlu0 %1811, %v1718
          %v1813 = vpop.permute.xlu0 %1812
          %1816 = vset.pattern.permute.xlu0 0
          %1817 = vperm.xlu0 %1816, %v1719
          %v1818 = vpop.permute.xlu0 %1817
          %1821 = vset.pattern.permute.xlu0 0
          %1822 = vperm.xlu0 %1821, %v1720
          %v1823 = vpop.permute.xlu0 %1822
          %1826 = vset.pattern.permute.xlu0 0
          %1827 = vperm.xlu0 %1826, %v1721
          %v1828 = vpop.permute.xlu0 %1827
          %1831 = vset.pattern.permute.xlu0 0
          %1832 = vperm.xlu0 %1831, %v1722
          %v1833 = vpop.permute.xlu0 %1832
          %1836 = vset.pattern.permute.xlu0 0
          %1837 = vperm.xlu0 %1836, %v1723
          %v1838 = vpop.permute.xlu0 %1837
          %1841 = vset.pattern.permute.xlu0 0
          %1842 = vperm.xlu0 %1841, %v1724
          %v1843 = vpop.permute.xlu0 %1842
          %1846 = vset.pattern.permute.xlu0 0
          %1847 = vperm.xlu0 %1846, %v1725
          %v1848 = vpop.permute.xlu0 %1847
          %1851 = vset.pattern.permute.xlu0 0
          %1852 = vperm.xlu0 %1851, %v1726
          %v1853 = vpop.permute.xlu0 %1852
          %v1855 = vsub.f32 %v1629, %v1778
          %v1856 = vsub.f32 %v1630, %v1783
          %v1857 = vsub.f32 %v1631, %v1788
          %v1858 = vsub.f32 %v1632, %v1793
          %v1859 = vsub.f32 %v1633, %v1798
          %v1860 = vsub.f32 %v1634, %v1803
          %v1861 = vsub.f32 %v1635, %v1808
          %v1862 = vsub.f32 %v1636, %v1813
          %v1863 = vsub.f32 %v1637, %v1818
          %v1864 = vsub.f32 %v1638, %v1823
          %v1865 = vsub.f32 %v1639, %v1828
          %v1866 = vsub.f32 %v1640, %v1833
          %v1867 = vsub.f32 %v1641, %v1838
          %v1868 = vsub.f32 %v1642, %v1843
          %v1869 = vsub.f32 %v1643, %v1848
          %v1870 = vsub.f32 %v1644, %v1853
          %v1871 = vmul.f32 %v1855, 1.442695
          %v1872 = vpow.pop %v1871
          %v1873 = vmul.f32 %v1856, 1.442695
          %v1874 = vpow.pop %v1873
          %v1875 = vmul.f32 %v1857, 1.442695
          %v1876 = vpow.pop %v1875
          %v1877 = vmul.f32 %v1858, 1.442695
          %v1878 = vpow.pop %v1877
          %v1879 = vmul.f32 %v1859, 1.442695
          %v1880 = vpow.pop %v1879
          %v1881 = vmul.f32 %v1860, 1.442695
          %v1882 = vpow.pop %v1881
          %v1883 = vmul.f32 %v1861, 1.442695
          %v1884 = vpow.pop %v1883
          %v1885 = vmul.f32 %v1862, 1.442695
          %v1886 = vpow.pop %v1885
          %v1887 = vmul.f32 %v1863, 1.442695
          %v1888 = vpow.pop %v1887
          %v1889 = vmul.f32 %v1864, 1.442695
          %v1890 = vpow.pop %v1889
          %v1891 = vmul.f32 %v1865, 1.442695
          %v1892 = vpow.pop %v1891
          %v1893 = vmul.f32 %v1866, 1.442695
          %v1894 = vpow.pop %v1893
          %v1895 = vmul.f32 %v1867, 1.442695
          %v1896 = vpow.pop %v1895
          %v1897 = vmul.f32 %v1868, 1.442695
          %v1898 = vpow.pop %v1897
          %v1899 = vmul.f32 %v1869, 1.442695
          %v1900 = vpow.pop %v1899
          %v1901 = vmul.f32 %v1870, 1.442695
          %v1902 = vpow.pop %v1901
          %v1903 = vmul.f32 %v1744, %v1663
          %v1904 = vmul.f32 %v1746, %v1664
          %v1905 = vmul.f32 %v1748, %v1665
          %v1906 = vmul.f32 %v1750, %v1666
          %v1907 = vmul.f32 %v1752, %v1667
          %v1908 = vmul.f32 %v1754, %v1668
          %v1909 = vmul.f32 %v1756, %v1669
          %v1910 = vmul.f32 %v1758, %v1670
          %v1911 = vmul.f32 %v1760, %v1671
          %v1912 = vmul.f32 %v1762, %v1672
          %v1913 = vmul.f32 %v1764, %v1673
          %v1914 = vmul.f32 %v1766, %v1674
          %v1915 = vmul.f32 %v1768, %v1675
          %v1916 = vmul.f32 %v1770, %v1676
          %v1917 = vmul.f32 %v1772, %v1677
          %v1918 = vmul.f32 %v1774, %v1678
          %1919 = vadd.xlane.f32.xlu0 %v1872
          %v1920 = vpop.xlane.xlu0 %1919
          %1921 = vadd.xlane.f32.xlu0 %v1874
          %v1922 = vpop.xlane.xlu0 %1921
          %1923 = vadd.xlane.f32.xlu0 %v1876
          %v1924 = vpop.xlane.xlu0 %1923
          %1925 = vadd.xlane.f32.xlu0 %v1878
          %v1926 = vpop.xlane.xlu0 %1925
          %1927 = vadd.xlane.f32.xlu0 %v1880
          %v1928 = vpop.xlane.xlu0 %1927
          %1929 = vadd.xlane.f32.xlu0 %v1882
          %v1930 = vpop.xlane.xlu0 %1929
          %1931 = vadd.xlane.f32.xlu0 %v1884
          %v1932 = vpop.xlane.xlu0 %1931
          %1933 = vadd.xlane.f32.xlu0 %v1886
          %v1934 = vpop.xlane.xlu0 %1933
          %1935 = vadd.xlane.f32.xlu0 %v1888
          %v1936 = vpop.xlane.xlu0 %1935
          %1937 = vadd.xlane.f32.xlu0 %v1890
          %v1938 = vpop.xlane.xlu0 %1937
          %1939 = vadd.xlane.f32.xlu0 %v1892
          %v1940 = vpop.xlane.xlu0 %1939
          %1941 = vadd.xlane.f32.xlu0 %v1894
          %v1942 = vpop.xlane.xlu0 %1941
          %1943 = vadd.xlane.f32.xlu0 %v1896
          %v1944 = vpop.xlane.xlu0 %1943
          %1945 = vadd.xlane.f32.xlu0 %v1898
          %v1946 = vpop.xlane.xlu0 %1945
          %1947 = vadd.xlane.f32.xlu0 %v1900
          %v1948 = vpop.xlane.xlu0 %1947
          %1949 = vadd.xlane.f32.xlu0 %v1902
          %v1950 = vpop.xlane.xlu0 %1949
          %v1951 = vadd.f32 %v1903, %v1920
          %v1952 = vadd.f32 %v1904, %v1922
          %v1953 = vadd.f32 %v1905, %v1924
          %v1954 = vadd.f32 %v1906, %v1926
          %v1955 = vadd.f32 %v1907, %v1928
          %v1956 = vadd.f32 %v1908, %v1930
          %v1957 = vadd.f32 %v1909, %v1932
          %v1958 = vadd.f32 %v1910, %v1934
          %v1959 = vadd.f32 %v1911, %v1936
          %v1960 = vadd.f32 %v1912, %v1938
          %v1961 = vadd.f32 %v1913, %v1940
          %v1962 = vadd.f32 %v1914, %v1942
          %v1963 = vadd.f32 %v1915, %v1944
          %v1964 = vadd.f32 %v1916, %v1946
          %v1965 = vadd.f32 %v1917, %v1948
          %v1966 = vadd.f32 %v1918, %v1950
          %1967 = vst.msk [vmem:[%s1662] sm:$0xff] %vm1234, %v1951
          %1968 = vst.msk [vmem:[%s1662 + $0x8] sm:$0xff] %vm1234, %v1952
          %1969 = vst.msk [vmem:[%s1662 + $0x10] sm:$0xff] %vm1234, %v1953
          %1970 = vst.msk [vmem:[%s1662 + $0x18] sm:$0xff] %vm1234, %v1954
          %1971 = vst.msk [vmem:[%s1662 + $0x20] sm:$0xff] %vm1234, %v1955
          %1972 = vst.msk [vmem:[%s1662 + $0x28] sm:$0xff] %vm1234, %v1956
          %1973 = vst.msk [vmem:[%s1662 + $0x30] sm:$0xff] %vm1234, %v1957
          %1974 = vst.msk [vmem:[%s1662 + $0x38] sm:$0xff] %vm1234, %v1958
          %1975 = vst.msk [vmem:[%s1662 + $0x40] sm:$0xff] %vm1234, %v1959
          %1976 = vst.msk [vmem:[%s1662 + $0x48] sm:$0xff] %vm1234, %v1960
          %1977 = vst.msk [vmem:[%s1662 + $0x50] sm:$0xff] %vm1234, %v1961
          %1978 = vst.msk [vmem:[%s1662 + $0x58] sm:$0xff] %vm1234, %v1962
          %1979 = vst.msk [vmem:[%s1662 + $0x60] sm:$0xff] %vm1234, %v1963
          %1980 = vst.msk [vmem:[%s1662 + $0x68] sm:$0xff] %vm1234, %v1964
          %1981 = vst.msk [vmem:[%s1662 + $0x70] sm:$0xff] %vm1234, %v1965
          %1982 = vst.msk [vmem:[%s1662 + $0x78] sm:$0xff] %vm1234, %v1966
          %s1983 = scalar_lea.vmem [#allocation4], 128
          %v1984 = vld [vmem:[%s1983] sm:$0xff]
          %v1985 = vld [vmem:[%s1983 + $0x8] sm:$0xff]
          %v1986 = vld [vmem:[%s1983 + $0x10] sm:$0xff]
          %v1987 = vld [vmem:[%s1983 + $0x18] sm:$0xff]
          %v1988 = vld [vmem:[%s1983 + $0x20] sm:$0xff]
          %v1989 = vld [vmem:[%s1983 + $0x28] sm:$0xff]
          %v1990 = vld [vmem:[%s1983 + $0x30] sm:$0xff]
          %v1991 = vld [vmem:[%s1983 + $0x38] sm:$0xff]
          %v1992 = vld [vmem:[%s1983 + $0x40] sm:$0xff]
          %v1993 = vld [vmem:[%s1983 + $0x48] sm:$0xff]
          %v1994 = vld [vmem:[%s1983 + $0x50] sm:$0xff]
          %v1995 = vld [vmem:[%s1983 + $0x58] sm:$0xff]
          %v1996 = vld [vmem:[%s1983 + $0x60] sm:$0xff]
          %v1997 = vld [vmem:[%s1983 + $0x68] sm:$0xff]
          %v1998 = vld [vmem:[%s1983 + $0x70] sm:$0xff]
          %v1999 = vld [vmem:[%s1983 + $0x78] sm:$0xff]
          %2001 = vset.pattern.permute.xlu0 0
          %2002 = vperm.xlu0 %2001, %v1744
          %v2003 = vpop.permute.xlu0 %2002
          %2006 = vset.pattern.permute.xlu0 0
          %2007 = vperm.xlu0 %2006, %v1746
          %v2008 = vpop.permute.xlu0 %2007
          %2011 = vset.pattern.permute.xlu0 0
          %2012 = vperm.xlu0 %2011, %v1748
          %v2013 = vpop.permute.xlu0 %2012
          %2016 = vset.pattern.permute.xlu0 0
          %2017 = vperm.xlu0 %2016, %v1750
          %v2018 = vpop.permute.xlu0 %2017
          %2021 = vset.pattern.permute.xlu0 0
          %2022 = vperm.xlu0 %2021, %v1752
          %v2023 = vpop.permute.xlu0 %2022
          %2026 = vset.pattern.permute.xlu0 0
          %2027 = vperm.xlu0 %2026, %v1754
          %v2028 = vpop.permute.xlu0 %2027
          %2031 = vset.pattern.permute.xlu0 0
          %2032 = vperm.xlu0 %2031, %v1756
          %v2033 = vpop.permute.xlu0 %2032
          %2036 = vset.pattern.permute.xlu0 0
          %2037 = vperm.xlu0 %2036, %v1758
          %v2038 = vpop.permute.xlu0 %2037
          %2041 = vset.pattern.permute.xlu0 0
          %2042 = vperm.xlu0 %2041, %v1760
          %v2043 = vpop.permute.xlu0 %2042
          %2046 = vset.pattern.permute.xlu0 0
          %2047 = vperm.xlu0 %2046, %v1762
          %v2048 = vpop.permute.xlu0 %2047
          %2051 = vset.pattern.permute.xlu0 0
          %2052 = vperm.xlu0 %2051, %v1764
          %v2053 = vpop.permute.xlu0 %2052
          %2056 = vset.pattern.permute.xlu0 0
          %2057 = vperm.xlu0 %2056, %v1766
          %v2058 = vpop.permute.xlu0 %2057
          %2061 = vset.pattern.permute.xlu0 0
          %2062 = vperm.xlu0 %2061, %v1768
          %v2063 = vpop.permute.xlu0 %2062
          %2066 = vset.pattern.permute.xlu0 0
          %2067 = vperm.xlu0 %2066, %v1770
          %v2068 = vpop.permute.xlu0 %2067
          %2071 = vset.pattern.permute.xlu0 0
          %2072 = vperm.xlu0 %2071, %v1772
          %v2073 = vpop.permute.xlu0 %2072
          %2076 = vset.pattern.permute.xlu0 0
          %2077 = vperm.xlu0 %2076, %v1774
          %v2078 = vpop.permute.xlu0 %2077
          %v2080 = vmul.f32 %v2003, %v1984
          %v2081 = vmul.f32 %v2008, %v1985
          %v2082 = vmul.f32 %v2013, %v1986
          %v2083 = vmul.f32 %v2018, %v1987
          %v2084 = vmul.f32 %v2023, %v1988
          %v2085 = vmul.f32 %v2028, %v1989
          %v2086 = vmul.f32 %v2033, %v1990
          %v2087 = vmul.f32 %v2038, %v1991
          %v2088 = vmul.f32 %v2043, %v1992
          %v2089 = vmul.f32 %v2048, %v1993
          %v2090 = vmul.f32 %v2053, %v1994
          %v2091 = vmul.f32 %v2058, %v1995
          %v2092 = vmul.f32 %v2063, %v1996
          %v2093 = vmul.f32 %v2068, %v1997
          %v2094 = vmul.f32 %v2073, %v1998
          %v2095 = vmul.f32 %v2078, %v1999
          %v2096 = vpack.c.bf16 %v1874, %v1872
          %v2097 = vpack.c.bf16 %v1878, %v1876
          %v2098 = vpack.c.bf16 %v1882, %v1880
          %v2099 = vpack.c.bf16 %v1886, %v1884
          %v2100 = vpack.c.bf16 %v1890, %v1888
          %v2101 = vpack.c.bf16 %v1894, %v1892
          %v2102 = vpack.c.bf16 %v1898, %v1896
          %v2103 = vpack.c.bf16 %v1902, %v1900
          %2112 = vrot.lane.b32.xlu0 %v776, 64
          %v2113 = vpop.permute.xlu0 %2112
          %2114 = vrot.lane.b32.xlu0 %v777, 64
          %v2115 = vpop.permute.xlu0 %2114
          %2116 = vrot.lane.b32.xlu0 %v778, 64
          %v2117 = vpop.permute.xlu0 %2116
          %2118 = vrot.lane.b32.xlu0 %v779, 64
          %v2119 = vpop.permute.xlu0 %2118
          %2120 = vrot.lane.b32.xlu0 %v780, 64
          %v2121 = vpop.permute.xlu0 %2120
          %2122 = vrot.lane.b32.xlu0 %v781, 64
          %v2123 = vpop.permute.xlu0 %2122
          %2124 = vrot.lane.b32.xlu0 %v782, 64
          %v2125 = vpop.permute.xlu0 %2124
          %2126 = vrot.lane.b32.xlu0 %v783, 64
          %v2127 = vpop.permute.xlu0 %2126
          %2136 = vmatpush.bf16.msra.mxu0 %v2127
          %2137 = vmatpush.bf16.msra.mxu0 %v2125
          %2138 = vmatpush.bf16.msra.mxu0 %v2123
          %2139 = vmatpush.bf16.msra.mxu0 %v2121
          %2140 = vmatpush.bf16.msra.mxu0 %v2119
          %2141 = vmatpush.bf16.msra.mxu0 %v2117
          %2142 = vmatpush.bf16.msra.mxu0 %v2115
          %2143 = vmatpush.bf16.msra.mxu0 %v2113
          %2144 = vmatmul.bf16.gmra.mxu0 %v2096
          %v2145 = vpop.f32.mrf.mxu0
          %v2146 = vadd.f32 0.0, %v2145
          %v2147 = vpop.f32.mrf.mxu0
          %v2148 = vadd.f32 0.0, %v2147
          %2149 = vmatmul.bf16.gmra.mxu0 %v2097
          %v2150 = vpop.f32.mrf.mxu0
          %v2151 = vadd.f32 0.0, %v2150
          %v2152 = vpop.f32.mrf.mxu0
          %v2153 = vadd.f32 0.0, %v2152
          %2154 = vmatmul.bf16.gmra.mxu0 %v2098
          %v2155 = vpop.f32.mrf.mxu0
          %v2156 = vadd.f32 0.0, %v2155
          %v2157 = vpop.f32.mrf.mxu0
          %v2158 = vadd.f32 0.0, %v2157
          %2159 = vmatmul.bf16.gmra.mxu0 %v2099
          %v2160 = vpop.f32.mrf.mxu0
          %v2161 = vadd.f32 0.0, %v2160
          %v2162 = vpop.f32.mrf.mxu0
          %v2163 = vadd.f32 0.0, %v2162
          %2164 = vmatmul.bf16.gmra.mxu0 %v2100
          %v2165 = vpop.f32.mrf.mxu0
          %v2166 = vadd.f32 0.0, %v2165
          %v2167 = vpop.f32.mrf.mxu0
          %v2168 = vadd.f32 0.0, %v2167
          %2169 = vmatmul.bf16.gmra.mxu0 %v2101
          %v2170 = vpop.f32.mrf.mxu0
          %v2171 = vadd.f32 0.0, %v2170
          %v2172 = vpop.f32.mrf.mxu0
          %v2173 = vadd.f32 0.0, %v2172
          %2174 = vmatmul.bf16.gmra.mxu0 %v2102
          %v2175 = vpop.f32.mrf.mxu0
          %v2176 = vadd.f32 0.0, %v2175
          %v2177 = vpop.f32.mrf.mxu0
          %v2178 = vadd.f32 0.0, %v2177
          %2179 = vmatmul.bf16.gmra.mxu0 %v2103
          %v2180 = vpop.f32.mrf.mxu0
          %v2181 = vadd.f32 0.0, %v2180
          %v2182 = vpop.f32.mrf.mxu0
          %v2183 = vadd.f32 0.0, %v2182
          %2184 = vdwg.mxu0
          %v2185 = vadd.f32 %v2080, %v2146
          %v2186 = vadd.f32 %v2081, %v2148
          %v2187 = vadd.f32 %v2082, %v2151
          %v2188 = vadd.f32 %v2083, %v2153
          %v2189 = vadd.f32 %v2084, %v2156
          %v2190 = vadd.f32 %v2085, %v2158
          %v2191 = vadd.f32 %v2086, %v2161
          %v2192 = vadd.f32 %v2087, %v2163
          %v2193 = vadd.f32 %v2088, %v2166
          %v2194 = vadd.f32 %v2089, %v2168
          %v2195 = vadd.f32 %v2090, %v2171
          %v2196 = vadd.f32 %v2091, %v2173
          %v2197 = vadd.f32 %v2092, %v2176
          %v2198 = vadd.f32 %v2093, %v2178
          %v2199 = vadd.f32 %v2094, %v2181
          %v2200 = vadd.f32 %v2095, %v2183
          %2201 = vst.msk [vmem:[%s1983] sm:$0xff] %vm784, %v2185
          %2202 = vst.msk [vmem:[%s1983 + $0x8] sm:$0xff] %vm784, %v2186
          %2203 = vst.msk [vmem:[%s1983 + $0x10] sm:$0xff] %vm784, %v2187
          %2204 = vst.msk [vmem:[%s1983 + $0x18] sm:$0xff] %vm784, %v2188
          %2205 = vst.msk [vmem:[%s1983 + $0x20] sm:$0xff] %vm784, %v2189
          %2206 = vst.msk [vmem:[%s1983 + $0x28] sm:$0xff] %vm784, %v2190
          %2207 = vst.msk [vmem:[%s1983 + $0x30] sm:$0xff] %vm784, %v2191
          %2208 = vst.msk [vmem:[%s1983 + $0x38] sm:$0xff] %vm784, %v2192
          %2209 = vst.msk [vmem:[%s1983 + $0x40] sm:$0xff] %vm784, %v2193
          %2210 = vst.msk [vmem:[%s1983 + $0x48] sm:$0xff] %vm784, %v2194
          %2211 = vst.msk [vmem:[%s1983 + $0x50] sm:$0xff] %vm784, %v2195
          %2212 = vst.msk [vmem:[%s1983 + $0x58] sm:$0xff] %vm784, %v2196
          %2213 = vst.msk [vmem:[%s1983 + $0x60] sm:$0xff] %vm784, %v2197
          %2214 = vst.msk [vmem:[%s1983 + $0x68] sm:$0xff] %vm784, %v2198
          %2215 = vst.msk [vmem:[%s1983 + $0x70] sm:$0xff] %vm784, %v2199
          %2216 = vst.msk [vmem:[%s1983 + $0x78] sm:$0xff] %vm784, %v2200
          %2217 = vst.msk [vmem:[%s1645] sm:$0xff] %vm1234, %v1711
          %2218 = vst.msk [vmem:[%s1645 + $0x8] sm:$0xff] %vm1234, %v1712
          %2219 = vst.msk [vmem:[%s1645 + $0x10] sm:$0xff] %vm1234, %v1713
          %2220 = vst.msk [vmem:[%s1645 + $0x18] sm:$0xff] %vm1234, %v1714
          %2221 = vst.msk [vmem:[%s1645 + $0x20] sm:$0xff] %vm1234, %v1715
          %2222 = vst.msk [vmem:[%s1645 + $0x28] sm:$0xff] %vm1234, %v1716
          %2223 = vst.msk [vmem:[%s1645 + $0x30] sm:$0xff] %vm1234, %v1717
          %2224 = vst.msk [vmem:[%s1645 + $0x38] sm:$0xff] %vm1234, %v1718
          %2225 = vst.msk [vmem:[%s1645 + $0x40] sm:$0xff] %vm1234, %v1719
          %2226 = vst.msk [vmem:[%s1645 + $0x48] sm:$0xff] %vm1234, %v1720
          %2227 = vst.msk [vmem:[%s1645 + $0x50] sm:$0xff] %vm1234, %v1721
          %2228 = vst.msk [vmem:[%s1645 + $0x58] sm:$0xff] %vm1234, %v1722
          %2229 = vst.msk [vmem:[%s1645 + $0x60] sm:$0xff] %vm1234, %v1723
          %2230 = vst.msk [vmem:[%s1645 + $0x68] sm:$0xff] %vm1234, %v1724
          %2231 = vst.msk [vmem:[%s1645 + $0x70] sm:$0xff] %vm1234, %v1725
          %2232 = vst.msk [vmem:[%s1645 + $0x78] sm:$0xff] %vm1234, %v1726
        $region154: #{gpt_forward.13} parent=133 // pred_fallthru
          _
        %p2233 = scmp.eq.s32.totalorder %s21, 1
        // Predicated region
        $region155: #{gpt_forward.13} parent=133 // pred_check
          %p2234 = pneg %p2233
        $region156: #{gpt_forward.13} parent=133 // pred_check_branch
          %2236 = sbr.rel (%p2234) target = $region158
        $region157: #{gpt_forward.13} parent=133 // pred_region
          %v2237 = vld [vmem:[#allocation3] sm:$0xff]
          %v2238 = vld [vmem:[#allocation3 + $0x8] sm:$0xff]
          %v2239 = vld [vmem:[#allocation3 + $0x10] sm:$0xff]
          %v2240 = vld [vmem:[#allocation3 + $0x18] sm:$0xff]
          %v2241 = vld [vmem:[#allocation3 + $0x20] sm:$0xff]
          %v2242 = vld [vmem:[#allocation3 + $0x28] sm:$0xff]
          %v2243 = vld [vmem:[#allocation3 + $0x30] sm:$0xff]
          %v2244 = vld [vmem:[#allocation3 + $0x38] sm:$0xff]
          %v2245 = vld [vmem:[#allocation3 + $0x40] sm:$0xff]
          %v2246 = vld [vmem:[#allocation3 + $0x48] sm:$0xff]
          %v2247 = vld [vmem:[#allocation3 + $0x50] sm:$0xff]
          %v2248 = vld [vmem:[#allocation3 + $0x58] sm:$0xff]
          %v2249 = vld [vmem:[#allocation3 + $0x60] sm:$0xff]
          %v2250 = vld [vmem:[#allocation3 + $0x68] sm:$0xff]
          %v2251 = vld [vmem:[#allocation3 + $0x70] sm:$0xff]
          %v2252 = vld [vmem:[#allocation3 + $0x78] sm:$0xff]
          %v2253 = vrcp.pop %v2237
          %v2254 = vrcp.pop %v2238
          %v2255 = vrcp.pop %v2239
          %v2256 = vrcp.pop %v2240
          %v2257 = vrcp.pop %v2241
          %v2258 = vrcp.pop %v2242
          %v2259 = vrcp.pop %v2243
          %v2260 = vrcp.pop %v2244
          %v2261 = vrcp.pop %v2245
          %v2262 = vrcp.pop %v2246
          %v2263 = vrcp.pop %v2247
          %v2264 = vrcp.pop %v2248
          %v2265 = vrcp.pop %v2249
          %v2266 = vrcp.pop %v2250
          %v2267 = vrcp.pop %v2251
          %v2268 = vrcp.pop %v2252
          %v2269 = vld [vmem:[#allocation4] sm:$0xff]
          %v2270 = vld [vmem:[#allocation4 + $0x8] sm:$0xff]
          %v2271 = vld [vmem:[#allocation4 + $0x10] sm:$0xff]
          %v2272 = vld [vmem:[#allocation4 + $0x18] sm:$0xff]
          %v2273 = vld [vmem:[#allocation4 + $0x20] sm:$0xff]
          %v2274 = vld [vmem:[#allocation4 + $0x28] sm:$0xff]
          %v2275 = vld [vmem:[#allocation4 + $0x30] sm:$0xff]
          %v2276 = vld [vmem:[#allocation4 + $0x38] sm:$0xff]
          %v2277 = vld [vmem:[#allocation4 + $0x40] sm:$0xff]
          %v2278 = vld [vmem:[#allocation4 + $0x48] sm:$0xff]
          %v2279 = vld [vmem:[#allocation4 + $0x50] sm:$0xff]
          %v2280 = vld [vmem:[#allocation4 + $0x58] sm:$0xff]
          %v2281 = vld [vmem:[#allocation4 + $0x60] sm:$0xff]
          %v2282 = vld [vmem:[#allocation4 + $0x68] sm:$0xff]
          %v2283 = vld [vmem:[#allocation4 + $0x70] sm:$0xff]
          %v2284 = vld [vmem:[#allocation4 + $0x78] sm:$0xff]
          %2286 = vset.pattern.permute.xlu0 0
          %2287 = vperm.xlu0 %2286, %v2253
          %v2288 = vpop.permute.xlu0 %2287
          %2291 = vset.pattern.permute.xlu0 0
          %2292 = vperm.xlu0 %2291, %v2254
          %v2293 = vpop.permute.xlu0 %2292
          %2296 = vset.pattern.permute.xlu0 0
          %2297 = vperm.xlu0 %2296, %v2255
          %v2298 = vpop.permute.xlu0 %2297
          %2301 = vset.pattern.permute.xlu0 0
          %2302 = vperm.xlu0 %2301, %v2256
          %v2303 = vpop.permute.xlu0 %2302
          %2306 = vset.pattern.permute.xlu0 0
          %2307 = vperm.xlu0 %2306, %v2257
          %v2308 = vpop.permute.xlu0 %2307
          %2311 = vset.pattern.permute.xlu0 0
          %2312 = vperm.xlu0 %2311, %v2258
          %v2313 = vpop.permute.xlu0 %2312
          %2316 = vset.pattern.permute.xlu0 0
          %2317 = vperm.xlu0 %2316, %v2259
          %v2318 = vpop.permute.xlu0 %2317
          %2321 = vset.pattern.permute.xlu0 0
          %2322 = vperm.xlu0 %2321, %v2260
          %v2323 = vpop.permute.xlu0 %2322
          %2326 = vset.pattern.permute.xlu0 0
          %2327 = vperm.xlu0 %2326, %v2261
          %v2328 = vpop.permute.xlu0 %2327
          %2331 = vset.pattern.permute.xlu0 0
          %2332 = vperm.xlu0 %2331, %v2262
          %v2333 = vpop.permute.xlu0 %2332
          %2336 = vset.pattern.permute.xlu0 0
          %2337 = vperm.xlu0 %2336, %v2263
          %v2338 = vpop.permute.xlu0 %2337
          %2341 = vset.pattern.permute.xlu0 0
          %2342 = vperm.xlu0 %2341, %v2264
          %v2343 = vpop.permute.xlu0 %2342
          %2346 = vset.pattern.permute.xlu0 0
          %2347 = vperm.xlu0 %2346, %v2265
          %v2348 = vpop.permute.xlu0 %2347
          %2351 = vset.pattern.permute.xlu0 0
          %2352 = vperm.xlu0 %2351, %v2266
          %v2353 = vpop.permute.xlu0 %2352
          %2356 = vset.pattern.permute.xlu0 0
          %2357 = vperm.xlu0 %2356, %v2267
          %v2358 = vpop.permute.xlu0 %2357
          %2361 = vset.pattern.permute.xlu0 0
          %2362 = vperm.xlu0 %2361, %v2268
          %v2363 = vpop.permute.xlu0 %2362
          %v2365 = vmul.f32 %v2269, %v2288
          %v2366 = vmul.f32 %v2270, %v2293
          %v2367 = vmul.f32 %v2271, %v2298
          %v2368 = vmul.f32 %v2272, %v2303
          %v2369 = vmul.f32 %v2273, %v2308
          %v2370 = vmul.f32 %v2274, %v2313
          %v2371 = vmul.f32 %v2275, %v2318
          %v2372 = vmul.f32 %v2276, %v2323
          %v2373 = vmul.f32 %v2277, %v2328
          %v2374 = vmul.f32 %v2278, %v2333
          %v2375 = vmul.f32 %v2279, %v2338
          %v2376 = vmul.f32 %v2280, %v2343
          %v2377 = vmul.f32 %v2281, %v2348
          %v2378 = vmul.f32 %v2282, %v2353
          %v2379 = vmul.f32 %v2283, %v2358
          %v2380 = vmul.f32 %v2284, %v2363
          %vm2381 = vcmask 523264
          %2382 = vst.msk [vmem:[%s547] sm:$0xff] %vm2381, %v2365
          %2383 = vst.msk [vmem:[%s547 + $0x8] sm:$0xff] %vm2381, %v2366
          %2384 = vst.msk [vmem:[%s547 + $0x10] sm:$0xff] %vm2381, %v2367
          %2385 = vst.msk [vmem:[%s547 + $0x18] sm:$0xff] %vm2381, %v2368
          %2386 = vst.msk [vmem:[%s547 + $0x20] sm:$0xff] %vm2381, %v2369
          %2387 = vst.msk [vmem:[%s547 + $0x28] sm:$0xff] %vm2381, %v2370
          %2388 = vst.msk [vmem:[%s547 + $0x30] sm:$0xff] %vm2381, %v2371
          %2389 = vst.msk [vmem:[%s547 + $0x38] sm:$0xff] %vm2381, %v2372
          %2390 = vst.msk [vmem:[%s547 + $0x40] sm:$0xff] %vm2381, %v2373
          %2391 = vst.msk [vmem:[%s547 + $0x48] sm:$0xff] %vm2381, %v2374
          %2392 = vst.msk [vmem:[%s547 + $0x50] sm:$0xff] %vm2381, %v2375
          %2393 = vst.msk [vmem:[%s547 + $0x58] sm:$0xff] %vm2381, %v2376
          %2394 = vst.msk [vmem:[%s547 + $0x60] sm:$0xff] %vm2381, %v2377
          %2395 = vst.msk [vmem:[%s547 + $0x68] sm:$0xff] %vm2381, %v2378
          %2396 = vst.msk [vmem:[%s547 + $0x70] sm:$0xff] %vm2381, %v2379
          %2397 = vst.msk [vmem:[%s547 + $0x78] sm:$0xff] %vm2381, %v2380
          %s2398 = scalar_lea.vmem [#allocation3], 128
          %v2399 = vld [vmem:[%s2398] sm:$0xff]
          %v2400 = vld [vmem:[%s2398 + $0x8] sm:$0xff]
          %v2401 = vld [vmem:[%s2398 + $0x10] sm:$0xff]
          %v2402 = vld [vmem:[%s2398 + $0x18] sm:$0xff]
          %v2403 = vld [vmem:[%s2398 + $0x20] sm:$0xff]
          %v2404 = vld [vmem:[%s2398 + $0x28] sm:$0xff]
          %v2405 = vld [vmem:[%s2398 + $0x30] sm:$0xff]
          %v2406 = vld [vmem:[%s2398 + $0x38] sm:$0xff]
          %v2407 = vld [vmem:[%s2398 + $0x40] sm:$0xff]
          %v2408 = vld [vmem:[%s2398 + $0x48] sm:$0xff]
          %v2409 = vld [vmem:[%s2398 + $0x50] sm:$0xff]
          %v2410 = vld [vmem:[%s2398 + $0x58] sm:$0xff]
          %v2411 = vld [vmem:[%s2398 + $0x60] sm:$0xff]
          %v2412 = vld [vmem:[%s2398 + $0x68] sm:$0xff]
          %v2413 = vld [vmem:[%s2398 + $0x70] sm:$0xff]
          %v2414 = vld [vmem:[%s2398 + $0x78] sm:$0xff]
          %v2415 = vrcp.pop %v2399
          %v2416 = vrcp.pop %v2400
          %v2417 = vrcp.pop %v2401
          %v2418 = vrcp.pop %v2402
          %v2419 = vrcp.pop %v2403
          %v2420 = vrcp.pop %v2404
          %v2421 = vrcp.pop %v2405
          %v2422 = vrcp.pop %v2406
          %v2423 = vrcp.pop %v2407
          %v2424 = vrcp.pop %v2408
          %v2425 = vrcp.pop %v2409
          %v2426 = vrcp.pop %v2410
          %v2427 = vrcp.pop %v2411
          %v2428 = vrcp.pop %v2412
          %v2429 = vrcp.pop %v2413
          %v2430 = vrcp.pop %v2414
          %s2431 = scalar_lea.vmem [#allocation4], 128
          %v2432 = vld [vmem:[%s2431] sm:$0xff]
          %v2433 = vld [vmem:[%s2431 + $0x8] sm:$0xff]
          %v2434 = vld [vmem:[%s2431 + $0x10] sm:$0xff]
          %v2435 = vld [vmem:[%s2431 + $0x18] sm:$0xff]
          %v2436 = vld [vmem:[%s2431 + $0x20] sm:$0xff]
          %v2437 = vld [vmem:[%s2431 + $0x28] sm:$0xff]
          %v2438 = vld [vmem:[%s2431 + $0x30] sm:$0xff]
          %v2439 = vld [vmem:[%s2431 + $0x38] sm:$0xff]
          %v2440 = vld [vmem:[%s2431 + $0x40] sm:$0xff]
          %v2441 = vld [vmem:[%s2431 + $0x48] sm:$0xff]
          %v2442 = vld [vmem:[%s2431 + $0x50] sm:$0xff]
          %v2443 = vld [vmem:[%s2431 + $0x58] sm:$0xff]
          %v2444 = vld [vmem:[%s2431 + $0x60] sm:$0xff]
          %v2445 = vld [vmem:[%s2431 + $0x68] sm:$0xff]
          %v2446 = vld [vmem:[%s2431 + $0x70] sm:$0xff]
          %v2447 = vld [vmem:[%s2431 + $0x78] sm:$0xff]
          %2449 = vset.pattern.permute.xlu0 0
          %2450 = vperm.xlu0 %2449, %v2415
          %v2451 = vpop.permute.xlu0 %2450
          %2454 = vset.pattern.permute.xlu0 0
          %2455 = vperm.xlu0 %2454, %v2416
          %v2456 = vpop.permute.xlu0 %2455
          %2459 = vset.pattern.permute.xlu0 0
          %2460 = vperm.xlu0 %2459, %v2417
          %v2461 = vpop.permute.xlu0 %2460
          %2464 = vset.pattern.permute.xlu0 0
          %2465 = vperm.xlu0 %2464, %v2418
          %v2466 = vpop.permute.xlu0 %2465
          %2469 = vset.pattern.permute.xlu0 0
          %2470 = vperm.xlu0 %2469, %v2419
          %v2471 = vpop.permute.xlu0 %2470
          %2474 = vset.pattern.permute.xlu0 0
          %2475 = vperm.xlu0 %2474, %v2420
          %v2476 = vpop.permute.xlu0 %2475
          %2479 = vset.pattern.permute.xlu0 0
          %2480 = vperm.xlu0 %2479, %v2421
          %v2481 = vpop.permute.xlu0 %2480
          %2484 = vset.pattern.permute.xlu0 0
          %2485 = vperm.xlu0 %2484, %v2422
          %v2486 = vpop.permute.xlu0 %2485
          %2489 = vset.pattern.permute.xlu0 0
          %2490 = vperm.xlu0 %2489, %v2423
          %v2491 = vpop.permute.xlu0 %2490
          %2494 = vset.pattern.permute.xlu0 0
          %2495 = vperm.xlu0 %2494, %v2424
          %v2496 = vpop.permute.xlu0 %2495
          %2499 = vset.pattern.permute.xlu0 0
          %2500 = vperm.xlu0 %2499, %v2425
          %v2501 = vpop.permute.xlu0 %2500
          %2504 = vset.pattern.permute.xlu0 0
          %2505 = vperm.xlu0 %2504, %v2426
          %v2506 = vpop.permute.xlu0 %2505
          %2509 = vset.pattern.permute.xlu0 0
          %2510 = vperm.xlu0 %2509, %v2427
          %v2511 = vpop.permute.xlu0 %2510
          %2514 = vset.pattern.permute.xlu0 0
          %2515 = vperm.xlu0 %2514, %v2428
          %v2516 = vpop.permute.xlu0 %2515
          %2519 = vset.pattern.permute.xlu0 0
          %2520 = vperm.xlu0 %2519, %v2429
          %v2521 = vpop.permute.xlu0 %2520
          %2524 = vset.pattern.permute.xlu0 0
          %2525 = vperm.xlu0 %2524, %v2430
          %v2526 = vpop.permute.xlu0 %2525
          %v2528 = vmul.f32 %v2432, %v2451
          %v2529 = vmul.f32 %v2433, %v2456
          %v2530 = vmul.f32 %v2434, %v2461
          %v2531 = vmul.f32 %v2435, %v2466
          %v2532 = vmul.f32 %v2436, %v2471
          %v2533 = vmul.f32 %v2437, %v2476
          %v2534 = vmul.f32 %v2438, %v2481
          %v2535 = vmul.f32 %v2439, %v2486
          %v2536 = vmul.f32 %v2440, %v2491
          %v2537 = vmul.f32 %v2441, %v2496
          %v2538 = vmul.f32 %v2442, %v2501
          %v2539 = vmul.f32 %v2443, %v2506
          %v2540 = vmul.f32 %v2444, %v2511
          %v2541 = vmul.f32 %v2445, %v2516
          %v2542 = vmul.f32 %v2446, %v2521
          %v2543 = vmul.f32 %v2447, %v2526
          %2560 = vrot.lane.b32.xlu0 %v2528, 64
          %v2561 = vpop.permute.xlu0 %2560
          %2562 = vrot.lane.b32.xlu0 %v2529, 64
          %v2563 = vpop.permute.xlu0 %2562
          %2564 = vrot.lane.b32.xlu0 %v2530, 64
          %v2565 = vpop.permute.xlu0 %2564
          %2566 = vrot.lane.b32.xlu0 %v2531, 64
          %v2567 = vpop.permute.xlu0 %2566
          %2568 = vrot.lane.b32.xlu0 %v2532, 64
          %v2569 = vpop.permute.xlu0 %2568
          %2570 = vrot.lane.b32.xlu0 %v2533, 64
          %v2571 = vpop.permute.xlu0 %2570
          %2572 = vrot.lane.b32.xlu0 %v2534, 64
          %v2573 = vpop.permute.xlu0 %2572
          %2574 = vrot.lane.b32.xlu0 %v2535, 64
          %v2575 = vpop.permute.xlu0 %2574
          %2576 = vrot.lane.b32.xlu0 %v2536, 64
          %v2577 = vpop.permute.xlu0 %2576
          %2578 = vrot.lane.b32.xlu0 %v2537, 64
          %v2579 = vpop.permute.xlu0 %2578
          %2580 = vrot.lane.b32.xlu0 %v2538, 64
          %v2581 = vpop.permute.xlu0 %2580
          %2582 = vrot.lane.b32.xlu0 %v2539, 64
          %v2583 = vpop.permute.xlu0 %2582
          %2584 = vrot.lane.b32.xlu0 %v2540, 64
          %v2585 = vpop.permute.xlu0 %2584
          %2586 = vrot.lane.b32.xlu0 %v2541, 64
          %v2587 = vpop.permute.xlu0 %2586
          %2588 = vrot.lane.b32.xlu0 %v2542, 64
          %v2589 = vpop.permute.xlu0 %2588
          %2590 = vrot.lane.b32.xlu0 %v2543, 64
          %v2591 = vpop.permute.xlu0 %2590
          %vm2608 = vcmask 1048064
          %2609 = vst.msk [vmem:[%s547] sm:$0xff] %vm2608, %v2561
          %2610 = vst.msk [vmem:[%s547 + $0x8] sm:$0xff] %vm2608, %v2563
          %2611 = vst.msk [vmem:[%s547 + $0x10] sm:$0xff] %vm2608, %v2565
          %2612 = vst.msk [vmem:[%s547 + $0x18] sm:$0xff] %vm2608, %v2567
          %2613 = vst.msk [vmem:[%s547 + $0x20] sm:$0xff] %vm2608, %v2569
          %2614 = vst.msk [vmem:[%s547 + $0x28] sm:$0xff] %vm2608, %v2571
          %2615 = vst.msk [vmem:[%s547 + $0x30] sm:$0xff] %vm2608, %v2573
          %2616 = vst.msk [vmem:[%s547 + $0x38] sm:$0xff] %vm2608, %v2575
          %2617 = vst.msk [vmem:[%s547 + $0x40] sm:$0xff] %vm2608, %v2577
          %2618 = vst.msk [vmem:[%s547 + $0x48] sm:$0xff] %vm2608, %v2579
          %2619 = vst.msk [vmem:[%s547 + $0x50] sm:$0xff] %vm2608, %v2581
          %2620 = vst.msk [vmem:[%s547 + $0x58] sm:$0xff] %vm2608, %v2583
          %2621 = vst.msk [vmem:[%s547 + $0x60] sm:$0xff] %vm2608, %v2585
          %2622 = vst.msk [vmem:[%s547 + $0x68] sm:$0xff] %vm2608, %v2587
          %2623 = vst.msk [vmem:[%s547 + $0x70] sm:$0xff] %vm2608, %v2589
          %2624 = vst.msk [vmem:[%s547 + $0x78] sm:$0xff] %vm2608, %v2591
        $region158: #{gpt_forward.13} parent=133 // pred_fallthru
          _
        %s2625 = smul.u32 16, %s20
        %p2626 = scmp.lt.s32.totalorder %s19, 1
        %s2627 = scalar_select %p2626, %s19, 1
        %p2628 = scmp.lt.s32.totalorder %s2625, 31
        %s2629 = scalar_select %p2628, %s2625, 31
        %s2630 = smul.addr %s2627, 32
        %s2631 = sadd.s32 %s2629, %s2630
        %s2632 = smul.addr %s2631, 8
        %s2633 = scalar_lea.vmem %s3, %s2632
        // Predicated region
        $region159: #{gpt_forward.13} parent=133 // pred_check
          %p2634 = pneg %p137
        $region160: #{gpt_forward.13} parent=133 // pred_check_branch
          %2636 = sbr.rel (%p2634) target = $region162
        $region161: #{gpt_forward.13} parent=133 // pred_region
          %s2637 = smul.u32 16, %s20
        $region162: #{gpt_forward.13} parent=133 // pred_fallthru
          _
      $region134: #{gpt_forward.13} parent=5 // pred_fallthru
        _
      %p2638 = scmp.le.s32.totalorder 2, %s9
      // Predicated region
      $region163: #{gpt_forward.13} parent=5 // pred_check
        %p2639 = pneg %p2638
      $region164: #{gpt_forward.13} parent=5 // pred_check_branch
        %2641 = sbr.rel (%p2639) target = $region166
      $region165: #{gpt_forward.13} parent=5 // pred_region
        %s2642 = ssub.s32 %s9, 2
        // Predicated region
        $region167: #{gpt_forward.13} parent=165 // pred_check
          %p2643 = pneg %p143
        $region168: #{gpt_forward.13} parent=165 // pred_check_branch
          %2645 = sbr.rel (%p2643) target = $region170
        $region169: #{gpt_forward.13} parent=165 // pred_region
          %s2646 = smul.u32 16, %s23
          %p2647 = scmp.lt.s32.totalorder %s22, 1
          %s2648 = scalar_select %p2647, %s22, 1
          %p2649 = scmp.lt.s32.totalorder %s2646, 31
          %s2650 = scalar_select %p2649, %s2646, 31
          %s2651 = smul.addr %s2648, 32
          %s2652 = sadd.s32 %s2650, %s2651
          %s2653 = smul.addr %s2652, 8
          %s2654 = scalar_lea.vmem %s3, %s2653
        $region170: #{gpt_forward.13} parent=165 // pred_fallthru
          _
      $region166: #{gpt_forward.13} parent=5 // pred_fallthru
        _
    $region6: #{gpt_forward.13} parent=1 // loop_footer
      %s13 = sadd.s32 1, %s9
    $region7: #{gpt_forward.13} parent=1 // loop_footer_branch
      %8 = sbr.rel target = $region3
    $region8: #{gpt_forward.13} parent=1 // loop_exit
      _

// kernel: gpt_forward.23
$region0: #{gpt_forward.23}
  #allocation0 [shape = 'u32[]', space=smem, size = 0x4, offset = 0x4, fixed_abs, tag = 'smem constant byte address 0x4 - core index']
  #allocation1 [shape = 'u32[72,128]{1,0:T(1,128)}', space=vmem, size = 0x9000, scoped, tag = 'internal scratch']
  #allocation2 [shape = 'f32[128,256]{1,0:T(8,128)}', space=vmem, size = 0x20000, scoped, tag = 'scratch operand']
  %s0 = inlined_call_operand.vmem [shape: f32[512,128], index: 0, kind: input, shape index: {}]
  %s1 = inlined_call_operand.vmem [shape: bf16[128,256], index: 1, kind: input, shape index: {}]
  %s2 = inlined_call_operand.hbm [shape: f32[512,256], index: 2, kind: output, shape index: {}]
  %s3 = sld [smem:[#allocation0]]
  $region49: #{gpt_forward.23} parent=0
    _
  %s5 = ssub.s32 1, %s3
  %s6 = scalar_select 0, %s5, %s3
  $region1: #{gpt_forward.23} parent=0
    #allocation3 [shape = 'u8[262144]{0}', space=vmem, size = 0x40000, scoped, tag = 'output window, operand 0']
    #allocation4 [shape = 's32[2]{0}', space=sflag, size = 0x8, scoped, tag = 'scoped memory for gpt_forward.23']
    %7 = vsyncpa [#allocation4], 0
    %s8 = scalar_lea.sflag [#allocation4], 1
    %9 = vsyncpa %s8, 0
    loop: start=0, step=1, limit=6
    $region2: #{gpt_forward.23} parent=1 // loop_pre_header
      _
    $region3: #{gpt_forward.23} parent=1 // loop_header
      %s11 = sphi 0, %s15
      %p12 = scmp.ge.s32.totalorder %s11, 6
      %s18 = sphi 0, %s37
      %s19 = sphi 0, %s33
      %s20 = sphi 0, %s29
      %s21 = sphi 0, %s18
      %s22 = sphi 0, %s19
      %s23 = sphi 0, %s20
      %s24 = sphi 0, %s21
      %s25 = sphi 0, %s22
      %s26 = sphi 0, %s23
      %s42 = sphi 0, %s44
      %s45 = sphi 0, %s42
      %s46 = sphi 0, %s45
      %s62 = sphi 0, %s46
      %s70 = sphi 0, %s72
      %s73 = sphi 0, %s70
      %s74 = sphi 0, %s73
      %s90 = sphi 0, %s74
      %s98 = sphi 0, %s100
      %s101 = sphi 0, %s98
      %s102 = sphi 0, %s101
      %s118 = sphi 0, %s102
    $region4: #{gpt_forward.23} parent=1 // loop_header_branch
      %14 = sbr.rel (%p12) target = $region8
    $region5: #{gpt_forward.23} parent=1 // loop_body
      %s16 = ssub.s32 %s11, 1
      %s17 = ssub.s32 %s11, 2
      %s27 = sadd.s32 1, %s20
      %p28 = scmp.ge.s32.totalorder %s27, 1
      %s29 = scalar_select %p28, 0, %s27
      %s30 = sadd.s32 1, %s19
      %s31 = scalar_select %p28, %s30, %s19
      %p32 = scmp.ge.s32.totalorder %s31, 1
      %s33 = scalar_select %p32, 0, %s31
      %s34 = sadd.s32 1, %s18
      %s35 = scalar_select %p32, %s34, %s18
      %p36 = scmp.ge.s32.totalorder %s35, 4
      %s37 = scalar_select %p36, 0, %s35
      %s38 = ssub.s32 %s18, %s37
      %s39 = ssub.s32 %s20, %s29
      %s40 = sor.u32 %s38, %s39
      %p41 = scmp.eq.s32.totalorder %s40, 0
      %s43 = sadd.s32 %s42, 1
      %s44 = scalar_select %p41, %s42, %s43
      %p47 = pneg %p41
      %p48 = scmp.eq.s32.totalorder %s11, 3
      %p49 = por %p47, %p48
      %p50 = scmp.ne.s32.totalorder %s42, %s45
      %p51 = scmp.eq.s32.totalorder %s11, 0
      %p52 = por %p50, %p51
      %p53 = scmp.ne.s32.totalorder %s42, %s45
      %p54 = scmp.eq.s32.totalorder %s16, 3
      %p55 = por %p53, %p54
      %p56 = scmp.ne.s32.totalorder %s45, %s46
      %p57 = scmp.eq.s32.totalorder %s16, 0
      %p58 = por %p56, %p57
      %p59 = scmp.ne.s32.totalorder %s45, %s46
      %p60 = scmp.eq.s32.totalorder %s17, 3
      %p61 = por %p59, %p60
      %p63 = scmp.ne.s32.totalorder %s46, %s62
      %p64 = scmp.eq.s32.totalorder %s17, 0
      %p65 = por %p63, %p64
      %s66 = ssub.s32 %s20, %s29
      %s67 = ssub.s32 %s19, %s33
      %s68 = sor.u32 %s66, %s67
      %p69 = scmp.eq.s32.totalorder %s68, 0
      %s71 = sadd.s32 %s70, 1
      %s72 = scalar_select %p69, %s70, %s71
      %p75 = pneg %p69
      %p76 = scmp.eq.s32.totalorder %s11, 3
      %p77 = por %p75, %p76
      %p78 = scmp.ne.s32.totalorder %s70, %s73
      %p79 = scmp.eq.s32.totalorder %s11, 0
      %p80 = por %p78, %p79
      %p81 = scmp.ne.s32.totalorder %s70, %s73
      %p82 = scmp.eq.s32.totalorder %s16, 3
      %p83 = por %p81, %p82
      %p84 = scmp.ne.s32.totalorder %s73, %s74
      %p85 = scmp.eq.s32.totalorder %s16, 0
      %p86 = por %p84, %p85
      %p87 = scmp.ne.s32.totalorder %s73, %s74
      %p88 = scmp.eq.s32.totalorder %s17, 3
      %p89 = por %p87, %p88
      %p91 = scmp.ne.s32.totalorder %s74, %s90
      %p92 = scmp.eq.s32.totalorder %s17, 0
      %p93 = por %p91, %p92
      %s94 = ssub.s32 %s18, %s37
      %s95 = ssub.s32 %s19, %s33
      %s96 = sor.u32 %s94, %s95
      %p97 = scmp.eq.s32.totalorder %s96, 0
      %s99 = sadd.s32 %s98, 1
      %s100 = scalar_select %p97, %s98, %s99
      %p103 = pneg %p97
      %p104 = scmp.eq.s32.totalorder %s11, 3
      %p105 = por %p103, %p104
      %p106 = scmp.ne.s32.totalorder %s98, %s101
      %p107 = scmp.eq.s32.totalorder %s11, 0
      %p108 = por %p106, %p107
      %p109 = scmp.ne.s32.totalorder %s98, %s101
      %p110 = scmp.eq.s32.totalorder %s16, 3
      %p111 = por %p109, %p110
      %p112 = scmp.ne.s32.totalorder %s101, %s102
      %p113 = scmp.eq.s32.totalorder %s16, 0
      %p114 = por %p112, %p113
      %p115 = scmp.ne.s32.totalorder %s101, %s102
      %p116 = scmp.eq.s32.totalorder %s17, 3
      %p117 = por %p115, %p116
      %p119 = scmp.ne.s32.totalorder %s102, %s118
      %p120 = scmp.eq.s32.totalorder %s17, 0
      %p121 = por %p119, %p120
      %p122 = scmp.le.s32.totalorder 1, %s11
      %p123 = scmp.lt.s32.totalorder %s11, 5
      %p124 = pnand %p122, %p123
      %p125 = pneg %p124
      // Predicated region
      $region9: #{gpt_forward.23} parent=5 // pred_check
        _
      $region10: #{gpt_forward.23} parent=5 // pred_check_branch
        %127 = sbr.rel (%p124) target = $region12
      $region11: #{gpt_forward.23} parent=5 // pred_region
        %s128 = ssub.s32 %s11, 1
        // Predicated region
        $region13: #{gpt_forward.23} parent=11 // pred_check
          %p129 = pneg %p86
        $region14: #{gpt_forward.23} parent=11 // pred_check_branch
          %131 = sbr.rel (%p129) target = $region16
        $region15: #{gpt_forward.23} parent=11 // pred_region
          %s132 = smul.u32 16, %s23
          %s133 = smul.u32 2, %s22
          %p134 = scmp.lt.s32.totalorder %s132, 15
          %s135 = scalar_select %p134, %s132, 15
          %p136 = scmp.lt.s32.totalorder %s133, 1
          %s137 = scalar_select %p136, %s133, 1
          %s138 = smul.addr %s135, 2
          %s139 = sadd.s32 %s137, %s138
          %s140 = smul.addr %s139, 4
          %s141 = scalar_lea.vmem %s1, %s140
          %s142 = smul.u32 16, %s23
          %s143 = smul.u32 2, %s22
        $region16: #{gpt_forward.23} parent=11 // pred_fallthru
          _
      $region12: #{gpt_forward.23} parent=5 // pred_fallthru
        _
      %p144 = scmp.lt.s32.totalorder %s11, 4
      // Predicated region
      $region17: #{gpt_forward.23} parent=5 // pred_check
        %p145 = pneg %p144
      $region18: #{gpt_forward.23} parent=5 // pred_check_branch
        %147 = sbr.rel (%p145) target = $region20
      $region19: #{gpt_forward.23} parent=5 // pred_region
        // Predicated region
        $region21: #{gpt_forward.23} parent=19 // pred_check
          %p148 = pneg %p52
        $region22: #{gpt_forward.23} parent=19 // pred_check_branch
          %150 = sbr.rel (%p148) target = $region24
        $region23: #{gpt_forward.23} parent=19 // pred_region
          %s151 = smul.u32 16, %s18
          %p152 = scmp.lt.s32.totalorder %s151, 63
          %s153 = scalar_select %p152, %s151, 63
          %p154 = scmp.lt.s32.totalorder %s20, 0
          %s155 = scalar_select %p154, %s20, 0
          %s156 = sadd.s32 %s155, %s153
          %s157 = smul.addr %s156, 8
          %s158 = scalar_lea.vmem %s0, %s157
          %s159 = smul.u32 16, %s18
        $region24: #{gpt_forward.23} parent=19 // pred_fallthru
          _
      $region20: #{gpt_forward.23} parent=5 // pred_fallthru
        _
      %p160 = scmp.le.s32.totalorder 1, %s11
      %p161 = scmp.lt.s32.totalorder %s11, 5
      %p162 = pnand %p160, %p161
      %p163 = pneg %p162
      // Predicated region
      $region25: #{gpt_forward.23} parent=5 // pred_check
        _
      $region26: #{gpt_forward.23} parent=5 // pred_check_branch
        %165 = sbr.rel (%p162) target = $region28
      $region27: #{gpt_forward.23} parent=5 // pred_region
        %s166 = ssub.s32 %s11, 1
        %s167 = smul.u32 16, %s21
        %p168 = scmp.lt.s32.totalorder %s167, 63
        %s169 = scalar_select %p168, %s167, 63
        %p170 = scmp.lt.s32.totalorder %s23, 0
        %s171 = scalar_select %p170, %s23, 0
        %s172 = sadd.s32 %s171, %s169
        %s173 = smul.addr %s172, 8
        %s174 = scalar_lea.vmem %s0, %s173
        %p175 = pneg %p58
        %p176 = pneg %p55
        %s177 = smul.u32 16, %s23
        %s178 = smul.u32 2, %s22
        %p179 = scmp.lt.s32.totalorder %s177, 15
        %s180 = scalar_select %p179, %s177, 15
        %p181 = scmp.lt.s32.totalorder %s178, 1
        %s182 = scalar_select %p181, %s178, 1
        %s183 = smul.addr %s180, 2
        %s184 = sadd.s32 %s182, %s183
        %s185 = smul.addr %s184, 4
        %s186 = scalar_lea.vmem %s1, %s185
        %p187 = pneg %p86
        %p188 = pneg %p83
        %p189 = pneg %p114
        %p190 = pneg %p111
        %s191 = sand.u32 %s101, 1
        %s192 = scalar_lea.sflag [#allocation4], %s191
        %s193 = sand.u32 %s101, 1
        %s194 = smul.addr %s193, 256
        %s195 = scalar_lea.vmem [#allocation3], %s194
        %s196 = smul.u32 16, %s21
        %p197 = scmp.lt.s32.totalorder %s196, 63
        %s198 = scalar_select %p197, %s196, 63
        %p199 = scmp.lt.s32.totalorder %s23, 0
        %s200 = scalar_select %p199, %s23, 0
        %s201 = sadd.s32 %s200, %s198
        %s202 = smul.addr %s201, 8
        %s203 = scalar_lea.vmem %s0, %s202
        %s204 = smul.u32 16, %s21
        %s205 = smul.u32 16, %s23
        %s206 = smul.u32 2, %s22
        %p207 = scmp.lt.s32.totalorder %s205, 15
        %s208 = scalar_select %p207, %s205, 15
        %p209 = scmp.lt.s32.totalorder %s206, 1
        %s210 = scalar_select %p209, %s206, 1
        %s211 = smul.addr %s208, 2
        %s212 = sadd.s32 %s210, %s211
        %s213 = smul.addr %s212, 4
        %s214 = scalar_lea.vmem %s1, %s213
        %s215 = smul.u32 16, %s23
        %s216 = smul.u32 2, %s22
        %s217 = smul.u32 16, %s21
        %s218 = smul.u32 2, %s22
        %p219 = scmp.eq.s32.totalorder %s23, 0
        // Predicated region
        $region29: #{gpt_forward.23} parent=27 // pred_check
          %p220 = pneg %p219
        $region30: #{gpt_forward.23} parent=27 // pred_check_branch
          %222 = sbr.rel (%p220) target = $region32
        $region31: #{gpt_forward.23} parent=27 // pred_region
          %223 = vst [vmem:[#allocation2] sm:$0xff] 0.0
          %224 = vst [vmem:[#allocation2 + $0x8] sm:$0xff] 0.0
          %225 = vst [vmem:[#allocation2 + $0x10] sm:$0xff] 0.0
          %226 = vst [vmem:[#allocation2 + $0x18] sm:$0xff] 0.0
          %227 = vst [vmem:[#allocation2 + $0x20] sm:$0xff] 0.0
          %228 = vst [vmem:[#allocation2 + $0x28] sm:$0xff] 0.0
          %229 = vst [vmem:[#allocation2 + $0x30] sm:$0xff] 0.0
          %230 = vst [vmem:[#allocation2 + $0x38] sm:$0xff] 0.0
          %231 = vst [vmem:[#allocation2 + $0x40] sm:$0xff] 0.0
          %232 = vst [vmem:[#allocation2 + $0x48] sm:$0xff] 0.0
          %233 = vst [vmem:[#allocation2 + $0x50] sm:$0xff] 0.0
          %234 = vst [vmem:[#allocation2 + $0x58] sm:$0xff] 0.0
          %235 = vst [vmem:[#allocation2 + $0x60] sm:$0xff] 0.0
          %236 = vst [vmem:[#allocation2 + $0x68] sm:$0xff] 0.0
          %237 = vst [vmem:[#allocation2 + $0x70] sm:$0xff] 0.0
          %238 = vst [vmem:[#allocation2 + $0x78] sm:$0xff] 0.0
          %239 = vst [vmem:[#allocation2 + $0x80] sm:$0xff] 0.0
          %240 = vst [vmem:[#allocation2 + $0x88] sm:$0xff] 0.0
          %241 = vst [vmem:[#allocation2 + $0x90] sm:$0xff] 0.0
          %242 = vst [vmem:[#allocation2 + $0x98] sm:$0xff] 0.0
          %243 = vst [vmem:[#allocation2 + $0xa0] sm:$0xff] 0.0
          %244 = vst [vmem:[#allocation2 + $0xa8] sm:$0xff] 0.0
          %245 = vst [vmem:[#allocation2 + $0xb0] sm:$0xff] 0.0
          %246 = vst [vmem:[#allocation2 + $0xb8] sm:$0xff] 0.0
          %247 = vst [vmem:[#allocation2 + $0xc0] sm:$0xff] 0.0
          %248 = vst [vmem:[#allocation2 + $0xc8] sm:$0xff] 0.0
          %249 = vst [vmem:[#allocation2 + $0xd0] sm:$0xff] 0.0
          %250 = vst [vmem:[#allocation2 + $0xd8] sm:$0xff] 0.0
          %251 = vst [vmem:[#allocation2 + $0xe0] sm:$0xff] 0.0
          %252 = vst [vmem:[#allocation2 + $0xe8] sm:$0xff] 0.0
          %253 = vst [vmem:[#allocation2 + $0xf0] sm:$0xff] 0.0
          %254 = vst [vmem:[#allocation2 + $0xf8] sm:$0xff] 0.0
        $region32: #{gpt_forward.23} parent=27 // pred_fallthru
          _
        %v255 = vld [vmem:[#allocation2] sm:$0xff]
        %v256 = vld [vmem:[#allocation2 + $0x8] sm:$0xff]
        %v257 = vld [vmem:[#allocation2 + $0x10] sm:$0xff]
        %v258 = vld [vmem:[#allocation2 + $0x18] sm:$0xff]
        %v259 = vld [vmem:[#allocation2 + $0x20] sm:$0xff]
        %v260 = vld [vmem:[#allocation2 + $0x28] sm:$0xff]
        %v261 = vld [vmem:[#allocation2 + $0x30] sm:$0xff]
        %v262 = vld [vmem:[#allocation2 + $0x38] sm:$0xff]
        %v263 = vld [vmem:[#allocation2 + $0x40] sm:$0xff]
        %v264 = vld [vmem:[#allocation2 + $0x48] sm:$0xff]
        %v265 = vld [vmem:[#allocation2 + $0x50] sm:$0xff]
        %v266 = vld [vmem:[#allocation2 + $0x58] sm:$0xff]
        %v267 = vld [vmem:[#allocation2 + $0x60] sm:$0xff]
        %v268 = vld [vmem:[#allocation2 + $0x68] sm:$0xff]
        %v269 = vld [vmem:[#allocation2 + $0x70] sm:$0xff]
        %v270 = vld [vmem:[#allocation2 + $0x78] sm:$0xff]
        %v271 = vld [vmem:[#allocation2 + $0x80] sm:$0xff]
        %v272 = vld [vmem:[#allocation2 + $0x88] sm:$0xff]
        %v273 = vld [vmem:[#allocation2 + $0x90] sm:$0xff]
        %v274 = vld [vmem:[#allocation2 + $0x98] sm:$0xff]
        %v275 = vld [vmem:[#allocation2 + $0xa0] sm:$0xff]
        %v276 = vld [vmem:[#allocation2 + $0xa8] sm:$0xff]
        %v277 = vld [vmem:[#allocation2 + $0xb0] sm:$0xff]
        %v278 = vld [vmem:[#allocation2 + $0xb8] sm:$0xff]
        %v279 = vld [vmem:[#allocation2 + $0xc0] sm:$0xff]
        %v280 = vld [vmem:[#allocation2 + $0xc8] sm:$0xff]
        %v281 = vld [vmem:[#allocation2 + $0xd0] sm:$0xff]
        %v282 = vld [vmem:[#allocation2 + $0xd8] sm:$0xff]
        %v283 = vld [vmem:[#allocation2 + $0xe0] sm:$0xff]
        %v284 = vld [vmem:[#allocation2 + $0xe8] sm:$0xff]
        %v285 = vld [vmem:[#allocation2 + $0xf0] sm:$0xff]
        %v286 = vld [vmem:[#allocation2 + $0xf8] sm:$0xff]
        %v287 = vld [vmem:[%s203] sm:$0xff]
        %v288 = vld [vmem:[%s203 + $0x8] sm:$0xff]
        %v289 = vld [vmem:[%s203 + $0x10] sm:$0xff]
        %v290 = vld [vmem:[%s203 + $0x18] sm:$0xff]
        %v291 = vld [vmem:[%s203 + $0x20] sm:$0xff]
        %v292 = vld [vmem:[%s203 + $0x28] sm:$0xff]
        %v293 = vld [vmem:[%s203 + $0x30] sm:$0xff]
        %v294 = vld [vmem:[%s203 + $0x38] sm:$0xff]
        %v295 = vld [vmem:[%s203 + $0x40] sm:$0xff]
        %v296 = vld [vmem:[%s203 + $0x48] sm:$0xff]
        %v297 = vld [vmem:[%s203 + $0x50] sm:$0xff]
        %v298 = vld [vmem:[%s203 + $0x58] sm:$0xff]
        %v299 = vld [vmem:[%s203 + $0x60] sm:$0xff]
        %v300 = vld [vmem:[%s203 + $0x68] sm:$0xff]
        %v301 = vld [vmem:[%s203 + $0x70] sm:$0xff]
        %v302 = vld [vmem:[%s203 + $0x78] sm:$0xff]
        %v303 = vpack.c.bf16 %v288, %v287
        %v304 = vpack.c.bf16 %v290, %v289
        %v305 = vpack.c.bf16 %v292, %v291
        %v306 = vpack.c.bf16 %v294, %v293
        %v307 = vpack.c.bf16 %v296, %v295
        %v308 = vpack.c.bf16 %v298, %v297
        %v309 = vpack.c.bf16 %v300, %v299
        %v310 = vpack.c.bf16 %v302, %v301
        %v311 = vld [vmem:[%s214] sm:$0xff]
        %v312 = vld [vmem:[%s214 + $0x8] sm:$0xff]
        %v313 = vld [vmem:[%s214 + $0x10] sm:$0xff]
        %v314 = vld [vmem:[%s214 + $0x18] sm:$0xff]
        %v315 = vld [vmem:[%s214 + $0x20] sm:$0xff]
        %v316 = vld [vmem:[%s214 + $0x28] sm:$0xff]
        %v317 = vld [vmem:[%s214 + $0x30] sm:$0xff]
        %v318 = vld [vmem:[%s214 + $0x38] sm:$0xff]
        %v319 = vld [vmem:[%s214 + $0x40] sm:$0xff]
        %v320 = vld [vmem:[%s214 + $0x48] sm:$0xff]
        %v321 = vld [vmem:[%s214 + $0x50] sm:$0xff]
        %v322 = vld [vmem:[%s214 + $0x58] sm:$0xff]
        %v323 = vld [vmem:[%s214 + $0x60] sm:$0xff]
        %v324 = vld [vmem:[%s214 + $0x68] sm:$0xff]
        %v325 = vld [vmem:[%s214 + $0x70] sm:$0xff]
        %v326 = vld [vmem:[%s214 + $0x78] sm:$0xff]
        %v343 = vunpack.c.l.b16 %v311
        %v344 = vunpack.c.h.b16 %v311
        %v345 = vunpack.c.l.b16 %v312
        %v346 = vunpack.c.h.b16 %v312
        %v347 = vunpack.c.l.b16 %v313
        %v348 = vunpack.c.h.b16 %v313
        %v349 = vunpack.c.l.b16 %v314
        %v350 = vunpack.c.h.b16 %v314
        %v351 = vunpack.c.l.b16 %v315
        %v352 = vunpack.c.h.b16 %v315
        %v353 = vunpack.c.l.b16 %v316
        %v354 = vunpack.c.h.b16 %v316
        %v355 = vunpack.c.l.b16 %v317
        %v356 = vunpack.c.h.b16 %v317
        %v357 = vunpack.c.l.b16 %v318
        %v358 = vunpack.c.h.b16 %v318
        %v359 = vunpack.c.l.b16 %v319
        %v360 = vunpack.c.h.b16 %v319
        %v361 = vunpack.c.l.b16 %v320
        %v362 = vunpack.c.h.b16 %v320
        %v363 = vunpack.c.l.b16 %v321
        %v364 = vunpack.c.h.b16 %v321
        %v365 = vunpack.c.l.b16 %v322
        %v366 = vunpack.c.h.b16 %v322
        %v367 = vunpack.c.l.b16 %v323
        %v368 = vunpack.c.h.b16 %v323
        %v369 = vunpack.c.l.b16 %v324
        %v370 = vunpack.c.h.b16 %v324
        %v371 = vunpack.c.l.b16 %v325
        %v372 = vunpack.c.h.b16 %v325
        %v373 = vunpack.c.l.b16 %v326
        %v374 = vunpack.c.h.b16 %v326
        %v375 = vpack.c.b16 %v345, %v343
        %v376 = vpack.c.b16 %v346, %v344
        %v377 = vpack.c.b16 %v349, %v347
        %v378 = vpack.c.b16 %v350, %v348
        %v379 = vpack.c.b16 %v353, %v351
        %v380 = vpack.c.b16 %v354, %v352
        %v381 = vpack.c.b16 %v357, %v355
        %v382 = vpack.c.b16 %v358, %v356
        %v383 = vpack.c.b16 %v361, %v359
        %v384 = vpack.c.b16 %v362, %v360
        %v385 = vpack.c.b16 %v365, %v363
        %v386 = vpack.c.b16 %v366, %v364
        %v387 = vpack.c.b16 %v369, %v367
        %v388 = vpack.c.b16 %v370, %v368
        %v389 = vpack.c.b16 %v373, %v371
        %v390 = vpack.c.b16 %v374, %v372
        %407 = vmatpush.bf16.msra.mxu0 %v389
        %408 = vmatpush.bf16.msra.mxu0 %v387
        %409 = vmatpush.bf16.msra.mxu0 %v385
        %410 = vmatpush.bf16.msra.mxu0 %v383
        %411 = vmatpush.bf16.msra.mxu0 %v381
        %412 = vmatpush.bf16.msra.mxu0 %v379
        %413 = vmatpush.bf16.msra.mxu0 %v377
        %414 = vmatpush.bf16.msra.mxu0 %v375
        %415 = vmatmul.bf16.gmra.mxu0 %v303
        %v416 = vpop.f32.mrf.mxu0
        %v417 = vadd.f32 0.0, %v416
        %v418 = vpop.f32.mrf.mxu0
        %v419 = vadd.f32 0.0, %v418
        %420 = vmatmul.bf16.gmra.mxu0 %v304
        %v421 = vpop.f32.mrf.mxu0
        %v422 = vadd.f32 0.0, %v421
        %v423 = vpop.f32.mrf.mxu0
        %v424 = vadd.f32 0.0, %v423
        %425 = vmatmul.bf16.gmra.mxu0 %v305
        %v426 = vpop.f32.mrf.mxu0
        %v427 = vadd.f32 0.0, %v426
        %v428 = vpop.f32.mrf.mxu0
        %v429 = vadd.f32 0.0, %v428
        %430 = vmatmul.bf16.gmra.mxu0 %v306
        %v431 = vpop.f32.mrf.mxu0
        %v432 = vadd.f32 0.0, %v431
        %v433 = vpop.f32.mrf.mxu0
        %v434 = vadd.f32 0.0, %v433
        %435 = vmatmul.bf16.gmra.mxu0 %v307
        %v436 = vpop.f32.mrf.mxu0
        %v437 = vadd.f32 0.0, %v436
        %v438 = vpop.f32.mrf.mxu0
        %v439 = vadd.f32 0.0, %v438
        %440 = vmatmul.bf16.gmra.mxu0 %v308
        %v441 = vpop.f32.mrf.mxu0
        %v442 = vadd.f32 0.0, %v441
        %v443 = vpop.f32.mrf.mxu0
        %v444 = vadd.f32 0.0, %v443
        %445 = vmatmul.bf16.gmra.mxu0 %v309
        %v446 = vpop.f32.mrf.mxu0
        %v447 = vadd.f32 0.0, %v446
        %v448 = vpop.f32.mrf.mxu0
        %v449 = vadd.f32 0.0, %v448
        %450 = vmatmul.bf16.gmra.mxu0 %v310
        %v451 = vpop.f32.mrf.mxu0
        %v452 = vadd.f32 0.0, %v451
        %v453 = vpop.f32.mrf.mxu0
        %v454 = vadd.f32 0.0, %v453
        %455 = vdwg.mxu0
        %456 = vmatpush.bf16.msra.mxu0 %v390
        %457 = vmatpush.bf16.msra.mxu0 %v388
        %458 = vmatpush.bf16.msra.mxu0 %v386
        %459 = vmatpush.bf16.msra.mxu0 %v384
        %460 = vmatpush.bf16.msra.mxu0 %v382
        %461 = vmatpush.bf16.msra.mxu0 %v380
        %462 = vmatpush.bf16.msra.mxu0 %v378
        %463 = vmatpush.bf16.msra.mxu0 %v376
        %464 = vmatmul.bf16.gmra.mxu0 %v303
        %v465 = vpop.f32.mrf.mxu0
        %v466 = vadd.f32 0.0, %v465
        %v467 = vpop.f32.mrf.mxu0
        %v468 = vadd.f32 0.0, %v467
        %469 = vmatmul.bf16.gmra.mxu0 %v304
        %v470 = vpop.f32.mrf.mxu0
        %v471 = vadd.f32 0.0, %v470
        %v472 = vpop.f32.mrf.mxu0
        %v473 = vadd.f32 0.0, %v472
        %474 = vmatmul.bf16.gmra.mxu0 %v305
        %v475 = vpop.f32.mrf.mxu0
        %v476 = vadd.f32 0.0, %v475
        %v477 = vpop.f32.mrf.mxu0
        %v478 = vadd.f32 0.0, %v477
        %479 = vmatmul.bf16.gmra.mxu0 %v306
        %v480 = vpop.f32.mrf.mxu0
        %v481 = vadd.f32 0.0, %v480
        %v482 = vpop.f32.mrf.mxu0
        %v483 = vadd.f32 0.0, %v482
        %484 = vmatmul.bf16.gmra.mxu0 %v307
        %v485 = vpop.f32.mrf.mxu0
        %v486 = vadd.f32 0.0, %v485
        %v487 = vpop.f32.mrf.mxu0
        %v488 = vadd.f32 0.0, %v487
        %489 = vmatmul.bf16.gmra.mxu0 %v308
        %v490 = vpop.f32.mrf.mxu0
        %v491 = vadd.f32 0.0, %v490
        %v492 = vpop.f32.mrf.mxu0
        %v493 = vadd.f32 0.0, %v492
        %494 = vmatmul.bf16.gmra.mxu0 %v309
        %v495 = vpop.f32.mrf.mxu0
        %v496 = vadd.f32 0.0, %v495
        %v497 = vpop.f32.mrf.mxu0
        %v498 = vadd.f32 0.0, %v497
        %499 = vmatmul.bf16.gmra.mxu0 %v310
        %v500 = vpop.f32.mrf.mxu0
        %v501 = vadd.f32 0.0, %v500
        %v502 = vpop.f32.mrf.mxu0
        %v503 = vadd.f32 0.0, %v502
        %504 = vdwg.mxu0
        %v505 = vadd.f32 %v255, %v417
        %v506 = vadd.f32 %v256, %v466
        %v507 = vadd.f32 %v257, %v419
        %v508 = vadd.f32 %v258, %v468
        %v509 = vadd.f32 %v259, %v422
        %v510 = vadd.f32 %v260, %v471
        %v511 = vadd.f32 %v261, %v424
        %v512 = vadd.f32 %v262, %v473
        %v513 = vadd.f32 %v263, %v427
        %v514 = vadd.f32 %v264, %v476
        %v515 = vadd.f32 %v265, %v429
        %v516 = vadd.f32 %v266, %v478
        %v517 = vadd.f32 %v267, %v432
        %v518 = vadd.f32 %v268, %v481
        %v519 = vadd.f32 %v269, %v434
        %v520 = vadd.f32 %v270, %v483
        %v521 = vadd.f32 %v271, %v437
        %v522 = vadd.f32 %v272, %v486
        %v523 = vadd.f32 %v273, %v439
        %v524 = vadd.f32 %v274, %v488
        %v525 = vadd.f32 %v275, %v442
        %v526 = vadd.f32 %v276, %v491
        %v527 = vadd.f32 %v277, %v444
        %v528 = vadd.f32 %v278, %v493
        %v529 = vadd.f32 %v279, %v447
        %v530 = vadd.f32 %v280, %v496
        %v531 = vadd.f32 %v281, %v449
        %v532 = vadd.f32 %v282, %v498
        %v533 = vadd.f32 %v283, %v452
        %v534 = vadd.f32 %v284, %v501
        %v535 = vadd.f32 %v285, %v454
        %v536 = vadd.f32 %v286, %v503
        %537 = vst [vmem:[#allocation2] sm:$0xff] %v505
        %538 = vst [vmem:[#allocation2 + $0x8] sm:$0xff] %v506
        %539 = vst [vmem:[#allocation2 + $0x10] sm:$0xff] %v507
        %540 = vst [vmem:[#allocation2 + $0x18] sm:$0xff] %v508
        %541 = vst [vmem:[#allocation2 + $0x20] sm:$0xff] %v509
        %542 = vst [vmem:[#allocation2 + $0x28] sm:$0xff] %v510
        %543 = vst [vmem:[#allocation2 + $0x30] sm:$0xff] %v511
        %544 = vst [vmem:[#allocation2 + $0x38] sm:$0xff] %v512
        %545 = vst [vmem:[#allocation2 + $0x40] sm:$0xff] %v513
        %546 = vst [vmem:[#allocation2 + $0x48] sm:$0xff] %v514
        %547 = vst [vmem:[#allocation2 + $0x50] sm:$0xff] %v515
        %548 = vst [vmem:[#allocation2 + $0x58] sm:$0xff] %v516
        %549 = vst [vmem:[#allocation2 + $0x60] sm:$0xff] %v517
        %550 = vst [vmem:[#allocation2 + $0x68] sm:$0xff] %v518
        %551 = vst [vmem:[#allocation2 + $0x70] sm:$0xff] %v519
        %552 = vst [vmem:[#allocation2 + $0x78] sm:$0xff] %v520
        %553 = vst [vmem:[#allocation2 + $0x80] sm:$0xff] %v521
        %554 = vst [vmem:[#allocation2 + $0x88] sm:$0xff] %v522
        %555 = vst [vmem:[#allocation2 + $0x90] sm:$0xff] %v523
        %556 = vst [vmem:[#allocation2 + $0x98] sm:$0xff] %v524
        %557 = vst [vmem:[#allocation2 + $0xa0] sm:$0xff] %v525
        %558 = vst [vmem:[#allocation2 + $0xa8] sm:$0xff] %v526
        %559 = vst [vmem:[#allocation2 + $0xb0] sm:$0xff] %v527
        %560 = vst [vmem:[#allocation2 + $0xb8] sm:$0xff] %v528
        %561 = vst [vmem:[#allocation2 + $0xc0] sm:$0xff] %v529
        %562 = vst [vmem:[#allocation2 + $0xc8] sm:$0xff] %v530
        %563 = vst [vmem:[#allocation2 + $0xd0] sm:$0xff] %v531
        %564 = vst [vmem:[#allocation2 + $0xd8] sm:$0xff] %v532
        %565 = vst [vmem:[#allocation2 + $0xe0] sm:$0xff] %v533
        %566 = vst [vmem:[#allocation2 + $0xe8] sm:$0xff] %v534
        %567 = vst [vmem:[#allocation2 + $0xf0] sm:$0xff] %v535
        %568 = vst [vmem:[#allocation2 + $0xf8] sm:$0xff] %v536
        // Predicated region
        $region33: #{gpt_forward.23} parent=27 // pred_check
          %p569 = pneg %p219
        $region34: #{gpt_forward.23} parent=27 // pred_check_branch
          %571 = sbr.rel (%p569) target = $region36
        $region35: #{gpt_forward.23} parent=27 // pred_region
          %v572 = vld [vmem:[#allocation2] sm:$0xff]
          %v573 = vld [vmem:[#allocation2 + $0x8] sm:$0xff]
          %v574 = vld [vmem:[#allocation2 + $0x10] sm:$0xff]
          %v575 = vld [vmem:[#allocation2 + $0x18] sm:$0xff]
          %v576 = vld [vmem:[#allocation2 + $0x20] sm:$0xff]
          %v577 = vld [vmem:[#allocation2 + $0x28] sm:$0xff]
          %v578 = vld [vmem:[#allocation2 + $0x30] sm:$0xff]
          %v579 = vld [vmem:[#allocation2 + $0x38] sm:$0xff]
          %v580 = vld [vmem:[#allocation2 + $0x40] sm:$0xff]
          %v581 = vld [vmem:[#allocation2 + $0x48] sm:$0xff]
          %v582 = vld [vmem:[#allocation2 + $0x50] sm:$0xff]
          %v583 = vld [vmem:[#allocation2 + $0x58] sm:$0xff]
          %v584 = vld [vmem:[#allocation2 + $0x60] sm:$0xff]
          %v585 = vld [vmem:[#allocation2 + $0x68] sm:$0xff]
          %v586 = vld [vmem:[#allocation2 + $0x70] sm:$0xff]
          %v587 = vld [vmem:[#allocation2 + $0x78] sm:$0xff]
          %v588 = vld [vmem:[#allocation2 + $0x80] sm:$0xff]
          %v589 = vld [vmem:[#allocation2 + $0x88] sm:$0xff]
          %v590 = vld [vmem:[#allocation2 + $0x90] sm:$0xff]
          %v591 = vld [vmem:[#allocation2 + $0x98] sm:$0xff]
          %v592 = vld [vmem:[#allocation2 + $0xa0] sm:$0xff]
          %v593 = vld [vmem:[#allocation2 + $0xa8] sm:$0xff]
          %v594 = vld [vmem:[#allocation2 + $0xb0] sm:$0xff]
          %v595 = vld [vmem:[#allocation2 + $0xb8] sm:$0xff]
          %v596 = vld [vmem:[#allocation2 + $0xc0] sm:$0xff]
          %v597 = vld [vmem:[#allocation2 + $0xc8] sm:$0xff]
          %v598 = vld [vmem:[#allocation2 + $0xd0] sm:$0xff]
          %v599 = vld [vmem:[#allocation2 + $0xd8] sm:$0xff]
          %v600 = vld [vmem:[#allocation2 + $0xe0] sm:$0xff]
          %v601 = vld [vmem:[#allocation2 + $0xe8] sm:$0xff]
          %v602 = vld [vmem:[#allocation2 + $0xf0] sm:$0xff]
          %v603 = vld [vmem:[#allocation2 + $0xf8] sm:$0xff]
          %604 = vst [vmem:[%s195] sm:$0xff] %v572
          %605 = vst [vmem:[%s195 + $0x8] sm:$0xff] %v573
          %606 = vst [vmem:[%s195 + $0x10] sm:$0xff] %v574
          %607 = vst [vmem:[%s195 + $0x18] sm:$0xff] %v575
          %608 = vst [vmem:[%s195 + $0x20] sm:$0xff] %v576
          %609 = vst [vmem:[%s195 + $0x28] sm:$0xff] %v577
          %610 = vst [vmem:[%s195 + $0x30] sm:$0xff] %v578
          %611 = vst [vmem:[%s195 + $0x38] sm:$0xff] %v579
          %612 = vst [vmem:[%s195 + $0x40] sm:$0xff] %v580
          %613 = vst [vmem:[%s195 + $0x48] sm:$0xff] %v581
          %614 = vst [vmem:[%s195 + $0x50] sm:$0xff] %v582
          %615 = vst [vmem:[%s195 + $0x58] sm:$0xff] %v583
          %616 = vst [vmem:[%s195 + $0x60] sm:$0xff] %v584
          %617 = vst [vmem:[%s195 + $0x68] sm:$0xff] %v585
          %618 = vst [vmem:[%s195 + $0x70] sm:$0xff] %v586
          %619 = vst [vmem:[%s195 + $0x78] sm:$0xff] %v587
          %620 = vst [vmem:[%s195 + $0x80] sm:$0xff] %v588
          %621 = vst [vmem:[%s195 + $0x88] sm:$0xff] %v589
          %622 = vst [vmem:[%s195 + $0x90] sm:$0xff] %v590
          %623 = vst [vmem:[%s195 + $0x98] sm:$0xff] %v591
          %624 = vst [vmem:[%s195 + $0xa0] sm:$0xff] %v592
          %625 = vst [vmem:[%s195 + $0xa8] sm:$0xff] %v593
          %626 = vst [vmem:[%s195 + $0xb0] sm:$0xff] %v594
          %627 = vst [vmem:[%s195 + $0xb8] sm:$0xff] %v595
          %628 = vst [vmem:[%s195 + $0xc0] sm:$0xff] %v596
          %629 = vst [vmem:[%s195 + $0xc8] sm:$0xff] %v597
          %630 = vst [vmem:[%s195 + $0xd0] sm:$0xff] %v598
          %631 = vst [vmem:[%s195 + $0xd8] sm:$0xff] %v599
          %632 = vst [vmem:[%s195 + $0xe0] sm:$0xff] %v600
          %633 = vst [vmem:[%s195 + $0xe8] sm:$0xff] %v601
          %634 = vst [vmem:[%s195 + $0xf0] sm:$0xff] %v602
          %635 = vst [vmem:[%s195 + $0xf8] sm:$0xff] %v603
        $region36: #{gpt_forward.23} parent=27 // pred_fallthru
          _
        %s636 = sand.u32 %s101, 1
        %s637 = scalar_lea.sflag [#allocation4], %s636
        %s638 = sand.u32 %s101, 1
        %s639 = smul.addr %s638, 256
        %s640 = scalar_lea.vmem [#allocation3], %s639
        // Predicated region
        $region37: #{gpt_forward.23} parent=27 // pred_check
          %p641 = pneg %p111
        $region38: #{gpt_forward.23} parent=27 // pred_check_branch
          %643 = sbr.rel (%p641) target = $region40
        $region39: #{gpt_forward.23} parent=27 // pred_region
          %s644 = smul.u32 16, %s21
          %s645 = smul.u32 2, %s22
          %647 = vsyncadd %s637, 0
          %s648 = smul.addr %s644, 2
          %s649 = sadd.s32 %s645, %s648
          %s650 = smul.addr %s649, 8
          %s651 = scalar_lea.hbm %s2, %s650
          %s652 = sshll.u32 %s640, 4
          %s653 = int_to_ptr.vmem [resolvable:$true] %s652
          %s654 = sshll.u32 %s651, 4
          %s655 = int_to_ptr.hbm [resolvable:$true] %s654
          %660 = dma.vmem_to_hbm [thread:$0]  %s653, 4096, %s655, %s637, 256, 256, 16
        $region40: #{gpt_forward.23} parent=27 // pred_fallthru
          _
      $region28: #{gpt_forward.23} parent=5 // pred_fallthru
        _
      %p661 = scmp.le.s32.totalorder 2, %s11
      // Predicated region
      $region41: #{gpt_forward.23} parent=5 // pred_check
        %p662 = pneg %p661
      $region42: #{gpt_forward.23} parent=5 // pred_check_branch
        %664 = sbr.rel (%p662) target = $region44
      $region43: #{gpt_forward.23} parent=5 // pred_region
        %s665 = ssub.s32 %s11, 2
        // Predicated region
        $region45: #{gpt_forward.23} parent=43 // pred_check
          %p666 = pneg %p117
        $region46: #{gpt_forward.23} parent=43 // pred_check_branch
          %668 = sbr.rel (%p666) target = $region48
        $region47: #{gpt_forward.23} parent=43 // pred_region
          %s669 = sand.u32 %s102, 1
          %s670 = scalar_lea.sflag [#allocation4], %s669
          %s671 = sand.u32 %s102, 1
          %s672 = smul.addr %s671, 256
          %s673 = scalar_lea.vmem [#allocation3], %s672
          %675 = dma.done %s670, 4096
        $region48: #{gpt_forward.23} parent=43 // pred_fallthru
          _
      $region44: #{gpt_forward.23} parent=5 // pred_fallthru
        _
    $region6: #{gpt_forward.23} parent=1 // loop_footer
      %s15 = sadd.s32 1, %s11
    $region7: #{gpt_forward.23} parent=1 // loop_footer_branch
      %10 = sbr.rel target = $region3
    $region8: #{gpt_forward.23} parent=1 // loop_exit
      _
    %676 = vsyncpa [#allocation4], 1
    %s677 = scalar_lea.sflag [#allocation4], 1
    %678 = vsyncpa %s677, 1

// kernel: gpt_forward.22
$region0: #{gpt_forward.22}
  #allocation0 [shape = 'u32[]', space=smem, size = 0x4, offset = 0x4, fixed_abs, tag = 'smem constant byte address 0x4 - core index']
  #allocation1 [shape = 'u32[72,128]{1,0:T(1,128)}', space=vmem, size = 0x9000, scoped, tag = 'internal scratch']
  %s0 = inlined_call_operand.vmem [shape: f32[512,128], index: 0, kind: input, shape index: {}]
  %s1 = inlined_call_operand.vmem [shape: f32[1,128], index: 1, kind: input, shape index: {}]
  %s2 = inlined_call_operand.vmem [shape: f32[1,128], index: 2, kind: input, shape index: {}]
  %s3 = inlined_call_operand.vmem [shape: f32[512,128], index: 3, kind: output, shape index: {}]
  %s4 = sld [smem:[#allocation0]]
  $region45: #{gpt_forward.22} parent=0
    _
  %s6 = ssub.s32 1, %s4
  %s7 = scalar_select 0, %s6, %s4
  loop: start=0, step=1, limit=4
  $region2: #{gpt_forward.22} parent=0 // loop_pre_header
    _
  $region3: #{gpt_forward.22} parent=0 // loop_header
    %s9 = sphi 0, %s13
    %p10 = scmp.ge.s32.totalorder %s9, 4
    %s19 = sphi 0, %s21
    %s22 = sphi 0, %s19
    %s23 = sphi 0, %s22
    %s39 = sphi 0, %s23
    %s43 = sphi 0, %s43
    %s45 = sphi 0, %s43
    %s46 = sphi 0, %s45
    %s60 = sphi 0, %s46
    %s64 = sphi 0, %s64
    %s66 = sphi 0, %s64
    %s67 = sphi 0, %s66
    %s81 = sphi 0, %s67
    %s87 = sphi 0, %s89
    %s90 = sphi 0, %s87
    %s91 = sphi 0, %s90
    %s107 = sphi 0, %s91
  $region4: #{gpt_forward.22} parent=0 // loop_header_branch
    %12 = sbr.rel (%p10) target = $region8
  $region5: #{gpt_forward.22} parent=0 // loop_body
    %s14 = ssub.s32 %s9, 1
    %s15 = ssub.s32 %s9, 2
    %s16 = sadd.s32 %s9, 1
    %s17 = ssub.s32 %s9, %s16
    %p18 = scmp.eq.s32.totalorder %s17, 0
    %s20 = sadd.s32 %s19, 1
    %s21 = scalar_select %p18, %s19, %s20
    %p24 = pneg %p18
    %p25 = scmp.eq.s32.totalorder %s9, 1
    %p26 = por %p24, %p25
    %p27 = scmp.ne.s32.totalorder %s19, %s22
    %p28 = scmp.eq.s32.totalorder %s9, 0
    %p29 = por %p27, %p28
    %p30 = scmp.ne.s32.totalorder %s19, %s22
    %p31 = scmp.eq.s32.totalorder %s14, 1
    %p32 = por %p30, %p31
    %p33 = scmp.ne.s32.totalorder %s22, %s23
    %p34 = scmp.eq.s32.totalorder %s14, 0
    %p35 = por %p33, %p34
    %p36 = scmp.ne.s32.totalorder %s22, %s23
    %p37 = scmp.eq.s32.totalorder %s15, 1
    %p38 = por %p36, %p37
    %p40 = scmp.ne.s32.totalorder %s23, %s39
    %p41 = scmp.eq.s32.totalorder %s15, 0
    %p42 = por %p40, %p41
    %s44 = sadd.s32 %s43, 1
    %p47 = scmp.eq.s32.totalorder %s9, 1
    %p48 = scmp.ne.s32.totalorder %s43, %s45
    %p49 = scmp.eq.s32.totalorder %s9, 0
    %p50 = por %p48, %p49
    %p51 = scmp.ne.s32.totalorder %s43, %s45
    %p52 = scmp.eq.s32.totalorder %s14, 1
    %p53 = por %p51, %p52
    %p54 = scmp.ne.s32.totalorder %s45, %s46
    %p55 = scmp.eq.s32.totalorder %s14, 0
    %p56 = por %p54, %p55
    %p57 = scmp.ne.s32.totalorder %s45, %s46
    %p58 = scmp.eq.s32.totalorder %s15, 1
    %p59 = por %p57, %p58
    %p61 = scmp.ne.s32.totalorder %s46, %s60
    %p62 = scmp.eq.s32.totalorder %s15, 0
    %p63 = por %p61, %p62
    %s65 = sadd.s32 %s64, 1
    %p68 = scmp.eq.s32.totalorder %s9, 1
    %p69 = scmp.ne.s32.totalorder %s64, %s66
    %p70 = scmp.eq.s32.totalorder %s9, 0
    %p71 = por %p69, %p70
    %p72 = scmp.ne.s32.totalorder %s64, %s66
    %p73 = scmp.eq.s32.totalorder %s14, 1
    %p74 = por %p72, %p73
    %p75 = scmp.ne.s32.totalorder %s66, %s67
    %p76 = scmp.eq.s32.totalorder %s14, 0
    %p77 = por %p75, %p76
    %p78 = scmp.ne.s32.totalorder %s66, %s67
    %p79 = scmp.eq.s32.totalorder %s15, 1
    %p80 = por %p78, %p79
    %p82 = scmp.ne.s32.totalorder %s67, %s81
    %p83 = scmp.eq.s32.totalorder %s15, 0
    %p84 = por %p82, %p83
    %s85 = ssub.s32 %s9, %s16
    %p86 = scmp.eq.s32.totalorder %s85, 0
    %s88 = sadd.s32 %s87, 1
    %s89 = scalar_select %p86, %s87, %s88
    %p92 = pneg %p86
    %p93 = scmp.eq.s32.totalorder %s9, 1
    %p94 = por %p92, %p93
    %p95 = scmp.ne.s32.totalorder %s87, %s90
    %p96 = scmp.eq.s32.totalorder %s9, 0
    %p97 = por %p95, %p96
    %p98 = scmp.ne.s32.totalorder %s87, %s90
    %p99 = scmp.eq.s32.totalorder %s14, 1
    %p100 = por %p98, %p99
    %p101 = scmp.ne.s32.totalorder %s90, %s91
    %p102 = scmp.eq.s32.totalorder %s14, 0
    %p103 = por %p101, %p102
    %p104 = scmp.ne.s32.totalorder %s90, %s91
    %p105 = scmp.eq.s32.totalorder %s15, 1
    %p106 = por %p104, %p105
    %p108 = scmp.ne.s32.totalorder %s91, %s107
    %p109 = scmp.eq.s32.totalorder %s15, 0
    %p110 = por %p108, %p109
    %p111 = scmp.le.s32.totalorder 1, %s9
    %p112 = scmp.lt.s32.totalorder %s9, 3
    %p113 = pnand %p111, %p112
    %p114 = pneg %p113
    // Predicated region
    $region9: #{gpt_forward.22} parent=5 // pred_check
      _
    $region10: #{gpt_forward.22} parent=5 // pred_check_branch
      %116 = sbr.rel (%p113) target = $region12
    $region11: #{gpt_forward.22} parent=5 // pred_region
      %s117 = ssub.s32 %s9, 1
      // Predicated region
      $region13: #{gpt_forward.22} parent=11 // pred_check
        %p118 = pneg %p56
      $region14: #{gpt_forward.22} parent=11 // pred_check_branch
        %120 = sbr.rel (%p118) target = $region16
      $region15: #{gpt_forward.22} parent=11 // pred_region
        _
      $region16: #{gpt_forward.22} parent=11 // pred_fallthru
        _
      // Predicated region
      $region17: #{gpt_forward.22} parent=11 // pred_check
        %p121 = pneg %p77
      $region18: #{gpt_forward.22} parent=11 // pred_check_branch
        %123 = sbr.rel (%p121) target = $region20
      $region19: #{gpt_forward.22} parent=11 // pred_region
        _
      $region20: #{gpt_forward.22} parent=11 // pred_fallthru
        _
    $region12: #{gpt_forward.22} parent=5 // pred_fallthru
      _
    %p124 = scmp.lt.s32.totalorder %s9, 2
    // Predicated region
    $region21: #{gpt_forward.22} parent=5 // pred_check
      %p125 = pneg %p124
    $region22: #{gpt_forward.22} parent=5 // pred_check_branch
      %127 = sbr.rel (%p125) target = $region24
    $region23: #{gpt_forward.22} parent=5 // pred_region
      // Predicated region
      $region25: #{gpt_forward.22} parent=23 // pred_check
        %p128 = pneg %p29
      $region26: #{gpt_forward.22} parent=23 // pred_check_branch
        %130 = sbr.rel (%p128) target = $region28
      $region27: #{gpt_forward.22} parent=23 // pred_region
        %s131 = smul.u32 32, %s9
        %p132 = scmp.lt.s32.totalorder %s131, 63
        %s133 = scalar_select %p132, %s131, 63
        %s134 = smul.addr %s133, 8
        %s135 = scalar_lea.vmem %s0, %s134
        %s136 = smul.u32 32, %s9
      $region28: #{gpt_forward.22} parent=23 // pred_fallthru
        _
    $region24: #{gpt_forward.22} parent=5 // pred_fallthru
      _
    %p137 = scmp.le.s32.totalorder 1, %s9
    %p138 = scmp.lt.s32.totalorder %s9, 3
    %p139 = pnand %p137, %p138
    %p140 = pneg %p139
    // Predicated region
    $region29: #{gpt_forward.22} parent=5 // pred_check
      _
    $region30: #{gpt_forward.22} parent=5 // pred_check_branch
      %142 = sbr.rel (%p139) target = $region32
    $region31: #{gpt_forward.22} parent=5 // pred_region
      %s143 = ssub.s32 %s9, 1
      %s144 = smul.u32 32, %s14
      %p145 = scmp.lt.s32.totalorder %s144, 63
      %s146 = scalar_select %p145, %s144, 63
      %s147 = smul.addr %s146, 8
      %s148 = scalar_lea.vmem %s0, %s147
      %p149 = pneg %p35
      %p150 = pneg %p32
      %p151 = pneg %p56
      %p152 = pneg %p53
      %p153 = pneg %p77
      %p154 = pneg %p74
      %p155 = pneg %p103
      %p156 = pneg %p100
      %s157 = smul.u32 32, %s14
      %p158 = scmp.lt.s32.totalorder %s157, 63
      %s159 = scalar_select %p158, %s157, 63
      %s160 = smul.addr %s159, 8
      %s161 = scalar_lea.vmem %s3, %s160
      %s162 = smul.u32 32, %s14
      %p163 = scmp.lt.s32.totalorder %s162, 63
      %s164 = scalar_select %p163, %s162, 63
      %s165 = smul.addr %s164, 8
      %s166 = scalar_lea.vmem %s0, %s165
      %s167 = smul.u32 32, %s14
      %s168 = smul.u32 32, %s14
      %p169 = scmp.lt.s32.totalorder %s168, 63
      %s170 = scalar_select %p169, %s168, 63
      %s171 = smul.addr %s170, 8
      %s172 = scalar_lea.vmem %s3, %s171
      %s173 = smul.u32 32, %s14
      %v174 = vld [vmem:[%s166] sm:$0xff]
      %v175 = vld [vmem:[%s166 + $0x8] sm:$0xff]
      %v176 = vld [vmem:[%s166 + $0x10] sm:$0xff]
      %v177 = vld [vmem:[%s166 + $0x18] sm:$0xff]
      %v178 = vld [vmem:[%s166 + $0x20] sm:$0xff]
      %v179 = vld [vmem:[%s166 + $0x28] sm:$0xff]
      %v180 = vld [vmem:[%s166 + $0x30] sm:$0xff]
      %v181 = vld [vmem:[%s166 + $0x38] sm:$0xff]
      %v182 = vld [vmem:[%s166 + $0x40] sm:$0xff]
      %v183 = vld [vmem:[%s166 + $0x48] sm:$0xff]
      %v184 = vld [vmem:[%s166 + $0x50] sm:$0xff]
      %v185 = vld [vmem:[%s166 + $0x58] sm:$0xff]
      %v186 = vld [vmem:[%s166 + $0x60] sm:$0xff]
      %v187 = vld [vmem:[%s166 + $0x68] sm:$0xff]
      %v188 = vld [vmem:[%s166 + $0x70] sm:$0xff]
      %v189 = vld [vmem:[%s166 + $0x78] sm:$0xff]
      %v190 = vld [vmem:[%s166 + $0x80] sm:$0xff]
      %v191 = vld [vmem:[%s166 + $0x88] sm:$0xff]
      %v192 = vld [vmem:[%s166 + $0x90] sm:$0xff]
      %v193 = vld [vmem:[%s166 + $0x98] sm:$0xff]
      %v194 = vld [vmem:[%s166 + $0xa0] sm:$0xff]
      %v195 = vld [vmem:[%s166 + $0xa8] sm:$0xff]
      %v196 = vld [vmem:[%s166 + $0xb0] sm:$0xff]
      %v197 = vld [vmem:[%s166 + $0xb8] sm:$0xff]
      %v198 = vld [vmem:[%s166 + $0xc0] sm:$0xff]
      %v199 = vld [vmem:[%s166 + $0xc8] sm:$0xff]
      %v200 = vld [vmem:[%s166 + $0xd0] sm:$0xff]
      %v201 = vld [vmem:[%s166 + $0xd8] sm:$0xff]
      %v202 = vld [vmem:[%s166 + $0xe0] sm:$0xff]
      %v203 = vld [vmem:[%s166 + $0xe8] sm:$0xff]
      %v204 = vld [vmem:[%s166 + $0xf0] sm:$0xff]
      %v205 = vld [vmem:[%s166 + $0xf8] sm:$0xff]
      %206 = vadd.xlane.f32.xlu0 %v174
      %v207 = vpop.xlane.xlu0 %206
      %208 = vadd.xlane.f32.xlu0 %v175
      %v209 = vpop.xlane.xlu0 %208
      %210 = vadd.xlane.f32.xlu0 %v176
      %v211 = vpop.xlane.xlu0 %210
      %212 = vadd.xlane.f32.xlu0 %v177
      %v213 = vpop.xlane.xlu0 %212
      %214 = vadd.xlane.f32.xlu0 %v178
      %v215 = vpop.xlane.xlu0 %214
      %216 = vadd.xlane.f32.xlu0 %v179
      %v217 = vpop.xlane.xlu0 %216
      %218 = vadd.xlane.f32.xlu0 %v180
      %v219 = vpop.xlane.xlu0 %218
      %220 = vadd.xlane.f32.xlu0 %v181
      %v221 = vpop.xlane.xlu0 %220
      %222 = vadd.xlane.f32.xlu0 %v182
      %v223 = vpop.xlane.xlu0 %222
      %224 = vadd.xlane.f32.xlu0 %v183
      %v225 = vpop.xlane.xlu0 %224
      %226 = vadd.xlane.f32.xlu0 %v184
      %v227 = vpop.xlane.xlu0 %226
      %228 = vadd.xlane.f32.xlu0 %v185
      %v229 = vpop.xlane.xlu0 %228
      %230 = vadd.xlane.f32.xlu0 %v186
      %v231 = vpop.xlane.xlu0 %230
      %232 = vadd.xlane.f32.xlu0 %v187
      %v233 = vpop.xlane.xlu0 %232
      %234 = vadd.xlane.f32.xlu0 %v188
      %v235 = vpop.xlane.xlu0 %234
      %236 = vadd.xlane.f32.xlu0 %v189
      %v237 = vpop.xlane.xlu0 %236
      %238 = vadd.xlane.f32.xlu0 %v190
      %v239 = vpop.xlane.xlu0 %238
      %240 = vadd.xlane.f32.xlu0 %v191
      %v241 = vpop.xlane.xlu0 %240
      %242 = vadd.xlane.f32.xlu0 %v192
      %v243 = vpop.xlane.xlu0 %242
      %244 = vadd.xlane.f32.xlu0 %v193
      %v245 = vpop.xlane.xlu0 %244
      %246 = vadd.xlane.f32.xlu0 %v194
      %v247 = vpop.xlane.xlu0 %246
      %248 = vadd.xlane.f32.xlu0 %v195
      %v249 = vpop.xlane.xlu0 %248
      %250 = vadd.xlane.f32.xlu0 %v196
      %v251 = vpop.xlane.xlu0 %250
      %252 = vadd.xlane.f32.xlu0 %v197
      %v253 = vpop.xlane.xlu0 %252
      %254 = vadd.xlane.f32.xlu0 %v198
      %v255 = vpop.xlane.xlu0 %254
      %256 = vadd.xlane.f32.xlu0 %v199
      %v257 = vpop.xlane.xlu0 %256
      %258 = vadd.xlane.f32.xlu0 %v200
      %v259 = vpop.xlane.xlu0 %258
      %260 = vadd.xlane.f32.xlu0 %v201
      %v261 = vpop.xlane.xlu0 %260
      %262 = vadd.xlane.f32.xlu0 %v202
      %v263 = vpop.xlane.xlu0 %262
      %264 = vadd.xlane.f32.xlu0 %v203
      %v265 = vpop.xlane.xlu0 %264
      %266 = vadd.xlane.f32.xlu0 %v204
      %v267 = vpop.xlane.xlu0 %266
      %268 = vadd.xlane.f32.xlu0 %v205
      %v269 = vpop.xlane.xlu0 %268
      %v270 = vrcp.pop 128.0
      %v271 = vmul.f32 128.0, %v270
      %v272 = vsub.f32 1.0, %v271
      %v273 = vmul.f32 %v270, %v272
      %v274 = vadd.f32 %v270, %v273
      %vm275 = vweird.f32 %v270
      %v276 = vsel %vm275, %v270, %v274
      %v277 = vmul.f32 %v207, %v276
      %v278 = vmul.f32 %v209, %v276
      %v279 = vmul.f32 %v211, %v276
      %v280 = vmul.f32 %v213, %v276
      %v281 = vmul.f32 %v215, %v276
      %v282 = vmul.f32 %v217, %v276
      %v283 = vmul.f32 %v219, %v276
      %v284 = vmul.f32 %v221, %v276
      %v285 = vmul.f32 %v223, %v276
      %v286 = vmul.f32 %v225, %v276
      %v287 = vmul.f32 %v227, %v276
      %v288 = vmul.f32 %v229, %v276
      %v289 = vmul.f32 %v231, %v276
      %v290 = vmul.f32 %v233, %v276
      %v291 = vmul.f32 %v235, %v276
      %v292 = vmul.f32 %v237, %v276
      %v293 = vmul.f32 %v239, %v276
      %v294 = vmul.f32 %v241, %v276
      %v295 = vmul.f32 %v243, %v276
      %v296 = vmul.f32 %v245, %v276
      %v297 = vmul.f32 %v247, %v276
      %v298 = vmul.f32 %v249, %v276
      %v299 = vmul.f32 %v251, %v276
      %v300 = vmul.f32 %v253, %v276
      %v301 = vmul.f32 %v255, %v276
      %v302 = vmul.f32 %v257, %v276
      %v303 = vmul.f32 %v259, %v276
      %v304 = vmul.f32 %v261, %v276
      %v305 = vmul.f32 %v263, %v276
      %v306 = vmul.f32 %v265, %v276
      %v307 = vmul.f32 %v267, %v276
      %v308 = vmul.f32 %v269, %v276
      %v309 = vsub.f32 %v174, %v277
      %v310 = vsub.f32 %v175, %v278
      %v311 = vsub.f32 %v176, %v279
      %v312 = vsub.f32 %v177, %v280
      %v313 = vsub.f32 %v178, %v281
      %v314 = vsub.f32 %v179, %v282
      %v315 = vsub.f32 %v180, %v283
      %v316 = vsub.f32 %v181, %v284
      %v317 = vsub.f32 %v182, %v285
      %v318 = vsub.f32 %v183, %v286
      %v319 = vsub.f32 %v184, %v287
      %v320 = vsub.f32 %v185, %v288
      %v321 = vsub.f32 %v186, %v289
      %v322 = vsub.f32 %v187, %v290
      %v323 = vsub.f32 %v188, %v291
      %v324 = vsub.f32 %v189, %v292
      %v325 = vsub.f32 %v190, %v293
      %v326 = vsub.f32 %v191, %v294
      %v327 = vsub.f32 %v192, %v295
      %v328 = vsub.f32 %v193, %v296
      %v329 = vsub.f32 %v194, %v297
      %v330 = vsub.f32 %v195, %v298
      %v331 = vsub.f32 %v196, %v299
      %v332 = vsub.f32 %v197, %v300
      %v333 = vsub.f32 %v198, %v301
      %v334 = vsub.f32 %v199, %v302
      %v335 = vsub.f32 %v200, %v303
      %v336 = vsub.f32 %v201, %v304
      %v337 = vsub.f32 %v202, %v305
      %v338 = vsub.f32 %v203, %v306
      %v339 = vsub.f32 %v204, %v307
      %v340 = vsub.f32 %v205, %v308
      %v341 = vmul.f32 %v309, %v309
      %v342 = vmul.f32 %v310, %v310
      %v343 = vmul.f32 %v311, %v311
      %v344 = vmul.f32 %v312, %v312
      %v345 = vmul.f32 %v313, %v313
      %v346 = vmul.f32 %v314, %v314
      %v347 = vmul.f32 %v315, %v315
      %v348 = vmul.f32 %v316, %v316
      %v349 = vmul.f32 %v317, %v317
      %v350 = vmul.f32 %v318, %v318
      %v351 = vmul.f32 %v319, %v319
      %v352 = vmul.f32 %v320, %v320
      %v353 = vmul.f32 %v321, %v321
      %v354 = vmul.f32 %v322, %v322
      %v355 = vmul.f32 %v323, %v323
      %v356 = vmul.f32 %v324, %v324
      %v357 = vmul.f32 %v325, %v325
      %v358 = vmul.f32 %v326, %v326
      %v359 = vmul.f32 %v327, %v327
      %v360 = vmul.f32 %v328, %v328
      %v361 = vmul.f32 %v329, %v329
      %v362 = vmul.f32 %v330, %v330
      %v363 = vmul.f32 %v331, %v331
      %v364 = vmul.f32 %v332, %v332
      %v365 = vmul.f32 %v333, %v333
      %v366 = vmul.f32 %v334, %v334
      %v367 = vmul.f32 %v335, %v335
      %v368 = vmul.f32 %v336, %v336
      %v369 = vmul.f32 %v337, %v337
      %v370 = vmul.f32 %v338, %v338
      %v371 = vmul.f32 %v339, %v339
      %v372 = vmul.f32 %v340, %v340
      %373 = vadd.xlane.f32.xlu0 %v341
      %v374 = vpop.xlane.xlu0 %373
      %375 = vadd.xlane.f32.xlu0 %v342
      %v376 = vpop.xlane.xlu0 %375
      %377 = vadd.xlane.f32.xlu0 %v343
      %v378 = vpop.xlane.xlu0 %377
      %379 = vadd.xlane.f32.xlu0 %v344
      %v380 = vpop.xlane.xlu0 %379
      %381 = vadd.xlane.f32.xlu0 %v345
      %v382 = vpop.xlane.xlu0 %381
      %383 = vadd.xlane.f32.xlu0 %v346
      %v384 = vpop.xlane.xlu0 %383
      %385 = vadd.xlane.f32.xlu0 %v347
      %v386 = vpop.xlane.xlu0 %385
      %387 = vadd.xlane.f32.xlu0 %v348
      %v388 = vpop.xlane.xlu0 %387
      %389 = vadd.xlane.f32.xlu0 %v349
      %v390 = vpop.xlane.xlu0 %389
      %391 = vadd.xlane.f32.xlu0 %v350
      %v392 = vpop.xlane.xlu0 %391
      %393 = vadd.xlane.f32.xlu0 %v351
      %v394 = vpop.xlane.xlu0 %393
      %395 = vadd.xlane.f32.xlu0 %v352
      %v396 = vpop.xlane.xlu0 %395
      %397 = vadd.xlane.f32.xlu0 %v353
      %v398 = vpop.xlane.xlu0 %397
      %399 = vadd.xlane.f32.xlu0 %v354
      %v400 = vpop.xlane.xlu0 %399
      %401 = vadd.xlane.f32.xlu0 %v355
      %v402 = vpop.xlane.xlu0 %401
      %403 = vadd.xlane.f32.xlu0 %v356
      %v404 = vpop.xlane.xlu0 %403
      %405 = vadd.xlane.f32.xlu0 %v357
      %v406 = vpop.xlane.xlu0 %405
      %407 = vadd.xlane.f32.xlu0 %v358
      %v408 = vpop.xlane.xlu0 %407
      %409 = vadd.xlane.f32.xlu0 %v359
      %v410 = vpop.xlane.xlu0 %409
      %411 = vadd.xlane.f32.xlu0 %v360
      %v412 = vpop.xlane.xlu0 %411
      %413 = vadd.xlane.f32.xlu0 %v361
      %v414 = vpop.xlane.xlu0 %413
      %415 = vadd.xlane.f32.xlu0 %v362
      %v416 = vpop.xlane.xlu0 %415
      %417 = vadd.xlane.f32.xlu0 %v363
      %v418 = vpop.xlane.xlu0 %417
      %419 = vadd.xlane.f32.xlu0 %v364
      %v420 = vpop.xlane.xlu0 %419
      %421 = vadd.xlane.f32.xlu0 %v365
      %v422 = vpop.xlane.xlu0 %421
      %423 = vadd.xlane.f32.xlu0 %v366
      %v424 = vpop.xlane.xlu0 %423
      %425 = vadd.xlane.f32.xlu0 %v367
      %v426 = vpop.xlane.xlu0 %425
      %427 = vadd.xlane.f32.xlu0 %v368
      %v428 = vpop.xlane.xlu0 %427
      %429 = vadd.xlane.f32.xlu0 %v369
      %v430 = vpop.xlane.xlu0 %429
      %431 = vadd.xlane.f32.xlu0 %v370
      %v432 = vpop.xlane.xlu0 %431
      %433 = vadd.xlane.f32.xlu0 %v371
      %v434 = vpop.xlane.xlu0 %433
      %435 = vadd.xlane.f32.xlu0 %v372
      %v436 = vpop.xlane.xlu0 %435
      %v437 = vmul.f32 %v374, %v276
      %v438 = vmul.f32 %v376, %v276
      %v439 = vmul.f32 %v378, %v276
      %v440 = vmul.f32 %v380, %v276
      %v441 = vmul.f32 %v382, %v276
      %v442 = vmul.f32 %v384, %v276
      %v443 = vmul.f32 %v386, %v276
      %v444 = vmul.f32 %v388, %v276
      %v445 = vmul.f32 %v390, %v276
      %v446 = vmul.f32 %v392, %v276
      %v447 = vmul.f32 %v394, %v276
      %v448 = vmul.f32 %v396, %v276
      %v449 = vmul.f32 %v398, %v276
      %v450 = vmul.f32 %v400, %v276
      %v451 = vmul.f32 %v402, %v276
      %v452 = vmul.f32 %v404, %v276
      %v453 = vmul.f32 %v406, %v276
      %v454 = vmul.f32 %v408, %v276
      %v455 = vmul.f32 %v410, %v276
      %v456 = vmul.f32 %v412, %v276
      %v457 = vmul.f32 %v414, %v276
      %v458 = vmul.f32 %v416, %v276
      %v459 = vmul.f32 %v418, %v276
      %v460 = vmul.f32 %v420, %v276
      %v461 = vmul.f32 %v422, %v276
      %v462 = vmul.f32 %v424, %v276
      %v463 = vmul.f32 %v426, %v276
      %v464 = vmul.f32 %v428, %v276
      %v465 = vmul.f32 %v430, %v276
      %v466 = vmul.f32 %v432, %v276
      %v467 = vmul.f32 %v434, %v276
      %v468 = vmul.f32 %v436, %v276
      %v469 = vadd.f32 %v437, 1e-05
      %v470 = vadd.f32 %v438, 1e-05
      %v471 = vadd.f32 %v439, 1e-05
      %v472 = vadd.f32 %v440, 1e-05
      %v473 = vadd.f32 %v441, 1e-05
      %v474 = vadd.f32 %v442, 1e-05
      %v475 = vadd.f32 %v443, 1e-05
      %v476 = vadd.f32 %v444, 1e-05
      %v477 = vadd.f32 %v445, 1e-05
      %v478 = vadd.f32 %v446, 1e-05
      %v479 = vadd.f32 %v447, 1e-05
      %v480 = vadd.f32 %v448, 1e-05
      %v481 = vadd.f32 %v449, 1e-05
      %v482 = vadd.f32 %v450, 1e-05
      %v483 = vadd.f32 %v451, 1e-05
      %v484 = vadd.f32 %v452, 1e-05
      %v485 = vadd.f32 %v453, 1e-05
      %v486 = vadd.f32 %v454, 1e-05
      %v487 = vadd.f32 %v455, 1e-05
      %v488 = vadd.f32 %v456, 1e-05
      %v489 = vadd.f32 %v457, 1e-05
      %v490 = vadd.f32 %v458, 1e-05
      %v491 = vadd.f32 %v459, 1e-05
      %v492 = vadd.f32 %v460, 1e-05
      %v493 = vadd.f32 %v461, 1e-05
      %v494 = vadd.f32 %v462, 1e-05
      %v495 = vadd.f32 %v463, 1e-05
      %v496 = vadd.f32 %v464, 1e-05
      %v497 = vadd.f32 %v465, 1e-05
      %v498 = vadd.f32 %v466, 1e-05
      %v499 = vadd.f32 %v467, 1e-05
      %v500 = vadd.f32 %v468, 1e-05
      %v501 = vrsqrt.pop %v469
      %v502 = vmul.f32 %v501, %v469
      %v503 = vmul.f32 %v502, %v501
      %v504 = vmul.f32 0.5, %v503
      %v505 = vsub.f32 1.5, %v504
      %v506 = vmul.f32 %v501, %v505
      %vm507 = vweird.f32 %v469
      %vm508 = vweird.f32 %v501
      %vm509 = vmor %vm507, %vm508
      %v510 = vsel %vm509, %v501, %v506
      %v511 = vrsqrt.pop %v470
      %v512 = vmul.f32 %v511, %v470
      %v513 = vmul.f32 %v512, %v511
      %v514 = vmul.f32 0.5, %v513
      %v515 = vsub.f32 1.5, %v514
      %v516 = vmul.f32 %v511, %v515
      %vm517 = vweird.f32 %v470
      %vm518 = vweird.f32 %v511
      %vm519 = vmor %vm517, %vm518
      %v520 = vsel %vm519, %v511, %v516
      %v521 = vrsqrt.pop %v471
      %v522 = vmul.f32 %v521, %v471
      %v523 = vmul.f32 %v522, %v521
      %v524 = vmul.f32 0.5, %v523
      %v525 = vsub.f32 1.5, %v524
      %v526 = vmul.f32 %v521, %v525
      %vm527 = vweird.f32 %v471
      %vm528 = vweird.f32 %v521
      %vm529 = vmor %vm527, %vm528
      %v530 = vsel %vm529, %v521, %v526
      %v531 = vrsqrt.pop %v472
      %v532 = vmul.f32 %v531, %v472
      %v533 = vmul.f32 %v532, %v531
      %v534 = vmul.f32 0.5, %v533
      %v535 = vsub.f32 1.5, %v534
      %v536 = vmul.f32 %v531, %v535
      %vm537 = vweird.f32 %v472
      %vm538 = vweird.f32 %v531
      %vm539 = vmor %vm537, %vm538
      %v540 = vsel %vm539, %v531, %v536
      %v541 = vrsqrt.pop %v473
      %v542 = vmul.f32 %v541, %v473
      %v543 = vmul.f32 %v542, %v541
      %v544 = vmul.f32 0.5, %v543
      %v545 = vsub.f32 1.5, %v544
      %v546 = vmul.f32 %v541, %v545
      %vm547 = vweird.f32 %v473
      %vm548 = vweird.f32 %v541
      %vm549 = vmor %vm547, %vm548
      %v550 = vsel %vm549, %v541, %v546
      %v551 = vrsqrt.pop %v474
      %v552 = vmul.f32 %v551, %v474
      %v553 = vmul.f32 %v552, %v551
      %v554 = vmul.f32 0.5, %v553
      %v555 = vsub.f32 1.5, %v554
      %v556 = vmul.f32 %v551, %v555
      %vm557 = vweird.f32 %v474
      %vm558 = vweird.f32 %v551
      %vm559 = vmor %vm557, %vm558
      %v560 = vsel %vm559, %v551, %v556
      %v561 = vrsqrt.pop %v475
      %v562 = vmul.f32 %v561, %v475
      %v563 = vmul.f32 %v562, %v561
      %v564 = vmul.f32 0.5, %v563
      %v565 = vsub.f32 1.5, %v564
      %v566 = vmul.f32 %v561, %v565
      %vm567 = vweird.f32 %v475
      %vm568 = vweird.f32 %v561
      %vm569 = vmor %vm567, %vm568
      %v570 = vsel %vm569, %v561, %v566
      %v571 = vrsqrt.pop %v476
      %v572 = vmul.f32 %v571, %v476
      %v573 = vmul.f32 %v572, %v571
      %v574 = vmul.f32 0.5, %v573
      %v575 = vsub.f32 1.5, %v574
      %v576 = vmul.f32 %v571, %v575
      %vm577 = vweird.f32 %v476
      %vm578 = vweird.f32 %v571
      %vm579 = vmor %vm577, %vm578
      %v580 = vsel %vm579, %v571, %v576
      %v581 = vrsqrt.pop %v477
      %v582 = vmul.f32 %v581, %v477
      %v583 = vmul.f32 %v582, %v581
      %v584 = vmul.f32 0.5, %v583
      %v585 = vsub.f32 1.5, %v584
      %v586 = vmul.f32 %v581, %v585
      %vm587 = vweird.f32 %v477
      %vm588 = vweird.f32 %v581
      %vm589 = vmor %vm587, %vm588
      %v590 = vsel %vm589, %v581, %v586
      %v591 = vrsqrt.pop %v478
      %v592 = vmul.f32 %v591, %v478
      %v593 = vmul.f32 %v592, %v591
      %v594 = vmul.f32 0.5, %v593
      %v595 = vsub.f32 1.5, %v594
      %v596 = vmul.f32 %v591, %v595
      %vm597 = vweird.f32 %v478
      %vm598 = vweird.f32 %v591
      %vm599 = vmor %vm597, %vm598
      %v600 = vsel %vm599, %v591, %v596
      %v601 = vrsqrt.pop %v479
      %v602 = vmul.f32 %v601, %v479
      %v603 = vmul.f32 %v602, %v601
      %v604 = vmul.f32 0.5, %v603
      %v605 = vsub.f32 1.5, %v604
      %v606 = vmul.f32 %v601, %v605
      %vm607 = vweird.f32 %v479
      %vm608 = vweird.f32 %v601
      %vm609 = vmor %vm607, %vm608
      %v610 = vsel %vm609, %v601, %v606
      %v611 = vrsqrt.pop %v480
      %v612 = vmul.f32 %v611, %v480
      %v613 = vmul.f32 %v612, %v611
      %v614 = vmul.f32 0.5, %v613
      %v615 = vsub.f32 1.5, %v614
      %v616 = vmul.f32 %v611, %v615
      %vm617 = vweird.f32 %v480
      %vm618 = vweird.f32 %v611
      %vm619 = vmor %vm617, %vm618
      %v620 = vsel %vm619, %v611, %v616
      %v621 = vrsqrt.pop %v481
      %v622 = vmul.f32 %v621, %v481
      %v623 = vmul.f32 %v622, %v621
      %v624 = vmul.f32 0.5, %v623
      %v625 = vsub.f32 1.5, %v624
      %v626 = vmul.f32 %v621, %v625
      %vm627 = vweird.f32 %v481
      %vm628 = vweird.f32 %v621
      %vm629 = vmor %vm627, %vm628
      %v630 = vsel %vm629, %v621, %v626
      %v631 = vrsqrt.pop %v482
      %v632 = vmul.f32 %v631, %v482
      %v633 = vmul.f32 %v632, %v631
      %v634 = vmul.f32 0.5, %v633
      %v635 = vsub.f32 1.5, %v634
      %v636 = vmul.f32 %v631, %v635
      %vm637 = vweird.f32 %v482
      %vm638 = vweird.f32 %v631
      %vm639 = vmor %vm637, %vm638
      %v640 = vsel %vm639, %v631, %v636
      %v641 = vrsqrt.pop %v483
      %v642 = vmul.f32 %v641, %v483
      %v643 = vmul.f32 %v642, %v641
      %v644 = vmul.f32 0.5, %v643
      %v645 = vsub.f32 1.5, %v644
      %v646 = vmul.f32 %v641, %v645
      %vm647 = vweird.f32 %v483
      %vm648 = vweird.f32 %v641
      %vm649 = vmor %vm647, %vm648
      %v650 = vsel %vm649, %v641, %v646
      %v651 = vrsqrt.pop %v484
      %v652 = vmul.f32 %v651, %v484
      %v653 = vmul.f32 %v652, %v651
      %v654 = vmul.f32 0.5, %v653
      %v655 = vsub.f32 1.5, %v654
      %v656 = vmul.f32 %v651, %v655
      %vm657 = vweird.f32 %v484
      %vm658 = vweird.f32 %v651
      %vm659 = vmor %vm657, %vm658
      %v660 = vsel %vm659, %v651, %v656
      %v661 = vrsqrt.pop %v485
      %v662 = vmul.f32 %v661, %v485
      %v663 = vmul.f32 %v662, %v661
      %v664 = vmul.f32 0.5, %v663
      %v665 = vsub.f32 1.5, %v664
      %v666 = vmul.f32 %v661, %v665
      %vm667 = vweird.f32 %v485
      %vm668 = vweird.f32 %v661
      %vm669 = vmor %vm667, %vm668
      %v670 = vsel %vm669, %v661, %v666
      %v671 = vrsqrt.pop %v486
      %v672 = vmul.f32 %v671, %v486
      %v673 = vmul.f32 %v672, %v671
      %v674 = vmul.f32 0.5, %v673
      %v675 = vsub.f32 1.5, %v674
      %v676 = vmul.f32 %v671, %v675
      %vm677 = vweird.f32 %v486
      %vm678 = vweird.f32 %v671
      %vm679 = vmor %vm677, %vm678
      %v680 = vsel %vm679, %v671, %v676
      %v681 = vrsqrt.pop %v487
      %v682 = vmul.f32 %v681, %v487
      %v683 = vmul.f32 %v682, %v681
      %v684 = vmul.f32 0.5, %v683
      %v685 = vsub.f32 1.5, %v684
      %v686 = vmul.f32 %v681, %v685
      %vm687 = vweird.f32 %v487
      %vm688 = vweird.f32 %v681
      %vm689 = vmor %vm687, %vm688
      %v690 = vsel %vm689, %v681, %v686
      %v691 = vrsqrt.pop %v488
      %v692 = vmul.f32 %v691, %v488
      %v693 = vmul.f32 %v692, %v691
      %v694 = vmul.f32 0.5, %v693
      %v695 = vsub.f32 1.5, %v694
      %v696 = vmul.f32 %v691, %v695
      %vm697 = vweird.f32 %v488
      %vm698 = vweird.f32 %v691
      %vm699 = vmor %vm697, %vm698
      %v700 = vsel %vm699, %v691, %v696
      %v701 = vrsqrt.pop %v489
      %v702 = vmul.f32 %v701, %v489
      %v703 = vmul.f32 %v702, %v701
      %v704 = vmul.f32 0.5, %v703
      %v705 = vsub.f32 1.5, %v704
      %v706 = vmul.f32 %v701, %v705
      %vm707 = vweird.f32 %v489
      %vm708 = vweird.f32 %v701
      %vm709 = vmor %vm707, %vm708
      %v710 = vsel %vm709, %v701, %v706
      %v711 = vrsqrt.pop %v490
      %v712 = vmul.f32 %v711, %v490
      %v713 = vmul.f32 %v712, %v711
      %v714 = vmul.f32 0.5, %v713
      %v715 = vsub.f32 1.5, %v714
      %v716 = vmul.f32 %v711, %v715
      %vm717 = vweird.f32 %v490
      %vm718 = vweird.f32 %v711
      %vm719 = vmor %vm717, %vm718
      %v720 = vsel %vm719, %v711, %v716
      %v721 = vrsqrt.pop %v491
      %v722 = vmul.f32 %v721, %v491
      %v723 = vmul.f32 %v722, %v721
      %v724 = vmul.f32 0.5, %v723
      %v725 = vsub.f32 1.5, %v724
      %v726 = vmul.f32 %v721, %v725
      %vm727 = vweird.f32 %v491
      %vm728 = vweird.f32 %v721
      %vm729 = vmor %vm727, %vm728
      %v730 = vsel %vm729, %v721, %v726
      %v731 = vrsqrt.pop %v492
      %v732 = vmul.f32 %v731, %v492
      %v733 = vmul.f32 %v732, %v731
      %v734 = vmul.f32 0.5, %v733
      %v735 = vsub.f32 1.5, %v734
      %v736 = vmul.f32 %v731, %v735
      %vm737 = vweird.f32 %v492
      %vm738 = vweird.f32 %v731
      %vm739 = vmor %vm737, %vm738
      %v740 = vsel %vm739, %v731, %v736
      %v741 = vrsqrt.pop %v493
      %v742 = vmul.f32 %v741, %v493
      %v743 = vmul.f32 %v742, %v741
      %v744 = vmul.f32 0.5, %v743
      %v745 = vsub.f32 1.5, %v744
      %v746 = vmul.f32 %v741, %v745
      %vm747 = vweird.f32 %v493
      %vm748 = vweird.f32 %v741
      %vm749 = vmor %vm747, %vm748
      %v750 = vsel %vm749, %v741, %v746
      %v751 = vrsqrt.pop %v494
      %v752 = vmul.f32 %v751, %v494
      %v753 = vmul.f32 %v752, %v751
      %v754 = vmul.f32 0.5, %v753
      %v755 = vsub.f32 1.5, %v754
      %v756 = vmul.f32 %v751, %v755
      %vm757 = vweird.f32 %v494
      %vm758 = vweird.f32 %v751
      %vm759 = vmor %vm757, %vm758
      %v760 = vsel %vm759, %v751, %v756
      %v761 = vrsqrt.pop %v495
      %v762 = vmul.f32 %v761, %v495
      %v763 = vmul.f32 %v762, %v761
      %v764 = vmul.f32 0.5, %v763
      %v765 = vsub.f32 1.5, %v764
      %v766 = vmul.f32 %v761, %v765
      %vm767 = vweird.f32 %v495
      %vm768 = vweird.f32 %v761
      %vm769 = vmor %vm767, %vm768
      %v770 = vsel %vm769, %v761, %v766
      %v771 = vrsqrt.pop %v496
      %v772 = vmul.f32 %v771, %v496
      %v773 = vmul.f32 %v772, %v771
      %v774 = vmul.f32 0.5, %v773
      %v775 = vsub.f32 1.5, %v774
      %v776 = vmul.f32 %v771, %v775
      %vm777 = vweird.f32 %v496
      %vm778 = vweird.f32 %v771
      %vm779 = vmor %vm777, %vm778
      %v780 = vsel %vm779, %v771, %v776
      %v781 = vrsqrt.pop %v497
      %v782 = vmul.f32 %v781, %v497
      %v783 = vmul.f32 %v782, %v781
      %v784 = vmul.f32 0.5, %v783
      %v785 = vsub.f32 1.5, %v784
      %v786 = vmul.f32 %v781, %v785
      %vm787 = vweird.f32 %v497
      %vm788 = vweird.f32 %v781
      %vm789 = vmor %vm787, %vm788
      %v790 = vsel %vm789, %v781, %v786
      %v791 = vrsqrt.pop %v498
      %v792 = vmul.f32 %v791, %v498
      %v793 = vmul.f32 %v792, %v791
      %v794 = vmul.f32 0.5, %v793
      %v795 = vsub.f32 1.5, %v794
      %v796 = vmul.f32 %v791, %v795
      %vm797 = vweird.f32 %v498
      %vm798 = vweird.f32 %v791
      %vm799 = vmor %vm797, %vm798
      %v800 = vsel %vm799, %v791, %v796
      %v801 = vrsqrt.pop %v499
      %v802 = vmul.f32 %v801, %v499
      %v803 = vmul.f32 %v802, %v801
      %v804 = vmul.f32 0.5, %v803
      %v805 = vsub.f32 1.5, %v804
      %v806 = vmul.f32 %v801, %v805
      %vm807 = vweird.f32 %v499
      %vm808 = vweird.f32 %v801
      %vm809 = vmor %vm807, %vm808
      %v810 = vsel %vm809, %v801, %v806
      %v811 = vrsqrt.pop %v500
      %v812 = vmul.f32 %v811, %v500
      %v813 = vmul.f32 %v812, %v811
      %v814 = vmul.f32 0.5, %v813
      %v815 = vsub.f32 1.5, %v814
      %v816 = vmul.f32 %v811, %v815
      %vm817 = vweird.f32 %v500
      %vm818 = vweird.f32 %v811
      %vm819 = vmor %vm817, %vm818
      %v820 = vsel %vm819, %v811, %v816
      %v821 = vmul.f32 %v309, %v510
      %v822 = vmul.f32 %v310, %v520
      %v823 = vmul.f32 %v311, %v530
      %v824 = vmul.f32 %v312, %v540
      %v825 = vmul.f32 %v313, %v550
      %v826 = vmul.f32 %v314, %v560
      %v827 = vmul.f32 %v315, %v570
      %v828 = vmul.f32 %v316, %v580
      %v829 = vmul.f32 %v317, %v590
      %v830 = vmul.f32 %v318, %v600
      %v831 = vmul.f32 %v319, %v610
      %v832 = vmul.f32 %v320, %v620
      %v833 = vmul.f32 %v321, %v630
      %v834 = vmul.f32 %v322, %v640
      %v835 = vmul.f32 %v323, %v650
      %v836 = vmul.f32 %v324, %v660
      %v837 = vmul.f32 %v325, %v670
      %v838 = vmul.f32 %v326, %v680
      %v839 = vmul.f32 %v327, %v690
      %v840 = vmul.f32 %v328, %v700
      %v841 = vmul.f32 %v329, %v710
      %v842 = vmul.f32 %v330, %v720
      %v843 = vmul.f32 %v331, %v730
      %v844 = vmul.f32 %v332, %v740
      %v845 = vmul.f32 %v333, %v750
      %v846 = vmul.f32 %v334, %v760
      %v847 = vmul.f32 %v335, %v770
      %v848 = vmul.f32 %v336, %v780
      %v849 = vmul.f32 %v337, %v790
      %v850 = vmul.f32 %v338, %v800
      %v851 = vmul.f32 %v339, %v810
      %v852 = vmul.f32 %v340, %v820
      %v853 = vld [vmem:[%s1] sm:$0x1]
      %v855 = vperm.slane %v853, 0
      %v857 = vmul.f32 %v821, %v855
      %v858 = vmul.f32 %v822, %v855
      %v859 = vmul.f32 %v823, %v855
      %v860 = vmul.f32 %v824, %v855
      %v861 = vmul.f32 %v825, %v855
      %v862 = vmul.f32 %v826, %v855
      %v863 = vmul.f32 %v827, %v855
      %v864 = vmul.f32 %v828, %v855
      %v865 = vmul.f32 %v829, %v855
      %v866 = vmul.f32 %v830, %v855
      %v867 = vmul.f32 %v831, %v855
      %v868 = vmul.f32 %v832, %v855
      %v869 = vmul.f32 %v833, %v855
      %v870 = vmul.f32 %v834, %v855
      %v871 = vmul.f32 %v835, %v855
      %v872 = vmul.f32 %v836, %v855
      %v873 = vmul.f32 %v837, %v855
      %v874 = vmul.f32 %v838, %v855
      %v875 = vmul.f32 %v839, %v855
      %v876 = vmul.f32 %v840, %v855
      %v877 = vmul.f32 %v841, %v855
      %v878 = vmul.f32 %v842, %v855
      %v879 = vmul.f32 %v843, %v855
      %v880 = vmul.f32 %v844, %v855
      %v881 = vmul.f32 %v845, %v855
      %v882 = vmul.f32 %v846, %v855
      %v883 = vmul.f32 %v847, %v855
      %v884 = vmul.f32 %v848, %v855
      %v885 = vmul.f32 %v849, %v855
      %v886 = vmul.f32 %v850, %v855
      %v887 = vmul.f32 %v851, %v855
      %v888 = vmul.f32 %v852, %v855
      %v889 = vld [vmem:[%s2] sm:$0x1]
      %v891 = vperm.slane %v889, 0
      %v893 = vadd.f32 %v857, %v891
      %v894 = vadd.f32 %v858, %v891
      %v895 = vadd.f32 %v859, %v891
      %v896 = vadd.f32 %v860, %v891
      %v897 = vadd.f32 %v861, %v891
      %v898 = vadd.f32 %v862, %v891
      %v899 = vadd.f32 %v863, %v891
      %v900 = vadd.f32 %v864, %v891
      %v901 = vadd.f32 %v865, %v891
      %v902 = vadd.f32 %v866, %v891
      %v903 = vadd.f32 %v867, %v891
      %v904 = vadd.f32 %v868, %v891
      %v905 = vadd.f32 %v869, %v891
      %v906 = vadd.f32 %v870, %v891
      %v907 = vadd.f32 %v871, %v891
      %v908 = vadd.f32 %v872, %v891
      %v909 = vadd.f32 %v873, %v891
      %v910 = vadd.f32 %v874, %v891
      %v911 = vadd.f32 %v875, %v891
      %v912 = vadd.f32 %v876, %v891
      %v913 = vadd.f32 %v877, %v891
      %v914 = vadd.f32 %v878, %v891
      %v915 = vadd.f32 %v879, %v891
      %v916 = vadd.f32 %v880, %v891
      %v917 = vadd.f32 %v881, %v891
      %v918 = vadd.f32 %v882, %v891
      %v919 = vadd.f32 %v883, %v891
      %v920 = vadd.f32 %v884, %v891
      %v921 = vadd.f32 %v885, %v891
      %v922 = vadd.f32 %v886, %v891
      %v923 = vadd.f32 %v887, %v891
      %v924 = vadd.f32 %v888, %v891
      %925 = vst [vmem:[%s172] sm:$0xff] %v893
      %926 = vst [vmem:[%s172 + $0x8] sm:$0xff] %v894
      %927 = vst [vmem:[%s172 + $0x10] sm:$0xff] %v895
      %928 = vst [vmem:[%s172 + $0x18] sm:$0xff] %v896
      %929 = vst [vmem:[%s172 + $0x20] sm:$0xff] %v897
      %930 = vst [vmem:[%s172 + $0x28] sm:$0xff] %v898
      %931 = vst [vmem:[%s172 + $0x30] sm:$0xff] %v899
      %932 = vst [vmem:[%s172 + $0x38] sm:$0xff] %v900
      %933 = vst [vmem:[%s172 + $0x40] sm:$0xff] %v901
      %934 = vst [vmem:[%s172 + $0x48] sm:$0xff] %v902
      %935 = vst [vmem:[%s172 + $0x50] sm:$0xff] %v903
      %936 = vst [vmem:[%s172 + $0x58] sm:$0xff] %v904
      %937 = vst [vmem:[%s172 + $0x60] sm:$0xff] %v905
      %938 = vst [vmem:[%s172 + $0x68] sm:$0xff] %v906
      %939 = vst [vmem:[%s172 + $0x70] sm:$0xff] %v907
      %940 = vst [vmem:[%s172 + $0x78] sm:$0xff] %v908
      %941 = vst [vmem:[%s172 + $0x80] sm:$0xff] %v909
      %942 = vst [vmem:[%s172 + $0x88] sm:$0xff] %v910
      %943 = vst [vmem:[%s172 + $0x90] sm:$0xff] %v911
      %944 = vst [vmem:[%s172 + $0x98] sm:$0xff] %v912
      %945 = vst [vmem:[%s172 + $0xa0] sm:$0xff] %v913
      %946 = vst [vmem:[%s172 + $0xa8] sm:$0xff] %v914
      %947 = vst [vmem:[%s172 + $0xb0] sm:$0xff] %v915
      %948 = vst [vmem:[%s172 + $0xb8] sm:$0xff] %v916
      %949 = vst [vmem:[%s172 + $0xc0] sm:$0xff] %v917
      %950 = vst [vmem:[%s172 + $0xc8] sm:$0xff] %v918
      %951 = vst [vmem:[%s172 + $0xd0] sm:$0xff] %v919
      %952 = vst [vmem:[%s172 + $0xd8] sm:$0xff] %v920
      %953 = vst [vmem:[%s172 + $0xe0] sm:$0xff] %v921
      %954 = vst [vmem:[%s172 + $0xe8] sm:$0xff] %v922
      %955 = vst [vmem:[%s172 + $0xf0] sm:$0xff] %v923
      %956 = vst [vmem:[%s172 + $0xf8] sm:$0xff] %v924
      %s957 = smul.u32 32, %s14
      %p958 = scmp.lt.s32.totalorder %s957, 63
      %s959 = scalar_select %p958, %s957, 63
      %s960 = smul.addr %s959, 8
      %s961 = scalar_lea.vmem %s3, %s960
      // Predicated region
      $region33: #{gpt_forward.22} parent=31 // pred_check
        %p962 = pneg %p100
      $region34: #{gpt_forward.22} parent=31 // pred_check_branch
        %964 = sbr.rel (%p962) target = $region36
      $region35: #{gpt_forward.22} parent=31 // pred_region
        %s965 = smul.u32 32, %s14
      $region36: #{gpt_forward.22} parent=31 // pred_fallthru
        _
    $region32: #{gpt_forward.22} parent=5 // pred_fallthru
      _
    %p966 = scmp.le.s32.totalorder 2, %s9
    // Predicated region
    $region37: #{gpt_forward.22} parent=5 // pred_check
      %p967 = pneg %p966
    $region38: #{gpt_forward.22} parent=5 // pred_check_branch
      %969 = sbr.rel (%p967) target = $region40
    $region39: #{gpt_forward.22} parent=5 // pred_region
      %s970 = ssub.s32 %s9, 2
      // Predicated region
      $region41: #{gpt_forward.22} parent=39 // pred_check
        %p971 = pneg %p106
      $region42: #{gpt_forward.22} parent=39 // pred_check_branch
        %973 = sbr.rel (%p971) target = $region44
      $region43: #{gpt_forward.22} parent=39 // pred_region
        %s974 = smul.u32 32, %s15
        %p975 = scmp.lt.s32.totalorder %s974, 63
        %s976 = scalar_select %p975, %s974, 63
        %s977 = smul.addr %s976, 8
        %s978 = scalar_lea.vmem %s3, %s977
      $region44: #{gpt_forward.22} parent=39 // pred_fallthru
        _
    $region40: #{gpt_forward.22} parent=5 // pred_fallthru
      _
  $region6: #{gpt_forward.22} parent=0 // loop_footer
    %s13 = sadd.s32 1, %s9
  $region7: #{gpt_forward.22} parent=0 // loop_footer_branch
    %8 = sbr.rel target = $region3
  $region8: #{gpt_forward.22} parent=0 // loop_exit
    _

</llo_original>
